<compile_context>
chip_gen: v7x
topology: tpu7x:2x2x1
jax: 0.10.0
libtpu: 0.0.40
codegen_flags: <defaults>
</compile_context>

<pallas_src>
import jax
import jax.numpy as jnp
from jax.experimental import pallas as pl
from jax.experimental.pallas import tpu as pltpu


def _h_swish(z):
    return z * jnp.clip(z + 3.0, 0.0, 6.0) * (1.0 / 6.0)


def _cbam_kernel(x_ref, w1t_ref, w2t_ref, wc1_ref, bc1_ref,
                 wch_ref, bch_ref, wcw_ref, bcw_ref, o_ref):
    # x_ref: (Nb, C, H, W) -- H on sublanes, W on lanes.
    x = x_ref[...].astype(jnp.float32)
    nb, c, h, w = x.shape
    inv_w = 1.0 / w
    inv_h = 1.0 / h

    # ---- pooled features (pure reductions; no one-hot matmuls) ----
    xh_raw = jnp.sum(x, axis=3) * inv_w            # (Nb, C, H)  mean over W
    xw_raw = jnp.sum(x, axis=2) * inv_h            # (Nb, C, W)  mean over H
    gavg = jnp.sum(xh_raw, axis=2) * inv_h         # (Nb, C)     global mean
    gmax = jnp.max(jnp.max(x, axis=3), axis=2)     # (Nb, C)     global max

    # ---- ChannelAttention MLP, fused over [avg; max] (one weight push per layer) ----
    stacked = jnp.concatenate([gavg, gmax], axis=0)                       # (2Nb, C)
    hmid = jnp.maximum(
        jnp.dot(stacked, w1t_ref[...], preferred_element_type=jnp.float32), 0.0)
    mlp_out = jnp.dot(hmid, w2t_ref[...], preferred_element_type=jnp.float32)  # (2Nb, C)
    ca = jax.nn.sigmoid(mlp_out[:nb] + mlp_out[nb:])                     # (Nb, C)

    # ---- CoordAtt on out = x * ca (pooling is linear -> scale pooled x by ca) ----
    xh = xh_raw * ca[:, :, None]                   # (Nb, C, H)  = pool_h(out)
    xw = xw_raw * ca[:, :, None]                   # (Nb, C, W)  = pool_w(out)
    y_cat = jnp.concatenate([xh, xw], axis=2)      # (Nb, C, H+W)

    wc1 = wc1_ref[...]                             # (mip, C)  (BN folded)
    bc1 = bc1_ref[...]                             # (mip, 1)
    wc1_b = jnp.broadcast_to(wc1[None], (nb,) + wc1.shape)
    y = jnp.einsum('nmc,ncl->nml', wc1_b, y_cat,
                   preferred_element_type=jnp.float32) + bc1[None]       # (Nb, mip, H+W)
    y = _h_swish(y)
    yh = y[:, :, :h]                               # (Nb, mip, H)
    yw = y[:, :, h:]                               # (Nb, mip, W)

    wch = wch_ref[...]                             # (C, mip)
    wcw = wcw_ref[...]                             # (C, mip)
    wch_b = jnp.broadcast_to(wch[None], (nb,) + wch.shape)
    wcw_b = jnp.broadcast_to(wcw[None], (nb,) + wcw.shape)
    ah = jax.nn.sigmoid(
        jnp.einsum('ncm,nml->ncl', wch_b, yh, preferred_element_type=jnp.float32)
        + bch_ref[...][None])                      # (Nb, C, H)
    aw = jax.nn.sigmoid(
        jnp.einsum('ncm,nml->ncl', wcw_b, yw, preferred_element_type=jnp.float32)
        + bcw_ref[...][None])                      # (Nb, C, W)

    # result = out * (out * a_h * a_w) = x^2 * ca^2 * a_h * a_w
    ahg = ah * (ca * ca)[:, :, None]               # fold channel gate^2 into (Nb, C, H)
    o = (x * x) * ahg[:, :, :, None] * aw[:, :, None, :]
    o_ref[...] = o.astype(o_ref.dtype)


def cbam(x_nchw, w1, w2, conv1_w, conv1_b,
         bn_gamma, bn_beta, bn_mean, bn_var,
         wch, bch, wcw, bcw, bn_eps=1e-5):
    """CBAM forward.  x_nchw: (N, C, H, W).
    w1: (C//ratio, C), w2: (C, C//ratio)   -- ChannelAttention MLP (bias-free 1x1 convs)
    conv1_w: (mip, C), conv1_b: (mip,)     -- CoordAtt conv1
    bn_*: (mip,)                           -- BatchNorm2d(mip) eval-mode params
    wch/wcw: (C, mip), bch/bcw: (C,)       -- CoordAtt conv_h / conv_w
    """
    N, C, H, W = x_nchw.shape
    f32 = jnp.float32

    # Fold eval-mode BatchNorm into conv1 (one-time, wrapper-side).
    bn_scale = bn_gamma / jnp.sqrt(bn_var + bn_eps)
    wc1 = (conv1_w * bn_scale[:, None]).astype(f32)                     # (mip, C)
    bc1 = ((conv1_b - bn_mean) * bn_scale + bn_beta).astype(f32)        # (mip,)
    mip = wc1.shape[0]

    # Small weights stay f32 (tiny); x stays in its input dtype for the DMA and is
    # upcast to f32 inside the kernel (no big matmuls on x remain, only reductions).
    w1t = jnp.asarray(w1, f32).T                 # (C, hid)
    w2t = jnp.asarray(w2, f32).T                 # (hid, C)
    wch_f = jnp.asarray(wch, f32)                # (C, mip)
    wcw_f = jnp.asarray(wcw, f32)                # (C, mip)
    bc1_2d = bc1.reshape(mip, 1)
    bch_2d = jnp.asarray(bch, f32).reshape(C, 1)
    bcw_2d = jnp.asarray(bcw, f32).reshape(C, 1)

    # --- pick Nb (batch elements per grid step) from the padded VMEM footprint ---
    itemsize = jnp.dtype(x_nchw.dtype).itemsize
    pad_h = -(-H // 8) * 8
    pad_w = -(-W // 128) * 128
    per_elem_in = C * pad_h * pad_w * itemsize   # one (C,H,W) slab in the pipeline buffers
    per_elem_f32 = C * pad_h * pad_w * 4         # in-kernel f32 temporaries
    budget = 16 * 1024 * 1024                    # x + out, double-buffered
    nb = max(1, min(N, budget // max(4 * per_elem_in, 1)))
    while N % nb != 0:                           # keep the grid exact (no ragged blocks)
        nb -= 1

    weight_bytes = sum(int(a.size) * 4 for a in
                       (w1t, w2t, wc1, bc1_2d, wch_f, bch_2d, wcw_f, bcw_2d))
    vmem_needed = 4 * nb * per_elem_in + 6 * nb * per_elem_f32 + 2 * weight_bytes + (4 << 20)
    try:
        cap = getattr(pltpu.get_tpu_info(), "vmem_capacity_bytes", 64 << 20)
        cap = min(max(int(cap) * 3 // 4, 32 << 20), 96 << 20)
    except Exception:
        cap = 48 << 20                           # safe on v7x's 64 MiB physical VMEM
    vmem_limit = int(min(max(vmem_needed, 32 << 20), cap))

    def rep(arr):  # replicated small 2-D operand (same block every step)
        return pl.BlockSpec(arr.shape, lambda n: (0, 0))

    # NOTE: when W < 128 the final store is a masked (sub-lane-width) vst; correct but
    # slower than a lane-dense layout — acceptable at the small deep-UNet stages.
    out = pl.pallas_call(
        _cbam_kernel,
        out_shape=jax.ShapeDtypeStruct((N, C, H, W), x_nchw.dtype),
        grid_spec=pltpu.PrefetchScalarGridSpec(
            num_scalar_prefetch=0,
            grid=(N // nb,),
            in_specs=[
                pl.BlockSpec((nb, C, H, W), lambda n: (n, 0, 0, 0)),   # x
                rep(w1t), rep(w2t),
                rep(wc1), rep(bc1_2d),
                rep(wch_f), rep(bch_2d),
                rep(wcw_f), rep(bcw_2d),
            ],
            out_specs=pl.BlockSpec((nb, C, H, W), lambda n: (n, 0, 0, 0)),
        ),
        compiler_params=pltpu.CompilerParams(
            dimension_semantics=("parallel",),
            vmem_limit_bytes=vmem_limit,
        ),
    )(x_nchw, w1t, w2t, wc1, bc1_2d, wch_f, bch_2d, wcw_f, bcw_2d)
    return out


def cbam_ref(x, w1, w2, conv1_w, conv1_b, bn_gamma, bn_beta, bn_mean, bn_var,
             wch, bch, wcw, bcw, bn_eps=1e-5):
    """Pure-JAX reference mirroring the PyTorch forward (BatchNorm in eval mode)."""
    N, C, H, W = x.shape

    # ChannelAttention
    gavg = jnp.mean(x, axis=(2, 3))                          # (N, C)
    gmax = jnp.max(x, axis=(2, 3))                           # (N, C)

    def mlp(v):
        h = jnp.maximum(v @ w1.T, 0.0)
        return h @ w2.T

    ca = jax.nn.sigmoid(mlp(gavg) + mlp(gmax))               # (N, C)
    out = x * ca[:, :, None, None]

    # CoordAtt(out)
    xh = jnp.mean(out, axis=3)                               # (N, C, H)
    xw = jnp.mean(out, axis=2)                               # (N, C, W)
    y = jnp.concatenate([xh, xw], axis=2)                    # (N, C, H+W)
    y = jnp.einsum("mc,ncl->nml", conv1_w, y) + conv1_b[None, :, None]
    scale = bn_gamma / jnp.sqrt(bn_var + bn_eps)
    y = (y - bn_mean[None, :, None]) * scale[None, :, None] + bn_beta[None, :, None]
    y = y * jnp.clip(y + 3.0, 0.0, 6.0) / 6.0                # h_swish
    yh, yw = y[:, :, :H], y[:, :, H:]
    ah = jax.nn.sigmoid(jnp.einsum("cm,nml->ncl", wch, yh) + bch[None, :, None])  # (N, C, H)
    aw = jax.nn.sigmoid(jnp.einsum("cm,nml->ncl", wcw, yw) + bcw[None, :, None])  # (N, C, W)
    coord = out * aw[:, :, None, :] * ah[:, :, :, None]
    return out * coord


if __name__ == "__main__":
    key = jax.random.PRNGKey(0)
    ks = jax.random.split(key, 9)

    N, C, H, W = 2, 32, 16, 16
    ratio, reduction = 16, 32
    hid = C // ratio                 # 2
    mip = max(8, C // reduction)     # 8

    x = jax.random.normal(ks[0], (N, C, H, W), dtype=jnp.float32)

    s = 0.2
    w1 = jax.random.normal(ks[1], (hid, C), jnp.float32) * s
    w2 = jax.random.normal(ks[2], (C, hid), jnp.float32) * s
    conv1_w = jax.random.normal(ks[3], (mip, C), jnp.float32) * s
    conv1_b = jax.random.normal(ks[4], (mip,), jnp.float32) * s
    wch = jax.random.normal(ks[5], (C, mip), jnp.float32) * s
    bch = jax.random.normal(ks[6], (C,), jnp.float32) * s
    wcw = jax.random.normal(ks[7], (C, mip), jnp.float32) * s
    bcw = jax.random.normal(ks[8], (C,), jnp.float32) * s

    # BatchNorm2d(mip) eval-mode parameters (default init: gamma=1, beta=0, mean=0, var=1).
    bn_gamma = jnp.ones((mip,), jnp.float32)
    bn_beta = jnp.zeros((mip,), jnp.float32)
    bn_mean = jnp.zeros((mip,), jnp.float32)
    bn_var = jnp.ones((mip,), jnp.float32)

    out = cbam(x, w1, w2, conv1_w, conv1_b, bn_gamma, bn_beta, bn_mean, bn_var,
               wch, bch, wcw, bcw)
    out = jax.block_until_ready(out)

    ref = cbam_ref(x, w1, w2, conv1_w, conv1_b, bn_gamma, bn_beta, bn_mean, bn_var,
                   wch, bch, wcw, bcw)
    assert out.shape == (N, C, H, W)
    assert jnp.allclose(out, ref, atol=1e-4, rtol=1e-4), "mismatch vs reference"

    print("KERNEL_OK")
</pallas_src>

<mosaic_0001>
module attributes {stable_mosaic.version = 11 : i64} {
  func.func @_cbam_kernel(%arg0: i32, %arg1: memref<2x32x16x16xf32, #tpu.memory_space<vmem>>, %arg2: memref<32x2xf32, #tpu.memory_space<vmem>>, %arg3: memref<2x32xf32, #tpu.memory_space<vmem>>, %arg4: memref<8x32xf32, #tpu.memory_space<vmem>>, %arg5: memref<8x1xf32, #tpu.memory_space<vmem>>, %arg6: memref<32x8xf32, #tpu.memory_space<vmem>>, %arg7: memref<32x1xf32, #tpu.memory_space<vmem>>, %arg8: memref<32x8xf32, #tpu.memory_space<vmem>>, %arg9: memref<32x1xf32, #tpu.memory_space<vmem>>, %arg10: memref<2x32x16x16xf32, #tpu.memory_space<vmem>>) attributes {dimension_semantics = [#tpu.dimension_semantics<parallel>], iteration_bounds = array<i64: 1>, scalar_prefetch = 0 : i64, scratch_operands = 0 : i64, tpu.core_type = #tpu.core_type<tc>, window_params = [{transform_indices = @transform_0, window_bounds = array<i64: 2, 32, 16, 16>}, {pipeline_mode = #tpu.pipeline_mode<synchronous>, transform_indices = @transform_1, window_bounds = array<i64: 32, 2>}, {pipeline_mode = #tpu.pipeline_mode<synchronous>, transform_indices = @transform_2, window_bounds = array<i64: 2, 32>}, {pipeline_mode = #tpu.pipeline_mode<synchronous>, transform_indices = @transform_3, window_bounds = array<i64: 8, 32>}, {pipeline_mode = #tpu.pipeline_mode<synchronous>, transform_indices = @transform_4, window_bounds = array<i64: 8, 1>}, {pipeline_mode = #tpu.pipeline_mode<synchronous>, transform_indices = @transform_5, window_bounds = array<i64: 32, 8>}, {pipeline_mode = #tpu.pipeline_mode<synchronous>, transform_indices = @transform_6, window_bounds = array<i64: 32, 1>}, {pipeline_mode = #tpu.pipeline_mode<synchronous>, transform_indices = @transform_7, window_bounds = array<i64: 32, 8>}, {pipeline_mode = #tpu.pipeline_mode<synchronous>, transform_indices = @transform_8, window_bounds = array<i64: 32, 1>}, {transform_indices = @transform_9, window_bounds = array<i64: 2, 32, 16, 16>}]} {
    %c0 = arith.constant 0 : index
    %c0_0 = arith.constant 0 : index
    %c0_1 = arith.constant 0 : index
    %c0_2 = arith.constant 0 : index
    %0 = vector.load %arg1[%c0, %c0_0, %c0_1, %c0_2] : memref<2x32x16x16xf32, #tpu.memory_space<vmem>>, vector<2x32x16x16xf32>
    %cst = arith.constant dense<0.000000e+00> : vector<2x32x16xf32>
    %1 = vector.multi_reduction <add>, %0, %cst [3] : vector<2x32x16x16xf32> to vector<2x32x16xf32>
    %cst_3 = arith.constant 6.250000e-02 : f32
    %2 = vector.broadcast %cst_3 : f32 to vector<2x32x16xf32>
    %3 = arith.mulf %1, %2 : vector<2x32x16xf32>
    %cst_4 = arith.constant dense<0.000000e+00> : vector<2x32x16xf32>
    %4 = vector.multi_reduction <add>, %0, %cst_4 [2] : vector<2x32x16x16xf32> to vector<2x32x16xf32>
    %cst_5 = arith.constant 6.250000e-02 : f32
    %5 = vector.broadcast %cst_5 : f32 to vector<2x32x16xf32>
    %6 = arith.mulf %4, %5 : vector<2x32x16xf32>
    %cst_6 = arith.constant dense<0.000000e+00> : vector<2x32xf32>
    %7 = vector.multi_reduction <add>, %3, %cst_6 [2] : vector<2x32x16xf32> to vector<2x32xf32>
    %cst_7 = arith.constant 6.250000e-02 : f32
    %8 = vector.broadcast %cst_7 : f32 to vector<2x32xf32>
    %9 = arith.mulf %7, %8 : vector<2x32xf32>
    %cst_8 = arith.constant dense<0xFF800000> : vector<2x32x16xf32>
    %10 = vector.multi_reduction <maximumf>, %0, %cst_8 [3] : vector<2x32x16x16xf32> to vector<2x32x16xf32>
    %cst_9 = arith.constant dense<0xFF800000> : vector<2x32xf32>
    %11 = vector.multi_reduction <maximumf>, %10, %cst_9 [2] : vector<2x32x16xf32> to vector<2x32xf32>
    %12 = tpu.concatenate %9, %11 in 0 : vector<2x32xf32>, vector<2x32xf32> -> vector<4x32xf32>
    %c0_10 = arith.constant 0 : index
    %c0_11 = arith.constant 0 : index
    %13 = vector.load %arg2[%c0_10, %c0_11] : memref<32x2xf32, #tpu.memory_space<vmem>>, vector<32x2xf32>
    %cst_12 = arith.constant dense<0.000000e+00> : vector<4x2xf32>
    %14 = tpu.matmul %12, %13, %cst_12 {dimension_numbers = #tpu.dot_dimension_numbers<[1], [0], [0], [1], [0, 0, 1, 1], [], []>} : vector<4x32xf32>, vector<32x2xf32>, vector<4x2xf32> -> vector<4x2xf32>
    %cst_13 = arith.constant 0.000000e+00 : f32
    %15 = vector.broadcast %cst_13 : f32 to vector<4x2xf32>
    %16 = arith.maximumf %14, %15 : vector<4x2xf32>
    %c0_14 = arith.constant 0 : index
    %c0_15 = arith.constant 0 : index
    %17 = vector.load %arg3[%c0_14, %c0_15] : memref<2x32xf32, #tpu.memory_space<vmem>>, vector<2x32xf32>
    %cst_16 = arith.constant dense<0.000000e+00> : vector<4x32xf32>
    %18 = tpu.matmul %16, %17, %cst_16 {dimension_numbers = #tpu.dot_dimension_numbers<[1], [0], [0], [1], [0, 0, 1, 1], [], []>} : vector<4x2xf32>, vector<2x32xf32>, vector<4x32xf32> -> vector<4x32xf32>
    %19 = vector.extract_strided_slice %18 {offsets = [0, 0], sizes = [2, 32], strides = [1, 1]} : vector<4x32xf32> to vector<2x32xf32>
    %20 = vector.extract_strided_slice %18 {offsets = [2, 0], sizes = [2, 32], strides = [1, 1]} : vector<4x32xf32> to vector<2x32xf32>
    %21 = arith.addf %19, %20 : vector<2x32xf32>
    %22 = arith.negf %21 : vector<2x32xf32>
    %23 = math.exp %22 : vector<2x32xf32>
    %cst_17 = arith.constant 1.000000e+00 : f32
    %24 = vector.broadcast %cst_17 : f32 to vector<2x32xf32>
    %25 = arith.addf %24, %23 : vector<2x32xf32>
    %26 = arith.divf %24, %25 : vector<2x32xf32>
    %27 = vector.shape_cast %26 : vector<2x32xf32> to vector<2x32x1xf32>
    %28 = vector.broadcast %27 : vector<2x32x1xf32> to vector<2x32x16xf32>
    %29 = arith.mulf %3, %28 : vector<2x32x16xf32>
    %30 = vector.shape_cast %26 : vector<2x32xf32> to vector<2x32x1xf32>
    %31 = vector.broadcast %30 : vector<2x32x1xf32> to vector<2x32x16xf32>
    %32 = arith.mulf %6, %31 : vector<2x32x16xf32>
    %33 = tpu.concatenate %29, %32 in 2 : vector<2x32x16xf32>, vector<2x32x16xf32> -> vector<2x32x32xf32>
    %c0_18 = arith.constant 0 : index
    %c0_19 = arith.constant 0 : index
    %34 = vector.load %arg4[%c0_18, %c0_19] : memref<8x32xf32, #tpu.memory_space<vmem>>, vector<8x32xf32>
    %c0_20 = arith.constant 0 : index
    %c0_21 = arith.constant 0 : index
    %35 = vector.load %arg5[%c0_20, %c0_21] : memref<8x1xf32, #tpu.memory_space<vmem>>, vector<8x1xf32>
    %36 = vector.shape_cast %34 : vector<8x32xf32> to vector<1x8x32xf32>
    %37 = vector.shape_cast %36 : vector<1x8x32xf32> to vector<1x8x32xf32>
    %38 = vector.broadcast %37 : vector<1x8x32xf32> to vector<2x8x32xf32>
    "tpu.trace_start"() <{level = 10 : i32, message = "nmc,ncl->nml"}> : () -> ()
    %cst_22 = arith.constant dense<0.000000e+00> : vector<2x8x32xf32>
    %39 = tpu.matmul %38, %33, %cst_22 {dimension_numbers = #tpu.dot_dimension_numbers<[2], [1], [1], [2], [0, 0, 0, 1, 1, 2], [0], [0]>} : vector<2x8x32xf32>, vector<2x32x32xf32>, vector<2x8x32xf32> -> vector<2x8x32xf32>
    "tpu.trace_stop"() : () -> ()
    %40 = vector.shape_cast %35 : vector<8x1xf32> to vector<1x8x1xf32>
    %41 = vector.broadcast %40 : vector<1x8x1xf32> to vector<2x8x32xf32>
    %42 = arith.addf %39, %41 : vector<2x8x32xf32>
    %cst_23 = arith.constant 3.000000e+00 : f32
    %43 = vector.broadcast %cst_23 : f32 to vector<2x8x32xf32>
    %44 = arith.addf %42, %43 : vector<2x8x32xf32>
    %cst_24 = arith.constant 0.000000e+00 : f32
    %cst_25 = arith.constant 6.000000e+00 : f32
    %45 = vector.broadcast %cst_24 : f32 to vector<2x8x32xf32>
    %46 = arith.maximumf %45, %44 : vector<2x8x32xf32>
    %47 = vector.broadcast %cst_25 : f32 to vector<2x8x32xf32>
    %48 = arith.minimumf %47, %46 : vector<2x8x32xf32>
    %49 = arith.mulf %42, %48 : vector<2x8x32xf32>
    %cst_26 = arith.constant 0.166666672 : f32
    %50 = vector.broadcast %cst_26 : f32 to vector<2x8x32xf32>
    %51 = arith.mulf %49, %50 : vector<2x8x32xf32>
    %52 = vector.extract_strided_slice %51 {offsets = [0, 0, 0], sizes = [2, 8, 16], strides = [1, 1, 1]} : vector<2x8x32xf32> to vector<2x8x16xf32>
    %53 = vector.extract_strided_slice %51 {offsets = [0, 0, 16], sizes = [2, 8, 16], strides = [1, 1, 1]} : vector<2x8x32xf32> to vector<2x8x16xf32>
    %c0_27 = arith.constant 0 : index
    %c0_28 = arith.constant 0 : index
    %54 = vector.load %arg6[%c0_27, %c0_28] : memref<32x8xf32, #tpu.memory_space<vmem>>, vector<32x8xf32>
    %c0_29 = arith.constant 0 : index
    %c0_30 = arith.constant 0 : index
    %55 = vector.load %arg8[%c0_29, %c0_30] : memref<32x8xf32, #tpu.memory_space<vmem>>, vector<32x8xf32>
    %56 = vector.shape_cast %54 : vector<32x8xf32> to vector<1x32x8xf32>
    %57 = vector.shape_cast %56 : vector<1x32x8xf32> to vector<1x32x8xf32>
    %58 = vector.broadcast %57 : vector<1x32x8xf32> to vector<2x32x8xf32>
    %59 = vector.shape_cast %55 : vector<32x8xf32> to vector<1x32x8xf32>
    %60 = vector.shape_cast %59 : vector<1x32x8xf32> to vector<1x32x8xf32>
    %61 = vector.broadcast %60 : vector<1x32x8xf32> to vector<2x32x8xf32>
    "tpu.trace_start"() <{level = 10 : i32, message = "ncm,nml->ncl"}> : () -> ()
    %cst_31 = arith.constant dense<0.000000e+00> : vector<2x32x16xf32>
    %62 = tpu.matmul %58, %52, %cst_31 {dimension_numbers = #tpu.dot_dimension_numbers<[2], [1], [1], [2], [0, 0, 0, 1, 1, 2], [0], [0]>} : vector<2x32x8xf32>, vector<2x8x16xf32>, vector<2x32x16xf32> -> vector<2x32x16xf32>
    "tpu.trace_stop"() : () -> ()
    %c0_32 = arith.constant 0 : index
    %c0_33 = arith.constant 0 : index
    %63 = vector.load %arg7[%c0_32, %c0_33] : memref<32x1xf32, #tpu.memory_space<vmem>>, vector<32x1xf32>
    %64 = vector.shape_cast %63 : vector<32x1xf32> to vector<1x32x1xf32>
    %65 = vector.broadcast %64 : vector<1x32x1xf32> to vector<2x32x16xf32>
    %66 = arith.addf %62, %65 : vector<2x32x16xf32>
    %67 = arith.negf %66 : vector<2x32x16xf32>
    %68 = math.exp %67 : vector<2x32x16xf32>
    %cst_34 = arith.constant 1.000000e+00 : f32
    %69 = vector.broadcast %cst_34 : f32 to vector<2x32x16xf32>
    %70 = arith.addf %69, %68 : vector<2x32x16xf32>
    %71 = arith.divf %69, %70 : vector<2x32x16xf32>
    "tpu.trace_start"() <{level = 10 : i32, message = "ncm,nml->ncl"}> : () -> ()
    %cst_35 = arith.constant dense<0.000000e+00> : vector<2x32x16xf32>
    %72 = tpu.matmul %61, %53, %cst_35 {dimension_numbers = #tpu.dot_dimension_numbers<[2], [1], [1], [2], [0, 0, 0, 1, 1, 2], [0], [0]>} : vector<2x32x8xf32>, vector<2x8x16xf32>, vector<2x32x16xf32> -> vector<2x32x16xf32>
    "tpu.trace_stop"() : () -> ()
    %c0_36 = arith.constant 0 : index
    %c0_37 = arith.constant 0 : index
    %73 = vector.load %arg9[%c0_36, %c0_37] : memref<32x1xf32, #tpu.memory_space<vmem>>, vector<32x1xf32>
    %74 = vector.shape_cast %73 : vector<32x1xf32> to vector<1x32x1xf32>
    %75 = vector.broadcast %74 : vector<1x32x1xf32> to vector<2x32x16xf32>
    %76 = arith.addf %72, %75 : vector<2x32x16xf32>
    %77 = arith.negf %76 : vector<2x32x16xf32>
    %78 = math.exp %77 : vector<2x32x16xf32>
    %cst_38 = arith.constant 1.000000e+00 : f32
    %79 = vector.broadcast %cst_38 : f32 to vector<2x32x16xf32>
    %80 = arith.addf %79, %78 : vector<2x32x16xf32>
    %81 = arith.divf %79, %80 : vector<2x32x16xf32>
    %82 = arith.mulf %26, %26 : vector<2x32xf32>
    %83 = vector.shape_cast %82 : vector<2x32xf32> to vector<2x32x1xf32>
    %84 = vector.broadcast %83 : vector<2x32x1xf32> to vector<2x32x16xf32>
    %85 = arith.mulf %71, %84 : vector<2x32x16xf32>
    %86 = arith.mulf %0, %0 : vector<2x32x16x16xf32>
    %87 = vector.shape_cast %85 : vector<2x32x16xf32> to vector<2x32x16x1xf32>
    %88 = vector.broadcast %87 : vector<2x32x16x1xf32> to vector<2x32x16x16xf32>
    %89 = arith.mulf %86, %88 : vector<2x32x16x16xf32>
    %90 = vector.shape_cast %81 : vector<2x32x16xf32> to vector<2x32x1x16xf32>
    %91 = vector.broadcast %90 : vector<2x32x1x16xf32> to vector<2x32x16x16xf32>
    %92 = arith.mulf %89, %91 : vector<2x32x16x16xf32>
    %c0_39 = arith.constant 0 : index
    %c0_40 = arith.constant 0 : index
    %c0_41 = arith.constant 0 : index
    %c0_42 = arith.constant 0 : index
    %93 = vector.load %arg10[%c0_39, %c0_40, %c0_41, %c0_42] : memref<2x32x16x16xf32, #tpu.memory_space<vmem>>, vector<2x32x16x16xf32>
    tpu.vector_store %arg10[%c0_39, %c0_40, %c0_41, %c0_42], %92 {strides = array<i32>} : memref<2x32x16x16xf32, #tpu.memory_space<vmem>>, vector<2x32x16x16xf32>,
    return
  }
  func.func @transform_0(%arg0: i32) -> (i32, i32, i32, i32) {
    %c0_i32 = arith.constant 0 : i32
    %c0_i32_0 = arith.constant 0 : i32
    %c0_i32_1 = arith.constant 0 : i32
    %c0_i32_2 = arith.constant 0 : i32
    return %arg0, %c0_i32, %c0_i32_0, %c0_i32_1 : i32, i32, i32, i32
  }
  func.func @transform_1(%arg0: i32) -> (i32, i32) {
    %c0_i32 = arith.constant 0 : i32
    %c0_i32_0 = arith.constant 0 : i32
    %c0_i32_1 = arith.constant 0 : i32
    return %c0_i32, %c0_i32_0 : i32, i32
  }
  func.func @transform_2(%arg0: i32) -> (i32, i32) {
    %c0_i32 = arith.constant 0 : i32
    %c0_i32_0 = arith.constant 0 : i32
    %c0_i32_1 = arith.constant 0 : i32
    return %c0_i32, %c0_i32_0 : i32, i32
  }
  func.func @transform_3(%arg0: i32) -> (i32, i32) {
    %c0_i32 = arith.constant 0 : i32
    %c0_i32_0 = arith.constant 0 : i32
    %c0_i32_1 = arith.constant 0 : i32
    return %c0_i32, %c0_i32_0 : i32, i32
  }
  func.func @transform_4(%arg0: i32) -> (i32, i32) {
    %c0_i32 = arith.constant 0 : i32
    %c0_i32_0 = arith.constant 0 : i32
    %c0_i32_1 = arith.constant 0 : i32
    return %c0_i32, %c0_i32_0 : i32, i32
  }
  func.func @transform_5(%arg0: i32) -> (i32, i32) {
    %c0_i32 = arith.constant 0 : i32
    %c0_i32_0 = arith.constant 0 : i32
    %c0_i32_1 = arith.constant 0 : i32
    return %c0_i32, %c0_i32_0 : i32, i32
  }
  func.func @transform_6(%arg0: i32) -> (i32, i32) {
    %c0_i32 = arith.constant 0 : i32
    %c0_i32_0 = arith.constant 0 : i32
    %c0_i32_1 = arith.constant 0 : i32
    return %c0_i32, %c0_i32_0 : i32, i32
  }
  func.func @transform_7(%arg0: i32) -> (i32, i32) {
    %c0_i32 = arith.constant 0 : i32
    %c0_i32_0 = arith.constant 0 : i32
    %c0_i32_1 = arith.constant 0 : i32
    return %c0_i32, %c0_i32_0 : i32, i32
  }
  func.func @transform_8(%arg0: i32) -> (i32, i32) {
    %c0_i32 = arith.constant 0 : i32
    %c0_i32_0 = arith.constant 0 : i32
    %c0_i32_1 = arith.constant 0 : i32
    return %c0_i32, %c0_i32_0 : i32, i32
  }
  func.func @transform_9(%arg0: i32) -> (i32, i32, i32, i32) {
    %c0_i32 = arith.constant 0 : i32
    %c0_i32_0 = arith.constant 0 : i32
    %c0_i32_1 = arith.constant 0 : i32
    %c0_i32_2 = arith.constant 0 : i32
    return %arg0, %c0_i32, %c0_i32_0, %c0_i32_1 : i32, i32, i32, i32
  }
}

</mosaic_0001>

<llo_original>
// kernel: tpu_custom_call.1
$region0: #{tpu_custom_call.1}
  #allocation0 [shape = 'u32[]', space=smem, size = 0x4, offset = 0x4, fixed_abs, tag = 'smem constant byte address 0x4 - core index']
  #allocation1 [shape = 'u32[144,128]{1,0:T(1,128)}', space=vmem, size = 0x12000, scoped, tag = 'internal scratch']
  %s0 = inlined_call_operand.vmem [shape: f32[2,32,16,16], index: 0, kind: input, shape index: {}]
  %s1 = inlined_call_operand.vmem [shape: f32[32,2], index: 1, kind: input, shape index: {}]
  %s2 = inlined_call_operand.vmem [shape: f32[2,32], index: 2, kind: input, shape index: {}]
  %s3 = inlined_call_operand.vmem [shape: f32[8,32], index: 3, kind: input, shape index: {}]
  %s4 = inlined_call_operand.vmem [shape: f32[8,1], index: 4, kind: input, shape index: {}]
  %s5 = inlined_call_operand.vmem [shape: f32[32,8], index: 5, kind: input, shape index: {}]
  %s6 = inlined_call_operand.vmem [shape: f32[32,1], index: 6, kind: input, shape index: {}]
  %s7 = inlined_call_operand.vmem [shape: f32[32,8], index: 7, kind: input, shape index: {}]
  %s8 = inlined_call_operand.vmem [shape: f32[32,1], index: 8, kind: input, shape index: {}]
  %s9 = inlined_call_operand.vmem [shape: f32[2,32,16,16], index: 9, kind: output, shape index: {}]
  %s10 = sld [smem:[#allocation0]]
  $region46: #{tpu_custom_call.1} parent=0
    _
  %s12 = ssub.s32 1, %s10
  %s13 = scalar_select 0, %s12, %s10
  // Predicated region
  $region2: #{tpu_custom_call.1} parent=0 // pred_check
    _
  $region3: #{tpu_custom_call.1} parent=0 // pred_check_branch
    %15 = sbr.rel (0) target = $region5
  $region4: #{tpu_custom_call.1} parent=0 // pred_region
    _
  $region5: #{tpu_custom_call.1} parent=0 // pred_fallthru
    _
  // Predicated region
  $region6: #{tpu_custom_call.1} parent=0 // pred_check
    _
  $region7: #{tpu_custom_call.1} parent=0 // pred_check_branch
    %17 = sbr.rel (0) target = $region9
  $region8: #{tpu_custom_call.1} parent=0 // pred_region
    _
  $region9: #{tpu_custom_call.1} parent=0 // pred_fallthru
    _
  // Predicated region
  $region10: #{tpu_custom_call.1} parent=0 // pred_check
    _
  $region11: #{tpu_custom_call.1} parent=0 // pred_check_branch
    %19 = sbr.rel (0) target = $region13
  $region12: #{tpu_custom_call.1} parent=0 // pred_region
    _
  $region13: #{tpu_custom_call.1} parent=0 // pred_fallthru
    _
  // Predicated region
  $region14: #{tpu_custom_call.1} parent=0 // pred_check
    _
  $region15: #{tpu_custom_call.1} parent=0 // pred_check_branch
    %21 = sbr.rel (0) target = $region17
  $region16: #{tpu_custom_call.1} parent=0 // pred_region
    _
  $region17: #{tpu_custom_call.1} parent=0 // pred_fallthru
    _
  // Predicated region
  $region18: #{tpu_custom_call.1} parent=0 // pred_check
    _
  $region19: #{tpu_custom_call.1} parent=0 // pred_check_branch
    %23 = sbr.rel (0) target = $region21
  $region20: #{tpu_custom_call.1} parent=0 // pred_region
    _
  $region21: #{tpu_custom_call.1} parent=0 // pred_fallthru
    _
  // Predicated region
  $region22: #{tpu_custom_call.1} parent=0 // pred_check
    _
  $region23: #{tpu_custom_call.1} parent=0 // pred_check_branch
    %25 = sbr.rel (0) target = $region25
  $region24: #{tpu_custom_call.1} parent=0 // pred_region
    _
  $region25: #{tpu_custom_call.1} parent=0 // pred_fallthru
    _
  // Predicated region
  $region26: #{tpu_custom_call.1} parent=0 // pred_check
    _
  $region27: #{tpu_custom_call.1} parent=0 // pred_check_branch
    %27 = sbr.rel (0) target = $region29
  $region28: #{tpu_custom_call.1} parent=0 // pred_region
    _
  $region29: #{tpu_custom_call.1} parent=0 // pred_fallthru
    _
  // Predicated region
  $region30: #{tpu_custom_call.1} parent=0 // pred_check
    _
  $region31: #{tpu_custom_call.1} parent=0 // pred_check_branch
    %29 = sbr.rel (0) target = $region33
  $region32: #{tpu_custom_call.1} parent=0 // pred_region
    _
  $region33: #{tpu_custom_call.1} parent=0 // pred_fallthru
    _
  // Predicated region
  $region34: #{tpu_custom_call.1} parent=0 // pred_check
    _
  $region35: #{tpu_custom_call.1} parent=0 // pred_check_branch
    %31 = sbr.rel (0) target = $region37
  $region36: #{tpu_custom_call.1} parent=0 // pred_region
    _
  $region37: #{tpu_custom_call.1} parent=0 // pred_fallthru
    _
  %v32 = vld [vmem:[%s0] sm:$0xff]
  %v33 = vld [vmem:[%s0 + $0x8] sm:$0xff]
  %v34 = vld [vmem:[%s0 + $0x10] sm:$0xff]
  %v35 = vld [vmem:[%s0 + $0x18] sm:$0xff]
  %v36 = vld [vmem:[%s0 + $0x20] sm:$0xff]
  %v37 = vld [vmem:[%s0 + $0x28] sm:$0xff]
  %v38 = vld [vmem:[%s0 + $0x30] sm:$0xff]
  %v39 = vld [vmem:[%s0 + $0x38] sm:$0xff]
  %v40 = vld [vmem:[%s0 + $0x40] sm:$0xff]
  %v41 = vld [vmem:[%s0 + $0x48] sm:$0xff]
  %v42 = vld [vmem:[%s0 + $0x50] sm:$0xff]
  %v43 = vld [vmem:[%s0 + $0x58] sm:$0xff]
  %v44 = vld [vmem:[%s0 + $0x60] sm:$0xff]
  %v45 = vld [vmem:[%s0 + $0x68] sm:$0xff]
  %v46 = vld [vmem:[%s0 + $0x70] sm:$0xff]
  %v47 = vld [vmem:[%s0 + $0x78] sm:$0xff]
  %v48 = vld [vmem:[%s0 + $0x80] sm:$0xff]
  %v49 = vld [vmem:[%s0 + $0x88] sm:$0xff]
  %v50 = vld [vmem:[%s0 + $0x90] sm:$0xff]
  %v51 = vld [vmem:[%s0 + $0x98] sm:$0xff]
  %v52 = vld [vmem:[%s0 + $0xa0] sm:$0xff]
  %v53 = vld [vmem:[%s0 + $0xa8] sm:$0xff]
  %v54 = vld [vmem:[%s0 + $0xb0] sm:$0xff]
  %v55 = vld [vmem:[%s0 + $0xb8] sm:$0xff]
  %v56 = vld [vmem:[%s0 + $0xc0] sm:$0xff]
  %v57 = vld [vmem:[%s0 + $0xc8] sm:$0xff]
  %v58 = vld [vmem:[%s0 + $0xd0] sm:$0xff]
  %v59 = vld [vmem:[%s0 + $0xd8] sm:$0xff]
  %v60 = vld [vmem:[%s0 + $0xe0] sm:$0xff]
  %v61 = vld [vmem:[%s0 + $0xe8] sm:$0xff]
  %v62 = vld [vmem:[%s0 + $0xf0] sm:$0xff]
  %v63 = vld [vmem:[%s0 + $0xf8] sm:$0xff]
  %v64 = vld [vmem:[%s0 + $0x100] sm:$0xff]
  %v65 = vld [vmem:[%s0 + $0x108] sm:$0xff]
  %v66 = vld [vmem:[%s0 + $0x110] sm:$0xff]
  %v67 = vld [vmem:[%s0 + $0x118] sm:$0xff]
  %v68 = vld [vmem:[%s0 + $0x120] sm:$0xff]
  %v69 = vld [vmem:[%s0 + $0x128] sm:$0xff]
  %v70 = vld [vmem:[%s0 + $0x130] sm:$0xff]
  %v71 = vld [vmem:[%s0 + $0x138] sm:$0xff]
  %v72 = vld [vmem:[%s0 + $0x140] sm:$0xff]
  %v73 = vld [vmem:[%s0 + $0x148] sm:$0xff]
  %v74 = vld [vmem:[%s0 + $0x150] sm:$0xff]
  %v75 = vld [vmem:[%s0 + $0x158] sm:$0xff]
  %v76 = vld [vmem:[%s0 + $0x160] sm:$0xff]
  %v77 = vld [vmem:[%s0 + $0x168] sm:$0xff]
  %v78 = vld [vmem:[%s0 + $0x170] sm:$0xff]
  %v79 = vld [vmem:[%s0 + $0x178] sm:$0xff]
  %v80 = vld [vmem:[%s0 + $0x180] sm:$0xff]
  %v81 = vld [vmem:[%s0 + $0x188] sm:$0xff]
  %v82 = vld [vmem:[%s0 + $0x190] sm:$0xff]
  %v83 = vld [vmem:[%s0 + $0x198] sm:$0xff]
  %v84 = vld [vmem:[%s0 + $0x1a0] sm:$0xff]
  %v85 = vld [vmem:[%s0 + $0x1a8] sm:$0xff]
  %v86 = vld [vmem:[%s0 + $0x1b0] sm:$0xff]
  %v87 = vld [vmem:[%s0 + $0x1b8] sm:$0xff]
  %v88 = vld [vmem:[%s0 + $0x1c0] sm:$0xff]
  %v89 = vld [vmem:[%s0 + $0x1c8] sm:$0xff]
  %v90 = vld [vmem:[%s0 + $0x1d0] sm:$0xff]
  %v91 = vld [vmem:[%s0 + $0x1d8] sm:$0xff]
  %v92 = vld [vmem:[%s0 + $0x1e0] sm:$0xff]
  %v93 = vld [vmem:[%s0 + $0x1e8] sm:$0xff]
  %v94 = vld [vmem:[%s0 + $0x1f0] sm:$0xff]
  %v95 = vld [vmem:[%s0 + $0x1f8] sm:$0xff]
  %v96 = vld [vmem:[%s0 + $0x200] sm:$0xff]
  %v97 = vld [vmem:[%s0 + $0x208] sm:$0xff]
  %v98 = vld [vmem:[%s0 + $0x210] sm:$0xff]
  %v99 = vld [vmem:[%s0 + $0x218] sm:$0xff]
  %v100 = vld [vmem:[%s0 + $0x220] sm:$0xff]
  %v101 = vld [vmem:[%s0 + $0x228] sm:$0xff]
  %v102 = vld [vmem:[%s0 + $0x230] sm:$0xff]
  %v103 = vld [vmem:[%s0 + $0x238] sm:$0xff]
  %v104 = vld [vmem:[%s0 + $0x240] sm:$0xff]
  %v105 = vld [vmem:[%s0 + $0x248] sm:$0xff]
  %v106 = vld [vmem:[%s0 + $0x250] sm:$0xff]
  %v107 = vld [vmem:[%s0 + $0x258] sm:$0xff]
  %v108 = vld [vmem:[%s0 + $0x260] sm:$0xff]
  %v109 = vld [vmem:[%s0 + $0x268] sm:$0xff]
  %v110 = vld [vmem:[%s0 + $0x270] sm:$0xff]
  %v111 = vld [vmem:[%s0 + $0x278] sm:$0xff]
  %v112 = vld [vmem:[%s0 + $0x280] sm:$0xff]
  %v113 = vld [vmem:[%s0 + $0x288] sm:$0xff]
  %v114 = vld [vmem:[%s0 + $0x290] sm:$0xff]
  %v115 = vld [vmem:[%s0 + $0x298] sm:$0xff]
  %v116 = vld [vmem:[%s0 + $0x2a0] sm:$0xff]
  %v117 = vld [vmem:[%s0 + $0x2a8] sm:$0xff]
  %v118 = vld [vmem:[%s0 + $0x2b0] sm:$0xff]
  %v119 = vld [vmem:[%s0 + $0x2b8] sm:$0xff]
  %v120 = vld [vmem:[%s0 + $0x2c0] sm:$0xff]
  %v121 = vld [vmem:[%s0 + $0x2c8] sm:$0xff]
  %v122 = vld [vmem:[%s0 + $0x2d0] sm:$0xff]
  %v123 = vld [vmem:[%s0 + $0x2d8] sm:$0xff]
  %v124 = vld [vmem:[%s0 + $0x2e0] sm:$0xff]
  %v125 = vld [vmem:[%s0 + $0x2e8] sm:$0xff]
  %v126 = vld [vmem:[%s0 + $0x2f0] sm:$0xff]
  %v127 = vld [vmem:[%s0 + $0x2f8] sm:$0xff]
  %v128 = vld [vmem:[%s0 + $0x300] sm:$0xff]
  %v129 = vld [vmem:[%s0 + $0x308] sm:$0xff]
  %v130 = vld [vmem:[%s0 + $0x310] sm:$0xff]
  %v131 = vld [vmem:[%s0 + $0x318] sm:$0xff]
  %v132 = vld [vmem:[%s0 + $0x320] sm:$0xff]
  %v133 = vld [vmem:[%s0 + $0x328] sm:$0xff]
  %v134 = vld [vmem:[%s0 + $0x330] sm:$0xff]
  %v135 = vld [vmem:[%s0 + $0x338] sm:$0xff]
  %v136 = vld [vmem:[%s0 + $0x340] sm:$0xff]
  %v137 = vld [vmem:[%s0 + $0x348] sm:$0xff]
  %v138 = vld [vmem:[%s0 + $0x350] sm:$0xff]
  %v139 = vld [vmem:[%s0 + $0x358] sm:$0xff]
  %v140 = vld [vmem:[%s0 + $0x360] sm:$0xff]
  %v141 = vld [vmem:[%s0 + $0x368] sm:$0xff]
  %v142 = vld [vmem:[%s0 + $0x370] sm:$0xff]
  %v143 = vld [vmem:[%s0 + $0x378] sm:$0xff]
  %v144 = vld [vmem:[%s0 + $0x380] sm:$0xff]
  %v145 = vld [vmem:[%s0 + $0x388] sm:$0xff]
  %v146 = vld [vmem:[%s0 + $0x390] sm:$0xff]
  %v147 = vld [vmem:[%s0 + $0x398] sm:$0xff]
  %v148 = vld [vmem:[%s0 + $0x3a0] sm:$0xff]
  %v149 = vld [vmem:[%s0 + $0x3a8] sm:$0xff]
  %v150 = vld [vmem:[%s0 + $0x3b0] sm:$0xff]
  %v151 = vld [vmem:[%s0 + $0x3b8] sm:$0xff]
  %v152 = vld [vmem:[%s0 + $0x3c0] sm:$0xff]
  %v153 = vld [vmem:[%s0 + $0x3c8] sm:$0xff]
  %v154 = vld [vmem:[%s0 + $0x3d0] sm:$0xff]
  %v155 = vld [vmem:[%s0 + $0x3d8] sm:$0xff]
  %v156 = vld [vmem:[%s0 + $0x3e0] sm:$0xff]
  %v157 = vld [vmem:[%s0 + $0x3e8] sm:$0xff]
  %v158 = vld [vmem:[%s0 + $0x3f0] sm:$0xff]
  %v159 = vld [vmem:[%s0 + $0x3f8] sm:$0xff]
  %vm160 = vcmask 130048
  %v161 = vsel %vm160, %v32, 0.0
  %162 = vadd.xlane.f32.xlu0 %v161
  %v163 = vpop.xlane.xlu0 %162
  %v164 = vsel %vm160, %v33, 0.0
  %165 = vadd.xlane.f32.xlu0 %v164
  %v166 = vpop.xlane.xlu0 %165
  %v167 = vsel %vm160, %v34, 0.0
  %168 = vadd.xlane.f32.xlu0 %v167
  %v169 = vpop.xlane.xlu0 %168
  %v170 = vsel %vm160, %v35, 0.0
  %171 = vadd.xlane.f32.xlu0 %v170
  %v172 = vpop.xlane.xlu0 %171
  %v173 = vsel %vm160, %v36, 0.0
  %174 = vadd.xlane.f32.xlu0 %v173
  %v175 = vpop.xlane.xlu0 %174
  %v176 = vsel %vm160, %v37, 0.0
  %177 = vadd.xlane.f32.xlu0 %v176
  %v178 = vpop.xlane.xlu0 %177
  %v179 = vsel %vm160, %v38, 0.0
  %180 = vadd.xlane.f32.xlu0 %v179
  %v181 = vpop.xlane.xlu0 %180
  %v182 = vsel %vm160, %v39, 0.0
  %183 = vadd.xlane.f32.xlu0 %v182
  %v184 = vpop.xlane.xlu0 %183
  %v185 = vsel %vm160, %v40, 0.0
  %186 = vadd.xlane.f32.xlu0 %v185
  %v187 = vpop.xlane.xlu0 %186
  %v188 = vsel %vm160, %v41, 0.0
  %189 = vadd.xlane.f32.xlu0 %v188
  %v190 = vpop.xlane.xlu0 %189
  %v191 = vsel %vm160, %v42, 0.0
  %192 = vadd.xlane.f32.xlu0 %v191
  %v193 = vpop.xlane.xlu0 %192
  %v194 = vsel %vm160, %v43, 0.0
  %195 = vadd.xlane.f32.xlu0 %v194
  %v196 = vpop.xlane.xlu0 %195
  %v197 = vsel %vm160, %v44, 0.0
  %198 = vadd.xlane.f32.xlu0 %v197
  %v199 = vpop.xlane.xlu0 %198
  %v200 = vsel %vm160, %v45, 0.0
  %201 = vadd.xlane.f32.xlu0 %v200
  %v202 = vpop.xlane.xlu0 %201
  %v203 = vsel %vm160, %v46, 0.0
  %204 = vadd.xlane.f32.xlu0 %v203
  %v205 = vpop.xlane.xlu0 %204
  %v206 = vsel %vm160, %v47, 0.0
  %207 = vadd.xlane.f32.xlu0 %v206
  %v208 = vpop.xlane.xlu0 %207
  %v209 = vsel %vm160, %v48, 0.0
  %210 = vadd.xlane.f32.xlu0 %v209
  %v211 = vpop.xlane.xlu0 %210
  %v212 = vsel %vm160, %v49, 0.0
  %213 = vadd.xlane.f32.xlu0 %v212
  %v214 = vpop.xlane.xlu0 %213
  %v215 = vsel %vm160, %v50, 0.0
  %216 = vadd.xlane.f32.xlu0 %v215
  %v217 = vpop.xlane.xlu0 %216
  %v218 = vsel %vm160, %v51, 0.0
  %219 = vadd.xlane.f32.xlu0 %v218
  %v220 = vpop.xlane.xlu0 %219
  %v221 = vsel %vm160, %v52, 0.0
  %222 = vadd.xlane.f32.xlu0 %v221
  %v223 = vpop.xlane.xlu0 %222
  %v224 = vsel %vm160, %v53, 0.0
  %225 = vadd.xlane.f32.xlu0 %v224
  %v226 = vpop.xlane.xlu0 %225
  %v227 = vsel %vm160, %v54, 0.0
  %228 = vadd.xlane.f32.xlu0 %v227
  %v229 = vpop.xlane.xlu0 %228
  %v230 = vsel %vm160, %v55, 0.0
  %231 = vadd.xlane.f32.xlu0 %v230
  %v232 = vpop.xlane.xlu0 %231
  %v233 = vsel %vm160, %v56, 0.0
  %234 = vadd.xlane.f32.xlu0 %v233
  %v235 = vpop.xlane.xlu0 %234
  %v236 = vsel %vm160, %v57, 0.0
  %237 = vadd.xlane.f32.xlu0 %v236
  %v238 = vpop.xlane.xlu0 %237
  %v239 = vsel %vm160, %v58, 0.0
  %240 = vadd.xlane.f32.xlu0 %v239
  %v241 = vpop.xlane.xlu0 %240
  %v242 = vsel %vm160, %v59, 0.0
  %243 = vadd.xlane.f32.xlu0 %v242
  %v244 = vpop.xlane.xlu0 %243
  %v245 = vsel %vm160, %v60, 0.0
  %246 = vadd.xlane.f32.xlu0 %v245
  %v247 = vpop.xlane.xlu0 %246
  %v248 = vsel %vm160, %v61, 0.0
  %249 = vadd.xlane.f32.xlu0 %v248
  %v250 = vpop.xlane.xlu0 %249
  %v251 = vsel %vm160, %v62, 0.0
  %252 = vadd.xlane.f32.xlu0 %v251
  %v253 = vpop.xlane.xlu0 %252
  %v254 = vsel %vm160, %v63, 0.0
  %255 = vadd.xlane.f32.xlu0 %v254
  %v256 = vpop.xlane.xlu0 %255
  %v257 = vsel %vm160, %v64, 0.0
  %258 = vadd.xlane.f32.xlu0 %v257
  %v259 = vpop.xlane.xlu0 %258
  %v260 = vsel %vm160, %v65, 0.0
  %261 = vadd.xlane.f32.xlu0 %v260
  %v262 = vpop.xlane.xlu0 %261
  %v263 = vsel %vm160, %v66, 0.0
  %264 = vadd.xlane.f32.xlu0 %v263
  %v265 = vpop.xlane.xlu0 %264
  %v266 = vsel %vm160, %v67, 0.0
  %267 = vadd.xlane.f32.xlu0 %v266
  %v268 = vpop.xlane.xlu0 %267
  %v269 = vsel %vm160, %v68, 0.0
  %270 = vadd.xlane.f32.xlu0 %v269
  %v271 = vpop.xlane.xlu0 %270
  %v272 = vsel %vm160, %v69, 0.0
  %273 = vadd.xlane.f32.xlu0 %v272
  %v274 = vpop.xlane.xlu0 %273
  %v275 = vsel %vm160, %v70, 0.0
  %276 = vadd.xlane.f32.xlu0 %v275
  %v277 = vpop.xlane.xlu0 %276
  %v278 = vsel %vm160, %v71, 0.0
  %279 = vadd.xlane.f32.xlu0 %v278
  %v280 = vpop.xlane.xlu0 %279
  %v281 = vsel %vm160, %v72, 0.0
  %282 = vadd.xlane.f32.xlu0 %v281
  %v283 = vpop.xlane.xlu0 %282
  %v284 = vsel %vm160, %v73, 0.0
  %285 = vadd.xlane.f32.xlu0 %v284
  %v286 = vpop.xlane.xlu0 %285
  %v287 = vsel %vm160, %v74, 0.0
  %288 = vadd.xlane.f32.xlu0 %v287
  %v289 = vpop.xlane.xlu0 %288
  %v290 = vsel %vm160, %v75, 0.0
  %291 = vadd.xlane.f32.xlu0 %v290
  %v292 = vpop.xlane.xlu0 %291
  %v293 = vsel %vm160, %v76, 0.0
  %294 = vadd.xlane.f32.xlu0 %v293
  %v295 = vpop.xlane.xlu0 %294
  %v296 = vsel %vm160, %v77, 0.0
  %297 = vadd.xlane.f32.xlu0 %v296
  %v298 = vpop.xlane.xlu0 %297
  %v299 = vsel %vm160, %v78, 0.0
  %300 = vadd.xlane.f32.xlu0 %v299
  %v301 = vpop.xlane.xlu0 %300
  %v302 = vsel %vm160, %v79, 0.0
  %303 = vadd.xlane.f32.xlu0 %v302
  %v304 = vpop.xlane.xlu0 %303
  %v305 = vsel %vm160, %v80, 0.0
  %306 = vadd.xlane.f32.xlu0 %v305
  %v307 = vpop.xlane.xlu0 %306
  %v308 = vsel %vm160, %v81, 0.0
  %309 = vadd.xlane.f32.xlu0 %v308
  %v310 = vpop.xlane.xlu0 %309
  %v311 = vsel %vm160, %v82, 0.0
  %312 = vadd.xlane.f32.xlu0 %v311
  %v313 = vpop.xlane.xlu0 %312
  %v314 = vsel %vm160, %v83, 0.0
  %315 = vadd.xlane.f32.xlu0 %v314
  %v316 = vpop.xlane.xlu0 %315
  %v317 = vsel %vm160, %v84, 0.0
  %318 = vadd.xlane.f32.xlu0 %v317
  %v319 = vpop.xlane.xlu0 %318
  %v320 = vsel %vm160, %v85, 0.0
  %321 = vadd.xlane.f32.xlu0 %v320
  %v322 = vpop.xlane.xlu0 %321
  %v323 = vsel %vm160, %v86, 0.0
  %324 = vadd.xlane.f32.xlu0 %v323
  %v325 = vpop.xlane.xlu0 %324
  %v326 = vsel %vm160, %v87, 0.0
  %327 = vadd.xlane.f32.xlu0 %v326
  %v328 = vpop.xlane.xlu0 %327
  %v329 = vsel %vm160, %v88, 0.0
  %330 = vadd.xlane.f32.xlu0 %v329
  %v331 = vpop.xlane.xlu0 %330
  %v332 = vsel %vm160, %v89, 0.0
  %333 = vadd.xlane.f32.xlu0 %v332
  %v334 = vpop.xlane.xlu0 %333
  %v335 = vsel %vm160, %v90, 0.0
  %336 = vadd.xlane.f32.xlu0 %v335
  %v337 = vpop.xlane.xlu0 %336
  %v338 = vsel %vm160, %v91, 0.0
  %339 = vadd.xlane.f32.xlu0 %v338
  %v340 = vpop.xlane.xlu0 %339
  %v341 = vsel %vm160, %v92, 0.0
  %342 = vadd.xlane.f32.xlu0 %v341
  %v343 = vpop.xlane.xlu0 %342
  %v344 = vsel %vm160, %v93, 0.0
  %345 = vadd.xlane.f32.xlu0 %v344
  %v346 = vpop.xlane.xlu0 %345
  %v347 = vsel %vm160, %v94, 0.0
  %348 = vadd.xlane.f32.xlu0 %v347
  %v349 = vpop.xlane.xlu0 %348
  %v350 = vsel %vm160, %v95, 0.0
  %351 = vadd.xlane.f32.xlu0 %v350
  %v352 = vpop.xlane.xlu0 %351
  %v353 = vsel %vm160, %v96, 0.0
  %354 = vadd.xlane.f32.xlu0 %v353
  %v355 = vpop.xlane.xlu0 %354
  %v356 = vsel %vm160, %v97, 0.0
  %357 = vadd.xlane.f32.xlu0 %v356
  %v358 = vpop.xlane.xlu0 %357
  %v359 = vsel %vm160, %v98, 0.0
  %360 = vadd.xlane.f32.xlu0 %v359
  %v361 = vpop.xlane.xlu0 %360
  %v362 = vsel %vm160, %v99, 0.0
  %363 = vadd.xlane.f32.xlu0 %v362
  %v364 = vpop.xlane.xlu0 %363
  %v365 = vsel %vm160, %v100, 0.0
  %366 = vadd.xlane.f32.xlu0 %v365
  %v367 = vpop.xlane.xlu0 %366
  %v368 = vsel %vm160, %v101, 0.0
  %369 = vadd.xlane.f32.xlu0 %v368
  %v370 = vpop.xlane.xlu0 %369
  %v371 = vsel %vm160, %v102, 0.0
  %372 = vadd.xlane.f32.xlu0 %v371
  %v373 = vpop.xlane.xlu0 %372
  %v374 = vsel %vm160, %v103, 0.0
  %375 = vadd.xlane.f32.xlu0 %v374
  %v376 = vpop.xlane.xlu0 %375
  %v377 = vsel %vm160, %v104, 0.0
  %378 = vadd.xlane.f32.xlu0 %v377
  %v379 = vpop.xlane.xlu0 %378
  %v380 = vsel %vm160, %v105, 0.0
  %381 = vadd.xlane.f32.xlu0 %v380
  %v382 = vpop.xlane.xlu0 %381
  %v383 = vsel %vm160, %v106, 0.0
  %384 = vadd.xlane.f32.xlu0 %v383
  %v385 = vpop.xlane.xlu0 %384
  %v386 = vsel %vm160, %v107, 0.0
  %387 = vadd.xlane.f32.xlu0 %v386
  %v388 = vpop.xlane.xlu0 %387
  %v389 = vsel %vm160, %v108, 0.0
  %390 = vadd.xlane.f32.xlu0 %v389
  %v391 = vpop.xlane.xlu0 %390
  %v392 = vsel %vm160, %v109, 0.0
  %393 = vadd.xlane.f32.xlu0 %v392
  %v394 = vpop.xlane.xlu0 %393
  %v395 = vsel %vm160, %v110, 0.0
  %396 = vadd.xlane.f32.xlu0 %v395
  %v397 = vpop.xlane.xlu0 %396
  %v398 = vsel %vm160, %v111, 0.0
  %399 = vadd.xlane.f32.xlu0 %v398
  %v400 = vpop.xlane.xlu0 %399
  %v401 = vsel %vm160, %v112, 0.0
  %402 = vadd.xlane.f32.xlu0 %v401
  %v403 = vpop.xlane.xlu0 %402
  %v404 = vsel %vm160, %v113, 0.0
  %405 = vadd.xlane.f32.xlu0 %v404
  %v406 = vpop.xlane.xlu0 %405
  %v407 = vsel %vm160, %v114, 0.0
  %408 = vadd.xlane.f32.xlu0 %v407
  %v409 = vpop.xlane.xlu0 %408
  %v410 = vsel %vm160, %v115, 0.0
  %411 = vadd.xlane.f32.xlu0 %v410
  %v412 = vpop.xlane.xlu0 %411
  %v413 = vsel %vm160, %v116, 0.0
  %414 = vadd.xlane.f32.xlu0 %v413
  %v415 = vpop.xlane.xlu0 %414
  %v416 = vsel %vm160, %v117, 0.0
  %417 = vadd.xlane.f32.xlu0 %v416
  %v418 = vpop.xlane.xlu0 %417
  %v419 = vsel %vm160, %v118, 0.0
  %420 = vadd.xlane.f32.xlu0 %v419
  %v421 = vpop.xlane.xlu0 %420
  %v422 = vsel %vm160, %v119, 0.0
  %423 = vadd.xlane.f32.xlu0 %v422
  %v424 = vpop.xlane.xlu0 %423
  %v425 = vsel %vm160, %v120, 0.0
  %426 = vadd.xlane.f32.xlu0 %v425
  %v427 = vpop.xlane.xlu0 %426
  %v428 = vsel %vm160, %v121, 0.0
  %429 = vadd.xlane.f32.xlu0 %v428
  %v430 = vpop.xlane.xlu0 %429
  %v431 = vsel %vm160, %v122, 0.0
  %432 = vadd.xlane.f32.xlu0 %v431
  %v433 = vpop.xlane.xlu0 %432
  %v434 = vsel %vm160, %v123, 0.0
  %435 = vadd.xlane.f32.xlu0 %v434
  %v436 = vpop.xlane.xlu0 %435
  %v437 = vsel %vm160, %v124, 0.0
  %438 = vadd.xlane.f32.xlu0 %v437
  %v439 = vpop.xlane.xlu0 %438
  %v440 = vsel %vm160, %v125, 0.0
  %441 = vadd.xlane.f32.xlu0 %v440
  %v442 = vpop.xlane.xlu0 %441
  %v443 = vsel %vm160, %v126, 0.0
  %444 = vadd.xlane.f32.xlu0 %v443
  %v445 = vpop.xlane.xlu0 %444
  %v446 = vsel %vm160, %v127, 0.0
  %447 = vadd.xlane.f32.xlu0 %v446
  %v448 = vpop.xlane.xlu0 %447
  %v449 = vsel %vm160, %v128, 0.0
  %450 = vadd.xlane.f32.xlu0 %v449
  %v451 = vpop.xlane.xlu0 %450
  %v452 = vsel %vm160, %v129, 0.0
  %453 = vadd.xlane.f32.xlu0 %v452
  %v454 = vpop.xlane.xlu0 %453
  %v455 = vsel %vm160, %v130, 0.0
  %456 = vadd.xlane.f32.xlu0 %v455
  %v457 = vpop.xlane.xlu0 %456
  %v458 = vsel %vm160, %v131, 0.0
  %459 = vadd.xlane.f32.xlu0 %v458
  %v460 = vpop.xlane.xlu0 %459
  %v461 = vsel %vm160, %v132, 0.0
  %462 = vadd.xlane.f32.xlu0 %v461
  %v463 = vpop.xlane.xlu0 %462
  %v464 = vsel %vm160, %v133, 0.0
  %465 = vadd.xlane.f32.xlu0 %v464
  %v466 = vpop.xlane.xlu0 %465
  %v467 = vsel %vm160, %v134, 0.0
  %468 = vadd.xlane.f32.xlu0 %v467
  %v469 = vpop.xlane.xlu0 %468
  %v470 = vsel %vm160, %v135, 0.0
  %471 = vadd.xlane.f32.xlu0 %v470
  %v472 = vpop.xlane.xlu0 %471
  %v473 = vsel %vm160, %v136, 0.0
  %474 = vadd.xlane.f32.xlu0 %v473
  %v475 = vpop.xlane.xlu0 %474
  %v476 = vsel %vm160, %v137, 0.0
  %477 = vadd.xlane.f32.xlu0 %v476
  %v478 = vpop.xlane.xlu0 %477
  %v479 = vsel %vm160, %v138, 0.0
  %480 = vadd.xlane.f32.xlu0 %v479
  %v481 = vpop.xlane.xlu0 %480
  %v482 = vsel %vm160, %v139, 0.0
  %483 = vadd.xlane.f32.xlu0 %v482
  %v484 = vpop.xlane.xlu0 %483
  %v485 = vsel %vm160, %v140, 0.0
  %486 = vadd.xlane.f32.xlu0 %v485
  %v487 = vpop.xlane.xlu0 %486
  %v488 = vsel %vm160, %v141, 0.0
  %489 = vadd.xlane.f32.xlu0 %v488
  %v490 = vpop.xlane.xlu0 %489
  %v491 = vsel %vm160, %v142, 0.0
  %492 = vadd.xlane.f32.xlu0 %v491
  %v493 = vpop.xlane.xlu0 %492
  %v494 = vsel %vm160, %v143, 0.0
  %495 = vadd.xlane.f32.xlu0 %v494
  %v496 = vpop.xlane.xlu0 %495
  %v497 = vsel %vm160, %v144, 0.0
  %498 = vadd.xlane.f32.xlu0 %v497
  %v499 = vpop.xlane.xlu0 %498
  %v500 = vsel %vm160, %v145, 0.0
  %501 = vadd.xlane.f32.xlu0 %v500
  %v502 = vpop.xlane.xlu0 %501
  %v503 = vsel %vm160, %v146, 0.0
  %504 = vadd.xlane.f32.xlu0 %v503
  %v505 = vpop.xlane.xlu0 %504
  %v506 = vsel %vm160, %v147, 0.0
  %507 = vadd.xlane.f32.xlu0 %v506
  %v508 = vpop.xlane.xlu0 %507
  %v509 = vsel %vm160, %v148, 0.0
  %510 = vadd.xlane.f32.xlu0 %v509
  %v511 = vpop.xlane.xlu0 %510
  %v512 = vsel %vm160, %v149, 0.0
  %513 = vadd.xlane.f32.xlu0 %v512
  %v514 = vpop.xlane.xlu0 %513
  %v515 = vsel %vm160, %v150, 0.0
  %516 = vadd.xlane.f32.xlu0 %v515
  %v517 = vpop.xlane.xlu0 %516
  %v518 = vsel %vm160, %v151, 0.0
  %519 = vadd.xlane.f32.xlu0 %v518
  %v520 = vpop.xlane.xlu0 %519
  %v521 = vsel %vm160, %v152, 0.0
  %522 = vadd.xlane.f32.xlu0 %v521
  %v523 = vpop.xlane.xlu0 %522
  %v524 = vsel %vm160, %v153, 0.0
  %525 = vadd.xlane.f32.xlu0 %v524
  %v526 = vpop.xlane.xlu0 %525
  %v527 = vsel %vm160, %v154, 0.0
  %528 = vadd.xlane.f32.xlu0 %v527
  %v529 = vpop.xlane.xlu0 %528
  %v530 = vsel %vm160, %v155, 0.0
  %531 = vadd.xlane.f32.xlu0 %v530
  %v532 = vpop.xlane.xlu0 %531
  %v533 = vsel %vm160, %v156, 0.0
  %534 = vadd.xlane.f32.xlu0 %v533
  %v535 = vpop.xlane.xlu0 %534
  %v536 = vsel %vm160, %v157, 0.0
  %537 = vadd.xlane.f32.xlu0 %v536
  %v538 = vpop.xlane.xlu0 %537
  %v539 = vsel %vm160, %v158, 0.0
  %540 = vadd.xlane.f32.xlu0 %v539
  %v541 = vpop.xlane.xlu0 %540
  %v542 = vsel %vm160, %v159, 0.0
  %543 = vadd.xlane.f32.xlu0 %v542
  %v544 = vpop.xlane.xlu0 %543
  %v545 = vmul.f32 %v163, 0.0625
  %v546 = vmul.f32 %v166, 0.0625
  %v547 = vmul.f32 %v169, 0.0625
  %v548 = vmul.f32 %v172, 0.0625
  %v549 = vmul.f32 %v175, 0.0625
  %v550 = vmul.f32 %v178, 0.0625
  %v551 = vmul.f32 %v181, 0.0625
  %v552 = vmul.f32 %v184, 0.0625
  %v553 = vmul.f32 %v187, 0.0625
  %v554 = vmul.f32 %v190, 0.0625
  %v555 = vmul.f32 %v193, 0.0625
  %v556 = vmul.f32 %v196, 0.0625
  %v557 = vmul.f32 %v199, 0.0625
  %v558 = vmul.f32 %v202, 0.0625
  %v559 = vmul.f32 %v205, 0.0625
  %v560 = vmul.f32 %v208, 0.0625
  %v561 = vmul.f32 %v211, 0.0625
  %v562 = vmul.f32 %v214, 0.0625
  %v563 = vmul.f32 %v217, 0.0625
  %v564 = vmul.f32 %v220, 0.0625
  %v565 = vmul.f32 %v223, 0.0625
  %v566 = vmul.f32 %v226, 0.0625
  %v567 = vmul.f32 %v229, 0.0625
  %v568 = vmul.f32 %v232, 0.0625
  %v569 = vmul.f32 %v235, 0.0625
  %v570 = vmul.f32 %v238, 0.0625
  %v571 = vmul.f32 %v241, 0.0625
  %v572 = vmul.f32 %v244, 0.0625
  %v573 = vmul.f32 %v247, 0.0625
  %v574 = vmul.f32 %v250, 0.0625
  %v575 = vmul.f32 %v253, 0.0625
  %v576 = vmul.f32 %v256, 0.0625
  %v577 = vmul.f32 %v259, 0.0625
  %v578 = vmul.f32 %v262, 0.0625
  %v579 = vmul.f32 %v265, 0.0625
  %v580 = vmul.f32 %v268, 0.0625
  %v581 = vmul.f32 %v271, 0.0625
  %v582 = vmul.f32 %v274, 0.0625
  %v583 = vmul.f32 %v277, 0.0625
  %v584 = vmul.f32 %v280, 0.0625
  %v585 = vmul.f32 %v283, 0.0625
  %v586 = vmul.f32 %v286, 0.0625
  %v587 = vmul.f32 %v289, 0.0625
  %v588 = vmul.f32 %v292, 0.0625
  %v589 = vmul.f32 %v295, 0.0625
  %v590 = vmul.f32 %v298, 0.0625
  %v591 = vmul.f32 %v301, 0.0625
  %v592 = vmul.f32 %v304, 0.0625
  %v593 = vmul.f32 %v307, 0.0625
  %v594 = vmul.f32 %v310, 0.0625
  %v595 = vmul.f32 %v313, 0.0625
  %v596 = vmul.f32 %v316, 0.0625
  %v597 = vmul.f32 %v319, 0.0625
  %v598 = vmul.f32 %v322, 0.0625
  %v599 = vmul.f32 %v325, 0.0625
  %v600 = vmul.f32 %v328, 0.0625
  %v601 = vmul.f32 %v331, 0.0625
  %v602 = vmul.f32 %v334, 0.0625
  %v603 = vmul.f32 %v337, 0.0625
  %v604 = vmul.f32 %v340, 0.0625
  %v605 = vmul.f32 %v343, 0.0625
  %v606 = vmul.f32 %v346, 0.0625
  %v607 = vmul.f32 %v349, 0.0625
  %v608 = vmul.f32 %v352, 0.0625
  %v609 = vmul.f32 %v355, 0.0625
  %v610 = vmul.f32 %v358, 0.0625
  %v611 = vmul.f32 %v361, 0.0625
  %v612 = vmul.f32 %v364, 0.0625
  %v613 = vmul.f32 %v367, 0.0625
  %v614 = vmul.f32 %v370, 0.0625
  %v615 = vmul.f32 %v373, 0.0625
  %v616 = vmul.f32 %v376, 0.0625
  %v617 = vmul.f32 %v379, 0.0625
  %v618 = vmul.f32 %v382, 0.0625
  %v619 = vmul.f32 %v385, 0.0625
  %v620 = vmul.f32 %v388, 0.0625
  %v621 = vmul.f32 %v391, 0.0625
  %v622 = vmul.f32 %v394, 0.0625
  %v623 = vmul.f32 %v397, 0.0625
  %v624 = vmul.f32 %v400, 0.0625
  %v625 = vmul.f32 %v403, 0.0625
  %v626 = vmul.f32 %v406, 0.0625
  %v627 = vmul.f32 %v409, 0.0625
  %v628 = vmul.f32 %v412, 0.0625
  %v629 = vmul.f32 %v415, 0.0625
  %v630 = vmul.f32 %v418, 0.0625
  %v631 = vmul.f32 %v421, 0.0625
  %v632 = vmul.f32 %v424, 0.0625
  %v633 = vmul.f32 %v427, 0.0625
  %v634 = vmul.f32 %v430, 0.0625
  %v635 = vmul.f32 %v433, 0.0625
  %v636 = vmul.f32 %v436, 0.0625
  %v637 = vmul.f32 %v439, 0.0625
  %v638 = vmul.f32 %v442, 0.0625
  %v639 = vmul.f32 %v445, 0.0625
  %v640 = vmul.f32 %v448, 0.0625
  %v641 = vmul.f32 %v451, 0.0625
  %v642 = vmul.f32 %v454, 0.0625
  %v643 = vmul.f32 %v457, 0.0625
  %v644 = vmul.f32 %v460, 0.0625
  %v645 = vmul.f32 %v463, 0.0625
  %v646 = vmul.f32 %v466, 0.0625
  %v647 = vmul.f32 %v469, 0.0625
  %v648 = vmul.f32 %v472, 0.0625
  %v649 = vmul.f32 %v475, 0.0625
  %v650 = vmul.f32 %v478, 0.0625
  %v651 = vmul.f32 %v481, 0.0625
  %v652 = vmul.f32 %v484, 0.0625
  %v653 = vmul.f32 %v487, 0.0625
  %v654 = vmul.f32 %v490, 0.0625
  %v655 = vmul.f32 %v493, 0.0625
  %v656 = vmul.f32 %v496, 0.0625
  %v657 = vmul.f32 %v499, 0.0625
  %v658 = vmul.f32 %v502, 0.0625
  %v659 = vmul.f32 %v505, 0.0625
  %v660 = vmul.f32 %v508, 0.0625
  %v661 = vmul.f32 %v511, 0.0625
  %v662 = vmul.f32 %v514, 0.0625
  %v663 = vmul.f32 %v517, 0.0625
  %v664 = vmul.f32 %v520, 0.0625
  %v665 = vmul.f32 %v523, 0.0625
  %v666 = vmul.f32 %v526, 0.0625
  %v667 = vmul.f32 %v529, 0.0625
  %v668 = vmul.f32 %v532, 0.0625
  %v669 = vmul.f32 %v535, 0.0625
  %v670 = vmul.f32 %v538, 0.0625
  %v671 = vmul.f32 %v541, 0.0625
  %v672 = vmul.f32 %v544, 0.0625
  %v673 = vadd.f32 %v161, %v164
  %v674 = vrot.slane %v673, 4
  %v675 = vadd.f32 %v673, %v674
  %v676 = vrot.slane %v675, 2
  %v677 = vadd.f32 %v675, %v676
  %v678 = vrot.slane %v677, 1
  %v679 = vadd.f32 %v677, %v678
  %v680 = vadd.f32 %v167, %v170
  %v681 = vrot.slane %v680, 4
  %v682 = vadd.f32 %v680, %v681
  %v683 = vrot.slane %v682, 2
  %v684 = vadd.f32 %v682, %v683
  %v685 = vrot.slane %v684, 1
  %v686 = vadd.f32 %v684, %v685
  %v687 = vadd.f32 %v173, %v176
  %v688 = vrot.slane %v687, 4
  %v689 = vadd.f32 %v687, %v688
  %v690 = vrot.slane %v689, 2
  %v691 = vadd.f32 %v689, %v690
  %v692 = vrot.slane %v691, 1
  %v693 = vadd.f32 %v691, %v692
  %v694 = vadd.f32 %v179, %v182
  %v695 = vrot.slane %v694, 4
  %v696 = vadd.f32 %v694, %v695
  %v697 = vrot.slane %v696, 2
  %v698 = vadd.f32 %v696, %v697
  %v699 = vrot.slane %v698, 1
  %v700 = vadd.f32 %v698, %v699
  %v701 = vadd.f32 %v185, %v188
  %v702 = vrot.slane %v701, 4
  %v703 = vadd.f32 %v701, %v702
  %v704 = vrot.slane %v703, 2
  %v705 = vadd.f32 %v703, %v704
  %v706 = vrot.slane %v705, 1
  %v707 = vadd.f32 %v705, %v706
  %v708 = vadd.f32 %v191, %v194
  %v709 = vrot.slane %v708, 4
  %v710 = vadd.f32 %v708, %v709
  %v711 = vrot.slane %v710, 2
  %v712 = vadd.f32 %v710, %v711
  %v713 = vrot.slane %v712, 1
  %v714 = vadd.f32 %v712, %v713
  %v715 = vadd.f32 %v197, %v200
  %v716 = vrot.slane %v715, 4
  %v717 = vadd.f32 %v715, %v716
  %v718 = vrot.slane %v717, 2
  %v719 = vadd.f32 %v717, %v718
  %v720 = vrot.slane %v719, 1
  %v721 = vadd.f32 %v719, %v720
  %v722 = vadd.f32 %v203, %v206
  %v723 = vrot.slane %v722, 4
  %v724 = vadd.f32 %v722, %v723
  %v725 = vrot.slane %v724, 2
  %v726 = vadd.f32 %v724, %v725
  %v727 = vrot.slane %v726, 1
  %v728 = vadd.f32 %v726, %v727
  %v729 = vadd.f32 %v209, %v212
  %v730 = vrot.slane %v729, 4
  %v731 = vadd.f32 %v729, %v730
  %v732 = vrot.slane %v731, 2
  %v733 = vadd.f32 %v731, %v732
  %v734 = vrot.slane %v733, 1
  %v735 = vadd.f32 %v733, %v734
  %v736 = vadd.f32 %v215, %v218
  %v737 = vrot.slane %v736, 4
  %v738 = vadd.f32 %v736, %v737
  %v739 = vrot.slane %v738, 2
  %v740 = vadd.f32 %v738, %v739
  %v741 = vrot.slane %v740, 1
  %v742 = vadd.f32 %v740, %v741
  %v743 = vadd.f32 %v221, %v224
  %v744 = vrot.slane %v743, 4
  %v745 = vadd.f32 %v743, %v744
  %v746 = vrot.slane %v745, 2
  %v747 = vadd.f32 %v745, %v746
  %v748 = vrot.slane %v747, 1
  %v749 = vadd.f32 %v747, %v748
  %v750 = vadd.f32 %v227, %v230
  %v751 = vrot.slane %v750, 4
  %v752 = vadd.f32 %v750, %v751
  %v753 = vrot.slane %v752, 2
  %v754 = vadd.f32 %v752, %v753
  %v755 = vrot.slane %v754, 1
  %v756 = vadd.f32 %v754, %v755
  %v757 = vadd.f32 %v233, %v236
  %v758 = vrot.slane %v757, 4
  %v759 = vadd.f32 %v757, %v758
  %v760 = vrot.slane %v759, 2
  %v761 = vadd.f32 %v759, %v760
  %v762 = vrot.slane %v761, 1
  %v763 = vadd.f32 %v761, %v762
  %v764 = vadd.f32 %v239, %v242
  %v765 = vrot.slane %v764, 4
  %v766 = vadd.f32 %v764, %v765
  %v767 = vrot.slane %v766, 2
  %v768 = vadd.f32 %v766, %v767
  %v769 = vrot.slane %v768, 1
  %v770 = vadd.f32 %v768, %v769
  %v771 = vadd.f32 %v245, %v248
  %v772 = vrot.slane %v771, 4
  %v773 = vadd.f32 %v771, %v772
  %v774 = vrot.slane %v773, 2
  %v775 = vadd.f32 %v773, %v774
  %v776 = vrot.slane %v775, 1
  %v777 = vadd.f32 %v775, %v776
  %v778 = vadd.f32 %v251, %v254
  %v779 = vrot.slane %v778, 4
  %v780 = vadd.f32 %v778, %v779
  %v781 = vrot.slane %v780, 2
  %v782 = vadd.f32 %v780, %v781
  %v783 = vrot.slane %v782, 1
  %v784 = vadd.f32 %v782, %v783
  %v785 = vadd.f32 %v257, %v260
  %v786 = vrot.slane %v785, 4
  %v787 = vadd.f32 %v785, %v786
  %v788 = vrot.slane %v787, 2
  %v789 = vadd.f32 %v787, %v788
  %v790 = vrot.slane %v789, 1
  %v791 = vadd.f32 %v789, %v790
  %v792 = vadd.f32 %v263, %v266
  %v793 = vrot.slane %v792, 4
  %v794 = vadd.f32 %v792, %v793
  %v795 = vrot.slane %v794, 2
  %v796 = vadd.f32 %v794, %v795
  %v797 = vrot.slane %v796, 1
  %v798 = vadd.f32 %v796, %v797
  %v799 = vadd.f32 %v269, %v272
  %v800 = vrot.slane %v799, 4
  %v801 = vadd.f32 %v799, %v800
  %v802 = vrot.slane %v801, 2
  %v803 = vadd.f32 %v801, %v802
  %v804 = vrot.slane %v803, 1
  %v805 = vadd.f32 %v803, %v804
  %v806 = vadd.f32 %v275, %v278
  %v807 = vrot.slane %v806, 4
  %v808 = vadd.f32 %v806, %v807
  %v809 = vrot.slane %v808, 2
  %v810 = vadd.f32 %v808, %v809
  %v811 = vrot.slane %v810, 1
  %v812 = vadd.f32 %v810, %v811
  %v813 = vadd.f32 %v281, %v284
  %v814 = vrot.slane %v813, 4
  %v815 = vadd.f32 %v813, %v814
  %v816 = vrot.slane %v815, 2
  %v817 = vadd.f32 %v815, %v816
  %v818 = vrot.slane %v817, 1
  %v819 = vadd.f32 %v817, %v818
  %v820 = vadd.f32 %v287, %v290
  %v821 = vrot.slane %v820, 4
  %v822 = vadd.f32 %v820, %v821
  %v823 = vrot.slane %v822, 2
  %v824 = vadd.f32 %v822, %v823
  %v825 = vrot.slane %v824, 1
  %v826 = vadd.f32 %v824, %v825
  %v827 = vadd.f32 %v293, %v296
  %v828 = vrot.slane %v827, 4
  %v829 = vadd.f32 %v827, %v828
  %v830 = vrot.slane %v829, 2
  %v831 = vadd.f32 %v829, %v830
  %v832 = vrot.slane %v831, 1
  %v833 = vadd.f32 %v831, %v832
  %v834 = vadd.f32 %v299, %v302
  %v835 = vrot.slane %v834, 4
  %v836 = vadd.f32 %v834, %v835
  %v837 = vrot.slane %v836, 2
  %v838 = vadd.f32 %v836, %v837
  %v839 = vrot.slane %v838, 1
  %v840 = vadd.f32 %v838, %v839
  %v841 = vadd.f32 %v305, %v308
  %v842 = vrot.slane %v841, 4
  %v843 = vadd.f32 %v841, %v842
  %v844 = vrot.slane %v843, 2
  %v845 = vadd.f32 %v843, %v844
  %v846 = vrot.slane %v845, 1
  %v847 = vadd.f32 %v845, %v846
  %v848 = vadd.f32 %v311, %v314
  %v849 = vrot.slane %v848, 4
  %v850 = vadd.f32 %v848, %v849
  %v851 = vrot.slane %v850, 2
  %v852 = vadd.f32 %v850, %v851
  %v853 = vrot.slane %v852, 1
  %v854 = vadd.f32 %v852, %v853
  %v855 = vadd.f32 %v317, %v320
  %v856 = vrot.slane %v855, 4
  %v857 = vadd.f32 %v855, %v856
  %v858 = vrot.slane %v857, 2
  %v859 = vadd.f32 %v857, %v858
  %v860 = vrot.slane %v859, 1
  %v861 = vadd.f32 %v859, %v860
  %v862 = vadd.f32 %v323, %v326
  %v863 = vrot.slane %v862, 4
  %v864 = vadd.f32 %v862, %v863
  %v865 = vrot.slane %v864, 2
  %v866 = vadd.f32 %v864, %v865
  %v867 = vrot.slane %v866, 1
  %v868 = vadd.f32 %v866, %v867
  %v869 = vadd.f32 %v329, %v332
  %v870 = vrot.slane %v869, 4
  %v871 = vadd.f32 %v869, %v870
  %v872 = vrot.slane %v871, 2
  %v873 = vadd.f32 %v871, %v872
  %v874 = vrot.slane %v873, 1
  %v875 = vadd.f32 %v873, %v874
  %v876 = vadd.f32 %v335, %v338
  %v877 = vrot.slane %v876, 4
  %v878 = vadd.f32 %v876, %v877
  %v879 = vrot.slane %v878, 2
  %v880 = vadd.f32 %v878, %v879
  %v881 = vrot.slane %v880, 1
  %v882 = vadd.f32 %v880, %v881
  %v883 = vadd.f32 %v341, %v344
  %v884 = vrot.slane %v883, 4
  %v885 = vadd.f32 %v883, %v884
  %v886 = vrot.slane %v885, 2
  %v887 = vadd.f32 %v885, %v886
  %v888 = vrot.slane %v887, 1
  %v889 = vadd.f32 %v887, %v888
  %v890 = vadd.f32 %v347, %v350
  %v891 = vrot.slane %v890, 4
  %v892 = vadd.f32 %v890, %v891
  %v893 = vrot.slane %v892, 2
  %v894 = vadd.f32 %v892, %v893
  %v895 = vrot.slane %v894, 1
  %v896 = vadd.f32 %v894, %v895
  %v897 = vadd.f32 %v353, %v356
  %v898 = vrot.slane %v897, 4
  %v899 = vadd.f32 %v897, %v898
  %v900 = vrot.slane %v899, 2
  %v901 = vadd.f32 %v899, %v900
  %v902 = vrot.slane %v901, 1
  %v903 = vadd.f32 %v901, %v902
  %v904 = vadd.f32 %v359, %v362
  %v905 = vrot.slane %v904, 4
  %v906 = vadd.f32 %v904, %v905
  %v907 = vrot.slane %v906, 2
  %v908 = vadd.f32 %v906, %v907
  %v909 = vrot.slane %v908, 1
  %v910 = vadd.f32 %v908, %v909
  %v911 = vadd.f32 %v365, %v368
  %v912 = vrot.slane %v911, 4
  %v913 = vadd.f32 %v911, %v912
  %v914 = vrot.slane %v913, 2
  %v915 = vadd.f32 %v913, %v914
  %v916 = vrot.slane %v915, 1
  %v917 = vadd.f32 %v915, %v916
  %v918 = vadd.f32 %v371, %v374
  %v919 = vrot.slane %v918, 4
  %v920 = vadd.f32 %v918, %v919
  %v921 = vrot.slane %v920, 2
  %v922 = vadd.f32 %v920, %v921
  %v923 = vrot.slane %v922, 1
  %v924 = vadd.f32 %v922, %v923
  %v925 = vadd.f32 %v377, %v380
  %v926 = vrot.slane %v925, 4
  %v927 = vadd.f32 %v925, %v926
  %v928 = vrot.slane %v927, 2
  %v929 = vadd.f32 %v927, %v928
  %v930 = vrot.slane %v929, 1
  %v931 = vadd.f32 %v929, %v930
  %v932 = vadd.f32 %v383, %v386
  %v933 = vrot.slane %v932, 4
  %v934 = vadd.f32 %v932, %v933
  %v935 = vrot.slane %v934, 2
  %v936 = vadd.f32 %v934, %v935
  %v937 = vrot.slane %v936, 1
  %v938 = vadd.f32 %v936, %v937
  %v939 = vadd.f32 %v389, %v392
  %v940 = vrot.slane %v939, 4
  %v941 = vadd.f32 %v939, %v940
  %v942 = vrot.slane %v941, 2
  %v943 = vadd.f32 %v941, %v942
  %v944 = vrot.slane %v943, 1
  %v945 = vadd.f32 %v943, %v944
  %v946 = vadd.f32 %v395, %v398
  %v947 = vrot.slane %v946, 4
  %v948 = vadd.f32 %v946, %v947
  %v949 = vrot.slane %v948, 2
  %v950 = vadd.f32 %v948, %v949
  %v951 = vrot.slane %v950, 1
  %v952 = vadd.f32 %v950, %v951
  %v953 = vadd.f32 %v401, %v404
  %v954 = vrot.slane %v953, 4
  %v955 = vadd.f32 %v953, %v954
  %v956 = vrot.slane %v955, 2
  %v957 = vadd.f32 %v955, %v956
  %v958 = vrot.slane %v957, 1
  %v959 = vadd.f32 %v957, %v958
  %v960 = vadd.f32 %v407, %v410
  %v961 = vrot.slane %v960, 4
  %v962 = vadd.f32 %v960, %v961
  %v963 = vrot.slane %v962, 2
  %v964 = vadd.f32 %v962, %v963
  %v965 = vrot.slane %v964, 1
  %v966 = vadd.f32 %v964, %v965
  %v967 = vadd.f32 %v413, %v416
  %v968 = vrot.slane %v967, 4
  %v969 = vadd.f32 %v967, %v968
  %v970 = vrot.slane %v969, 2
  %v971 = vadd.f32 %v969, %v970
  %v972 = vrot.slane %v971, 1
  %v973 = vadd.f32 %v971, %v972
  %v974 = vadd.f32 %v419, %v422
  %v975 = vrot.slane %v974, 4
  %v976 = vadd.f32 %v974, %v975
  %v977 = vrot.slane %v976, 2
  %v978 = vadd.f32 %v976, %v977
  %v979 = vrot.slane %v978, 1
  %v980 = vadd.f32 %v978, %v979
  %v981 = vadd.f32 %v425, %v428
  %v982 = vrot.slane %v981, 4
  %v983 = vadd.f32 %v981, %v982
  %v984 = vrot.slane %v983, 2
  %v985 = vadd.f32 %v983, %v984
  %v986 = vrot.slane %v985, 1
  %v987 = vadd.f32 %v985, %v986
  %v988 = vadd.f32 %v431, %v434
  %v989 = vrot.slane %v988, 4
  %v990 = vadd.f32 %v988, %v989
  %v991 = vrot.slane %v990, 2
  %v992 = vadd.f32 %v990, %v991
  %v993 = vrot.slane %v992, 1
  %v994 = vadd.f32 %v992, %v993
  %v995 = vadd.f32 %v437, %v440
  %v996 = vrot.slane %v995, 4
  %v997 = vadd.f32 %v995, %v996
  %v998 = vrot.slane %v997, 2
  %v999 = vadd.f32 %v997, %v998
  %v1000 = vrot.slane %v999, 1
  %v1001 = vadd.f32 %v999, %v1000
  %v1002 = vadd.f32 %v443, %v446
  %v1003 = vrot.slane %v1002, 4
  %v1004 = vadd.f32 %v1002, %v1003
  %v1005 = vrot.slane %v1004, 2
  %v1006 = vadd.f32 %v1004, %v1005
  %v1007 = vrot.slane %v1006, 1
  %v1008 = vadd.f32 %v1006, %v1007
  %v1009 = vadd.f32 %v449, %v452
  %v1010 = vrot.slane %v1009, 4
  %v1011 = vadd.f32 %v1009, %v1010
  %v1012 = vrot.slane %v1011, 2
  %v1013 = vadd.f32 %v1011, %v1012
  %v1014 = vrot.slane %v1013, 1
  %v1015 = vadd.f32 %v1013, %v1014
  %v1016 = vadd.f32 %v455, %v458
  %v1017 = vrot.slane %v1016, 4
  %v1018 = vadd.f32 %v1016, %v1017
  %v1019 = vrot.slane %v1018, 2
  %v1020 = vadd.f32 %v1018, %v1019
  %v1021 = vrot.slane %v1020, 1
  %v1022 = vadd.f32 %v1020, %v1021
  %v1023 = vadd.f32 %v461, %v464
  %v1024 = vrot.slane %v1023, 4
  %v1025 = vadd.f32 %v1023, %v1024
  %v1026 = vrot.slane %v1025, 2
  %v1027 = vadd.f32 %v1025, %v1026
  %v1028 = vrot.slane %v1027, 1
  %v1029 = vadd.f32 %v1027, %v1028
  %v1030 = vadd.f32 %v467, %v470
  %v1031 = vrot.slane %v1030, 4
  %v1032 = vadd.f32 %v1030, %v1031
  %v1033 = vrot.slane %v1032, 2
  %v1034 = vadd.f32 %v1032, %v1033
  %v1035 = vrot.slane %v1034, 1
  %v1036 = vadd.f32 %v1034, %v1035
  %v1037 = vadd.f32 %v473, %v476
  %v1038 = vrot.slane %v1037, 4
  %v1039 = vadd.f32 %v1037, %v1038
  %v1040 = vrot.slane %v1039, 2
  %v1041 = vadd.f32 %v1039, %v1040
  %v1042 = vrot.slane %v1041, 1
  %v1043 = vadd.f32 %v1041, %v1042
  %v1044 = vadd.f32 %v479, %v482
  %v1045 = vrot.slane %v1044, 4
  %v1046 = vadd.f32 %v1044, %v1045
  %v1047 = vrot.slane %v1046, 2
  %v1048 = vadd.f32 %v1046, %v1047
  %v1049 = vrot.slane %v1048, 1
  %v1050 = vadd.f32 %v1048, %v1049
  %v1051 = vadd.f32 %v485, %v488
  %v1052 = vrot.slane %v1051, 4
  %v1053 = vadd.f32 %v1051, %v1052
  %v1054 = vrot.slane %v1053, 2
  %v1055 = vadd.f32 %v1053, %v1054
  %v1056 = vrot.slane %v1055, 1
  %v1057 = vadd.f32 %v1055, %v1056
  %v1058 = vadd.f32 %v491, %v494
  %v1059 = vrot.slane %v1058, 4
  %v1060 = vadd.f32 %v1058, %v1059
  %v1061 = vrot.slane %v1060, 2
  %v1062 = vadd.f32 %v1060, %v1061
  %v1063 = vrot.slane %v1062, 1
  %v1064 = vadd.f32 %v1062, %v1063
  %v1065 = vadd.f32 %v497, %v500
  %v1066 = vrot.slane %v1065, 4
  %v1067 = vadd.f32 %v1065, %v1066
  %v1068 = vrot.slane %v1067, 2
  %v1069 = vadd.f32 %v1067, %v1068
  %v1070 = vrot.slane %v1069, 1
  %v1071 = vadd.f32 %v1069, %v1070
  %v1072 = vadd.f32 %v503, %v506
  %v1073 = vrot.slane %v1072, 4
  %v1074 = vadd.f32 %v1072, %v1073
  %v1075 = vrot.slane %v1074, 2
  %v1076 = vadd.f32 %v1074, %v1075
  %v1077 = vrot.slane %v1076, 1
  %v1078 = vadd.f32 %v1076, %v1077
  %v1079 = vadd.f32 %v509, %v512
  %v1080 = vrot.slane %v1079, 4
  %v1081 = vadd.f32 %v1079, %v1080
  %v1082 = vrot.slane %v1081, 2
  %v1083 = vadd.f32 %v1081, %v1082
  %v1084 = vrot.slane %v1083, 1
  %v1085 = vadd.f32 %v1083, %v1084
  %v1086 = vadd.f32 %v515, %v518
  %v1087 = vrot.slane %v1086, 4
  %v1088 = vadd.f32 %v1086, %v1087
  %v1089 = vrot.slane %v1088, 2
  %v1090 = vadd.f32 %v1088, %v1089
  %v1091 = vrot.slane %v1090, 1
  %v1092 = vadd.f32 %v1090, %v1091
  %v1093 = vadd.f32 %v521, %v524
  %v1094 = vrot.slane %v1093, 4
  %v1095 = vadd.f32 %v1093, %v1094
  %v1096 = vrot.slane %v1095, 2
  %v1097 = vadd.f32 %v1095, %v1096
  %v1098 = vrot.slane %v1097, 1
  %v1099 = vadd.f32 %v1097, %v1098
  %v1100 = vadd.f32 %v527, %v530
  %v1101 = vrot.slane %v1100, 4
  %v1102 = vadd.f32 %v1100, %v1101
  %v1103 = vrot.slane %v1102, 2
  %v1104 = vadd.f32 %v1102, %v1103
  %v1105 = vrot.slane %v1104, 1
  %v1106 = vadd.f32 %v1104, %v1105
  %v1107 = vadd.f32 %v533, %v536
  %v1108 = vrot.slane %v1107, 4
  %v1109 = vadd.f32 %v1107, %v1108
  %v1110 = vrot.slane %v1109, 2
  %v1111 = vadd.f32 %v1109, %v1110
  %v1112 = vrot.slane %v1111, 1
  %v1113 = vadd.f32 %v1111, %v1112
  %v1114 = vadd.f32 %v539, %v542
  %v1115 = vrot.slane %v1114, 4
  %v1116 = vadd.f32 %v1114, %v1115
  %v1117 = vrot.slane %v1116, 2
  %v1118 = vadd.f32 %v1116, %v1117
  %v1119 = vrot.slane %v1118, 1
  %v1120 = vadd.f32 %v1118, %v1119
  %v1121 = vmul.f32 %v679, 0.0625
  %v1122 = vmul.f32 %v686, 0.0625
  %v1123 = vmul.f32 %v693, 0.0625
  %v1124 = vmul.f32 %v700, 0.0625
  %v1125 = vmul.f32 %v707, 0.0625
  %v1126 = vmul.f32 %v714, 0.0625
  %v1127 = vmul.f32 %v721, 0.0625
  %v1128 = vmul.f32 %v728, 0.0625
  %v1129 = vmul.f32 %v735, 0.0625
  %v1130 = vmul.f32 %v742, 0.0625
  %v1131 = vmul.f32 %v749, 0.0625
  %v1132 = vmul.f32 %v756, 0.0625
  %v1133 = vmul.f32 %v763, 0.0625
  %v1134 = vmul.f32 %v770, 0.0625
  %v1135 = vmul.f32 %v777, 0.0625
  %v1136 = vmul.f32 %v784, 0.0625
  %v1137 = vmul.f32 %v791, 0.0625
  %v1138 = vmul.f32 %v798, 0.0625
  %v1139 = vmul.f32 %v805, 0.0625
  %v1140 = vmul.f32 %v812, 0.0625
  %v1141 = vmul.f32 %v819, 0.0625
  %v1142 = vmul.f32 %v826, 0.0625
  %v1143 = vmul.f32 %v833, 0.0625
  %v1144 = vmul.f32 %v840, 0.0625
  %v1145 = vmul.f32 %v847, 0.0625
  %v1146 = vmul.f32 %v854, 0.0625
  %v1147 = vmul.f32 %v861, 0.0625
  %v1148 = vmul.f32 %v868, 0.0625
  %v1149 = vmul.f32 %v875, 0.0625
  %v1150 = vmul.f32 %v882, 0.0625
  %v1151 = vmul.f32 %v889, 0.0625
  %v1152 = vmul.f32 %v896, 0.0625
  %v1153 = vmul.f32 %v903, 0.0625
  %v1154 = vmul.f32 %v910, 0.0625
  %v1155 = vmul.f32 %v917, 0.0625
  %v1156 = vmul.f32 %v924, 0.0625
  %v1157 = vmul.f32 %v931, 0.0625
  %v1158 = vmul.f32 %v938, 0.0625
  %v1159 = vmul.f32 %v945, 0.0625
  %v1160 = vmul.f32 %v952, 0.0625
  %v1161 = vmul.f32 %v959, 0.0625
  %v1162 = vmul.f32 %v966, 0.0625
  %v1163 = vmul.f32 %v973, 0.0625
  %v1164 = vmul.f32 %v980, 0.0625
  %v1165 = vmul.f32 %v987, 0.0625
  %v1166 = vmul.f32 %v994, 0.0625
  %v1167 = vmul.f32 %v1001, 0.0625
  %v1168 = vmul.f32 %v1008, 0.0625
  %v1169 = vmul.f32 %v1015, 0.0625
  %v1170 = vmul.f32 %v1022, 0.0625
  %v1171 = vmul.f32 %v1029, 0.0625
  %v1172 = vmul.f32 %v1036, 0.0625
  %v1173 = vmul.f32 %v1043, 0.0625
  %v1174 = vmul.f32 %v1050, 0.0625
  %v1175 = vmul.f32 %v1057, 0.0625
  %v1176 = vmul.f32 %v1064, 0.0625
  %v1177 = vmul.f32 %v1071, 0.0625
  %v1178 = vmul.f32 %v1078, 0.0625
  %v1179 = vmul.f32 %v1085, 0.0625
  %v1180 = vmul.f32 %v1092, 0.0625
  %v1181 = vmul.f32 %v1099, 0.0625
  %v1182 = vmul.f32 %v1106, 0.0625
  %v1183 = vmul.f32 %v1113, 0.0625
  %v1184 = vmul.f32 %v1120, 0.0625
  %v1313 = vlaneseq
  %v1314 = vand.u32 %v1313, 127
  %v1315 = vlaneseq
  %v1316 = vshrl.u32 %v1315, 7
  %v1317 = vsub.s32 %v1314, %v1316
  %v1318 = vrot.slane %v545, %v1317
  %v1319 = vadd.s32 %v1314, 4294967288
  %v1320 = vlaneseq
  %v1321 = vshrl.u32 %v1320, 7
  %v1322 = vsub.s32 %v1319, %v1321
  %v1323 = vrot.slane %v546, %v1322
  %vm1324 = vcmask 130112
  %v1325 = vsel %vm1324, %v1323, %v1318
  %v1326 = vlaneseq
  %v1327 = vshrl.u32 %v1326, 7
  %v1328 = vsub.s32 %v1314, %v1327
  %v1329 = vrot.slane %v547, %v1328
  %v1330 = vlaneseq
  %v1331 = vshrl.u32 %v1330, 7
  %v1332 = vsub.s32 %v1319, %v1331
  %v1333 = vrot.slane %v548, %v1332
  %v1334 = vsel %vm1324, %v1333, %v1329
  %v1335 = vlaneseq
  %v1336 = vshrl.u32 %v1335, 7
  %v1337 = vsub.s32 %v1314, %v1336
  %v1338 = vrot.slane %v549, %v1337
  %v1339 = vlaneseq
  %v1340 = vshrl.u32 %v1339, 7
  %v1341 = vsub.s32 %v1319, %v1340
  %v1342 = vrot.slane %v550, %v1341
  %v1343 = vsel %vm1324, %v1342, %v1338
  %v1344 = vlaneseq
  %v1345 = vshrl.u32 %v1344, 7
  %v1346 = vsub.s32 %v1314, %v1345
  %v1347 = vrot.slane %v551, %v1346
  %v1348 = vlaneseq
  %v1349 = vshrl.u32 %v1348, 7
  %v1350 = vsub.s32 %v1319, %v1349
  %v1351 = vrot.slane %v552, %v1350
  %v1352 = vsel %vm1324, %v1351, %v1347
  %v1353 = vlaneseq
  %v1354 = vshrl.u32 %v1353, 7
  %v1355 = vsub.s32 %v1314, %v1354
  %v1356 = vrot.slane %v553, %v1355
  %v1357 = vlaneseq
  %v1358 = vshrl.u32 %v1357, 7
  %v1359 = vsub.s32 %v1319, %v1358
  %v1360 = vrot.slane %v554, %v1359
  %v1361 = vsel %vm1324, %v1360, %v1356
  %v1362 = vlaneseq
  %v1363 = vshrl.u32 %v1362, 7
  %v1364 = vsub.s32 %v1314, %v1363
  %v1365 = vrot.slane %v555, %v1364
  %v1366 = vlaneseq
  %v1367 = vshrl.u32 %v1366, 7
  %v1368 = vsub.s32 %v1319, %v1367
  %v1369 = vrot.slane %v556, %v1368
  %v1370 = vsel %vm1324, %v1369, %v1365
  %v1371 = vlaneseq
  %v1372 = vshrl.u32 %v1371, 7
  %v1373 = vsub.s32 %v1314, %v1372
  %v1374 = vrot.slane %v557, %v1373
  %v1375 = vlaneseq
  %v1376 = vshrl.u32 %v1375, 7
  %v1377 = vsub.s32 %v1319, %v1376
  %v1378 = vrot.slane %v558, %v1377
  %v1379 = vsel %vm1324, %v1378, %v1374
  %v1380 = vlaneseq
  %v1381 = vshrl.u32 %v1380, 7
  %v1382 = vsub.s32 %v1314, %v1381
  %v1383 = vrot.slane %v559, %v1382
  %v1384 = vlaneseq
  %v1385 = vshrl.u32 %v1384, 7
  %v1386 = vsub.s32 %v1319, %v1385
  %v1387 = vrot.slane %v560, %v1386
  %v1388 = vsel %vm1324, %v1387, %v1383
  %v1389 = vlaneseq
  %v1390 = vshrl.u32 %v1389, 7
  %v1391 = vsub.s32 %v1314, %v1390
  %v1392 = vrot.slane %v561, %v1391
  %v1393 = vlaneseq
  %v1394 = vshrl.u32 %v1393, 7
  %v1395 = vsub.s32 %v1319, %v1394
  %v1396 = vrot.slane %v562, %v1395
  %v1397 = vsel %vm1324, %v1396, %v1392
  %v1398 = vlaneseq
  %v1399 = vshrl.u32 %v1398, 7
  %v1400 = vsub.s32 %v1314, %v1399
  %v1401 = vrot.slane %v563, %v1400
  %v1402 = vlaneseq
  %v1403 = vshrl.u32 %v1402, 7
  %v1404 = vsub.s32 %v1319, %v1403
  %v1405 = vrot.slane %v564, %v1404
  %v1406 = vsel %vm1324, %v1405, %v1401
  %v1407 = vlaneseq
  %v1408 = vshrl.u32 %v1407, 7
  %v1409 = vsub.s32 %v1314, %v1408
  %v1410 = vrot.slane %v565, %v1409
  %v1411 = vlaneseq
  %v1412 = vshrl.u32 %v1411, 7
  %v1413 = vsub.s32 %v1319, %v1412
  %v1414 = vrot.slane %v566, %v1413
  %v1415 = vsel %vm1324, %v1414, %v1410
  %v1416 = vlaneseq
  %v1417 = vshrl.u32 %v1416, 7
  %v1418 = vsub.s32 %v1314, %v1417
  %v1419 = vrot.slane %v567, %v1418
  %v1420 = vlaneseq
  %v1421 = vshrl.u32 %v1420, 7
  %v1422 = vsub.s32 %v1319, %v1421
  %v1423 = vrot.slane %v568, %v1422
  %v1424 = vsel %vm1324, %v1423, %v1419
  %v1425 = vlaneseq
  %v1426 = vshrl.u32 %v1425, 7
  %v1427 = vsub.s32 %v1314, %v1426
  %v1428 = vrot.slane %v569, %v1427
  %v1429 = vlaneseq
  %v1430 = vshrl.u32 %v1429, 7
  %v1431 = vsub.s32 %v1319, %v1430
  %v1432 = vrot.slane %v570, %v1431
  %v1433 = vsel %vm1324, %v1432, %v1428
  %v1434 = vlaneseq
  %v1435 = vshrl.u32 %v1434, 7
  %v1436 = vsub.s32 %v1314, %v1435
  %v1437 = vrot.slane %v571, %v1436
  %v1438 = vlaneseq
  %v1439 = vshrl.u32 %v1438, 7
  %v1440 = vsub.s32 %v1319, %v1439
  %v1441 = vrot.slane %v572, %v1440
  %v1442 = vsel %vm1324, %v1441, %v1437
  %v1443 = vlaneseq
  %v1444 = vshrl.u32 %v1443, 7
  %v1445 = vsub.s32 %v1314, %v1444
  %v1446 = vrot.slane %v573, %v1445
  %v1447 = vlaneseq
  %v1448 = vshrl.u32 %v1447, 7
  %v1449 = vsub.s32 %v1319, %v1448
  %v1450 = vrot.slane %v574, %v1449
  %v1451 = vsel %vm1324, %v1450, %v1446
  %v1452 = vlaneseq
  %v1453 = vshrl.u32 %v1452, 7
  %v1454 = vsub.s32 %v1314, %v1453
  %v1455 = vrot.slane %v575, %v1454
  %v1456 = vlaneseq
  %v1457 = vshrl.u32 %v1456, 7
  %v1458 = vsub.s32 %v1319, %v1457
  %v1459 = vrot.slane %v576, %v1458
  %v1460 = vsel %vm1324, %v1459, %v1455
  %v1461 = vlaneseq
  %v1462 = vshrl.u32 %v1461, 7
  %v1463 = vsub.s32 %v1314, %v1462
  %v1464 = vrot.slane %v577, %v1463
  %v1465 = vlaneseq
  %v1466 = vshrl.u32 %v1465, 7
  %v1467 = vsub.s32 %v1319, %v1466
  %v1468 = vrot.slane %v578, %v1467
  %v1469 = vsel %vm1324, %v1468, %v1464
  %v1470 = vlaneseq
  %v1471 = vshrl.u32 %v1470, 7
  %v1472 = vsub.s32 %v1314, %v1471
  %v1473 = vrot.slane %v579, %v1472
  %v1474 = vlaneseq
  %v1475 = vshrl.u32 %v1474, 7
  %v1476 = vsub.s32 %v1319, %v1475
  %v1477 = vrot.slane %v580, %v1476
  %v1478 = vsel %vm1324, %v1477, %v1473
  %v1479 = vlaneseq
  %v1480 = vshrl.u32 %v1479, 7
  %v1481 = vsub.s32 %v1314, %v1480
  %v1482 = vrot.slane %v581, %v1481
  %v1483 = vlaneseq
  %v1484 = vshrl.u32 %v1483, 7
  %v1485 = vsub.s32 %v1319, %v1484
  %v1486 = vrot.slane %v582, %v1485
  %v1487 = vsel %vm1324, %v1486, %v1482
  %v1488 = vlaneseq
  %v1489 = vshrl.u32 %v1488, 7
  %v1490 = vsub.s32 %v1314, %v1489
  %v1491 = vrot.slane %v583, %v1490
  %v1492 = vlaneseq
  %v1493 = vshrl.u32 %v1492, 7
  %v1494 = vsub.s32 %v1319, %v1493
  %v1495 = vrot.slane %v584, %v1494
  %v1496 = vsel %vm1324, %v1495, %v1491
  %v1497 = vlaneseq
  %v1498 = vshrl.u32 %v1497, 7
  %v1499 = vsub.s32 %v1314, %v1498
  %v1500 = vrot.slane %v585, %v1499
  %v1501 = vlaneseq
  %v1502 = vshrl.u32 %v1501, 7
  %v1503 = vsub.s32 %v1319, %v1502
  %v1504 = vrot.slane %v586, %v1503
  %v1505 = vsel %vm1324, %v1504, %v1500
  %v1506 = vlaneseq
  %v1507 = vshrl.u32 %v1506, 7
  %v1508 = vsub.s32 %v1314, %v1507
  %v1509 = vrot.slane %v587, %v1508
  %v1510 = vlaneseq
  %v1511 = vshrl.u32 %v1510, 7
  %v1512 = vsub.s32 %v1319, %v1511
  %v1513 = vrot.slane %v588, %v1512
  %v1514 = vsel %vm1324, %v1513, %v1509
  %v1515 = vlaneseq
  %v1516 = vshrl.u32 %v1515, 7
  %v1517 = vsub.s32 %v1314, %v1516
  %v1518 = vrot.slane %v589, %v1517
  %v1519 = vlaneseq
  %v1520 = vshrl.u32 %v1519, 7
  %v1521 = vsub.s32 %v1319, %v1520
  %v1522 = vrot.slane %v590, %v1521
  %v1523 = vsel %vm1324, %v1522, %v1518
  %v1524 = vlaneseq
  %v1525 = vshrl.u32 %v1524, 7
  %v1526 = vsub.s32 %v1314, %v1525
  %v1527 = vrot.slane %v591, %v1526
  %v1528 = vlaneseq
  %v1529 = vshrl.u32 %v1528, 7
  %v1530 = vsub.s32 %v1319, %v1529
  %v1531 = vrot.slane %v592, %v1530
  %v1532 = vsel %vm1324, %v1531, %v1527
  %v1533 = vlaneseq
  %v1534 = vshrl.u32 %v1533, 7
  %v1535 = vsub.s32 %v1314, %v1534
  %v1536 = vrot.slane %v593, %v1535
  %v1537 = vlaneseq
  %v1538 = vshrl.u32 %v1537, 7
  %v1539 = vsub.s32 %v1319, %v1538
  %v1540 = vrot.slane %v594, %v1539
  %v1541 = vsel %vm1324, %v1540, %v1536
  %v1542 = vlaneseq
  %v1543 = vshrl.u32 %v1542, 7
  %v1544 = vsub.s32 %v1314, %v1543
  %v1545 = vrot.slane %v595, %v1544
  %v1546 = vlaneseq
  %v1547 = vshrl.u32 %v1546, 7
  %v1548 = vsub.s32 %v1319, %v1547
  %v1549 = vrot.slane %v596, %v1548
  %v1550 = vsel %vm1324, %v1549, %v1545
  %v1551 = vlaneseq
  %v1552 = vshrl.u32 %v1551, 7
  %v1553 = vsub.s32 %v1314, %v1552
  %v1554 = vrot.slane %v597, %v1553
  %v1555 = vlaneseq
  %v1556 = vshrl.u32 %v1555, 7
  %v1557 = vsub.s32 %v1319, %v1556
  %v1558 = vrot.slane %v598, %v1557
  %v1559 = vsel %vm1324, %v1558, %v1554
  %v1560 = vlaneseq
  %v1561 = vshrl.u32 %v1560, 7
  %v1562 = vsub.s32 %v1314, %v1561
  %v1563 = vrot.slane %v599, %v1562
  %v1564 = vlaneseq
  %v1565 = vshrl.u32 %v1564, 7
  %v1566 = vsub.s32 %v1319, %v1565
  %v1567 = vrot.slane %v600, %v1566
  %v1568 = vsel %vm1324, %v1567, %v1563
  %v1569 = vlaneseq
  %v1570 = vshrl.u32 %v1569, 7
  %v1571 = vsub.s32 %v1314, %v1570
  %v1572 = vrot.slane %v601, %v1571
  %v1573 = vlaneseq
  %v1574 = vshrl.u32 %v1573, 7
  %v1575 = vsub.s32 %v1319, %v1574
  %v1576 = vrot.slane %v602, %v1575
  %v1577 = vsel %vm1324, %v1576, %v1572
  %v1578 = vlaneseq
  %v1579 = vshrl.u32 %v1578, 7
  %v1580 = vsub.s32 %v1314, %v1579
  %v1581 = vrot.slane %v603, %v1580
  %v1582 = vlaneseq
  %v1583 = vshrl.u32 %v1582, 7
  %v1584 = vsub.s32 %v1319, %v1583
  %v1585 = vrot.slane %v604, %v1584
  %v1586 = vsel %vm1324, %v1585, %v1581
  %v1587 = vlaneseq
  %v1588 = vshrl.u32 %v1587, 7
  %v1589 = vsub.s32 %v1314, %v1588
  %v1590 = vrot.slane %v605, %v1589
  %v1591 = vlaneseq
  %v1592 = vshrl.u32 %v1591, 7
  %v1593 = vsub.s32 %v1319, %v1592
  %v1594 = vrot.slane %v606, %v1593
  %v1595 = vsel %vm1324, %v1594, %v1590
  %v1596 = vlaneseq
  %v1597 = vshrl.u32 %v1596, 7
  %v1598 = vsub.s32 %v1314, %v1597
  %v1599 = vrot.slane %v607, %v1598
  %v1600 = vlaneseq
  %v1601 = vshrl.u32 %v1600, 7
  %v1602 = vsub.s32 %v1319, %v1601
  %v1603 = vrot.slane %v608, %v1602
  %v1604 = vsel %vm1324, %v1603, %v1599
  %v1605 = vlaneseq
  %v1606 = vshrl.u32 %v1605, 7
  %v1607 = vsub.s32 %v1314, %v1606
  %v1608 = vrot.slane %v609, %v1607
  %v1609 = vlaneseq
  %v1610 = vshrl.u32 %v1609, 7
  %v1611 = vsub.s32 %v1319, %v1610
  %v1612 = vrot.slane %v610, %v1611
  %v1613 = vsel %vm1324, %v1612, %v1608
  %v1614 = vlaneseq
  %v1615 = vshrl.u32 %v1614, 7
  %v1616 = vsub.s32 %v1314, %v1615
  %v1617 = vrot.slane %v611, %v1616
  %v1618 = vlaneseq
  %v1619 = vshrl.u32 %v1618, 7
  %v1620 = vsub.s32 %v1319, %v1619
  %v1621 = vrot.slane %v612, %v1620
  %v1622 = vsel %vm1324, %v1621, %v1617
  %v1623 = vlaneseq
  %v1624 = vshrl.u32 %v1623, 7
  %v1625 = vsub.s32 %v1314, %v1624
  %v1626 = vrot.slane %v613, %v1625
  %v1627 = vlaneseq
  %v1628 = vshrl.u32 %v1627, 7
  %v1629 = vsub.s32 %v1319, %v1628
  %v1630 = vrot.slane %v614, %v1629
  %v1631 = vsel %vm1324, %v1630, %v1626
  %v1632 = vlaneseq
  %v1633 = vshrl.u32 %v1632, 7
  %v1634 = vsub.s32 %v1314, %v1633
  %v1635 = vrot.slane %v615, %v1634
  %v1636 = vlaneseq
  %v1637 = vshrl.u32 %v1636, 7
  %v1638 = vsub.s32 %v1319, %v1637
  %v1639 = vrot.slane %v616, %v1638
  %v1640 = vsel %vm1324, %v1639, %v1635
  %v1641 = vlaneseq
  %v1642 = vshrl.u32 %v1641, 7
  %v1643 = vsub.s32 %v1314, %v1642
  %v1644 = vrot.slane %v617, %v1643
  %v1645 = vlaneseq
  %v1646 = vshrl.u32 %v1645, 7
  %v1647 = vsub.s32 %v1319, %v1646
  %v1648 = vrot.slane %v618, %v1647
  %v1649 = vsel %vm1324, %v1648, %v1644
  %v1650 = vlaneseq
  %v1651 = vshrl.u32 %v1650, 7
  %v1652 = vsub.s32 %v1314, %v1651
  %v1653 = vrot.slane %v619, %v1652
  %v1654 = vlaneseq
  %v1655 = vshrl.u32 %v1654, 7
  %v1656 = vsub.s32 %v1319, %v1655
  %v1657 = vrot.slane %v620, %v1656
  %v1658 = vsel %vm1324, %v1657, %v1653
  %v1659 = vlaneseq
  %v1660 = vshrl.u32 %v1659, 7
  %v1661 = vsub.s32 %v1314, %v1660
  %v1662 = vrot.slane %v621, %v1661
  %v1663 = vlaneseq
  %v1664 = vshrl.u32 %v1663, 7
  %v1665 = vsub.s32 %v1319, %v1664
  %v1666 = vrot.slane %v622, %v1665
  %v1667 = vsel %vm1324, %v1666, %v1662
  %v1668 = vlaneseq
  %v1669 = vshrl.u32 %v1668, 7
  %v1670 = vsub.s32 %v1314, %v1669
  %v1671 = vrot.slane %v623, %v1670
  %v1672 = vlaneseq
  %v1673 = vshrl.u32 %v1672, 7
  %v1674 = vsub.s32 %v1319, %v1673
  %v1675 = vrot.slane %v624, %v1674
  %v1676 = vsel %vm1324, %v1675, %v1671
  %v1677 = vlaneseq
  %v1678 = vshrl.u32 %v1677, 7
  %v1679 = vsub.s32 %v1314, %v1678
  %v1680 = vrot.slane %v625, %v1679
  %v1681 = vlaneseq
  %v1682 = vshrl.u32 %v1681, 7
  %v1683 = vsub.s32 %v1319, %v1682
  %v1684 = vrot.slane %v626, %v1683
  %v1685 = vsel %vm1324, %v1684, %v1680
  %v1686 = vlaneseq
  %v1687 = vshrl.u32 %v1686, 7
  %v1688 = vsub.s32 %v1314, %v1687
  %v1689 = vrot.slane %v627, %v1688
  %v1690 = vlaneseq
  %v1691 = vshrl.u32 %v1690, 7
  %v1692 = vsub.s32 %v1319, %v1691
  %v1693 = vrot.slane %v628, %v1692
  %v1694 = vsel %vm1324, %v1693, %v1689
  %v1695 = vlaneseq
  %v1696 = vshrl.u32 %v1695, 7
  %v1697 = vsub.s32 %v1314, %v1696
  %v1698 = vrot.slane %v629, %v1697
  %v1699 = vlaneseq
  %v1700 = vshrl.u32 %v1699, 7
  %v1701 = vsub.s32 %v1319, %v1700
  %v1702 = vrot.slane %v630, %v1701
  %v1703 = vsel %vm1324, %v1702, %v1698
  %v1704 = vlaneseq
  %v1705 = vshrl.u32 %v1704, 7
  %v1706 = vsub.s32 %v1314, %v1705
  %v1707 = vrot.slane %v631, %v1706
  %v1708 = vlaneseq
  %v1709 = vshrl.u32 %v1708, 7
  %v1710 = vsub.s32 %v1319, %v1709
  %v1711 = vrot.slane %v632, %v1710
  %v1712 = vsel %vm1324, %v1711, %v1707
  %v1713 = vlaneseq
  %v1714 = vshrl.u32 %v1713, 7
  %v1715 = vsub.s32 %v1314, %v1714
  %v1716 = vrot.slane %v633, %v1715
  %v1717 = vlaneseq
  %v1718 = vshrl.u32 %v1717, 7
  %v1719 = vsub.s32 %v1319, %v1718
  %v1720 = vrot.slane %v634, %v1719
  %v1721 = vsel %vm1324, %v1720, %v1716
  %v1722 = vlaneseq
  %v1723 = vshrl.u32 %v1722, 7
  %v1724 = vsub.s32 %v1314, %v1723
  %v1725 = vrot.slane %v635, %v1724
  %v1726 = vlaneseq
  %v1727 = vshrl.u32 %v1726, 7
  %v1728 = vsub.s32 %v1319, %v1727
  %v1729 = vrot.slane %v636, %v1728
  %v1730 = vsel %vm1324, %v1729, %v1725
  %v1731 = vlaneseq
  %v1732 = vshrl.u32 %v1731, 7
  %v1733 = vsub.s32 %v1314, %v1732
  %v1734 = vrot.slane %v637, %v1733
  %v1735 = vlaneseq
  %v1736 = vshrl.u32 %v1735, 7
  %v1737 = vsub.s32 %v1319, %v1736
  %v1738 = vrot.slane %v638, %v1737
  %v1739 = vsel %vm1324, %v1738, %v1734
  %v1740 = vlaneseq
  %v1741 = vshrl.u32 %v1740, 7
  %v1742 = vsub.s32 %v1314, %v1741
  %v1743 = vrot.slane %v639, %v1742
  %v1744 = vlaneseq
  %v1745 = vshrl.u32 %v1744, 7
  %v1746 = vsub.s32 %v1319, %v1745
  %v1747 = vrot.slane %v640, %v1746
  %v1748 = vsel %vm1324, %v1747, %v1743
  %v1749 = vlaneseq
  %v1750 = vshrl.u32 %v1749, 7
  %v1751 = vsub.s32 %v1314, %v1750
  %v1752 = vrot.slane %v641, %v1751
  %v1753 = vlaneseq
  %v1754 = vshrl.u32 %v1753, 7
  %v1755 = vsub.s32 %v1319, %v1754
  %v1756 = vrot.slane %v642, %v1755
  %v1757 = vsel %vm1324, %v1756, %v1752
  %v1758 = vlaneseq
  %v1759 = vshrl.u32 %v1758, 7
  %v1760 = vsub.s32 %v1314, %v1759
  %v1761 = vrot.slane %v643, %v1760
  %v1762 = vlaneseq
  %v1763 = vshrl.u32 %v1762, 7
  %v1764 = vsub.s32 %v1319, %v1763
  %v1765 = vrot.slane %v644, %v1764
  %v1766 = vsel %vm1324, %v1765, %v1761
  %v1767 = vlaneseq
  %v1768 = vshrl.u32 %v1767, 7
  %v1769 = vsub.s32 %v1314, %v1768
  %v1770 = vrot.slane %v645, %v1769
  %v1771 = vlaneseq
  %v1772 = vshrl.u32 %v1771, 7
  %v1773 = vsub.s32 %v1319, %v1772
  %v1774 = vrot.slane %v646, %v1773
  %v1775 = vsel %vm1324, %v1774, %v1770
  %v1776 = vlaneseq
  %v1777 = vshrl.u32 %v1776, 7
  %v1778 = vsub.s32 %v1314, %v1777
  %v1779 = vrot.slane %v647, %v1778
  %v1780 = vlaneseq
  %v1781 = vshrl.u32 %v1780, 7
  %v1782 = vsub.s32 %v1319, %v1781
  %v1783 = vrot.slane %v648, %v1782
  %v1784 = vsel %vm1324, %v1783, %v1779
  %v1785 = vlaneseq
  %v1786 = vshrl.u32 %v1785, 7
  %v1787 = vsub.s32 %v1314, %v1786
  %v1788 = vrot.slane %v649, %v1787
  %v1789 = vlaneseq
  %v1790 = vshrl.u32 %v1789, 7
  %v1791 = vsub.s32 %v1319, %v1790
  %v1792 = vrot.slane %v650, %v1791
  %v1793 = vsel %vm1324, %v1792, %v1788
  %v1794 = vlaneseq
  %v1795 = vshrl.u32 %v1794, 7
  %v1796 = vsub.s32 %v1314, %v1795
  %v1797 = vrot.slane %v651, %v1796
  %v1798 = vlaneseq
  %v1799 = vshrl.u32 %v1798, 7
  %v1800 = vsub.s32 %v1319, %v1799
  %v1801 = vrot.slane %v652, %v1800
  %v1802 = vsel %vm1324, %v1801, %v1797
  %v1803 = vlaneseq
  %v1804 = vshrl.u32 %v1803, 7
  %v1805 = vsub.s32 %v1314, %v1804
  %v1806 = vrot.slane %v653, %v1805
  %v1807 = vlaneseq
  %v1808 = vshrl.u32 %v1807, 7
  %v1809 = vsub.s32 %v1319, %v1808
  %v1810 = vrot.slane %v654, %v1809
  %v1811 = vsel %vm1324, %v1810, %v1806
  %v1812 = vlaneseq
  %v1813 = vshrl.u32 %v1812, 7
  %v1814 = vsub.s32 %v1314, %v1813
  %v1815 = vrot.slane %v655, %v1814
  %v1816 = vlaneseq
  %v1817 = vshrl.u32 %v1816, 7
  %v1818 = vsub.s32 %v1319, %v1817
  %v1819 = vrot.slane %v656, %v1818
  %v1820 = vsel %vm1324, %v1819, %v1815
  %v1821 = vlaneseq
  %v1822 = vshrl.u32 %v1821, 7
  %v1823 = vsub.s32 %v1314, %v1822
  %v1824 = vrot.slane %v657, %v1823
  %v1825 = vlaneseq
  %v1826 = vshrl.u32 %v1825, 7
  %v1827 = vsub.s32 %v1319, %v1826
  %v1828 = vrot.slane %v658, %v1827
  %v1829 = vsel %vm1324, %v1828, %v1824
  %v1830 = vlaneseq
  %v1831 = vshrl.u32 %v1830, 7
  %v1832 = vsub.s32 %v1314, %v1831
  %v1833 = vrot.slane %v659, %v1832
  %v1834 = vlaneseq
  %v1835 = vshrl.u32 %v1834, 7
  %v1836 = vsub.s32 %v1319, %v1835
  %v1837 = vrot.slane %v660, %v1836
  %v1838 = vsel %vm1324, %v1837, %v1833
  %v1839 = vlaneseq
  %v1840 = vshrl.u32 %v1839, 7
  %v1841 = vsub.s32 %v1314, %v1840
  %v1842 = vrot.slane %v661, %v1841
  %v1843 = vlaneseq
  %v1844 = vshrl.u32 %v1843, 7
  %v1845 = vsub.s32 %v1319, %v1844
  %v1846 = vrot.slane %v662, %v1845
  %v1847 = vsel %vm1324, %v1846, %v1842
  %v1848 = vlaneseq
  %v1849 = vshrl.u32 %v1848, 7
  %v1850 = vsub.s32 %v1314, %v1849
  %v1851 = vrot.slane %v663, %v1850
  %v1852 = vlaneseq
  %v1853 = vshrl.u32 %v1852, 7
  %v1854 = vsub.s32 %v1319, %v1853
  %v1855 = vrot.slane %v664, %v1854
  %v1856 = vsel %vm1324, %v1855, %v1851
  %v1857 = vlaneseq
  %v1858 = vshrl.u32 %v1857, 7
  %v1859 = vsub.s32 %v1314, %v1858
  %v1860 = vrot.slane %v665, %v1859
  %v1861 = vlaneseq
  %v1862 = vshrl.u32 %v1861, 7
  %v1863 = vsub.s32 %v1319, %v1862
  %v1864 = vrot.slane %v666, %v1863
  %v1865 = vsel %vm1324, %v1864, %v1860
  %v1866 = vlaneseq
  %v1867 = vshrl.u32 %v1866, 7
  %v1868 = vsub.s32 %v1314, %v1867
  %v1869 = vrot.slane %v667, %v1868
  %v1870 = vlaneseq
  %v1871 = vshrl.u32 %v1870, 7
  %v1872 = vsub.s32 %v1319, %v1871
  %v1873 = vrot.slane %v668, %v1872
  %v1874 = vsel %vm1324, %v1873, %v1869
  %v1875 = vlaneseq
  %v1876 = vshrl.u32 %v1875, 7
  %v1877 = vsub.s32 %v1314, %v1876
  %v1878 = vrot.slane %v669, %v1877
  %v1879 = vlaneseq
  %v1880 = vshrl.u32 %v1879, 7
  %v1881 = vsub.s32 %v1319, %v1880
  %v1882 = vrot.slane %v670, %v1881
  %v1883 = vsel %vm1324, %v1882, %v1878
  %v1884 = vlaneseq
  %v1885 = vshrl.u32 %v1884, 7
  %v1886 = vsub.s32 %v1314, %v1885
  %v1887 = vrot.slane %v671, %v1886
  %v1888 = vlaneseq
  %v1889 = vshrl.u32 %v1888, 7
  %v1890 = vsub.s32 %v1319, %v1889
  %v1891 = vrot.slane %v672, %v1890
  %v1892 = vsel %vm1324, %v1891, %v1887
  %vm1893 = vcmask 1041409
  %v1894 = vsel %vm1893, %v1334, %v1325
  %vm1895 = vcmask 1042434
  %v1896 = vsel %vm1895, %v1343, %v1894
  %vm1897 = vcmask 1043459
  %v1898 = vsel %vm1897, %v1352, %v1896
  %vm1899 = vcmask 1044484
  %v1900 = vsel %vm1899, %v1361, %v1898
  %vm1901 = vcmask 1045509
  %v1902 = vsel %vm1901, %v1370, %v1900
  %vm1903 = vcmask 1046534
  %v1904 = vsel %vm1903, %v1379, %v1902
  %vm1905 = vcmask 1047559
  %v1906 = vsel %vm1905, %v1388, %v1904
  %v1907 = vsel %vm1893, %v1406, %v1397
  %v1908 = vsel %vm1895, %v1415, %v1907
  %v1909 = vsel %vm1897, %v1424, %v1908
  %v1910 = vsel %vm1899, %v1433, %v1909
  %v1911 = vsel %vm1901, %v1442, %v1910
  %v1912 = vsel %vm1903, %v1451, %v1911
  %v1913 = vsel %vm1905, %v1460, %v1912
  %v1914 = vsel %vm1893, %v1478, %v1469
  %v1915 = vsel %vm1895, %v1487, %v1914
  %v1916 = vsel %vm1897, %v1496, %v1915
  %v1917 = vsel %vm1899, %v1505, %v1916
  %v1918 = vsel %vm1901, %v1514, %v1917
  %v1919 = vsel %vm1903, %v1523, %v1918
  %v1920 = vsel %vm1905, %v1532, %v1919
  %v1921 = vsel %vm1893, %v1550, %v1541
  %v1922 = vsel %vm1895, %v1559, %v1921
  %v1923 = vsel %vm1897, %v1568, %v1922
  %v1924 = vsel %vm1899, %v1577, %v1923
  %v1925 = vsel %vm1901, %v1586, %v1924
  %v1926 = vsel %vm1903, %v1595, %v1925
  %v1927 = vsel %vm1905, %v1604, %v1926
  %v1928 = vsel %vm1893, %v1622, %v1613
  %v1929 = vsel %vm1895, %v1631, %v1928
  %v1930 = vsel %vm1897, %v1640, %v1929
  %v1931 = vsel %vm1899, %v1649, %v1930
  %v1932 = vsel %vm1901, %v1658, %v1931
  %v1933 = vsel %vm1903, %v1667, %v1932
  %v1934 = vsel %vm1905, %v1676, %v1933
  %v1935 = vsel %vm1893, %v1694, %v1685
  %v1936 = vsel %vm1895, %v1703, %v1935
  %v1937 = vsel %vm1897, %v1712, %v1936
  %v1938 = vsel %vm1899, %v1721, %v1937
  %v1939 = vsel %vm1901, %v1730, %v1938
  %v1940 = vsel %vm1903, %v1739, %v1939
  %v1941 = vsel %vm1905, %v1748, %v1940
  %v1942 = vsel %vm1893, %v1766, %v1757
  %v1943 = vsel %vm1895, %v1775, %v1942
  %v1944 = vsel %vm1897, %v1784, %v1943
  %v1945 = vsel %vm1899, %v1793, %v1944
  %v1946 = vsel %vm1901, %v1802, %v1945
  %v1947 = vsel %vm1903, %v1811, %v1946
  %v1948 = vsel %vm1905, %v1820, %v1947
  %v1949 = vsel %vm1893, %v1838, %v1829
  %v1950 = vsel %vm1895, %v1847, %v1949
  %v1951 = vsel %vm1897, %v1856, %v1950
  %v1952 = vsel %vm1899, %v1865, %v1951
  %v1953 = vsel %vm1901, %v1874, %v1952
  %v1954 = vsel %vm1903, %v1883, %v1953
  %v1955 = vsel %vm1905, %v1892, %v1954
  %v1964 = vsel %vm160, %v1906, 0.0
  %1965 = vadd.xlane.f32.xlu0 %v1964
  %v1966 = vpop.xlane.xlu0 %1965
  %v1967 = vsel %vm160, %v1913, 0.0
  %1968 = vadd.xlane.f32.xlu0 %v1967
  %v1969 = vpop.xlane.xlu0 %1968
  %v1970 = vsel %vm160, %v1920, 0.0
  %1971 = vadd.xlane.f32.xlu0 %v1970
  %v1972 = vpop.xlane.xlu0 %1971
  %v1973 = vsel %vm160, %v1927, 0.0
  %1974 = vadd.xlane.f32.xlu0 %v1973
  %v1975 = vpop.xlane.xlu0 %1974
  %v1976 = vsel %vm160, %v1934, 0.0
  %1977 = vadd.xlane.f32.xlu0 %v1976
  %v1978 = vpop.xlane.xlu0 %1977
  %v1979 = vsel %vm160, %v1941, 0.0
  %1980 = vadd.xlane.f32.xlu0 %v1979
  %v1981 = vpop.xlane.xlu0 %1980
  %v1982 = vsel %vm160, %v1948, 0.0
  %1983 = vadd.xlane.f32.xlu0 %v1982
  %v1984 = vpop.xlane.xlu0 %1983
  %v1985 = vsel %vm160, %v1955, 0.0
  %1986 = vadd.xlane.f32.xlu0 %v1985
  %v1987 = vpop.xlane.xlu0 %1986
  %v1988 = vmul.f32 %v1966, 0.0625
  %v1989 = vmul.f32 %v1969, 0.0625
  %v1990 = vmul.f32 %v1972, 0.0625
  %v1991 = vmul.f32 %v1975, 0.0625
  %v1992 = vmul.f32 %v1978, 0.0625
  %v1993 = vmul.f32 %v1981, 0.0625
  %v1994 = vmul.f32 %v1984, 0.0625
  %v1995 = vmul.f32 %v1987, 0.0625
  %v1996 = vsel %vm160, %v32, -inf
  %1997 = vmax.xlane.f32.xlu0 %v1996
  %v1998 = vpop.xlane.xlu0 %1997
  %v1999 = vsel %vm160, %v33, -inf
  %2000 = vmax.xlane.f32.xlu0 %v1999
  %v2001 = vpop.xlane.xlu0 %2000
  %v2002 = vsel %vm160, %v34, -inf
  %2003 = vmax.xlane.f32.xlu0 %v2002
  %v2004 = vpop.xlane.xlu0 %2003
  %v2005 = vsel %vm160, %v35, -inf
  %2006 = vmax.xlane.f32.xlu0 %v2005
  %v2007 = vpop.xlane.xlu0 %2006
  %v2008 = vsel %vm160, %v36, -inf
  %2009 = vmax.xlane.f32.xlu0 %v2008
  %v2010 = vpop.xlane.xlu0 %2009
  %v2011 = vsel %vm160, %v37, -inf
  %2012 = vmax.xlane.f32.xlu0 %v2011
  %v2013 = vpop.xlane.xlu0 %2012
  %v2014 = vsel %vm160, %v38, -inf
  %2015 = vmax.xlane.f32.xlu0 %v2014
  %v2016 = vpop.xlane.xlu0 %2015
  %v2017 = vsel %vm160, %v39, -inf
  %2018 = vmax.xlane.f32.xlu0 %v2017
  %v2019 = vpop.xlane.xlu0 %2018
  %v2020 = vsel %vm160, %v40, -inf
  %2021 = vmax.xlane.f32.xlu0 %v2020
  %v2022 = vpop.xlane.xlu0 %2021
  %v2023 = vsel %vm160, %v41, -inf
  %2024 = vmax.xlane.f32.xlu0 %v2023
  %v2025 = vpop.xlane.xlu0 %2024
  %v2026 = vsel %vm160, %v42, -inf
  %2027 = vmax.xlane.f32.xlu0 %v2026
  %v2028 = vpop.xlane.xlu0 %2027
  %v2029 = vsel %vm160, %v43, -inf
  %2030 = vmax.xlane.f32.xlu0 %v2029
  %v2031 = vpop.xlane.xlu0 %2030
  %v2032 = vsel %vm160, %v44, -inf
  %2033 = vmax.xlane.f32.xlu0 %v2032
  %v2034 = vpop.xlane.xlu0 %2033
  %v2035 = vsel %vm160, %v45, -inf
  %2036 = vmax.xlane.f32.xlu0 %v2035
  %v2037 = vpop.xlane.xlu0 %2036
  %v2038 = vsel %vm160, %v46, -inf
  %2039 = vmax.xlane.f32.xlu0 %v2038
  %v2040 = vpop.xlane.xlu0 %2039
  %v2041 = vsel %vm160, %v47, -inf
  %2042 = vmax.xlane.f32.xlu0 %v2041
  %v2043 = vpop.xlane.xlu0 %2042
  %v2044 = vsel %vm160, %v48, -inf
  %2045 = vmax.xlane.f32.xlu0 %v2044
  %v2046 = vpop.xlane.xlu0 %2045
  %v2047 = vsel %vm160, %v49, -inf
  %2048 = vmax.xlane.f32.xlu0 %v2047
  %v2049 = vpop.xlane.xlu0 %2048
  %v2050 = vsel %vm160, %v50, -inf
  %2051 = vmax.xlane.f32.xlu0 %v2050
  %v2052 = vpop.xlane.xlu0 %2051
  %v2053 = vsel %vm160, %v51, -inf
  %2054 = vmax.xlane.f32.xlu0 %v2053
  %v2055 = vpop.xlane.xlu0 %2054
  %v2056 = vsel %vm160, %v52, -inf
  %2057 = vmax.xlane.f32.xlu0 %v2056
  %v2058 = vpop.xlane.xlu0 %2057
  %v2059 = vsel %vm160, %v53, -inf
  %2060 = vmax.xlane.f32.xlu0 %v2059
  %v2061 = vpop.xlane.xlu0 %2060
  %v2062 = vsel %vm160, %v54, -inf
  %2063 = vmax.xlane.f32.xlu0 %v2062
  %v2064 = vpop.xlane.xlu0 %2063
  %v2065 = vsel %vm160, %v55, -inf
  %2066 = vmax.xlane.f32.xlu0 %v2065
  %v2067 = vpop.xlane.xlu0 %2066
  %v2068 = vsel %vm160, %v56, -inf
  %2069 = vmax.xlane.f32.xlu0 %v2068
  %v2070 = vpop.xlane.xlu0 %2069
  %v2071 = vsel %vm160, %v57, -inf
  %2072 = vmax.xlane.f32.xlu0 %v2071
  %v2073 = vpop.xlane.xlu0 %2072
  %v2074 = vsel %vm160, %v58, -inf
  %2075 = vmax.xlane.f32.xlu0 %v2074
  %v2076 = vpop.xlane.xlu0 %2075
  %v2077 = vsel %vm160, %v59, -inf
  %2078 = vmax.xlane.f32.xlu0 %v2077
  %v2079 = vpop.xlane.xlu0 %2078
  %v2080 = vsel %vm160, %v60, -inf
  %2081 = vmax.xlane.f32.xlu0 %v2080
  %v2082 = vpop.xlane.xlu0 %2081
  %v2083 = vsel %vm160, %v61, -inf
  %2084 = vmax.xlane.f32.xlu0 %v2083
  %v2085 = vpop.xlane.xlu0 %2084
  %v2086 = vsel %vm160, %v62, -inf
  %2087 = vmax.xlane.f32.xlu0 %v2086
  %v2088 = vpop.xlane.xlu0 %2087
  %v2089 = vsel %vm160, %v63, -inf
  %2090 = vmax.xlane.f32.xlu0 %v2089
  %v2091 = vpop.xlane.xlu0 %2090
  %v2092 = vsel %vm160, %v64, -inf
  %2093 = vmax.xlane.f32.xlu0 %v2092
  %v2094 = vpop.xlane.xlu0 %2093
  %v2095 = vsel %vm160, %v65, -inf
  %2096 = vmax.xlane.f32.xlu0 %v2095
  %v2097 = vpop.xlane.xlu0 %2096
  %v2098 = vsel %vm160, %v66, -inf
  %2099 = vmax.xlane.f32.xlu0 %v2098
  %v2100 = vpop.xlane.xlu0 %2099
  %v2101 = vsel %vm160, %v67, -inf
  %2102 = vmax.xlane.f32.xlu0 %v2101
  %v2103 = vpop.xlane.xlu0 %2102
  %v2104 = vsel %vm160, %v68, -inf
  %2105 = vmax.xlane.f32.xlu0 %v2104
  %v2106 = vpop.xlane.xlu0 %2105
  %v2107 = vsel %vm160, %v69, -inf
  %2108 = vmax.xlane.f32.xlu0 %v2107
  %v2109 = vpop.xlane.xlu0 %2108
  %v2110 = vsel %vm160, %v70, -inf
  %2111 = vmax.xlane.f32.xlu0 %v2110
  %v2112 = vpop.xlane.xlu0 %2111
  %v2113 = vsel %vm160, %v71, -inf
  %2114 = vmax.xlane.f32.xlu0 %v2113
  %v2115 = vpop.xlane.xlu0 %2114
  %v2116 = vsel %vm160, %v72, -inf
  %2117 = vmax.xlane.f32.xlu0 %v2116
  %v2118 = vpop.xlane.xlu0 %2117
  %v2119 = vsel %vm160, %v73, -inf
  %2120 = vmax.xlane.f32.xlu0 %v2119
  %v2121 = vpop.xlane.xlu0 %2120
  %v2122 = vsel %vm160, %v74, -inf
  %2123 = vmax.xlane.f32.xlu0 %v2122
  %v2124 = vpop.xlane.xlu0 %2123
  %v2125 = vsel %vm160, %v75, -inf
  %2126 = vmax.xlane.f32.xlu0 %v2125
  %v2127 = vpop.xlane.xlu0 %2126
  %v2128 = vsel %vm160, %v76, -inf
  %2129 = vmax.xlane.f32.xlu0 %v2128
  %v2130 = vpop.xlane.xlu0 %2129
  %v2131 = vsel %vm160, %v77, -inf
  %2132 = vmax.xlane.f32.xlu0 %v2131
  %v2133 = vpop.xlane.xlu0 %2132
  %v2134 = vsel %vm160, %v78, -inf
  %2135 = vmax.xlane.f32.xlu0 %v2134
  %v2136 = vpop.xlane.xlu0 %2135
  %v2137 = vsel %vm160, %v79, -inf
  %2138 = vmax.xlane.f32.xlu0 %v2137
  %v2139 = vpop.xlane.xlu0 %2138
  %v2140 = vsel %vm160, %v80, -inf
  %2141 = vmax.xlane.f32.xlu0 %v2140
  %v2142 = vpop.xlane.xlu0 %2141
  %v2143 = vsel %vm160, %v81, -inf
  %2144 = vmax.xlane.f32.xlu0 %v2143
  %v2145 = vpop.xlane.xlu0 %2144
  %v2146 = vsel %vm160, %v82, -inf
  %2147 = vmax.xlane.f32.xlu0 %v2146
  %v2148 = vpop.xlane.xlu0 %2147
  %v2149 = vsel %vm160, %v83, -inf
  %2150 = vmax.xlane.f32.xlu0 %v2149
  %v2151 = vpop.xlane.xlu0 %2150
  %v2152 = vsel %vm160, %v84, -inf
  %2153 = vmax.xlane.f32.xlu0 %v2152
  %v2154 = vpop.xlane.xlu0 %2153
  %v2155 = vsel %vm160, %v85, -inf
  %2156 = vmax.xlane.f32.xlu0 %v2155
  %v2157 = vpop.xlane.xlu0 %2156
  %v2158 = vsel %vm160, %v86, -inf
  %2159 = vmax.xlane.f32.xlu0 %v2158
  %v2160 = vpop.xlane.xlu0 %2159
  %v2161 = vsel %vm160, %v87, -inf
  %2162 = vmax.xlane.f32.xlu0 %v2161
  %v2163 = vpop.xlane.xlu0 %2162
  %v2164 = vsel %vm160, %v88, -inf
  %2165 = vmax.xlane.f32.xlu0 %v2164
  %v2166 = vpop.xlane.xlu0 %2165
  %v2167 = vsel %vm160, %v89, -inf
  %2168 = vmax.xlane.f32.xlu0 %v2167
  %v2169 = vpop.xlane.xlu0 %2168
  %v2170 = vsel %vm160, %v90, -inf
  %2171 = vmax.xlane.f32.xlu0 %v2170
  %v2172 = vpop.xlane.xlu0 %2171
  %v2173 = vsel %vm160, %v91, -inf
  %2174 = vmax.xlane.f32.xlu0 %v2173
  %v2175 = vpop.xlane.xlu0 %2174
  %v2176 = vsel %vm160, %v92, -inf
  %2177 = vmax.xlane.f32.xlu0 %v2176
  %v2178 = vpop.xlane.xlu0 %2177
  %v2179 = vsel %vm160, %v93, -inf
  %2180 = vmax.xlane.f32.xlu0 %v2179
  %v2181 = vpop.xlane.xlu0 %2180
  %v2182 = vsel %vm160, %v94, -inf
  %2183 = vmax.xlane.f32.xlu0 %v2182
  %v2184 = vpop.xlane.xlu0 %2183
  %v2185 = vsel %vm160, %v95, -inf
  %2186 = vmax.xlane.f32.xlu0 %v2185
  %v2187 = vpop.xlane.xlu0 %2186
  %v2188 = vsel %vm160, %v96, -inf
  %2189 = vmax.xlane.f32.xlu0 %v2188
  %v2190 = vpop.xlane.xlu0 %2189
  %v2191 = vsel %vm160, %v97, -inf
  %2192 = vmax.xlane.f32.xlu0 %v2191
  %v2193 = vpop.xlane.xlu0 %2192
  %v2194 = vsel %vm160, %v98, -inf
  %2195 = vmax.xlane.f32.xlu0 %v2194
  %v2196 = vpop.xlane.xlu0 %2195
  %v2197 = vsel %vm160, %v99, -inf
  %2198 = vmax.xlane.f32.xlu0 %v2197
  %v2199 = vpop.xlane.xlu0 %2198
  %v2200 = vsel %vm160, %v100, -inf
  %2201 = vmax.xlane.f32.xlu0 %v2200
  %v2202 = vpop.xlane.xlu0 %2201
  %v2203 = vsel %vm160, %v101, -inf
  %2204 = vmax.xlane.f32.xlu0 %v2203
  %v2205 = vpop.xlane.xlu0 %2204
  %v2206 = vsel %vm160, %v102, -inf
  %2207 = vmax.xlane.f32.xlu0 %v2206
  %v2208 = vpop.xlane.xlu0 %2207
  %v2209 = vsel %vm160, %v103, -inf
  %2210 = vmax.xlane.f32.xlu0 %v2209
  %v2211 = vpop.xlane.xlu0 %2210
  %v2212 = vsel %vm160, %v104, -inf
  %2213 = vmax.xlane.f32.xlu0 %v2212
  %v2214 = vpop.xlane.xlu0 %2213
  %v2215 = vsel %vm160, %v105, -inf
  %2216 = vmax.xlane.f32.xlu0 %v2215
  %v2217 = vpop.xlane.xlu0 %2216
  %v2218 = vsel %vm160, %v106, -inf
  %2219 = vmax.xlane.f32.xlu0 %v2218
  %v2220 = vpop.xlane.xlu0 %2219
  %v2221 = vsel %vm160, %v107, -inf
  %2222 = vmax.xlane.f32.xlu0 %v2221
  %v2223 = vpop.xlane.xlu0 %2222
  %v2224 = vsel %vm160, %v108, -inf
  %2225 = vmax.xlane.f32.xlu0 %v2224
  %v2226 = vpop.xlane.xlu0 %2225
  %v2227 = vsel %vm160, %v109, -inf
  %2228 = vmax.xlane.f32.xlu0 %v2227
  %v2229 = vpop.xlane.xlu0 %2228
  %v2230 = vsel %vm160, %v110, -inf
  %2231 = vmax.xlane.f32.xlu0 %v2230
  %v2232 = vpop.xlane.xlu0 %2231
  %v2233 = vsel %vm160, %v111, -inf
  %2234 = vmax.xlane.f32.xlu0 %v2233
  %v2235 = vpop.xlane.xlu0 %2234
  %v2236 = vsel %vm160, %v112, -inf
  %2237 = vmax.xlane.f32.xlu0 %v2236
  %v2238 = vpop.xlane.xlu0 %2237
  %v2239 = vsel %vm160, %v113, -inf
  %2240 = vmax.xlane.f32.xlu0 %v2239
  %v2241 = vpop.xlane.xlu0 %2240
  %v2242 = vsel %vm160, %v114, -inf
  %2243 = vmax.xlane.f32.xlu0 %v2242
  %v2244 = vpop.xlane.xlu0 %2243
  %v2245 = vsel %vm160, %v115, -inf
  %2246 = vmax.xlane.f32.xlu0 %v2245
  %v2247 = vpop.xlane.xlu0 %2246
  %v2248 = vsel %vm160, %v116, -inf
  %2249 = vmax.xlane.f32.xlu0 %v2248
  %v2250 = vpop.xlane.xlu0 %2249
  %v2251 = vsel %vm160, %v117, -inf
  %2252 = vmax.xlane.f32.xlu0 %v2251
  %v2253 = vpop.xlane.xlu0 %2252
  %v2254 = vsel %vm160, %v118, -inf
  %2255 = vmax.xlane.f32.xlu0 %v2254
  %v2256 = vpop.xlane.xlu0 %2255
  %v2257 = vsel %vm160, %v119, -inf
  %2258 = vmax.xlane.f32.xlu0 %v2257
  %v2259 = vpop.xlane.xlu0 %2258
  %v2260 = vsel %vm160, %v120, -inf
  %2261 = vmax.xlane.f32.xlu0 %v2260
  %v2262 = vpop.xlane.xlu0 %2261
  %v2263 = vsel %vm160, %v121, -inf
  %2264 = vmax.xlane.f32.xlu0 %v2263
  %v2265 = vpop.xlane.xlu0 %2264
  %v2266 = vsel %vm160, %v122, -inf
  %2267 = vmax.xlane.f32.xlu0 %v2266
  %v2268 = vpop.xlane.xlu0 %2267
  %v2269 = vsel %vm160, %v123, -inf
  %2270 = vmax.xlane.f32.xlu0 %v2269
  %v2271 = vpop.xlane.xlu0 %2270
  %v2272 = vsel %vm160, %v124, -inf
  %2273 = vmax.xlane.f32.xlu0 %v2272
  %v2274 = vpop.xlane.xlu0 %2273
  %v2275 = vsel %vm160, %v125, -inf
  %2276 = vmax.xlane.f32.xlu0 %v2275
  %v2277 = vpop.xlane.xlu0 %2276
  %v2278 = vsel %vm160, %v126, -inf
  %2279 = vmax.xlane.f32.xlu0 %v2278
  %v2280 = vpop.xlane.xlu0 %2279
  %v2281 = vsel %vm160, %v127, -inf
  %2282 = vmax.xlane.f32.xlu0 %v2281
  %v2283 = vpop.xlane.xlu0 %2282
  %v2284 = vsel %vm160, %v128, -inf
  %2285 = vmax.xlane.f32.xlu0 %v2284
  %v2286 = vpop.xlane.xlu0 %2285
  %v2287 = vsel %vm160, %v129, -inf
  %2288 = vmax.xlane.f32.xlu0 %v2287
  %v2289 = vpop.xlane.xlu0 %2288
  %v2290 = vsel %vm160, %v130, -inf
  %2291 = vmax.xlane.f32.xlu0 %v2290
  %v2292 = vpop.xlane.xlu0 %2291
  %v2293 = vsel %vm160, %v131, -inf
  %2294 = vmax.xlane.f32.xlu0 %v2293
  %v2295 = vpop.xlane.xlu0 %2294
  %v2296 = vsel %vm160, %v132, -inf
  %2297 = vmax.xlane.f32.xlu0 %v2296
  %v2298 = vpop.xlane.xlu0 %2297
  %v2299 = vsel %vm160, %v133, -inf
  %2300 = vmax.xlane.f32.xlu0 %v2299
  %v2301 = vpop.xlane.xlu0 %2300
  %v2302 = vsel %vm160, %v134, -inf
  %2303 = vmax.xlane.f32.xlu0 %v2302
  %v2304 = vpop.xlane.xlu0 %2303
  %v2305 = vsel %vm160, %v135, -inf
  %2306 = vmax.xlane.f32.xlu0 %v2305
  %v2307 = vpop.xlane.xlu0 %2306
  %v2308 = vsel %vm160, %v136, -inf
  %2309 = vmax.xlane.f32.xlu0 %v2308
  %v2310 = vpop.xlane.xlu0 %2309
  %v2311 = vsel %vm160, %v137, -inf
  %2312 = vmax.xlane.f32.xlu0 %v2311
  %v2313 = vpop.xlane.xlu0 %2312
  %v2314 = vsel %vm160, %v138, -inf
  %2315 = vmax.xlane.f32.xlu0 %v2314
  %v2316 = vpop.xlane.xlu0 %2315
  %v2317 = vsel %vm160, %v139, -inf
  %2318 = vmax.xlane.f32.xlu0 %v2317
  %v2319 = vpop.xlane.xlu0 %2318
  %v2320 = vsel %vm160, %v140, -inf
  %2321 = vmax.xlane.f32.xlu0 %v2320
  %v2322 = vpop.xlane.xlu0 %2321
  %v2323 = vsel %vm160, %v141, -inf
  %2324 = vmax.xlane.f32.xlu0 %v2323
  %v2325 = vpop.xlane.xlu0 %2324
  %v2326 = vsel %vm160, %v142, -inf
  %2327 = vmax.xlane.f32.xlu0 %v2326
  %v2328 = vpop.xlane.xlu0 %2327
  %v2329 = vsel %vm160, %v143, -inf
  %2330 = vmax.xlane.f32.xlu0 %v2329
  %v2331 = vpop.xlane.xlu0 %2330
  %v2332 = vsel %vm160, %v144, -inf
  %2333 = vmax.xlane.f32.xlu0 %v2332
  %v2334 = vpop.xlane.xlu0 %2333
  %v2335 = vsel %vm160, %v145, -inf
  %2336 = vmax.xlane.f32.xlu0 %v2335
  %v2337 = vpop.xlane.xlu0 %2336
  %v2338 = vsel %vm160, %v146, -inf
  %2339 = vmax.xlane.f32.xlu0 %v2338
  %v2340 = vpop.xlane.xlu0 %2339
  %v2341 = vsel %vm160, %v147, -inf
  %2342 = vmax.xlane.f32.xlu0 %v2341
  %v2343 = vpop.xlane.xlu0 %2342
  %v2344 = vsel %vm160, %v148, -inf
  %2345 = vmax.xlane.f32.xlu0 %v2344
  %v2346 = vpop.xlane.xlu0 %2345
  %v2347 = vsel %vm160, %v149, -inf
  %2348 = vmax.xlane.f32.xlu0 %v2347
  %v2349 = vpop.xlane.xlu0 %2348
  %v2350 = vsel %vm160, %v150, -inf
  %2351 = vmax.xlane.f32.xlu0 %v2350
  %v2352 = vpop.xlane.xlu0 %2351
  %v2353 = vsel %vm160, %v151, -inf
  %2354 = vmax.xlane.f32.xlu0 %v2353
  %v2355 = vpop.xlane.xlu0 %2354
  %v2356 = vsel %vm160, %v152, -inf
  %2357 = vmax.xlane.f32.xlu0 %v2356
  %v2358 = vpop.xlane.xlu0 %2357
  %v2359 = vsel %vm160, %v153, -inf
  %2360 = vmax.xlane.f32.xlu0 %v2359
  %v2361 = vpop.xlane.xlu0 %2360
  %v2362 = vsel %vm160, %v154, -inf
  %2363 = vmax.xlane.f32.xlu0 %v2362
  %v2364 = vpop.xlane.xlu0 %2363
  %v2365 = vsel %vm160, %v155, -inf
  %2366 = vmax.xlane.f32.xlu0 %v2365
  %v2367 = vpop.xlane.xlu0 %2366
  %v2368 = vsel %vm160, %v156, -inf
  %2369 = vmax.xlane.f32.xlu0 %v2368
  %v2370 = vpop.xlane.xlu0 %2369
  %v2371 = vsel %vm160, %v157, -inf
  %2372 = vmax.xlane.f32.xlu0 %v2371
  %v2373 = vpop.xlane.xlu0 %2372
  %v2374 = vsel %vm160, %v158, -inf
  %2375 = vmax.xlane.f32.xlu0 %v2374
  %v2376 = vpop.xlane.xlu0 %2375
  %v2377 = vsel %vm160, %v159, -inf
  %2378 = vmax.xlane.f32.xlu0 %v2377
  %v2379 = vpop.xlane.xlu0 %2378
  %v2508 = vlaneseq
  %v2509 = vshrl.u32 %v2508, 7
  %v2510 = vsub.s32 %v1314, %v2509
  %v2511 = vrot.slane %v1998, %v2510
  %v2512 = vlaneseq
  %v2513 = vshrl.u32 %v2512, 7
  %v2514 = vsub.s32 %v1319, %v2513
  %v2515 = vrot.slane %v2001, %v2514
  %v2516 = vsel %vm1324, %v2515, %v2511
  %v2517 = vlaneseq
  %v2518 = vshrl.u32 %v2517, 7
  %v2519 = vsub.s32 %v1314, %v2518
  %v2520 = vrot.slane %v2004, %v2519
  %v2521 = vlaneseq
  %v2522 = vshrl.u32 %v2521, 7
  %v2523 = vsub.s32 %v1319, %v2522
  %v2524 = vrot.slane %v2007, %v2523
  %v2525 = vsel %vm1324, %v2524, %v2520
  %v2526 = vlaneseq
  %v2527 = vshrl.u32 %v2526, 7
  %v2528 = vsub.s32 %v1314, %v2527
  %v2529 = vrot.slane %v2010, %v2528
  %v2530 = vlaneseq
  %v2531 = vshrl.u32 %v2530, 7
  %v2532 = vsub.s32 %v1319, %v2531
  %v2533 = vrot.slane %v2013, %v2532
  %v2534 = vsel %vm1324, %v2533, %v2529
  %v2535 = vlaneseq
  %v2536 = vshrl.u32 %v2535, 7
  %v2537 = vsub.s32 %v1314, %v2536
  %v2538 = vrot.slane %v2016, %v2537
  %v2539 = vlaneseq
  %v2540 = vshrl.u32 %v2539, 7
  %v2541 = vsub.s32 %v1319, %v2540
  %v2542 = vrot.slane %v2019, %v2541
  %v2543 = vsel %vm1324, %v2542, %v2538
  %v2544 = vlaneseq
  %v2545 = vshrl.u32 %v2544, 7
  %v2546 = vsub.s32 %v1314, %v2545
  %v2547 = vrot.slane %v2022, %v2546
  %v2548 = vlaneseq
  %v2549 = vshrl.u32 %v2548, 7
  %v2550 = vsub.s32 %v1319, %v2549
  %v2551 = vrot.slane %v2025, %v2550
  %v2552 = vsel %vm1324, %v2551, %v2547
  %v2553 = vlaneseq
  %v2554 = vshrl.u32 %v2553, 7
  %v2555 = vsub.s32 %v1314, %v2554
  %v2556 = vrot.slane %v2028, %v2555
  %v2557 = vlaneseq
  %v2558 = vshrl.u32 %v2557, 7
  %v2559 = vsub.s32 %v1319, %v2558
  %v2560 = vrot.slane %v2031, %v2559
  %v2561 = vsel %vm1324, %v2560, %v2556
  %v2562 = vlaneseq
  %v2563 = vshrl.u32 %v2562, 7
  %v2564 = vsub.s32 %v1314, %v2563
  %v2565 = vrot.slane %v2034, %v2564
  %v2566 = vlaneseq
  %v2567 = vshrl.u32 %v2566, 7
  %v2568 = vsub.s32 %v1319, %v2567
  %v2569 = vrot.slane %v2037, %v2568
  %v2570 = vsel %vm1324, %v2569, %v2565
  %v2571 = vlaneseq
  %v2572 = vshrl.u32 %v2571, 7
  %v2573 = vsub.s32 %v1314, %v2572
  %v2574 = vrot.slane %v2040, %v2573
  %v2575 = vlaneseq
  %v2576 = vshrl.u32 %v2575, 7
  %v2577 = vsub.s32 %v1319, %v2576
  %v2578 = vrot.slane %v2043, %v2577
  %v2579 = vsel %vm1324, %v2578, %v2574
  %v2580 = vlaneseq
  %v2581 = vshrl.u32 %v2580, 7
  %v2582 = vsub.s32 %v1314, %v2581
  %v2583 = vrot.slane %v2046, %v2582
  %v2584 = vlaneseq
  %v2585 = vshrl.u32 %v2584, 7
  %v2586 = vsub.s32 %v1319, %v2585
  %v2587 = vrot.slane %v2049, %v2586
  %v2588 = vsel %vm1324, %v2587, %v2583
  %v2589 = vlaneseq
  %v2590 = vshrl.u32 %v2589, 7
  %v2591 = vsub.s32 %v1314, %v2590
  %v2592 = vrot.slane %v2052, %v2591
  %v2593 = vlaneseq
  %v2594 = vshrl.u32 %v2593, 7
  %v2595 = vsub.s32 %v1319, %v2594
  %v2596 = vrot.slane %v2055, %v2595
  %v2597 = vsel %vm1324, %v2596, %v2592
  %v2598 = vlaneseq
  %v2599 = vshrl.u32 %v2598, 7
  %v2600 = vsub.s32 %v1314, %v2599
  %v2601 = vrot.slane %v2058, %v2600
  %v2602 = vlaneseq
  %v2603 = vshrl.u32 %v2602, 7
  %v2604 = vsub.s32 %v1319, %v2603
  %v2605 = vrot.slane %v2061, %v2604
  %v2606 = vsel %vm1324, %v2605, %v2601
  %v2607 = vlaneseq
  %v2608 = vshrl.u32 %v2607, 7
  %v2609 = vsub.s32 %v1314, %v2608
  %v2610 = vrot.slane %v2064, %v2609
  %v2611 = vlaneseq
  %v2612 = vshrl.u32 %v2611, 7
  %v2613 = vsub.s32 %v1319, %v2612
  %v2614 = vrot.slane %v2067, %v2613
  %v2615 = vsel %vm1324, %v2614, %v2610
  %v2616 = vlaneseq
  %v2617 = vshrl.u32 %v2616, 7
  %v2618 = vsub.s32 %v1314, %v2617
  %v2619 = vrot.slane %v2070, %v2618
  %v2620 = vlaneseq
  %v2621 = vshrl.u32 %v2620, 7
  %v2622 = vsub.s32 %v1319, %v2621
  %v2623 = vrot.slane %v2073, %v2622
  %v2624 = vsel %vm1324, %v2623, %v2619
  %v2625 = vlaneseq
  %v2626 = vshrl.u32 %v2625, 7
  %v2627 = vsub.s32 %v1314, %v2626
  %v2628 = vrot.slane %v2076, %v2627
  %v2629 = vlaneseq
  %v2630 = vshrl.u32 %v2629, 7
  %v2631 = vsub.s32 %v1319, %v2630
  %v2632 = vrot.slane %v2079, %v2631
  %v2633 = vsel %vm1324, %v2632, %v2628
  %v2634 = vlaneseq
  %v2635 = vshrl.u32 %v2634, 7
  %v2636 = vsub.s32 %v1314, %v2635
  %v2637 = vrot.slane %v2082, %v2636
  %v2638 = vlaneseq
  %v2639 = vshrl.u32 %v2638, 7
  %v2640 = vsub.s32 %v1319, %v2639
  %v2641 = vrot.slane %v2085, %v2640
  %v2642 = vsel %vm1324, %v2641, %v2637
  %v2643 = vlaneseq
  %v2644 = vshrl.u32 %v2643, 7
  %v2645 = vsub.s32 %v1314, %v2644
  %v2646 = vrot.slane %v2088, %v2645
  %v2647 = vlaneseq
  %v2648 = vshrl.u32 %v2647, 7
  %v2649 = vsub.s32 %v1319, %v2648
  %v2650 = vrot.slane %v2091, %v2649
  %v2651 = vsel %vm1324, %v2650, %v2646
  %v2652 = vlaneseq
  %v2653 = vshrl.u32 %v2652, 7
  %v2654 = vsub.s32 %v1314, %v2653
  %v2655 = vrot.slane %v2094, %v2654
  %v2656 = vlaneseq
  %v2657 = vshrl.u32 %v2656, 7
  %v2658 = vsub.s32 %v1319, %v2657
  %v2659 = vrot.slane %v2097, %v2658
  %v2660 = vsel %vm1324, %v2659, %v2655
  %v2661 = vlaneseq
  %v2662 = vshrl.u32 %v2661, 7
  %v2663 = vsub.s32 %v1314, %v2662
  %v2664 = vrot.slane %v2100, %v2663
  %v2665 = vlaneseq
  %v2666 = vshrl.u32 %v2665, 7
  %v2667 = vsub.s32 %v1319, %v2666
  %v2668 = vrot.slane %v2103, %v2667
  %v2669 = vsel %vm1324, %v2668, %v2664
  %v2670 = vlaneseq
  %v2671 = vshrl.u32 %v2670, 7
  %v2672 = vsub.s32 %v1314, %v2671
  %v2673 = vrot.slane %v2106, %v2672
  %v2674 = vlaneseq
  %v2675 = vshrl.u32 %v2674, 7
  %v2676 = vsub.s32 %v1319, %v2675
  %v2677 = vrot.slane %v2109, %v2676
  %v2678 = vsel %vm1324, %v2677, %v2673
  %v2679 = vlaneseq
  %v2680 = vshrl.u32 %v2679, 7
  %v2681 = vsub.s32 %v1314, %v2680
  %v2682 = vrot.slane %v2112, %v2681
  %v2683 = vlaneseq
  %v2684 = vshrl.u32 %v2683, 7
  %v2685 = vsub.s32 %v1319, %v2684
  %v2686 = vrot.slane %v2115, %v2685
  %v2687 = vsel %vm1324, %v2686, %v2682
  %v2688 = vlaneseq
  %v2689 = vshrl.u32 %v2688, 7
  %v2690 = vsub.s32 %v1314, %v2689
  %v2691 = vrot.slane %v2118, %v2690
  %v2692 = vlaneseq
  %v2693 = vshrl.u32 %v2692, 7
  %v2694 = vsub.s32 %v1319, %v2693
  %v2695 = vrot.slane %v2121, %v2694
  %v2696 = vsel %vm1324, %v2695, %v2691
  %v2697 = vlaneseq
  %v2698 = vshrl.u32 %v2697, 7
  %v2699 = vsub.s32 %v1314, %v2698
  %v2700 = vrot.slane %v2124, %v2699
  %v2701 = vlaneseq
  %v2702 = vshrl.u32 %v2701, 7
  %v2703 = vsub.s32 %v1319, %v2702
  %v2704 = vrot.slane %v2127, %v2703
  %v2705 = vsel %vm1324, %v2704, %v2700
  %v2706 = vlaneseq
  %v2707 = vshrl.u32 %v2706, 7
  %v2708 = vsub.s32 %v1314, %v2707
  %v2709 = vrot.slane %v2130, %v2708
  %v2710 = vlaneseq
  %v2711 = vshrl.u32 %v2710, 7
  %v2712 = vsub.s32 %v1319, %v2711
  %v2713 = vrot.slane %v2133, %v2712
  %v2714 = vsel %vm1324, %v2713, %v2709
  %v2715 = vlaneseq
  %v2716 = vshrl.u32 %v2715, 7
  %v2717 = vsub.s32 %v1314, %v2716
  %v2718 = vrot.slane %v2136, %v2717
  %v2719 = vlaneseq
  %v2720 = vshrl.u32 %v2719, 7
  %v2721 = vsub.s32 %v1319, %v2720
  %v2722 = vrot.slane %v2139, %v2721
  %v2723 = vsel %vm1324, %v2722, %v2718
  %v2724 = vlaneseq
  %v2725 = vshrl.u32 %v2724, 7
  %v2726 = vsub.s32 %v1314, %v2725
  %v2727 = vrot.slane %v2142, %v2726
  %v2728 = vlaneseq
  %v2729 = vshrl.u32 %v2728, 7
  %v2730 = vsub.s32 %v1319, %v2729
  %v2731 = vrot.slane %v2145, %v2730
  %v2732 = vsel %vm1324, %v2731, %v2727
  %v2733 = vlaneseq
  %v2734 = vshrl.u32 %v2733, 7
  %v2735 = vsub.s32 %v1314, %v2734
  %v2736 = vrot.slane %v2148, %v2735
  %v2737 = vlaneseq
  %v2738 = vshrl.u32 %v2737, 7
  %v2739 = vsub.s32 %v1319, %v2738
  %v2740 = vrot.slane %v2151, %v2739
  %v2741 = vsel %vm1324, %v2740, %v2736
  %v2742 = vlaneseq
  %v2743 = vshrl.u32 %v2742, 7
  %v2744 = vsub.s32 %v1314, %v2743
  %v2745 = vrot.slane %v2154, %v2744
  %v2746 = vlaneseq
  %v2747 = vshrl.u32 %v2746, 7
  %v2748 = vsub.s32 %v1319, %v2747
  %v2749 = vrot.slane %v2157, %v2748
  %v2750 = vsel %vm1324, %v2749, %v2745
  %v2751 = vlaneseq
  %v2752 = vshrl.u32 %v2751, 7
  %v2753 = vsub.s32 %v1314, %v2752
  %v2754 = vrot.slane %v2160, %v2753
  %v2755 = vlaneseq
  %v2756 = vshrl.u32 %v2755, 7
  %v2757 = vsub.s32 %v1319, %v2756
  %v2758 = vrot.slane %v2163, %v2757
  %v2759 = vsel %vm1324, %v2758, %v2754
  %v2760 = vlaneseq
  %v2761 = vshrl.u32 %v2760, 7
  %v2762 = vsub.s32 %v1314, %v2761
  %v2763 = vrot.slane %v2166, %v2762
  %v2764 = vlaneseq
  %v2765 = vshrl.u32 %v2764, 7
  %v2766 = vsub.s32 %v1319, %v2765
  %v2767 = vrot.slane %v2169, %v2766
  %v2768 = vsel %vm1324, %v2767, %v2763
  %v2769 = vlaneseq
  %v2770 = vshrl.u32 %v2769, 7
  %v2771 = vsub.s32 %v1314, %v2770
  %v2772 = vrot.slane %v2172, %v2771
  %v2773 = vlaneseq
  %v2774 = vshrl.u32 %v2773, 7
  %v2775 = vsub.s32 %v1319, %v2774
  %v2776 = vrot.slane %v2175, %v2775
  %v2777 = vsel %vm1324, %v2776, %v2772
  %v2778 = vlaneseq
  %v2779 = vshrl.u32 %v2778, 7
  %v2780 = vsub.s32 %v1314, %v2779
  %v2781 = vrot.slane %v2178, %v2780
  %v2782 = vlaneseq
  %v2783 = vshrl.u32 %v2782, 7
  %v2784 = vsub.s32 %v1319, %v2783
  %v2785 = vrot.slane %v2181, %v2784
  %v2786 = vsel %vm1324, %v2785, %v2781
  %v2787 = vlaneseq
  %v2788 = vshrl.u32 %v2787, 7
  %v2789 = vsub.s32 %v1314, %v2788
  %v2790 = vrot.slane %v2184, %v2789
  %v2791 = vlaneseq
  %v2792 = vshrl.u32 %v2791, 7
  %v2793 = vsub.s32 %v1319, %v2792
  %v2794 = vrot.slane %v2187, %v2793
  %v2795 = vsel %vm1324, %v2794, %v2790
  %v2796 = vlaneseq
  %v2797 = vshrl.u32 %v2796, 7
  %v2798 = vsub.s32 %v1314, %v2797
  %v2799 = vrot.slane %v2190, %v2798
  %v2800 = vlaneseq
  %v2801 = vshrl.u32 %v2800, 7
  %v2802 = vsub.s32 %v1319, %v2801
  %v2803 = vrot.slane %v2193, %v2802
  %v2804 = vsel %vm1324, %v2803, %v2799
  %v2805 = vlaneseq
  %v2806 = vshrl.u32 %v2805, 7
  %v2807 = vsub.s32 %v1314, %v2806
  %v2808 = vrot.slane %v2196, %v2807
  %v2809 = vlaneseq
  %v2810 = vshrl.u32 %v2809, 7
  %v2811 = vsub.s32 %v1319, %v2810
  %v2812 = vrot.slane %v2199, %v2811
  %v2813 = vsel %vm1324, %v2812, %v2808
  %v2814 = vlaneseq
  %v2815 = vshrl.u32 %v2814, 7
  %v2816 = vsub.s32 %v1314, %v2815
  %v2817 = vrot.slane %v2202, %v2816
  %v2818 = vlaneseq
  %v2819 = vshrl.u32 %v2818, 7
  %v2820 = vsub.s32 %v1319, %v2819
  %v2821 = vrot.slane %v2205, %v2820
  %v2822 = vsel %vm1324, %v2821, %v2817
  %v2823 = vlaneseq
  %v2824 = vshrl.u32 %v2823, 7
  %v2825 = vsub.s32 %v1314, %v2824
  %v2826 = vrot.slane %v2208, %v2825
  %v2827 = vlaneseq
  %v2828 = vshrl.u32 %v2827, 7
  %v2829 = vsub.s32 %v1319, %v2828
  %v2830 = vrot.slane %v2211, %v2829
  %v2831 = vsel %vm1324, %v2830, %v2826
  %v2832 = vlaneseq
  %v2833 = vshrl.u32 %v2832, 7
  %v2834 = vsub.s32 %v1314, %v2833
  %v2835 = vrot.slane %v2214, %v2834
  %v2836 = vlaneseq
  %v2837 = vshrl.u32 %v2836, 7
  %v2838 = vsub.s32 %v1319, %v2837
  %v2839 = vrot.slane %v2217, %v2838
  %v2840 = vsel %vm1324, %v2839, %v2835
  %v2841 = vlaneseq
  %v2842 = vshrl.u32 %v2841, 7
  %v2843 = vsub.s32 %v1314, %v2842
  %v2844 = vrot.slane %v2220, %v2843
  %v2845 = vlaneseq
  %v2846 = vshrl.u32 %v2845, 7
  %v2847 = vsub.s32 %v1319, %v2846
  %v2848 = vrot.slane %v2223, %v2847
  %v2849 = vsel %vm1324, %v2848, %v2844
  %v2850 = vlaneseq
  %v2851 = vshrl.u32 %v2850, 7
  %v2852 = vsub.s32 %v1314, %v2851
  %v2853 = vrot.slane %v2226, %v2852
  %v2854 = vlaneseq
  %v2855 = vshrl.u32 %v2854, 7
  %v2856 = vsub.s32 %v1319, %v2855
  %v2857 = vrot.slane %v2229, %v2856
  %v2858 = vsel %vm1324, %v2857, %v2853
  %v2859 = vlaneseq
  %v2860 = vshrl.u32 %v2859, 7
  %v2861 = vsub.s32 %v1314, %v2860
  %v2862 = vrot.slane %v2232, %v2861
  %v2863 = vlaneseq
  %v2864 = vshrl.u32 %v2863, 7
  %v2865 = vsub.s32 %v1319, %v2864
  %v2866 = vrot.slane %v2235, %v2865
  %v2867 = vsel %vm1324, %v2866, %v2862
  %v2868 = vlaneseq
  %v2869 = vshrl.u32 %v2868, 7
  %v2870 = vsub.s32 %v1314, %v2869
  %v2871 = vrot.slane %v2238, %v2870
  %v2872 = vlaneseq
  %v2873 = vshrl.u32 %v2872, 7
  %v2874 = vsub.s32 %v1319, %v2873
  %v2875 = vrot.slane %v2241, %v2874
  %v2876 = vsel %vm1324, %v2875, %v2871
  %v2877 = vlaneseq
  %v2878 = vshrl.u32 %v2877, 7
  %v2879 = vsub.s32 %v1314, %v2878
  %v2880 = vrot.slane %v2244, %v2879
  %v2881 = vlaneseq
  %v2882 = vshrl.u32 %v2881, 7
  %v2883 = vsub.s32 %v1319, %v2882
  %v2884 = vrot.slane %v2247, %v2883
  %v2885 = vsel %vm1324, %v2884, %v2880
  %v2886 = vlaneseq
  %v2887 = vshrl.u32 %v2886, 7
  %v2888 = vsub.s32 %v1314, %v2887
  %v2889 = vrot.slane %v2250, %v2888
  %v2890 = vlaneseq
  %v2891 = vshrl.u32 %v2890, 7
  %v2892 = vsub.s32 %v1319, %v2891
  %v2893 = vrot.slane %v2253, %v2892
  %v2894 = vsel %vm1324, %v2893, %v2889
  %v2895 = vlaneseq
  %v2896 = vshrl.u32 %v2895, 7
  %v2897 = vsub.s32 %v1314, %v2896
  %v2898 = vrot.slane %v2256, %v2897
  %v2899 = vlaneseq
  %v2900 = vshrl.u32 %v2899, 7
  %v2901 = vsub.s32 %v1319, %v2900
  %v2902 = vrot.slane %v2259, %v2901
  %v2903 = vsel %vm1324, %v2902, %v2898
  %v2904 = vlaneseq
  %v2905 = vshrl.u32 %v2904, 7
  %v2906 = vsub.s32 %v1314, %v2905
  %v2907 = vrot.slane %v2262, %v2906
  %v2908 = vlaneseq
  %v2909 = vshrl.u32 %v2908, 7
  %v2910 = vsub.s32 %v1319, %v2909
  %v2911 = vrot.slane %v2265, %v2910
  %v2912 = vsel %vm1324, %v2911, %v2907
  %v2913 = vlaneseq
  %v2914 = vshrl.u32 %v2913, 7
  %v2915 = vsub.s32 %v1314, %v2914
  %v2916 = vrot.slane %v2268, %v2915
  %v2917 = vlaneseq
  %v2918 = vshrl.u32 %v2917, 7
  %v2919 = vsub.s32 %v1319, %v2918
  %v2920 = vrot.slane %v2271, %v2919
  %v2921 = vsel %vm1324, %v2920, %v2916
  %v2922 = vlaneseq
  %v2923 = vshrl.u32 %v2922, 7
  %v2924 = vsub.s32 %v1314, %v2923
  %v2925 = vrot.slane %v2274, %v2924
  %v2926 = vlaneseq
  %v2927 = vshrl.u32 %v2926, 7
  %v2928 = vsub.s32 %v1319, %v2927
  %v2929 = vrot.slane %v2277, %v2928
  %v2930 = vsel %vm1324, %v2929, %v2925
  %v2931 = vlaneseq
  %v2932 = vshrl.u32 %v2931, 7
  %v2933 = vsub.s32 %v1314, %v2932
  %v2934 = vrot.slane %v2280, %v2933
  %v2935 = vlaneseq
  %v2936 = vshrl.u32 %v2935, 7
  %v2937 = vsub.s32 %v1319, %v2936
  %v2938 = vrot.slane %v2283, %v2937
  %v2939 = vsel %vm1324, %v2938, %v2934
  %v2940 = vlaneseq
  %v2941 = vshrl.u32 %v2940, 7
  %v2942 = vsub.s32 %v1314, %v2941
  %v2943 = vrot.slane %v2286, %v2942
  %v2944 = vlaneseq
  %v2945 = vshrl.u32 %v2944, 7
  %v2946 = vsub.s32 %v1319, %v2945
  %v2947 = vrot.slane %v2289, %v2946
  %v2948 = vsel %vm1324, %v2947, %v2943
  %v2949 = vlaneseq
  %v2950 = vshrl.u32 %v2949, 7
  %v2951 = vsub.s32 %v1314, %v2950
  %v2952 = vrot.slane %v2292, %v2951
  %v2953 = vlaneseq
  %v2954 = vshrl.u32 %v2953, 7
  %v2955 = vsub.s32 %v1319, %v2954
  %v2956 = vrot.slane %v2295, %v2955
  %v2957 = vsel %vm1324, %v2956, %v2952
  %v2958 = vlaneseq
  %v2959 = vshrl.u32 %v2958, 7
  %v2960 = vsub.s32 %v1314, %v2959
  %v2961 = vrot.slane %v2298, %v2960
  %v2962 = vlaneseq
  %v2963 = vshrl.u32 %v2962, 7
  %v2964 = vsub.s32 %v1319, %v2963
  %v2965 = vrot.slane %v2301, %v2964
  %v2966 = vsel %vm1324, %v2965, %v2961
  %v2967 = vlaneseq
  %v2968 = vshrl.u32 %v2967, 7
  %v2969 = vsub.s32 %v1314, %v2968
  %v2970 = vrot.slane %v2304, %v2969
  %v2971 = vlaneseq
  %v2972 = vshrl.u32 %v2971, 7
  %v2973 = vsub.s32 %v1319, %v2972
  %v2974 = vrot.slane %v2307, %v2973
  %v2975 = vsel %vm1324, %v2974, %v2970
  %v2976 = vlaneseq
  %v2977 = vshrl.u32 %v2976, 7
  %v2978 = vsub.s32 %v1314, %v2977
  %v2979 = vrot.slane %v2310, %v2978
  %v2980 = vlaneseq
  %v2981 = vshrl.u32 %v2980, 7
  %v2982 = vsub.s32 %v1319, %v2981
  %v2983 = vrot.slane %v2313, %v2982
  %v2984 = vsel %vm1324, %v2983, %v2979
  %v2985 = vlaneseq
  %v2986 = vshrl.u32 %v2985, 7
  %v2987 = vsub.s32 %v1314, %v2986
  %v2988 = vrot.slane %v2316, %v2987
  %v2989 = vlaneseq
  %v2990 = vshrl.u32 %v2989, 7
  %v2991 = vsub.s32 %v1319, %v2990
  %v2992 = vrot.slane %v2319, %v2991
  %v2993 = vsel %vm1324, %v2992, %v2988
  %v2994 = vlaneseq
  %v2995 = vshrl.u32 %v2994, 7
  %v2996 = vsub.s32 %v1314, %v2995
  %v2997 = vrot.slane %v2322, %v2996
  %v2998 = vlaneseq
  %v2999 = vshrl.u32 %v2998, 7
  %v3000 = vsub.s32 %v1319, %v2999
  %v3001 = vrot.slane %v2325, %v3000
  %v3002 = vsel %vm1324, %v3001, %v2997
  %v3003 = vlaneseq
  %v3004 = vshrl.u32 %v3003, 7
  %v3005 = vsub.s32 %v1314, %v3004
  %v3006 = vrot.slane %v2328, %v3005
  %v3007 = vlaneseq
  %v3008 = vshrl.u32 %v3007, 7
  %v3009 = vsub.s32 %v1319, %v3008
  %v3010 = vrot.slane %v2331, %v3009
  %v3011 = vsel %vm1324, %v3010, %v3006
  %v3012 = vlaneseq
  %v3013 = vshrl.u32 %v3012, 7
  %v3014 = vsub.s32 %v1314, %v3013
  %v3015 = vrot.slane %v2334, %v3014
  %v3016 = vlaneseq
  %v3017 = vshrl.u32 %v3016, 7
  %v3018 = vsub.s32 %v1319, %v3017
  %v3019 = vrot.slane %v2337, %v3018
  %v3020 = vsel %vm1324, %v3019, %v3015
  %v3021 = vlaneseq
  %v3022 = vshrl.u32 %v3021, 7
  %v3023 = vsub.s32 %v1314, %v3022
  %v3024 = vrot.slane %v2340, %v3023
  %v3025 = vlaneseq
  %v3026 = vshrl.u32 %v3025, 7
  %v3027 = vsub.s32 %v1319, %v3026
  %v3028 = vrot.slane %v2343, %v3027
  %v3029 = vsel %vm1324, %v3028, %v3024
  %v3030 = vlaneseq
  %v3031 = vshrl.u32 %v3030, 7
  %v3032 = vsub.s32 %v1314, %v3031
  %v3033 = vrot.slane %v2346, %v3032
  %v3034 = vlaneseq
  %v3035 = vshrl.u32 %v3034, 7
  %v3036 = vsub.s32 %v1319, %v3035
  %v3037 = vrot.slane %v2349, %v3036
  %v3038 = vsel %vm1324, %v3037, %v3033
  %v3039 = vlaneseq
  %v3040 = vshrl.u32 %v3039, 7
  %v3041 = vsub.s32 %v1314, %v3040
  %v3042 = vrot.slane %v2352, %v3041
  %v3043 = vlaneseq
  %v3044 = vshrl.u32 %v3043, 7
  %v3045 = vsub.s32 %v1319, %v3044
  %v3046 = vrot.slane %v2355, %v3045
  %v3047 = vsel %vm1324, %v3046, %v3042
  %v3048 = vlaneseq
  %v3049 = vshrl.u32 %v3048, 7
  %v3050 = vsub.s32 %v1314, %v3049
  %v3051 = vrot.slane %v2358, %v3050
  %v3052 = vlaneseq
  %v3053 = vshrl.u32 %v3052, 7
  %v3054 = vsub.s32 %v1319, %v3053
  %v3055 = vrot.slane %v2361, %v3054
  %v3056 = vsel %vm1324, %v3055, %v3051
  %v3057 = vlaneseq
  %v3058 = vshrl.u32 %v3057, 7
  %v3059 = vsub.s32 %v1314, %v3058
  %v3060 = vrot.slane %v2364, %v3059
  %v3061 = vlaneseq
  %v3062 = vshrl.u32 %v3061, 7
  %v3063 = vsub.s32 %v1319, %v3062
  %v3064 = vrot.slane %v2367, %v3063
  %v3065 = vsel %vm1324, %v3064, %v3060
  %v3066 = vlaneseq
  %v3067 = vshrl.u32 %v3066, 7
  %v3068 = vsub.s32 %v1314, %v3067
  %v3069 = vrot.slane %v2370, %v3068
  %v3070 = vlaneseq
  %v3071 = vshrl.u32 %v3070, 7
  %v3072 = vsub.s32 %v1319, %v3071
  %v3073 = vrot.slane %v2373, %v3072
  %v3074 = vsel %vm1324, %v3073, %v3069
  %v3075 = vlaneseq
  %v3076 = vshrl.u32 %v3075, 7
  %v3077 = vsub.s32 %v1314, %v3076
  %v3078 = vrot.slane %v2376, %v3077
  %v3079 = vlaneseq
  %v3080 = vshrl.u32 %v3079, 7
  %v3081 = vsub.s32 %v1319, %v3080
  %v3082 = vrot.slane %v2379, %v3081
  %v3083 = vsel %vm1324, %v3082, %v3078
  %v3084 = vsel %vm1893, %v2525, %v2516
  %v3085 = vsel %vm1895, %v2534, %v3084
  %v3086 = vsel %vm1897, %v2543, %v3085
  %v3087 = vsel %vm1899, %v2552, %v3086
  %v3088 = vsel %vm1901, %v2561, %v3087
  %v3089 = vsel %vm1903, %v2570, %v3088
  %v3090 = vsel %vm1905, %v2579, %v3089
  %v3091 = vsel %vm1893, %v2597, %v2588
  %v3092 = vsel %vm1895, %v2606, %v3091
  %v3093 = vsel %vm1897, %v2615, %v3092
  %v3094 = vsel %vm1899, %v2624, %v3093
  %v3095 = vsel %vm1901, %v2633, %v3094
  %v3096 = vsel %vm1903, %v2642, %v3095
  %v3097 = vsel %vm1905, %v2651, %v3096
  %v3098 = vsel %vm1893, %v2669, %v2660
  %v3099 = vsel %vm1895, %v2678, %v3098
  %v3100 = vsel %vm1897, %v2687, %v3099
  %v3101 = vsel %vm1899, %v2696, %v3100
  %v3102 = vsel %vm1901, %v2705, %v3101
  %v3103 = vsel %vm1903, %v2714, %v3102
  %v3104 = vsel %vm1905, %v2723, %v3103
  %v3105 = vsel %vm1893, %v2741, %v2732
  %v3106 = vsel %vm1895, %v2750, %v3105
  %v3107 = vsel %vm1897, %v2759, %v3106
  %v3108 = vsel %vm1899, %v2768, %v3107
  %v3109 = vsel %vm1901, %v2777, %v3108
  %v3110 = vsel %vm1903, %v2786, %v3109
  %v3111 = vsel %vm1905, %v2795, %v3110
  %v3112 = vsel %vm1893, %v2813, %v2804
  %v3113 = vsel %vm1895, %v2822, %v3112
  %v3114 = vsel %vm1897, %v2831, %v3113
  %v3115 = vsel %vm1899, %v2840, %v3114
  %v3116 = vsel %vm1901, %v2849, %v3115
  %v3117 = vsel %vm1903, %v2858, %v3116
  %v3118 = vsel %vm1905, %v2867, %v3117
  %v3119 = vsel %vm1893, %v2885, %v2876
  %v3120 = vsel %vm1895, %v2894, %v3119
  %v3121 = vsel %vm1897, %v2903, %v3120
  %v3122 = vsel %vm1899, %v2912, %v3121
  %v3123 = vsel %vm1901, %v2921, %v3122
  %v3124 = vsel %vm1903, %v2930, %v3123
  %v3125 = vsel %vm1905, %v2939, %v3124
  %v3126 = vsel %vm1893, %v2957, %v2948
  %v3127 = vsel %vm1895, %v2966, %v3126
  %v3128 = vsel %vm1897, %v2975, %v3127
  %v3129 = vsel %vm1899, %v2984, %v3128
  %v3130 = vsel %vm1901, %v2993, %v3129
  %v3131 = vsel %vm1903, %v3002, %v3130
  %v3132 = vsel %vm1905, %v3011, %v3131
  %v3133 = vsel %vm1893, %v3029, %v3020
  %v3134 = vsel %vm1895, %v3038, %v3133
  %v3135 = vsel %vm1897, %v3047, %v3134
  %v3136 = vsel %vm1899, %v3056, %v3135
  %v3137 = vsel %vm1901, %v3065, %v3136
  %v3138 = vsel %vm1903, %v3074, %v3137
  %v3139 = vsel %vm1905, %v3083, %v3138
  %v3148 = vsel %vm160, %v3090, -inf
  %3149 = vmax.xlane.f32.xlu0 %v3148
  %v3150 = vpop.xlane.xlu0 %3149
  %v3151 = vsel %vm160, %v3097, -inf
  %3152 = vmax.xlane.f32.xlu0 %v3151
  %v3153 = vpop.xlane.xlu0 %3152
  %v3154 = vsel %vm160, %v3104, -inf
  %3155 = vmax.xlane.f32.xlu0 %v3154
  %v3156 = vpop.xlane.xlu0 %3155
  %v3157 = vsel %vm160, %v3111, -inf
  %3158 = vmax.xlane.f32.xlu0 %v3157
  %v3159 = vpop.xlane.xlu0 %3158
  %v3160 = vsel %vm160, %v3118, -inf
  %3161 = vmax.xlane.f32.xlu0 %v3160
  %v3162 = vpop.xlane.xlu0 %3161
  %v3163 = vsel %vm160, %v3125, -inf
  %3164 = vmax.xlane.f32.xlu0 %v3163
  %v3165 = vpop.xlane.xlu0 %3164
  %v3166 = vsel %vm160, %v3132, -inf
  %3167 = vmax.xlane.f32.xlu0 %v3166
  %v3168 = vpop.xlane.xlu0 %3167
  %v3169 = vsel %vm160, %v3139, -inf
  %3170 = vmax.xlane.f32.xlu0 %v3169
  %v3171 = vpop.xlane.xlu0 %3170
  %v3180 = vlaneseq
  %v3181 = vshrl.u32 %v3180, 7
  %v3182 = vsub.s32 %v1314, %v3181
  %v3183 = vrot.slane %v1988, %v3182
  %v3184 = vlaneseq
  %v3185 = vshrl.u32 %v3184, 7
  %v3186 = vsub.s32 %v1319, %v3185
  %v3187 = vrot.slane %v1989, %v3186
  %v3188 = vsel %vm1324, %v3187, %v3183
  %v3189 = vadd.s32 %v1314, 4294967280
  %v3190 = vlaneseq
  %v3191 = vshrl.u32 %v3190, 7
  %v3192 = vsub.s32 %v3189, %v3191
  %v3193 = vrot.slane %v1990, %v3192
  %vm3194 = vcmask 195712
  %v3195 = vsel %vm3194, %v3193, %v3188
  %v3196 = vadd.s32 %v1314, 4294967272
  %v3197 = vlaneseq
  %v3198 = vshrl.u32 %v3197, 7
  %v3199 = vsub.s32 %v3196, %v3198
  %v3200 = vrot.slane %v1991, %v3199
  %vm3201 = vcmask 261312
  %v3202 = vsel %vm3201, %v3200, %v3195
  %v3203 = vlaneseq
  %v3204 = vshrl.u32 %v3203, 7
  %v3205 = vsub.s32 %v1314, %v3204
  %v3206 = vrot.slane %v1992, %v3205
  %v3207 = vlaneseq
  %v3208 = vshrl.u32 %v3207, 7
  %v3209 = vsub.s32 %v1319, %v3208
  %v3210 = vrot.slane %v1993, %v3209
  %v3211 = vsel %vm1324, %v3210, %v3206
  %v3212 = vlaneseq
  %v3213 = vshrl.u32 %v3212, 7
  %v3214 = vsub.s32 %v3189, %v3213
  %v3215 = vrot.slane %v1994, %v3214
  %v3216 = vsel %vm3194, %v3215, %v3211
  %v3217 = vlaneseq
  %v3218 = vshrl.u32 %v3217, 7
  %v3219 = vsub.s32 %v3196, %v3218
  %v3220 = vrot.slane %v1995, %v3219
  %v3221 = vsel %vm3201, %v3220, %v3216
  %v3222 = vsel %vm1893, %v3221, %v3202
  %v3232 = vlaneseq
  %v3233 = vshrl.u32 %v3232, 7
  %v3234 = vsub.s32 %v1314, %v3233
  %v3235 = vrot.slane %v3150, %v3234
  %v3236 = vlaneseq
  %v3237 = vshrl.u32 %v3236, 7
  %v3238 = vsub.s32 %v1319, %v3237
  %v3239 = vrot.slane %v3153, %v3238
  %v3240 = vsel %vm1324, %v3239, %v3235
  %v3241 = vlaneseq
  %v3242 = vshrl.u32 %v3241, 7
  %v3243 = vsub.s32 %v3189, %v3242
  %v3244 = vrot.slane %v3156, %v3243
  %v3245 = vsel %vm3194, %v3244, %v3240
  %v3246 = vlaneseq
  %v3247 = vshrl.u32 %v3246, 7
  %v3248 = vsub.s32 %v3196, %v3247
  %v3249 = vrot.slane %v3159, %v3248
  %v3250 = vsel %vm3201, %v3249, %v3245
  %v3251 = vlaneseq
  %v3252 = vshrl.u32 %v3251, 7
  %v3253 = vsub.s32 %v1314, %v3252
  %v3254 = vrot.slane %v3162, %v3253
  %v3255 = vlaneseq
  %v3256 = vshrl.u32 %v3255, 7
  %v3257 = vsub.s32 %v1319, %v3256
  %v3258 = vrot.slane %v3165, %v3257
  %v3259 = vsel %vm1324, %v3258, %v3254
  %v3260 = vlaneseq
  %v3261 = vshrl.u32 %v3260, 7
  %v3262 = vsub.s32 %v3189, %v3261
  %v3263 = vrot.slane %v3168, %v3262
  %v3264 = vsel %vm3194, %v3263, %v3259
  %v3265 = vlaneseq
  %v3266 = vshrl.u32 %v3265, 7
  %v3267 = vsub.s32 %v3196, %v3266
  %v3268 = vrot.slane %v3171, %v3267
  %v3269 = vsel %vm3201, %v3268, %v3264
  %v3270 = vsel %vm1897, %v3269, %v3250
  %vm3272 = vcmask 1041408
  %v3273 = vsel %vm3272, %v3222, %v3270
  %v3274 = vld [vmem:[%s1] sm:$0xff]
  %v3275 = vld [vmem:[%s1 + $0x8] sm:$0xff]
  %v3276 = vld [vmem:[%s1 + $0x10] sm:$0xff]
  %v3277 = vld [vmem:[%s1 + $0x18] sm:$0xff]
  %vm3278 = vcmask 261120
  %v3280 = vsel %vm3278, %v3273, 0
  %3282 = vmatprep.subr.mxu0 0.0
  %3283 = vmatpush1.msra.mxu0 %v3274
  %3284 = vmatprep.subr.mxu0 0.0
  %3285 = vmatpush1.msra.mxu0 %v3275
  %3286 = vmatprep.subr.mxu0 0.0
  %3287 = vmatpush1.msra.mxu0 %v3276
  %3288 = vmatprep.subr.mxu0 0.0
  %3289 = vmatpush1.msra.mxu0 %v3277
  %3290 = vmatprep.subr.mxu0 0.0
  %3291 = vmatpush1.msra.mxu0 0.0
  %3292 = vmatprep.subr.mxu0 0.0
  %3293 = vmatpush1.msra.mxu0 0.0
  %3294 = vmatprep.subr.mxu0 0.0
  %3295 = vmatpush1.msra.mxu0 0.0
  %3296 = vmatprep.subr.mxu0 0.0
  %3297 = vmatpush1.msra.mxu0 0.0
  %3298 = vmatprep.subr.mxu0 0.0
  %3299 = vmatpush1.msra.mxu0 0.0
  %3300 = vmatprep.subr.mxu0 0.0
  %3301 = vmatpush1.msra.mxu0 0.0
  %3302 = vmatprep.subr.mxu0 0.0
  %3303 = vmatpush1.msra.mxu0 0.0
  %3304 = vmatprep.subr.mxu0 0.0
  %3305 = vmatpush1.msra.mxu0 0.0
  %3306 = vmatprep.subr.mxu0 0.0
  %3307 = vmatpush1.msra.mxu0 0.0
  %3308 = vmatprep.subr.mxu0 0.0
  %3309 = vmatpush1.msra.mxu0 0.0
  %3310 = vmatprep.subr.mxu0 0.0
  %3311 = vmatpush1.msra.mxu0 0.0
  %3312 = vmatprep.subr.mxu0 0.0
  %3313 = vmatpush1.msra.mxu0 0.0
  %3314 = vmatprep.subr.mxu0 0.0
  %3315 = vmatpush1.msra.mxu0 0.0
  %3316 = vmatprep.subr.mxu0 0.0
  %3317 = vmatpush1.msra.mxu0 0.0
  %3318 = vmatprep.subr.mxu0 0.0
  %3319 = vmatpush1.msra.mxu0 0.0
  %3320 = vmatprep.subr.mxu0 0.0
  %3321 = vmatpush1.msra.mxu0 0.0
  %3322 = vmatprep.subr.mxu0 0.0
  %3323 = vmatpush1.msra.mxu0 0.0
  %3324 = vmatprep.subr.mxu0 0.0
  %3325 = vmatpush1.msra.mxu0 0.0
  %3326 = vmatprep.subr.mxu0 0.0
  %3327 = vmatpush1.msra.mxu0 0.0
  %3328 = vmatprep.subr.mxu0 0.0
  %3329 = vmatpush1.msra.mxu0 0.0
  %3330 = vmatprep.subr.mxu0 0.0
  %3331 = vmatpush1.msra.mxu0 0.0
  %3332 = vmatprep.subr.mxu0 0.0
  %3333 = vmatpush1.msra.mxu0 0.0
  %3334 = vmatprep.subr.mxu0 0.0
  %3335 = vmatpush1.msra.mxu0 0.0
  %3336 = vmatprep.subr.mxu0 0.0
  %3337 = vmatpush1.msra.mxu0 0.0
  %3338 = vmatprep.subr.mxu0 0.0
  %3339 = vmatpush1.msra.mxu0 0.0
  %3340 = vmatprep.subr.mxu0 0.0
  %3341 = vmatpush1.msra.mxu0 0.0
  %3342 = vmatprep.subr.mxu0 0.0
  %3343 = vmatpush1.msra.mxu0 0.0
  %3344 = vmatprep.subr.mxu0 0.0
  %3345 = vmatpush1.msra.mxu0 0.0
  %3346 = vmatprep.mubr.f32.mxu0 0.0
  %3347 = vmatmul.mubr.f32.gmra.mrb[0].mxu0 %v3280
  %v3348 = vpop.f32.mrb[0].mxu0
  %v3349 = vadd.f32 0.0, %v3348
  %v3350 = vpop.f32.mrb[0].mxu0
  %3351 = vdwg.mxu0
  %v3352 = vmax.f32 %v3349, 0.0
  %v3353 = vld [vmem:[%s2] sm:$0x3]
  %vm3354 = vcmask 15360
  %v3356 = vsel %vm3354, %v3352, 0
  %v3359 = vsel %vm3272, %v3353, 0
  %3361 = vmatprep.subr.mxu0 0.0
  %3362 = vmatpush1.msra.mxu0 %v3359
  %3363 = vmatprep.subr.mxu0 0.0
  %3364 = vmatpush1.msra.mxu0 0.0
  %3365 = vmatprep.subr.mxu0 0.0
  %3366 = vmatpush1.msra.mxu0 0.0
  %3367 = vmatprep.subr.mxu0 0.0
  %3368 = vmatpush1.msra.mxu0 0.0
  %3369 = vmatprep.subr.mxu0 0.0
  %3370 = vmatpush1.msra.mxu0 0.0
  %3371 = vmatprep.subr.mxu0 0.0
  %3372 = vmatpush1.msra.mxu0 0.0
  %3373 = vmatprep.subr.mxu0 0.0
  %3374 = vmatpush1.msra.mxu0 0.0
  %3375 = vmatprep.subr.mxu0 0.0
  %3376 = vmatpush1.msra.mxu0 0.0
  %3377 = vmatprep.subr.mxu0 0.0
  %3378 = vmatpush1.msra.mxu0 0.0
  %3379 = vmatprep.subr.mxu0 0.0
  %3380 = vmatpush1.msra.mxu0 0.0
  %3381 = vmatprep.subr.mxu0 0.0
  %3382 = vmatpush1.msra.mxu0 0.0
  %3383 = vmatprep.subr.mxu0 0.0
  %3384 = vmatpush1.msra.mxu0 0.0
  %3385 = vmatprep.subr.mxu0 0.0
  %3386 = vmatpush1.msra.mxu0 0.0
  %3387 = vmatprep.subr.mxu0 0.0
  %3388 = vmatpush1.msra.mxu0 0.0
  %3389 = vmatprep.subr.mxu0 0.0
  %3390 = vmatpush1.msra.mxu0 0.0
  %3391 = vmatprep.subr.mxu0 0.0
  %3392 = vmatpush1.msra.mxu0 0.0
  %3393 = vmatprep.subr.mxu0 0.0
  %3394 = vmatpush1.msra.mxu0 0.0
  %3395 = vmatprep.subr.mxu0 0.0
  %3396 = vmatpush1.msra.mxu0 0.0
  %3397 = vmatprep.subr.mxu0 0.0
  %3398 = vmatpush1.msra.mxu0 0.0
  %3399 = vmatprep.subr.mxu0 0.0
  %3400 = vmatpush1.msra.mxu0 0.0
  %3401 = vmatprep.subr.mxu0 0.0
  %3402 = vmatpush1.msra.mxu0 0.0
  %3403 = vmatprep.subr.mxu0 0.0
  %3404 = vmatpush1.msra.mxu0 0.0
  %3405 = vmatprep.subr.mxu0 0.0
  %3406 = vmatpush1.msra.mxu0 0.0
  %3407 = vmatprep.subr.mxu0 0.0
  %3408 = vmatpush1.msra.mxu0 0.0
  %3409 = vmatprep.subr.mxu0 0.0
  %3410 = vmatpush1.msra.mxu0 0.0
  %3411 = vmatprep.subr.mxu0 0.0
  %3412 = vmatpush1.msra.mxu0 0.0
  %3413 = vmatprep.subr.mxu0 0.0
  %3414 = vmatpush1.msra.mxu0 0.0
  %3415 = vmatprep.subr.mxu0 0.0
  %3416 = vmatpush1.msra.mxu0 0.0
  %3417 = vmatprep.subr.mxu0 0.0
  %3418 = vmatpush1.msra.mxu0 0.0
  %3419 = vmatprep.subr.mxu0 0.0
  %3420 = vmatpush1.msra.mxu0 0.0
  %3421 = vmatprep.subr.mxu0 0.0
  %3422 = vmatpush1.msra.mxu0 0.0
  %3423 = vmatprep.subr.mxu0 0.0
  %3424 = vmatpush1.msra.mxu0 0.0
  %3425 = vmatprep.mubr.f32.mxu0 0.0
  %3426 = vmatmul.mubr.f32.gmra.mrb[0].mxu0 %v3356
  %v3427 = vpop.f32.mrb[0].mxu0
  %v3428 = vadd.f32 0.0, %v3427
  %v3429 = vpop.f32.mrb[0].mxu0
  %3430 = vdwg.mxu0
  %v3432 = vrot.slane %v3428, 2
  %v3434 = vadd.f32 %v3428, %v3432
  %v3435 = vxor.u32 %v3434, 2147483648
  %v3436 = vmul.f32 %v3435, 1.442695
  %v3437 = vpow.pop %v3436
  %v3438 = vadd.f32 %v3437, 1.0
  %v3439 = vrcp.pop %v3438
  %v3440 = vmul.f32 1.0, %v3439
  %v3441 = vlaneseq
  %v3442 = vshrl.u32 %v3441, 7
  %v3443 = vsub.s32 0, %v3442
  %v3444 = vrot.slane %v3440, %v3443
  %3446 = vbcast.lane.b32.xlu0 %v3444, 256
  %v3447 = vpop.permute.xlu0 %3446
  %s3449 = sor.u32 256, 8
  %3450 = vbcast.lane.b32.xlu0 %v3444, %s3449
  %v3451 = vpop.permute.xlu0 %3450
  %s3453 = sor.u32 256, 16
  %3454 = vbcast.lane.b32.xlu0 %v3444, %s3453
  %v3455 = vpop.permute.xlu0 %3454
  %s3457 = sor.u32 256, 24
  %3458 = vbcast.lane.b32.xlu0 %v3444, %s3457
  %v3459 = vpop.permute.xlu0 %3458
  %v3460 = vlaneseq
  %v3461 = vshrl.u32 %v3460, 7
  %v3462 = vsub.s32 1, %v3461
  %v3463 = vrot.slane %v3440, %v3462
  %3465 = vbcast.lane.b32.xlu0 %v3463, 256
  %v3466 = vpop.permute.xlu0 %3465
  %s3468 = sor.u32 256, 8
  %3469 = vbcast.lane.b32.xlu0 %v3463, %s3468
  %v3470 = vpop.permute.xlu0 %3469
  %s3472 = sor.u32 256, 16
  %3473 = vbcast.lane.b32.xlu0 %v3463, %s3472
  %v3474 = vpop.permute.xlu0 %3473
  %s3476 = sor.u32 256, 24
  %3477 = vbcast.lane.b32.xlu0 %v3463, %s3476
  %v3478 = vpop.permute.xlu0 %3477
  %v3487 = vlaneseq
  %v3488 = vshrl.u32 %v3487, 7
  %v3489 = vsub.s32 0, %v3488
  %v3490 = vrot.slane %v3447, %v3489
  %v3491 = vlaneseq
  %v3492 = vshrl.u32 %v3491, 7
  %v3493 = vsub.s32 1, %v3492
  %v3494 = vrot.slane %v3447, %v3493
  %v3495 = vlaneseq
  %v3496 = vshrl.u32 %v3495, 7
  %v3497 = vsub.s32 2, %v3496
  %v3498 = vrot.slane %v3447, %v3497
  %v3499 = vlaneseq
  %v3500 = vshrl.u32 %v3499, 7
  %v3501 = vsub.s32 3, %v3500
  %v3502 = vrot.slane %v3447, %v3501
  %v3503 = vlaneseq
  %v3504 = vshrl.u32 %v3503, 7
  %v3505 = vsub.s32 4, %v3504
  %v3506 = vrot.slane %v3447, %v3505
  %v3507 = vlaneseq
  %v3508 = vshrl.u32 %v3507, 7
  %v3509 = vsub.s32 5, %v3508
  %v3510 = vrot.slane %v3447, %v3509
  %v3511 = vlaneseq
  %v3512 = vshrl.u32 %v3511, 7
  %v3513 = vsub.s32 6, %v3512
  %v3514 = vrot.slane %v3447, %v3513
  %v3515 = vlaneseq
  %v3516 = vshrl.u32 %v3515, 7
  %v3517 = vsub.s32 7, %v3516
  %v3518 = vrot.slane %v3447, %v3517
  %v3519 = vlaneseq
  %v3520 = vshrl.u32 %v3519, 7
  %v3521 = vsub.s32 0, %v3520
  %v3522 = vrot.slane %v3451, %v3521
  %v3523 = vlaneseq
  %v3524 = vshrl.u32 %v3523, 7
  %v3525 = vsub.s32 1, %v3524
  %v3526 = vrot.slane %v3451, %v3525
  %v3527 = vlaneseq
  %v3528 = vshrl.u32 %v3527, 7
  %v3529 = vsub.s32 2, %v3528
  %v3530 = vrot.slane %v3451, %v3529
  %v3531 = vlaneseq
  %v3532 = vshrl.u32 %v3531, 7
  %v3533 = vsub.s32 3, %v3532
  %v3534 = vrot.slane %v3451, %v3533
  %v3535 = vlaneseq
  %v3536 = vshrl.u32 %v3535, 7
  %v3537 = vsub.s32 4, %v3536
  %v3538 = vrot.slane %v3451, %v3537
  %v3539 = vlaneseq
  %v3540 = vshrl.u32 %v3539, 7
  %v3541 = vsub.s32 5, %v3540
  %v3542 = vrot.slane %v3451, %v3541
  %v3543 = vlaneseq
  %v3544 = vshrl.u32 %v3543, 7
  %v3545 = vsub.s32 6, %v3544
  %v3546 = vrot.slane %v3451, %v3545
  %v3547 = vlaneseq
  %v3548 = vshrl.u32 %v3547, 7
  %v3549 = vsub.s32 7, %v3548
  %v3550 = vrot.slane %v3451, %v3549
  %v3551 = vlaneseq
  %v3552 = vshrl.u32 %v3551, 7
  %v3553 = vsub.s32 0, %v3552
  %v3554 = vrot.slane %v3455, %v3553
  %v3555 = vlaneseq
  %v3556 = vshrl.u32 %v3555, 7
  %v3557 = vsub.s32 1, %v3556
  %v3558 = vrot.slane %v3455, %v3557
  %v3559 = vlaneseq
  %v3560 = vshrl.u32 %v3559, 7
  %v3561 = vsub.s32 2, %v3560
  %v3562 = vrot.slane %v3455, %v3561
  %v3563 = vlaneseq
  %v3564 = vshrl.u32 %v3563, 7
  %v3565 = vsub.s32 3, %v3564
  %v3566 = vrot.slane %v3455, %v3565
  %v3567 = vlaneseq
  %v3568 = vshrl.u32 %v3567, 7
  %v3569 = vsub.s32 4, %v3568
  %v3570 = vrot.slane %v3455, %v3569
  %v3571 = vlaneseq
  %v3572 = vshrl.u32 %v3571, 7
  %v3573 = vsub.s32 5, %v3572
  %v3574 = vrot.slane %v3455, %v3573
  %v3575 = vlaneseq
  %v3576 = vshrl.u32 %v3575, 7
  %v3577 = vsub.s32 6, %v3576
  %v3578 = vrot.slane %v3455, %v3577
  %v3579 = vlaneseq
  %v3580 = vshrl.u32 %v3579, 7
  %v3581 = vsub.s32 7, %v3580
  %v3582 = vrot.slane %v3455, %v3581
  %v3583 = vlaneseq
  %v3584 = vshrl.u32 %v3583, 7
  %v3585 = vsub.s32 0, %v3584
  %v3586 = vrot.slane %v3459, %v3585
  %v3587 = vlaneseq
  %v3588 = vshrl.u32 %v3587, 7
  %v3589 = vsub.s32 1, %v3588
  %v3590 = vrot.slane %v3459, %v3589
  %v3591 = vlaneseq
  %v3592 = vshrl.u32 %v3591, 7
  %v3593 = vsub.s32 2, %v3592
  %v3594 = vrot.slane %v3459, %v3593
  %v3595 = vlaneseq
  %v3596 = vshrl.u32 %v3595, 7
  %v3597 = vsub.s32 3, %v3596
  %v3598 = vrot.slane %v3459, %v3597
  %v3599 = vlaneseq
  %v3600 = vshrl.u32 %v3599, 7
  %v3601 = vsub.s32 4, %v3600
  %v3602 = vrot.slane %v3459, %v3601
  %v3603 = vlaneseq
  %v3604 = vshrl.u32 %v3603, 7
  %v3605 = vsub.s32 5, %v3604
  %v3606 = vrot.slane %v3459, %v3605
  %v3607 = vlaneseq
  %v3608 = vshrl.u32 %v3607, 7
  %v3609 = vsub.s32 6, %v3608
  %v3610 = vrot.slane %v3459, %v3609
  %v3611 = vlaneseq
  %v3612 = vshrl.u32 %v3611, 7
  %v3613 = vsub.s32 7, %v3612
  %v3614 = vrot.slane %v3459, %v3613
  %v3615 = vlaneseq
  %v3616 = vshrl.u32 %v3615, 7
  %v3617 = vsub.s32 0, %v3616
  %v3618 = vrot.slane %v3466, %v3617
  %v3619 = vlaneseq
  %v3620 = vshrl.u32 %v3619, 7
  %v3621 = vsub.s32 1, %v3620
  %v3622 = vrot.slane %v3466, %v3621
  %v3623 = vlaneseq
  %v3624 = vshrl.u32 %v3623, 7
  %v3625 = vsub.s32 2, %v3624
  %v3626 = vrot.slane %v3466, %v3625
  %v3627 = vlaneseq
  %v3628 = vshrl.u32 %v3627, 7
  %v3629 = vsub.s32 3, %v3628
  %v3630 = vrot.slane %v3466, %v3629
  %v3631 = vlaneseq
  %v3632 = vshrl.u32 %v3631, 7
  %v3633 = vsub.s32 4, %v3632
  %v3634 = vrot.slane %v3466, %v3633
  %v3635 = vlaneseq
  %v3636 = vshrl.u32 %v3635, 7
  %v3637 = vsub.s32 5, %v3636
  %v3638 = vrot.slane %v3466, %v3637
  %v3639 = vlaneseq
  %v3640 = vshrl.u32 %v3639, 7
  %v3641 = vsub.s32 6, %v3640
  %v3642 = vrot.slane %v3466, %v3641
  %v3643 = vlaneseq
  %v3644 = vshrl.u32 %v3643, 7
  %v3645 = vsub.s32 7, %v3644
  %v3646 = vrot.slane %v3466, %v3645
  %v3647 = vlaneseq
  %v3648 = vshrl.u32 %v3647, 7
  %v3649 = vsub.s32 0, %v3648
  %v3650 = vrot.slane %v3470, %v3649
  %v3651 = vlaneseq
  %v3652 = vshrl.u32 %v3651, 7
  %v3653 = vsub.s32 1, %v3652
  %v3654 = vrot.slane %v3470, %v3653
  %v3655 = vlaneseq
  %v3656 = vshrl.u32 %v3655, 7
  %v3657 = vsub.s32 2, %v3656
  %v3658 = vrot.slane %v3470, %v3657
  %v3659 = vlaneseq
  %v3660 = vshrl.u32 %v3659, 7
  %v3661 = vsub.s32 3, %v3660
  %v3662 = vrot.slane %v3470, %v3661
  %v3663 = vlaneseq
  %v3664 = vshrl.u32 %v3663, 7
  %v3665 = vsub.s32 4, %v3664
  %v3666 = vrot.slane %v3470, %v3665
  %v3667 = vlaneseq
  %v3668 = vshrl.u32 %v3667, 7
  %v3669 = vsub.s32 5, %v3668
  %v3670 = vrot.slane %v3470, %v3669
  %v3671 = vlaneseq
  %v3672 = vshrl.u32 %v3671, 7
  %v3673 = vsub.s32 6, %v3672
  %v3674 = vrot.slane %v3470, %v3673
  %v3675 = vlaneseq
  %v3676 = vshrl.u32 %v3675, 7
  %v3677 = vsub.s32 7, %v3676
  %v3678 = vrot.slane %v3470, %v3677
  %v3679 = vlaneseq
  %v3680 = vshrl.u32 %v3679, 7
  %v3681 = vsub.s32 0, %v3680
  %v3682 = vrot.slane %v3474, %v3681
  %v3683 = vlaneseq
  %v3684 = vshrl.u32 %v3683, 7
  %v3685 = vsub.s32 1, %v3684
  %v3686 = vrot.slane %v3474, %v3685
  %v3687 = vlaneseq
  %v3688 = vshrl.u32 %v3687, 7
  %v3689 = vsub.s32 2, %v3688
  %v3690 = vrot.slane %v3474, %v3689
  %v3691 = vlaneseq
  %v3692 = vshrl.u32 %v3691, 7
  %v3693 = vsub.s32 3, %v3692
  %v3694 = vrot.slane %v3474, %v3693
  %v3695 = vlaneseq
  %v3696 = vshrl.u32 %v3695, 7
  %v3697 = vsub.s32 4, %v3696
  %v3698 = vrot.slane %v3474, %v3697
  %v3699 = vlaneseq
  %v3700 = vshrl.u32 %v3699, 7
  %v3701 = vsub.s32 5, %v3700
  %v3702 = vrot.slane %v3474, %v3701
  %v3703 = vlaneseq
  %v3704 = vshrl.u32 %v3703, 7
  %v3705 = vsub.s32 6, %v3704
  %v3706 = vrot.slane %v3474, %v3705
  %v3707 = vlaneseq
  %v3708 = vshrl.u32 %v3707, 7
  %v3709 = vsub.s32 7, %v3708
  %v3710 = vrot.slane %v3474, %v3709
  %v3711 = vlaneseq
  %v3712 = vshrl.u32 %v3711, 7
  %v3713 = vsub.s32 0, %v3712
  %v3714 = vrot.slane %v3478, %v3713
  %v3715 = vlaneseq
  %v3716 = vshrl.u32 %v3715, 7
  %v3717 = vsub.s32 1, %v3716
  %v3718 = vrot.slane %v3478, %v3717
  %v3719 = vlaneseq
  %v3720 = vshrl.u32 %v3719, 7
  %v3721 = vsub.s32 2, %v3720
  %v3722 = vrot.slane %v3478, %v3721
  %v3723 = vlaneseq
  %v3724 = vshrl.u32 %v3723, 7
  %v3725 = vsub.s32 3, %v3724
  %v3726 = vrot.slane %v3478, %v3725
  %v3727 = vlaneseq
  %v3728 = vshrl.u32 %v3727, 7
  %v3729 = vsub.s32 4, %v3728
  %v3730 = vrot.slane %v3478, %v3729
  %v3731 = vlaneseq
  %v3732 = vshrl.u32 %v3731, 7
  %v3733 = vsub.s32 5, %v3732
  %v3734 = vrot.slane %v3478, %v3733
  %v3735 = vlaneseq
  %v3736 = vshrl.u32 %v3735, 7
  %v3737 = vsub.s32 6, %v3736
  %v3738 = vrot.slane %v3478, %v3737
  %v3739 = vlaneseq
  %v3740 = vshrl.u32 %v3739, 7
  %v3741 = vsub.s32 7, %v3740
  %v3742 = vrot.slane %v3478, %v3741
  %v3807 = vmul.f32 %v545, %v3490
  %v3808 = vmul.f32 %v546, %v3490
  %v3809 = vmul.f32 %v547, %v3494
  %v3810 = vmul.f32 %v548, %v3494
  %v3811 = vmul.f32 %v549, %v3498
  %v3812 = vmul.f32 %v550, %v3498
  %v3813 = vmul.f32 %v551, %v3502
  %v3814 = vmul.f32 %v552, %v3502
  %v3815 = vmul.f32 %v553, %v3506
  %v3816 = vmul.f32 %v554, %v3506
  %v3817 = vmul.f32 %v555, %v3510
  %v3818 = vmul.f32 %v556, %v3510
  %v3819 = vmul.f32 %v557, %v3514
  %v3820 = vmul.f32 %v558, %v3514
  %v3821 = vmul.f32 %v559, %v3518
  %v3822 = vmul.f32 %v560, %v3518
  %v3823 = vmul.f32 %v561, %v3522
  %v3824 = vmul.f32 %v562, %v3522
  %v3825 = vmul.f32 %v563, %v3526
  %v3826 = vmul.f32 %v564, %v3526
  %v3827 = vmul.f32 %v565, %v3530
  %v3828 = vmul.f32 %v566, %v3530
  %v3829 = vmul.f32 %v567, %v3534
  %v3830 = vmul.f32 %v568, %v3534
  %v3831 = vmul.f32 %v569, %v3538
  %v3832 = vmul.f32 %v570, %v3538
  %v3833 = vmul.f32 %v571, %v3542
  %v3834 = vmul.f32 %v572, %v3542
  %v3835 = vmul.f32 %v573, %v3546
  %v3836 = vmul.f32 %v574, %v3546
  %v3837 = vmul.f32 %v575, %v3550
  %v3838 = vmul.f32 %v576, %v3550
  %v3839 = vmul.f32 %v577, %v3554
  %v3840 = vmul.f32 %v578, %v3554
  %v3841 = vmul.f32 %v579, %v3558
  %v3842 = vmul.f32 %v580, %v3558
  %v3843 = vmul.f32 %v581, %v3562
  %v3844 = vmul.f32 %v582, %v3562
  %v3845 = vmul.f32 %v583, %v3566
  %v3846 = vmul.f32 %v584, %v3566
  %v3847 = vmul.f32 %v585, %v3570
  %v3848 = vmul.f32 %v586, %v3570
  %v3849 = vmul.f32 %v587, %v3574
  %v3850 = vmul.f32 %v588, %v3574
  %v3851 = vmul.f32 %v589, %v3578
  %v3852 = vmul.f32 %v590, %v3578
  %v3853 = vmul.f32 %v591, %v3582
  %v3854 = vmul.f32 %v592, %v3582
  %v3855 = vmul.f32 %v593, %v3586
  %v3856 = vmul.f32 %v594, %v3586
  %v3857 = vmul.f32 %v595, %v3590
  %v3858 = vmul.f32 %v596, %v3590
  %v3859 = vmul.f32 %v597, %v3594
  %v3860 = vmul.f32 %v598, %v3594
  %v3861 = vmul.f32 %v599, %v3598
  %v3862 = vmul.f32 %v600, %v3598
  %v3863 = vmul.f32 %v601, %v3602
  %v3864 = vmul.f32 %v602, %v3602
  %v3865 = vmul.f32 %v603, %v3606
  %v3866 = vmul.f32 %v604, %v3606
  %v3867 = vmul.f32 %v605, %v3610
  %v3868 = vmul.f32 %v606, %v3610
  %v3869 = vmul.f32 %v607, %v3614
  %v3870 = vmul.f32 %v608, %v3614
  %v3871 = vmul.f32 %v609, %v3618
  %v3872 = vmul.f32 %v610, %v3618
  %v3873 = vmul.f32 %v611, %v3622
  %v3874 = vmul.f32 %v612, %v3622
  %v3875 = vmul.f32 %v613, %v3626
  %v3876 = vmul.f32 %v614, %v3626
  %v3877 = vmul.f32 %v615, %v3630
  %v3878 = vmul.f32 %v616, %v3630
  %v3879 = vmul.f32 %v617, %v3634
  %v3880 = vmul.f32 %v618, %v3634
  %v3881 = vmul.f32 %v619, %v3638
  %v3882 = vmul.f32 %v620, %v3638
  %v3883 = vmul.f32 %v621, %v3642
  %v3884 = vmul.f32 %v622, %v3642
  %v3885 = vmul.f32 %v623, %v3646
  %v3886 = vmul.f32 %v624, %v3646
  %v3887 = vmul.f32 %v625, %v3650
  %v3888 = vmul.f32 %v626, %v3650
  %v3889 = vmul.f32 %v627, %v3654
  %v3890 = vmul.f32 %v628, %v3654
  %v3891 = vmul.f32 %v629, %v3658
  %v3892 = vmul.f32 %v630, %v3658
  %v3893 = vmul.f32 %v631, %v3662
  %v3894 = vmul.f32 %v632, %v3662
  %v3895 = vmul.f32 %v633, %v3666
  %v3896 = vmul.f32 %v634, %v3666
  %v3897 = vmul.f32 %v635, %v3670
  %v3898 = vmul.f32 %v636, %v3670
  %v3899 = vmul.f32 %v637, %v3674
  %v3900 = vmul.f32 %v638, %v3674
  %v3901 = vmul.f32 %v639, %v3678
  %v3902 = vmul.f32 %v640, %v3678
  %v3903 = vmul.f32 %v641, %v3682
  %v3904 = vmul.f32 %v642, %v3682
  %v3905 = vmul.f32 %v643, %v3686
  %v3906 = vmul.f32 %v644, %v3686
  %v3907 = vmul.f32 %v645, %v3690
  %v3908 = vmul.f32 %v646, %v3690
  %v3909 = vmul.f32 %v647, %v3694
  %v3910 = vmul.f32 %v648, %v3694
  %v3911 = vmul.f32 %v649, %v3698
  %v3912 = vmul.f32 %v650, %v3698
  %v3913 = vmul.f32 %v651, %v3702
  %v3914 = vmul.f32 %v652, %v3702
  %v3915 = vmul.f32 %v653, %v3706
  %v3916 = vmul.f32 %v654, %v3706
  %v3917 = vmul.f32 %v655, %v3710
  %v3918 = vmul.f32 %v656, %v3710
  %v3919 = vmul.f32 %v657, %v3714
  %v3920 = vmul.f32 %v658, %v3714
  %v3921 = vmul.f32 %v659, %v3718
  %v3922 = vmul.f32 %v660, %v3718
  %v3923 = vmul.f32 %v661, %v3722
  %v3924 = vmul.f32 %v662, %v3722
  %v3925 = vmul.f32 %v663, %v3726
  %v3926 = vmul.f32 %v664, %v3726
  %v3927 = vmul.f32 %v665, %v3730
  %v3928 = vmul.f32 %v666, %v3730
  %v3929 = vmul.f32 %v667, %v3734
  %v3930 = vmul.f32 %v668, %v3734
  %v3931 = vmul.f32 %v669, %v3738
  %v3932 = vmul.f32 %v670, %v3738
  %v3933 = vmul.f32 %v671, %v3742
  %v3934 = vmul.f32 %v672, %v3742
  %v3935 = vrot.slane %v3447, 1
  %v3936 = vrot.slane %v3447, 2
  %v3937 = vrot.slane %v3447, 3
  %v3938 = vrot.slane %v3447, 4
  %v3939 = vrot.slane %v3447, 5
  %v3940 = vrot.slane %v3447, 6
  %v3941 = vrot.slane %v3447, 7
  %v3942 = vrot.slane %v3451, 1
  %v3943 = vrot.slane %v3451, 2
  %v3944 = vrot.slane %v3451, 3
  %v3945 = vrot.slane %v3451, 4
  %v3946 = vrot.slane %v3451, 5
  %v3947 = vrot.slane %v3451, 6
  %v3948 = vrot.slane %v3451, 7
  %v3949 = vrot.slane %v3455, 1
  %v3950 = vrot.slane %v3455, 2
  %v3951 = vrot.slane %v3455, 3
  %v3952 = vrot.slane %v3455, 4
  %v3953 = vrot.slane %v3455, 5
  %v3954 = vrot.slane %v3455, 6
  %v3955 = vrot.slane %v3455, 7
  %v3956 = vrot.slane %v3459, 1
  %v3957 = vrot.slane %v3459, 2
  %v3958 = vrot.slane %v3459, 3
  %v3959 = vrot.slane %v3459, 4
  %v3960 = vrot.slane %v3459, 5
  %v3961 = vrot.slane %v3459, 6
  %v3962 = vrot.slane %v3459, 7
  %v3963 = vrot.slane %v3466, 1
  %v3964 = vrot.slane %v3466, 2
  %v3965 = vrot.slane %v3466, 3
  %v3966 = vrot.slane %v3466, 4
  %v3967 = vrot.slane %v3466, 5
  %v3968 = vrot.slane %v3466, 6
  %v3969 = vrot.slane %v3466, 7
  %v3970 = vrot.slane %v3470, 1
  %v3971 = vrot.slane %v3470, 2
  %v3972 = vrot.slane %v3470, 3
  %v3973 = vrot.slane %v3470, 4
  %v3974 = vrot.slane %v3470, 5
  %v3975 = vrot.slane %v3470, 6
  %v3976 = vrot.slane %v3470, 7
  %v3977 = vrot.slane %v3474, 1
  %v3978 = vrot.slane %v3474, 2
  %v3979 = vrot.slane %v3474, 3
  %v3980 = vrot.slane %v3474, 4
  %v3981 = vrot.slane %v3474, 5
  %v3982 = vrot.slane %v3474, 6
  %v3983 = vrot.slane %v3474, 7
  %v3984 = vrot.slane %v3478, 1
  %v3985 = vrot.slane %v3478, 2
  %v3986 = vrot.slane %v3478, 3
  %v3987 = vrot.slane %v3478, 4
  %v3988 = vrot.slane %v3478, 5
  %v3989 = vrot.slane %v3478, 6
  %v3990 = vrot.slane %v3478, 7
  %v4055 = vmul.f32 %v1121, %v3447
  %v4056 = vmul.f32 %v1122, %v3935
  %v4057 = vmul.f32 %v1123, %v3936
  %v4058 = vmul.f32 %v1124, %v3937
  %v4059 = vmul.f32 %v1125, %v3938
  %v4060 = vmul.f32 %v1126, %v3939
  %v4061 = vmul.f32 %v1127, %v3940
  %v4062 = vmul.f32 %v1128, %v3941
  %v4063 = vmul.f32 %v1129, %v3451
  %v4064 = vmul.f32 %v1130, %v3942
  %v4065 = vmul.f32 %v1131, %v3943
  %v4066 = vmul.f32 %v1132, %v3944
  %v4067 = vmul.f32 %v1133, %v3945
  %v4068 = vmul.f32 %v1134, %v3946
  %v4069 = vmul.f32 %v1135, %v3947
  %v4070 = vmul.f32 %v1136, %v3948
  %v4071 = vmul.f32 %v1137, %v3455
  %v4072 = vmul.f32 %v1138, %v3949
  %v4073 = vmul.f32 %v1139, %v3950
  %v4074 = vmul.f32 %v1140, %v3951
  %v4075 = vmul.f32 %v1141, %v3952
  %v4076 = vmul.f32 %v1142, %v3953
  %v4077 = vmul.f32 %v1143, %v3954
  %v4078 = vmul.f32 %v1144, %v3955
  %v4079 = vmul.f32 %v1145, %v3459
  %v4080 = vmul.f32 %v1146, %v3956
  %v4081 = vmul.f32 %v1147, %v3957
  %v4082 = vmul.f32 %v1148, %v3958
  %v4083 = vmul.f32 %v1149, %v3959
  %v4084 = vmul.f32 %v1150, %v3960
  %v4085 = vmul.f32 %v1151, %v3961
  %v4086 = vmul.f32 %v1152, %v3962
  %v4087 = vmul.f32 %v1153, %v3466
  %v4088 = vmul.f32 %v1154, %v3963
  %v4089 = vmul.f32 %v1155, %v3964
  %v4090 = vmul.f32 %v1156, %v3965
  %v4091 = vmul.f32 %v1157, %v3966
  %v4092 = vmul.f32 %v1158, %v3967
  %v4093 = vmul.f32 %v1159, %v3968
  %v4094 = vmul.f32 %v1160, %v3969
  %v4095 = vmul.f32 %v1161, %v3470
  %v4096 = vmul.f32 %v1162, %v3970
  %v4097 = vmul.f32 %v1163, %v3971
  %v4098 = vmul.f32 %v1164, %v3972
  %v4099 = vmul.f32 %v1165, %v3973
  %v4100 = vmul.f32 %v1166, %v3974
  %v4101 = vmul.f32 %v1167, %v3975
  %v4102 = vmul.f32 %v1168, %v3976
  %v4103 = vmul.f32 %v1169, %v3474
  %v4104 = vmul.f32 %v1170, %v3977
  %v4105 = vmul.f32 %v1171, %v3978
  %v4106 = vmul.f32 %v1172, %v3979
  %v4107 = vmul.f32 %v1173, %v3980
  %v4108 = vmul.f32 %v1174, %v3981
  %v4109 = vmul.f32 %v1175, %v3982
  %v4110 = vmul.f32 %v1176, %v3983
  %v4111 = vmul.f32 %v1177, %v3478
  %v4112 = vmul.f32 %v1178, %v3984
  %v4113 = vmul.f32 %v1179, %v3985
  %v4114 = vmul.f32 %v1180, %v3986
  %v4115 = vmul.f32 %v1181, %v3987
  %v4116 = vmul.f32 %v1182, %v3988
  %v4117 = vmul.f32 %v1183, %v3989
  %v4118 = vmul.f32 %v1184, %v3990
  %4247 = vset.pattern.permute.xlu0 0
  %4248 = vperm.xlu0 %4247, %v3807
  %v4249 = vpop.permute.xlu0 %4248
  %4250 = vset.pattern.permute.xlu0 0
  %4251 = vperm.xlu0 %4250, %v3808
  %v4252 = vpop.permute.xlu0 %4251
  %4253 = vset.pattern.permute.xlu0 0
  %4254 = vperm.xlu0 %4253, %v3809
  %v4255 = vpop.permute.xlu0 %4254
  %4256 = vset.pattern.permute.xlu0 0
  %4257 = vperm.xlu0 %4256, %v3810
  %v4258 = vpop.permute.xlu0 %4257
  %4259 = vset.pattern.permute.xlu0 0
  %4260 = vperm.xlu0 %4259, %v3811
  %v4261 = vpop.permute.xlu0 %4260
  %4262 = vset.pattern.permute.xlu0 0
  %4263 = vperm.xlu0 %4262, %v3812
  %v4264 = vpop.permute.xlu0 %4263
  %4265 = vset.pattern.permute.xlu0 0
  %4266 = vperm.xlu0 %4265, %v3813
  %v4267 = vpop.permute.xlu0 %4266
  %4268 = vset.pattern.permute.xlu0 0
  %4269 = vperm.xlu0 %4268, %v3814
  %v4270 = vpop.permute.xlu0 %4269
  %4271 = vset.pattern.permute.xlu0 0
  %4272 = vperm.xlu0 %4271, %v3815
  %v4273 = vpop.permute.xlu0 %4272
  %4274 = vset.pattern.permute.xlu0 0
  %4275 = vperm.xlu0 %4274, %v3816
  %v4276 = vpop.permute.xlu0 %4275
  %4277 = vset.pattern.permute.xlu0 0
  %4278 = vperm.xlu0 %4277, %v3817
  %v4279 = vpop.permute.xlu0 %4278
  %4280 = vset.pattern.permute.xlu0 0
  %4281 = vperm.xlu0 %4280, %v3818
  %v4282 = vpop.permute.xlu0 %4281
  %4283 = vset.pattern.permute.xlu0 0
  %4284 = vperm.xlu0 %4283, %v3819
  %v4285 = vpop.permute.xlu0 %4284
  %4286 = vset.pattern.permute.xlu0 0
  %4287 = vperm.xlu0 %4286, %v3820
  %v4288 = vpop.permute.xlu0 %4287
  %4289 = vset.pattern.permute.xlu0 0
  %4290 = vperm.xlu0 %4289, %v3821
  %v4291 = vpop.permute.xlu0 %4290
  %4292 = vset.pattern.permute.xlu0 0
  %4293 = vperm.xlu0 %4292, %v3822
  %v4294 = vpop.permute.xlu0 %4293
  %4295 = vset.pattern.permute.xlu0 0
  %4296 = vperm.xlu0 %4295, %v3823
  %v4297 = vpop.permute.xlu0 %4296
  %4298 = vset.pattern.permute.xlu0 0
  %4299 = vperm.xlu0 %4298, %v3824
  %v4300 = vpop.permute.xlu0 %4299
  %4301 = vset.pattern.permute.xlu0 0
  %4302 = vperm.xlu0 %4301, %v3825
  %v4303 = vpop.permute.xlu0 %4302
  %4304 = vset.pattern.permute.xlu0 0
  %4305 = vperm.xlu0 %4304, %v3826
  %v4306 = vpop.permute.xlu0 %4305
  %4307 = vset.pattern.permute.xlu0 0
  %4308 = vperm.xlu0 %4307, %v3827
  %v4309 = vpop.permute.xlu0 %4308
  %4310 = vset.pattern.permute.xlu0 0
  %4311 = vperm.xlu0 %4310, %v3828
  %v4312 = vpop.permute.xlu0 %4311
  %4313 = vset.pattern.permute.xlu0 0
  %4314 = vperm.xlu0 %4313, %v3829
  %v4315 = vpop.permute.xlu0 %4314
  %4316 = vset.pattern.permute.xlu0 0
  %4317 = vperm.xlu0 %4316, %v3830
  %v4318 = vpop.permute.xlu0 %4317
  %4319 = vset.pattern.permute.xlu0 0
  %4320 = vperm.xlu0 %4319, %v3831
  %v4321 = vpop.permute.xlu0 %4320
  %4322 = vset.pattern.permute.xlu0 0
  %4323 = vperm.xlu0 %4322, %v3832
  %v4324 = vpop.permute.xlu0 %4323
  %4325 = vset.pattern.permute.xlu0 0
  %4326 = vperm.xlu0 %4325, %v3833
  %v4327 = vpop.permute.xlu0 %4326
  %4328 = vset.pattern.permute.xlu0 0
  %4329 = vperm.xlu0 %4328, %v3834
  %v4330 = vpop.permute.xlu0 %4329
  %4331 = vset.pattern.permute.xlu0 0
  %4332 = vperm.xlu0 %4331, %v3835
  %v4333 = vpop.permute.xlu0 %4332
  %4334 = vset.pattern.permute.xlu0 0
  %4335 = vperm.xlu0 %4334, %v3836
  %v4336 = vpop.permute.xlu0 %4335
  %4337 = vset.pattern.permute.xlu0 0
  %4338 = vperm.xlu0 %4337, %v3837
  %v4339 = vpop.permute.xlu0 %4338
  %4340 = vset.pattern.permute.xlu0 0
  %4341 = vperm.xlu0 %4340, %v3838
  %v4342 = vpop.permute.xlu0 %4341
  %4343 = vset.pattern.permute.xlu0 0
  %4344 = vperm.xlu0 %4343, %v3839
  %v4345 = vpop.permute.xlu0 %4344
  %4346 = vset.pattern.permute.xlu0 0
  %4347 = vperm.xlu0 %4346, %v3840
  %v4348 = vpop.permute.xlu0 %4347
  %4349 = vset.pattern.permute.xlu0 0
  %4350 = vperm.xlu0 %4349, %v3841
  %v4351 = vpop.permute.xlu0 %4350
  %4352 = vset.pattern.permute.xlu0 0
  %4353 = vperm.xlu0 %4352, %v3842
  %v4354 = vpop.permute.xlu0 %4353
  %4355 = vset.pattern.permute.xlu0 0
  %4356 = vperm.xlu0 %4355, %v3843
  %v4357 = vpop.permute.xlu0 %4356
  %4358 = vset.pattern.permute.xlu0 0
  %4359 = vperm.xlu0 %4358, %v3844
  %v4360 = vpop.permute.xlu0 %4359
  %4361 = vset.pattern.permute.xlu0 0
  %4362 = vperm.xlu0 %4361, %v3845
  %v4363 = vpop.permute.xlu0 %4362
  %4364 = vset.pattern.permute.xlu0 0
  %4365 = vperm.xlu0 %4364, %v3846
  %v4366 = vpop.permute.xlu0 %4365
  %4367 = vset.pattern.permute.xlu0 0
  %4368 = vperm.xlu0 %4367, %v3847
  %v4369 = vpop.permute.xlu0 %4368
  %4370 = vset.pattern.permute.xlu0 0
  %4371 = vperm.xlu0 %4370, %v3848
  %v4372 = vpop.permute.xlu0 %4371
  %4373 = vset.pattern.permute.xlu0 0
  %4374 = vperm.xlu0 %4373, %v3849
  %v4375 = vpop.permute.xlu0 %4374
  %4376 = vset.pattern.permute.xlu0 0
  %4377 = vperm.xlu0 %4376, %v3850
  %v4378 = vpop.permute.xlu0 %4377
  %4379 = vset.pattern.permute.xlu0 0
  %4380 = vperm.xlu0 %4379, %v3851
  %v4381 = vpop.permute.xlu0 %4380
  %4382 = vset.pattern.permute.xlu0 0
  %4383 = vperm.xlu0 %4382, %v3852
  %v4384 = vpop.permute.xlu0 %4383
  %4385 = vset.pattern.permute.xlu0 0
  %4386 = vperm.xlu0 %4385, %v3853
  %v4387 = vpop.permute.xlu0 %4386
  %4388 = vset.pattern.permute.xlu0 0
  %4389 = vperm.xlu0 %4388, %v3854
  %v4390 = vpop.permute.xlu0 %4389
  %4391 = vset.pattern.permute.xlu0 0
  %4392 = vperm.xlu0 %4391, %v3855
  %v4393 = vpop.permute.xlu0 %4392
  %4394 = vset.pattern.permute.xlu0 0
  %4395 = vperm.xlu0 %4394, %v3856
  %v4396 = vpop.permute.xlu0 %4395
  %4397 = vset.pattern.permute.xlu0 0
  %4398 = vperm.xlu0 %4397, %v3857
  %v4399 = vpop.permute.xlu0 %4398
  %4400 = vset.pattern.permute.xlu0 0
  %4401 = vperm.xlu0 %4400, %v3858
  %v4402 = vpop.permute.xlu0 %4401
  %4403 = vset.pattern.permute.xlu0 0
  %4404 = vperm.xlu0 %4403, %v3859
  %v4405 = vpop.permute.xlu0 %4404
  %4406 = vset.pattern.permute.xlu0 0
  %4407 = vperm.xlu0 %4406, %v3860
  %v4408 = vpop.permute.xlu0 %4407
  %4409 = vset.pattern.permute.xlu0 0
  %4410 = vperm.xlu0 %4409, %v3861
  %v4411 = vpop.permute.xlu0 %4410
  %4412 = vset.pattern.permute.xlu0 0
  %4413 = vperm.xlu0 %4412, %v3862
  %v4414 = vpop.permute.xlu0 %4413
  %4415 = vset.pattern.permute.xlu0 0
  %4416 = vperm.xlu0 %4415, %v3863
  %v4417 = vpop.permute.xlu0 %4416
  %4418 = vset.pattern.permute.xlu0 0
  %4419 = vperm.xlu0 %4418, %v3864
  %v4420 = vpop.permute.xlu0 %4419
  %4421 = vset.pattern.permute.xlu0 0
  %4422 = vperm.xlu0 %4421, %v3865
  %v4423 = vpop.permute.xlu0 %4422
  %4424 = vset.pattern.permute.xlu0 0
  %4425 = vperm.xlu0 %4424, %v3866
  %v4426 = vpop.permute.xlu0 %4425
  %4427 = vset.pattern.permute.xlu0 0
  %4428 = vperm.xlu0 %4427, %v3867
  %v4429 = vpop.permute.xlu0 %4428
  %4430 = vset.pattern.permute.xlu0 0
  %4431 = vperm.xlu0 %4430, %v3868
  %v4432 = vpop.permute.xlu0 %4431
  %4433 = vset.pattern.permute.xlu0 0
  %4434 = vperm.xlu0 %4433, %v3869
  %v4435 = vpop.permute.xlu0 %4434
  %4436 = vset.pattern.permute.xlu0 0
  %4437 = vperm.xlu0 %4436, %v3870
  %v4438 = vpop.permute.xlu0 %4437
  %4439 = vset.pattern.permute.xlu0 0
  %4440 = vperm.xlu0 %4439, %v3871
  %v4441 = vpop.permute.xlu0 %4440
  %4442 = vset.pattern.permute.xlu0 0
  %4443 = vperm.xlu0 %4442, %v3872
  %v4444 = vpop.permute.xlu0 %4443
  %4445 = vset.pattern.permute.xlu0 0
  %4446 = vperm.xlu0 %4445, %v3873
  %v4447 = vpop.permute.xlu0 %4446
  %4448 = vset.pattern.permute.xlu0 0
  %4449 = vperm.xlu0 %4448, %v3874
  %v4450 = vpop.permute.xlu0 %4449
  %4451 = vset.pattern.permute.xlu0 0
  %4452 = vperm.xlu0 %4451, %v3875
  %v4453 = vpop.permute.xlu0 %4452
  %4454 = vset.pattern.permute.xlu0 0
  %4455 = vperm.xlu0 %4454, %v3876
  %v4456 = vpop.permute.xlu0 %4455
  %4457 = vset.pattern.permute.xlu0 0
  %4458 = vperm.xlu0 %4457, %v3877
  %v4459 = vpop.permute.xlu0 %4458
  %4460 = vset.pattern.permute.xlu0 0
  %4461 = vperm.xlu0 %4460, %v3878
  %v4462 = vpop.permute.xlu0 %4461
  %4463 = vset.pattern.permute.xlu0 0
  %4464 = vperm.xlu0 %4463, %v3879
  %v4465 = vpop.permute.xlu0 %4464
  %4466 = vset.pattern.permute.xlu0 0
  %4467 = vperm.xlu0 %4466, %v3880
  %v4468 = vpop.permute.xlu0 %4467
  %4469 = vset.pattern.permute.xlu0 0
  %4470 = vperm.xlu0 %4469, %v3881
  %v4471 = vpop.permute.xlu0 %4470
  %4472 = vset.pattern.permute.xlu0 0
  %4473 = vperm.xlu0 %4472, %v3882
  %v4474 = vpop.permute.xlu0 %4473
  %4475 = vset.pattern.permute.xlu0 0
  %4476 = vperm.xlu0 %4475, %v3883
  %v4477 = vpop.permute.xlu0 %4476
  %4478 = vset.pattern.permute.xlu0 0
  %4479 = vperm.xlu0 %4478, %v3884
  %v4480 = vpop.permute.xlu0 %4479
  %4481 = vset.pattern.permute.xlu0 0
  %4482 = vperm.xlu0 %4481, %v3885
  %v4483 = vpop.permute.xlu0 %4482
  %4484 = vset.pattern.permute.xlu0 0
  %4485 = vperm.xlu0 %4484, %v3886
  %v4486 = vpop.permute.xlu0 %4485
  %4487 = vset.pattern.permute.xlu0 0
  %4488 = vperm.xlu0 %4487, %v3887
  %v4489 = vpop.permute.xlu0 %4488
  %4490 = vset.pattern.permute.xlu0 0
  %4491 = vperm.xlu0 %4490, %v3888
  %v4492 = vpop.permute.xlu0 %4491
  %4493 = vset.pattern.permute.xlu0 0
  %4494 = vperm.xlu0 %4493, %v3889
  %v4495 = vpop.permute.xlu0 %4494
  %4496 = vset.pattern.permute.xlu0 0
  %4497 = vperm.xlu0 %4496, %v3890
  %v4498 = vpop.permute.xlu0 %4497
  %4499 = vset.pattern.permute.xlu0 0
  %4500 = vperm.xlu0 %4499, %v3891
  %v4501 = vpop.permute.xlu0 %4500
  %4502 = vset.pattern.permute.xlu0 0
  %4503 = vperm.xlu0 %4502, %v3892
  %v4504 = vpop.permute.xlu0 %4503
  %4505 = vset.pattern.permute.xlu0 0
  %4506 = vperm.xlu0 %4505, %v3893
  %v4507 = vpop.permute.xlu0 %4506
  %4508 = vset.pattern.permute.xlu0 0
  %4509 = vperm.xlu0 %4508, %v3894
  %v4510 = vpop.permute.xlu0 %4509
  %4511 = vset.pattern.permute.xlu0 0
  %4512 = vperm.xlu0 %4511, %v3895
  %v4513 = vpop.permute.xlu0 %4512
  %4514 = vset.pattern.permute.xlu0 0
  %4515 = vperm.xlu0 %4514, %v3896
  %v4516 = vpop.permute.xlu0 %4515
  %4517 = vset.pattern.permute.xlu0 0
  %4518 = vperm.xlu0 %4517, %v3897
  %v4519 = vpop.permute.xlu0 %4518
  %4520 = vset.pattern.permute.xlu0 0
  %4521 = vperm.xlu0 %4520, %v3898
  %v4522 = vpop.permute.xlu0 %4521
  %4523 = vset.pattern.permute.xlu0 0
  %4524 = vperm.xlu0 %4523, %v3899
  %v4525 = vpop.permute.xlu0 %4524
  %4526 = vset.pattern.permute.xlu0 0
  %4527 = vperm.xlu0 %4526, %v3900
  %v4528 = vpop.permute.xlu0 %4527
  %4529 = vset.pattern.permute.xlu0 0
  %4530 = vperm.xlu0 %4529, %v3901
  %v4531 = vpop.permute.xlu0 %4530
  %4532 = vset.pattern.permute.xlu0 0
  %4533 = vperm.xlu0 %4532, %v3902
  %v4534 = vpop.permute.xlu0 %4533
  %4535 = vset.pattern.permute.xlu0 0
  %4536 = vperm.xlu0 %4535, %v3903
  %v4537 = vpop.permute.xlu0 %4536
  %4538 = vset.pattern.permute.xlu0 0
  %4539 = vperm.xlu0 %4538, %v3904
  %v4540 = vpop.permute.xlu0 %4539
  %4541 = vset.pattern.permute.xlu0 0
  %4542 = vperm.xlu0 %4541, %v3905
  %v4543 = vpop.permute.xlu0 %4542
  %4544 = vset.pattern.permute.xlu0 0
  %4545 = vperm.xlu0 %4544, %v3906
  %v4546 = vpop.permute.xlu0 %4545
  %4547 = vset.pattern.permute.xlu0 0
  %4548 = vperm.xlu0 %4547, %v3907
  %v4549 = vpop.permute.xlu0 %4548
  %4550 = vset.pattern.permute.xlu0 0
  %4551 = vperm.xlu0 %4550, %v3908
  %v4552 = vpop.permute.xlu0 %4551
  %4553 = vset.pattern.permute.xlu0 0
  %4554 = vperm.xlu0 %4553, %v3909
  %v4555 = vpop.permute.xlu0 %4554
  %4556 = vset.pattern.permute.xlu0 0
  %4557 = vperm.xlu0 %4556, %v3910
  %v4558 = vpop.permute.xlu0 %4557
  %4559 = vset.pattern.permute.xlu0 0
  %4560 = vperm.xlu0 %4559, %v3911
  %v4561 = vpop.permute.xlu0 %4560
  %4562 = vset.pattern.permute.xlu0 0
  %4563 = vperm.xlu0 %4562, %v3912
  %v4564 = vpop.permute.xlu0 %4563
  %4565 = vset.pattern.permute.xlu0 0
  %4566 = vperm.xlu0 %4565, %v3913
  %v4567 = vpop.permute.xlu0 %4566
  %4568 = vset.pattern.permute.xlu0 0
  %4569 = vperm.xlu0 %4568, %v3914
  %v4570 = vpop.permute.xlu0 %4569
  %4571 = vset.pattern.permute.xlu0 0
  %4572 = vperm.xlu0 %4571, %v3915
  %v4573 = vpop.permute.xlu0 %4572
  %4574 = vset.pattern.permute.xlu0 0
  %4575 = vperm.xlu0 %4574, %v3916
  %v4576 = vpop.permute.xlu0 %4575
  %4577 = vset.pattern.permute.xlu0 0
  %4578 = vperm.xlu0 %4577, %v3917
  %v4579 = vpop.permute.xlu0 %4578
  %4580 = vset.pattern.permute.xlu0 0
  %4581 = vperm.xlu0 %4580, %v3918
  %v4582 = vpop.permute.xlu0 %4581
  %4583 = vset.pattern.permute.xlu0 0
  %4584 = vperm.xlu0 %4583, %v3919
  %v4585 = vpop.permute.xlu0 %4584
  %4586 = vset.pattern.permute.xlu0 0
  %4587 = vperm.xlu0 %4586, %v3920
  %v4588 = vpop.permute.xlu0 %4587
  %4589 = vset.pattern.permute.xlu0 0
  %4590 = vperm.xlu0 %4589, %v3921
  %v4591 = vpop.permute.xlu0 %4590
  %4592 = vset.pattern.permute.xlu0 0
  %4593 = vperm.xlu0 %4592, %v3922
  %v4594 = vpop.permute.xlu0 %4593
  %4595 = vset.pattern.permute.xlu0 0
  %4596 = vperm.xlu0 %4595, %v3923
  %v4597 = vpop.permute.xlu0 %4596
  %4598 = vset.pattern.permute.xlu0 0
  %4599 = vperm.xlu0 %4598, %v3924
  %v4600 = vpop.permute.xlu0 %4599
  %4601 = vset.pattern.permute.xlu0 0
  %4602 = vperm.xlu0 %4601, %v3925
  %v4603 = vpop.permute.xlu0 %4602
  %4604 = vset.pattern.permute.xlu0 0
  %4605 = vperm.xlu0 %4604, %v3926
  %v4606 = vpop.permute.xlu0 %4605
  %4607 = vset.pattern.permute.xlu0 0
  %4608 = vperm.xlu0 %4607, %v3927
  %v4609 = vpop.permute.xlu0 %4608
  %4610 = vset.pattern.permute.xlu0 0
  %4611 = vperm.xlu0 %4610, %v3928
  %v4612 = vpop.permute.xlu0 %4611
  %4613 = vset.pattern.permute.xlu0 0
  %4614 = vperm.xlu0 %4613, %v3929
  %v4615 = vpop.permute.xlu0 %4614
  %4616 = vset.pattern.permute.xlu0 0
  %4617 = vperm.xlu0 %4616, %v3930
  %v4618 = vpop.permute.xlu0 %4617
  %4619 = vset.pattern.permute.xlu0 0
  %4620 = vperm.xlu0 %4619, %v3931
  %v4621 = vpop.permute.xlu0 %4620
  %4622 = vset.pattern.permute.xlu0 0
  %4623 = vperm.xlu0 %4622, %v3932
  %v4624 = vpop.permute.xlu0 %4623
  %4625 = vset.pattern.permute.xlu0 0
  %4626 = vperm.xlu0 %4625, %v3933
  %v4627 = vpop.permute.xlu0 %4626
  %4628 = vset.pattern.permute.xlu0 0
  %4629 = vperm.xlu0 %4628, %v3934
  %v4630 = vpop.permute.xlu0 %4629
  %v4631 = vlaneseq
  %v4632 = vshrl.u32 %v4631, 7
  %v4633 = vsub.s32 %v1314, %v4632
  %v4634 = vrot.slane %v4249, %v4633
  %v4635 = vlaneseq
  %v4636 = vshrl.u32 %v4635, 7
  %v4637 = vsub.s32 %v1319, %v4636
  %v4638 = vrot.slane %v4252, %v4637
  %v4639 = vsel %vm1324, %v4638, %v4634
  %v4640 = vlaneseq
  %v4641 = vshrl.u32 %v4640, 7
  %v4642 = vsub.s32 %v1314, %v4641
  %v4643 = vrot.slane %v4255, %v4642
  %v4644 = vlaneseq
  %v4645 = vshrl.u32 %v4644, 7
  %v4646 = vsub.s32 %v1319, %v4645
  %v4647 = vrot.slane %v4258, %v4646
  %v4648 = vsel %vm1324, %v4647, %v4643
  %v4649 = vlaneseq
  %v4650 = vshrl.u32 %v4649, 7
  %v4651 = vsub.s32 %v1314, %v4650
  %v4652 = vrot.slane %v4261, %v4651
  %v4653 = vlaneseq
  %v4654 = vshrl.u32 %v4653, 7
  %v4655 = vsub.s32 %v1319, %v4654
  %v4656 = vrot.slane %v4264, %v4655
  %v4657 = vsel %vm1324, %v4656, %v4652
  %v4658 = vlaneseq
  %v4659 = vshrl.u32 %v4658, 7
  %v4660 = vsub.s32 %v1314, %v4659
  %v4661 = vrot.slane %v4267, %v4660
  %v4662 = vlaneseq
  %v4663 = vshrl.u32 %v4662, 7
  %v4664 = vsub.s32 %v1319, %v4663
  %v4665 = vrot.slane %v4270, %v4664
  %v4666 = vsel %vm1324, %v4665, %v4661
  %v4667 = vlaneseq
  %v4668 = vshrl.u32 %v4667, 7
  %v4669 = vsub.s32 %v1314, %v4668
  %v4670 = vrot.slane %v4273, %v4669
  %v4671 = vlaneseq
  %v4672 = vshrl.u32 %v4671, 7
  %v4673 = vsub.s32 %v1319, %v4672
  %v4674 = vrot.slane %v4276, %v4673
  %v4675 = vsel %vm1324, %v4674, %v4670
  %v4676 = vlaneseq
  %v4677 = vshrl.u32 %v4676, 7
  %v4678 = vsub.s32 %v1314, %v4677
  %v4679 = vrot.slane %v4279, %v4678
  %v4680 = vlaneseq
  %v4681 = vshrl.u32 %v4680, 7
  %v4682 = vsub.s32 %v1319, %v4681
  %v4683 = vrot.slane %v4282, %v4682
  %v4684 = vsel %vm1324, %v4683, %v4679
  %v4685 = vlaneseq
  %v4686 = vshrl.u32 %v4685, 7
  %v4687 = vsub.s32 %v1314, %v4686
  %v4688 = vrot.slane %v4285, %v4687
  %v4689 = vlaneseq
  %v4690 = vshrl.u32 %v4689, 7
  %v4691 = vsub.s32 %v1319, %v4690
  %v4692 = vrot.slane %v4288, %v4691
  %v4693 = vsel %vm1324, %v4692, %v4688
  %v4694 = vlaneseq
  %v4695 = vshrl.u32 %v4694, 7
  %v4696 = vsub.s32 %v1314, %v4695
  %v4697 = vrot.slane %v4291, %v4696
  %v4698 = vlaneseq
  %v4699 = vshrl.u32 %v4698, 7
  %v4700 = vsub.s32 %v1319, %v4699
  %v4701 = vrot.slane %v4294, %v4700
  %v4702 = vsel %vm1324, %v4701, %v4697
  %v4703 = vlaneseq
  %v4704 = vshrl.u32 %v4703, 7
  %v4705 = vsub.s32 %v1314, %v4704
  %v4706 = vrot.slane %v4297, %v4705
  %v4707 = vlaneseq
  %v4708 = vshrl.u32 %v4707, 7
  %v4709 = vsub.s32 %v1319, %v4708
  %v4710 = vrot.slane %v4300, %v4709
  %v4711 = vsel %vm1324, %v4710, %v4706
  %v4712 = vlaneseq
  %v4713 = vshrl.u32 %v4712, 7
  %v4714 = vsub.s32 %v1314, %v4713
  %v4715 = vrot.slane %v4303, %v4714
  %v4716 = vlaneseq
  %v4717 = vshrl.u32 %v4716, 7
  %v4718 = vsub.s32 %v1319, %v4717
  %v4719 = vrot.slane %v4306, %v4718
  %v4720 = vsel %vm1324, %v4719, %v4715
  %v4721 = vlaneseq
  %v4722 = vshrl.u32 %v4721, 7
  %v4723 = vsub.s32 %v1314, %v4722
  %v4724 = vrot.slane %v4309, %v4723
  %v4725 = vlaneseq
  %v4726 = vshrl.u32 %v4725, 7
  %v4727 = vsub.s32 %v1319, %v4726
  %v4728 = vrot.slane %v4312, %v4727
  %v4729 = vsel %vm1324, %v4728, %v4724
  %v4730 = vlaneseq
  %v4731 = vshrl.u32 %v4730, 7
  %v4732 = vsub.s32 %v1314, %v4731
  %v4733 = vrot.slane %v4315, %v4732
  %v4734 = vlaneseq
  %v4735 = vshrl.u32 %v4734, 7
  %v4736 = vsub.s32 %v1319, %v4735
  %v4737 = vrot.slane %v4318, %v4736
  %v4738 = vsel %vm1324, %v4737, %v4733
  %v4739 = vlaneseq
  %v4740 = vshrl.u32 %v4739, 7
  %v4741 = vsub.s32 %v1314, %v4740
  %v4742 = vrot.slane %v4321, %v4741
  %v4743 = vlaneseq
  %v4744 = vshrl.u32 %v4743, 7
  %v4745 = vsub.s32 %v1319, %v4744
  %v4746 = vrot.slane %v4324, %v4745
  %v4747 = vsel %vm1324, %v4746, %v4742
  %v4748 = vlaneseq
  %v4749 = vshrl.u32 %v4748, 7
  %v4750 = vsub.s32 %v1314, %v4749
  %v4751 = vrot.slane %v4327, %v4750
  %v4752 = vlaneseq
  %v4753 = vshrl.u32 %v4752, 7
  %v4754 = vsub.s32 %v1319, %v4753
  %v4755 = vrot.slane %v4330, %v4754
  %v4756 = vsel %vm1324, %v4755, %v4751
  %v4757 = vlaneseq
  %v4758 = vshrl.u32 %v4757, 7
  %v4759 = vsub.s32 %v1314, %v4758
  %v4760 = vrot.slane %v4333, %v4759
  %v4761 = vlaneseq
  %v4762 = vshrl.u32 %v4761, 7
  %v4763 = vsub.s32 %v1319, %v4762
  %v4764 = vrot.slane %v4336, %v4763
  %v4765 = vsel %vm1324, %v4764, %v4760
  %v4766 = vlaneseq
  %v4767 = vshrl.u32 %v4766, 7
  %v4768 = vsub.s32 %v1314, %v4767
  %v4769 = vrot.slane %v4339, %v4768
  %v4770 = vlaneseq
  %v4771 = vshrl.u32 %v4770, 7
  %v4772 = vsub.s32 %v1319, %v4771
  %v4773 = vrot.slane %v4342, %v4772
  %v4774 = vsel %vm1324, %v4773, %v4769
  %v4775 = vlaneseq
  %v4776 = vshrl.u32 %v4775, 7
  %v4777 = vsub.s32 %v1314, %v4776
  %v4778 = vrot.slane %v4345, %v4777
  %v4779 = vlaneseq
  %v4780 = vshrl.u32 %v4779, 7
  %v4781 = vsub.s32 %v1319, %v4780
  %v4782 = vrot.slane %v4348, %v4781
  %v4783 = vsel %vm1324, %v4782, %v4778
  %v4784 = vlaneseq
  %v4785 = vshrl.u32 %v4784, 7
  %v4786 = vsub.s32 %v1314, %v4785
  %v4787 = vrot.slane %v4351, %v4786
  %v4788 = vlaneseq
  %v4789 = vshrl.u32 %v4788, 7
  %v4790 = vsub.s32 %v1319, %v4789
  %v4791 = vrot.slane %v4354, %v4790
  %v4792 = vsel %vm1324, %v4791, %v4787
  %v4793 = vlaneseq
  %v4794 = vshrl.u32 %v4793, 7
  %v4795 = vsub.s32 %v1314, %v4794
  %v4796 = vrot.slane %v4357, %v4795
  %v4797 = vlaneseq
  %v4798 = vshrl.u32 %v4797, 7
  %v4799 = vsub.s32 %v1319, %v4798
  %v4800 = vrot.slane %v4360, %v4799
  %v4801 = vsel %vm1324, %v4800, %v4796
  %v4802 = vlaneseq
  %v4803 = vshrl.u32 %v4802, 7
  %v4804 = vsub.s32 %v1314, %v4803
  %v4805 = vrot.slane %v4363, %v4804
  %v4806 = vlaneseq
  %v4807 = vshrl.u32 %v4806, 7
  %v4808 = vsub.s32 %v1319, %v4807
  %v4809 = vrot.slane %v4366, %v4808
  %v4810 = vsel %vm1324, %v4809, %v4805
  %v4811 = vlaneseq
  %v4812 = vshrl.u32 %v4811, 7
  %v4813 = vsub.s32 %v1314, %v4812
  %v4814 = vrot.slane %v4369, %v4813
  %v4815 = vlaneseq
  %v4816 = vshrl.u32 %v4815, 7
  %v4817 = vsub.s32 %v1319, %v4816
  %v4818 = vrot.slane %v4372, %v4817
  %v4819 = vsel %vm1324, %v4818, %v4814
  %v4820 = vlaneseq
  %v4821 = vshrl.u32 %v4820, 7
  %v4822 = vsub.s32 %v1314, %v4821
  %v4823 = vrot.slane %v4375, %v4822
  %v4824 = vlaneseq
  %v4825 = vshrl.u32 %v4824, 7
  %v4826 = vsub.s32 %v1319, %v4825
  %v4827 = vrot.slane %v4378, %v4826
  %v4828 = vsel %vm1324, %v4827, %v4823
  %v4829 = vlaneseq
  %v4830 = vshrl.u32 %v4829, 7
  %v4831 = vsub.s32 %v1314, %v4830
  %v4832 = vrot.slane %v4381, %v4831
  %v4833 = vlaneseq
  %v4834 = vshrl.u32 %v4833, 7
  %v4835 = vsub.s32 %v1319, %v4834
  %v4836 = vrot.slane %v4384, %v4835
  %v4837 = vsel %vm1324, %v4836, %v4832
  %v4838 = vlaneseq
  %v4839 = vshrl.u32 %v4838, 7
  %v4840 = vsub.s32 %v1314, %v4839
  %v4841 = vrot.slane %v4387, %v4840
  %v4842 = vlaneseq
  %v4843 = vshrl.u32 %v4842, 7
  %v4844 = vsub.s32 %v1319, %v4843
  %v4845 = vrot.slane %v4390, %v4844
  %v4846 = vsel %vm1324, %v4845, %v4841
  %v4847 = vlaneseq
  %v4848 = vshrl.u32 %v4847, 7
  %v4849 = vsub.s32 %v1314, %v4848
  %v4850 = vrot.slane %v4393, %v4849
  %v4851 = vlaneseq
  %v4852 = vshrl.u32 %v4851, 7
  %v4853 = vsub.s32 %v1319, %v4852
  %v4854 = vrot.slane %v4396, %v4853
  %v4855 = vsel %vm1324, %v4854, %v4850
  %v4856 = vlaneseq
  %v4857 = vshrl.u32 %v4856, 7
  %v4858 = vsub.s32 %v1314, %v4857
  %v4859 = vrot.slane %v4399, %v4858
  %v4860 = vlaneseq
  %v4861 = vshrl.u32 %v4860, 7
  %v4862 = vsub.s32 %v1319, %v4861
  %v4863 = vrot.slane %v4402, %v4862
  %v4864 = vsel %vm1324, %v4863, %v4859
  %v4865 = vlaneseq
  %v4866 = vshrl.u32 %v4865, 7
  %v4867 = vsub.s32 %v1314, %v4866
  %v4868 = vrot.slane %v4405, %v4867
  %v4869 = vlaneseq
  %v4870 = vshrl.u32 %v4869, 7
  %v4871 = vsub.s32 %v1319, %v4870
  %v4872 = vrot.slane %v4408, %v4871
  %v4873 = vsel %vm1324, %v4872, %v4868
  %v4874 = vlaneseq
  %v4875 = vshrl.u32 %v4874, 7
  %v4876 = vsub.s32 %v1314, %v4875
  %v4877 = vrot.slane %v4411, %v4876
  %v4878 = vlaneseq
  %v4879 = vshrl.u32 %v4878, 7
  %v4880 = vsub.s32 %v1319, %v4879
  %v4881 = vrot.slane %v4414, %v4880
  %v4882 = vsel %vm1324, %v4881, %v4877
  %v4883 = vlaneseq
  %v4884 = vshrl.u32 %v4883, 7
  %v4885 = vsub.s32 %v1314, %v4884
  %v4886 = vrot.slane %v4417, %v4885
  %v4887 = vlaneseq
  %v4888 = vshrl.u32 %v4887, 7
  %v4889 = vsub.s32 %v1319, %v4888
  %v4890 = vrot.slane %v4420, %v4889
  %v4891 = vsel %vm1324, %v4890, %v4886
  %v4892 = vlaneseq
  %v4893 = vshrl.u32 %v4892, 7
  %v4894 = vsub.s32 %v1314, %v4893
  %v4895 = vrot.slane %v4423, %v4894
  %v4896 = vlaneseq
  %v4897 = vshrl.u32 %v4896, 7
  %v4898 = vsub.s32 %v1319, %v4897
  %v4899 = vrot.slane %v4426, %v4898
  %v4900 = vsel %vm1324, %v4899, %v4895
  %v4901 = vlaneseq
  %v4902 = vshrl.u32 %v4901, 7
  %v4903 = vsub.s32 %v1314, %v4902
  %v4904 = vrot.slane %v4429, %v4903
  %v4905 = vlaneseq
  %v4906 = vshrl.u32 %v4905, 7
  %v4907 = vsub.s32 %v1319, %v4906
  %v4908 = vrot.slane %v4432, %v4907
  %v4909 = vsel %vm1324, %v4908, %v4904
  %v4910 = vlaneseq
  %v4911 = vshrl.u32 %v4910, 7
  %v4912 = vsub.s32 %v1314, %v4911
  %v4913 = vrot.slane %v4435, %v4912
  %v4914 = vlaneseq
  %v4915 = vshrl.u32 %v4914, 7
  %v4916 = vsub.s32 %v1319, %v4915
  %v4917 = vrot.slane %v4438, %v4916
  %v4918 = vsel %vm1324, %v4917, %v4913
  %v4919 = vlaneseq
  %v4920 = vshrl.u32 %v4919, 7
  %v4921 = vsub.s32 %v1314, %v4920
  %v4922 = vrot.slane %v4441, %v4921
  %v4923 = vlaneseq
  %v4924 = vshrl.u32 %v4923, 7
  %v4925 = vsub.s32 %v1319, %v4924
  %v4926 = vrot.slane %v4444, %v4925
  %v4927 = vsel %vm1324, %v4926, %v4922
  %v4928 = vlaneseq
  %v4929 = vshrl.u32 %v4928, 7
  %v4930 = vsub.s32 %v1314, %v4929
  %v4931 = vrot.slane %v4447, %v4930
  %v4932 = vlaneseq
  %v4933 = vshrl.u32 %v4932, 7
  %v4934 = vsub.s32 %v1319, %v4933
  %v4935 = vrot.slane %v4450, %v4934
  %v4936 = vsel %vm1324, %v4935, %v4931
  %v4937 = vlaneseq
  %v4938 = vshrl.u32 %v4937, 7
  %v4939 = vsub.s32 %v1314, %v4938
  %v4940 = vrot.slane %v4453, %v4939
  %v4941 = vlaneseq
  %v4942 = vshrl.u32 %v4941, 7
  %v4943 = vsub.s32 %v1319, %v4942
  %v4944 = vrot.slane %v4456, %v4943
  %v4945 = vsel %vm1324, %v4944, %v4940
  %v4946 = vlaneseq
  %v4947 = vshrl.u32 %v4946, 7
  %v4948 = vsub.s32 %v1314, %v4947
  %v4949 = vrot.slane %v4459, %v4948
  %v4950 = vlaneseq
  %v4951 = vshrl.u32 %v4950, 7
  %v4952 = vsub.s32 %v1319, %v4951
  %v4953 = vrot.slane %v4462, %v4952
  %v4954 = vsel %vm1324, %v4953, %v4949
  %v4955 = vlaneseq
  %v4956 = vshrl.u32 %v4955, 7
  %v4957 = vsub.s32 %v1314, %v4956
  %v4958 = vrot.slane %v4465, %v4957
  %v4959 = vlaneseq
  %v4960 = vshrl.u32 %v4959, 7
  %v4961 = vsub.s32 %v1319, %v4960
  %v4962 = vrot.slane %v4468, %v4961
  %v4963 = vsel %vm1324, %v4962, %v4958
  %v4964 = vlaneseq
  %v4965 = vshrl.u32 %v4964, 7
  %v4966 = vsub.s32 %v1314, %v4965
  %v4967 = vrot.slane %v4471, %v4966
  %v4968 = vlaneseq
  %v4969 = vshrl.u32 %v4968, 7
  %v4970 = vsub.s32 %v1319, %v4969
  %v4971 = vrot.slane %v4474, %v4970
  %v4972 = vsel %vm1324, %v4971, %v4967
  %v4973 = vlaneseq
  %v4974 = vshrl.u32 %v4973, 7
  %v4975 = vsub.s32 %v1314, %v4974
  %v4976 = vrot.slane %v4477, %v4975
  %v4977 = vlaneseq
  %v4978 = vshrl.u32 %v4977, 7
  %v4979 = vsub.s32 %v1319, %v4978
  %v4980 = vrot.slane %v4480, %v4979
  %v4981 = vsel %vm1324, %v4980, %v4976
  %v4982 = vlaneseq
  %v4983 = vshrl.u32 %v4982, 7
  %v4984 = vsub.s32 %v1314, %v4983
  %v4985 = vrot.slane %v4483, %v4984
  %v4986 = vlaneseq
  %v4987 = vshrl.u32 %v4986, 7
  %v4988 = vsub.s32 %v1319, %v4987
  %v4989 = vrot.slane %v4486, %v4988
  %v4990 = vsel %vm1324, %v4989, %v4985
  %v4991 = vlaneseq
  %v4992 = vshrl.u32 %v4991, 7
  %v4993 = vsub.s32 %v1314, %v4992
  %v4994 = vrot.slane %v4489, %v4993
  %v4995 = vlaneseq
  %v4996 = vshrl.u32 %v4995, 7
  %v4997 = vsub.s32 %v1319, %v4996
  %v4998 = vrot.slane %v4492, %v4997
  %v4999 = vsel %vm1324, %v4998, %v4994
  %v5000 = vlaneseq
  %v5001 = vshrl.u32 %v5000, 7
  %v5002 = vsub.s32 %v1314, %v5001
  %v5003 = vrot.slane %v4495, %v5002
  %v5004 = vlaneseq
  %v5005 = vshrl.u32 %v5004, 7
  %v5006 = vsub.s32 %v1319, %v5005
  %v5007 = vrot.slane %v4498, %v5006
  %v5008 = vsel %vm1324, %v5007, %v5003
  %v5009 = vlaneseq
  %v5010 = vshrl.u32 %v5009, 7
  %v5011 = vsub.s32 %v1314, %v5010
  %v5012 = vrot.slane %v4501, %v5011
  %v5013 = vlaneseq
  %v5014 = vshrl.u32 %v5013, 7
  %v5015 = vsub.s32 %v1319, %v5014
  %v5016 = vrot.slane %v4504, %v5015
  %v5017 = vsel %vm1324, %v5016, %v5012
  %v5018 = vlaneseq
  %v5019 = vshrl.u32 %v5018, 7
  %v5020 = vsub.s32 %v1314, %v5019
  %v5021 = vrot.slane %v4507, %v5020
  %v5022 = vlaneseq
  %v5023 = vshrl.u32 %v5022, 7
  %v5024 = vsub.s32 %v1319, %v5023
  %v5025 = vrot.slane %v4510, %v5024
  %v5026 = vsel %vm1324, %v5025, %v5021
  %v5027 = vlaneseq
  %v5028 = vshrl.u32 %v5027, 7
  %v5029 = vsub.s32 %v1314, %v5028
  %v5030 = vrot.slane %v4513, %v5029
  %v5031 = vlaneseq
  %v5032 = vshrl.u32 %v5031, 7
  %v5033 = vsub.s32 %v1319, %v5032
  %v5034 = vrot.slane %v4516, %v5033
  %v5035 = vsel %vm1324, %v5034, %v5030
  %v5036 = vlaneseq
  %v5037 = vshrl.u32 %v5036, 7
  %v5038 = vsub.s32 %v1314, %v5037
  %v5039 = vrot.slane %v4519, %v5038
  %v5040 = vlaneseq
  %v5041 = vshrl.u32 %v5040, 7
  %v5042 = vsub.s32 %v1319, %v5041
  %v5043 = vrot.slane %v4522, %v5042
  %v5044 = vsel %vm1324, %v5043, %v5039
  %v5045 = vlaneseq
  %v5046 = vshrl.u32 %v5045, 7
  %v5047 = vsub.s32 %v1314, %v5046
  %v5048 = vrot.slane %v4525, %v5047
  %v5049 = vlaneseq
  %v5050 = vshrl.u32 %v5049, 7
  %v5051 = vsub.s32 %v1319, %v5050
  %v5052 = vrot.slane %v4528, %v5051
  %v5053 = vsel %vm1324, %v5052, %v5048
  %v5054 = vlaneseq
  %v5055 = vshrl.u32 %v5054, 7
  %v5056 = vsub.s32 %v1314, %v5055
  %v5057 = vrot.slane %v4531, %v5056
  %v5058 = vlaneseq
  %v5059 = vshrl.u32 %v5058, 7
  %v5060 = vsub.s32 %v1319, %v5059
  %v5061 = vrot.slane %v4534, %v5060
  %v5062 = vsel %vm1324, %v5061, %v5057
  %v5063 = vlaneseq
  %v5064 = vshrl.u32 %v5063, 7
  %v5065 = vsub.s32 %v1314, %v5064
  %v5066 = vrot.slane %v4537, %v5065
  %v5067 = vlaneseq
  %v5068 = vshrl.u32 %v5067, 7
  %v5069 = vsub.s32 %v1319, %v5068
  %v5070 = vrot.slane %v4540, %v5069
  %v5071 = vsel %vm1324, %v5070, %v5066
  %v5072 = vlaneseq
  %v5073 = vshrl.u32 %v5072, 7
  %v5074 = vsub.s32 %v1314, %v5073
  %v5075 = vrot.slane %v4543, %v5074
  %v5076 = vlaneseq
  %v5077 = vshrl.u32 %v5076, 7
  %v5078 = vsub.s32 %v1319, %v5077
  %v5079 = vrot.slane %v4546, %v5078
  %v5080 = vsel %vm1324, %v5079, %v5075
  %v5081 = vlaneseq
  %v5082 = vshrl.u32 %v5081, 7
  %v5083 = vsub.s32 %v1314, %v5082
  %v5084 = vrot.slane %v4549, %v5083
  %v5085 = vlaneseq
  %v5086 = vshrl.u32 %v5085, 7
  %v5087 = vsub.s32 %v1319, %v5086
  %v5088 = vrot.slane %v4552, %v5087
  %v5089 = vsel %vm1324, %v5088, %v5084
  %v5090 = vlaneseq
  %v5091 = vshrl.u32 %v5090, 7
  %v5092 = vsub.s32 %v1314, %v5091
  %v5093 = vrot.slane %v4555, %v5092
  %v5094 = vlaneseq
  %v5095 = vshrl.u32 %v5094, 7
  %v5096 = vsub.s32 %v1319, %v5095
  %v5097 = vrot.slane %v4558, %v5096
  %v5098 = vsel %vm1324, %v5097, %v5093
  %v5099 = vlaneseq
  %v5100 = vshrl.u32 %v5099, 7
  %v5101 = vsub.s32 %v1314, %v5100
  %v5102 = vrot.slane %v4561, %v5101
  %v5103 = vlaneseq
  %v5104 = vshrl.u32 %v5103, 7
  %v5105 = vsub.s32 %v1319, %v5104
  %v5106 = vrot.slane %v4564, %v5105
  %v5107 = vsel %vm1324, %v5106, %v5102
  %v5108 = vlaneseq
  %v5109 = vshrl.u32 %v5108, 7
  %v5110 = vsub.s32 %v1314, %v5109
  %v5111 = vrot.slane %v4567, %v5110
  %v5112 = vlaneseq
  %v5113 = vshrl.u32 %v5112, 7
  %v5114 = vsub.s32 %v1319, %v5113
  %v5115 = vrot.slane %v4570, %v5114
  %v5116 = vsel %vm1324, %v5115, %v5111
  %v5117 = vlaneseq
  %v5118 = vshrl.u32 %v5117, 7
  %v5119 = vsub.s32 %v1314, %v5118
  %v5120 = vrot.slane %v4573, %v5119
  %v5121 = vlaneseq
  %v5122 = vshrl.u32 %v5121, 7
  %v5123 = vsub.s32 %v1319, %v5122
  %v5124 = vrot.slane %v4576, %v5123
  %v5125 = vsel %vm1324, %v5124, %v5120
  %v5126 = vlaneseq
  %v5127 = vshrl.u32 %v5126, 7
  %v5128 = vsub.s32 %v1314, %v5127
  %v5129 = vrot.slane %v4579, %v5128
  %v5130 = vlaneseq
  %v5131 = vshrl.u32 %v5130, 7
  %v5132 = vsub.s32 %v1319, %v5131
  %v5133 = vrot.slane %v4582, %v5132
  %v5134 = vsel %vm1324, %v5133, %v5129
  %v5135 = vlaneseq
  %v5136 = vshrl.u32 %v5135, 7
  %v5137 = vsub.s32 %v1314, %v5136
  %v5138 = vrot.slane %v4585, %v5137
  %v5139 = vlaneseq
  %v5140 = vshrl.u32 %v5139, 7
  %v5141 = vsub.s32 %v1319, %v5140
  %v5142 = vrot.slane %v4588, %v5141
  %v5143 = vsel %vm1324, %v5142, %v5138
  %v5144 = vlaneseq
  %v5145 = vshrl.u32 %v5144, 7
  %v5146 = vsub.s32 %v1314, %v5145
  %v5147 = vrot.slane %v4591, %v5146
  %v5148 = vlaneseq
  %v5149 = vshrl.u32 %v5148, 7
  %v5150 = vsub.s32 %v1319, %v5149
  %v5151 = vrot.slane %v4594, %v5150
  %v5152 = vsel %vm1324, %v5151, %v5147
  %v5153 = vlaneseq
  %v5154 = vshrl.u32 %v5153, 7
  %v5155 = vsub.s32 %v1314, %v5154
  %v5156 = vrot.slane %v4597, %v5155
  %v5157 = vlaneseq
  %v5158 = vshrl.u32 %v5157, 7
  %v5159 = vsub.s32 %v1319, %v5158
  %v5160 = vrot.slane %v4600, %v5159
  %v5161 = vsel %vm1324, %v5160, %v5156
  %v5162 = vlaneseq
  %v5163 = vshrl.u32 %v5162, 7
  %v5164 = vsub.s32 %v1314, %v5163
  %v5165 = vrot.slane %v4603, %v5164
  %v5166 = vlaneseq
  %v5167 = vshrl.u32 %v5166, 7
  %v5168 = vsub.s32 %v1319, %v5167
  %v5169 = vrot.slane %v4606, %v5168
  %v5170 = vsel %vm1324, %v5169, %v5165
  %v5171 = vlaneseq
  %v5172 = vshrl.u32 %v5171, 7
  %v5173 = vsub.s32 %v1314, %v5172
  %v5174 = vrot.slane %v4609, %v5173
  %v5175 = vlaneseq
  %v5176 = vshrl.u32 %v5175, 7
  %v5177 = vsub.s32 %v1319, %v5176
  %v5178 = vrot.slane %v4612, %v5177
  %v5179 = vsel %vm1324, %v5178, %v5174
  %v5180 = vlaneseq
  %v5181 = vshrl.u32 %v5180, 7
  %v5182 = vsub.s32 %v1314, %v5181
  %v5183 = vrot.slane %v4615, %v5182
  %v5184 = vlaneseq
  %v5185 = vshrl.u32 %v5184, 7
  %v5186 = vsub.s32 %v1319, %v5185
  %v5187 = vrot.slane %v4618, %v5186
  %v5188 = vsel %vm1324, %v5187, %v5183
  %v5189 = vlaneseq
  %v5190 = vshrl.u32 %v5189, 7
  %v5191 = vsub.s32 %v1314, %v5190
  %v5192 = vrot.slane %v4621, %v5191
  %v5193 = vlaneseq
  %v5194 = vshrl.u32 %v5193, 7
  %v5195 = vsub.s32 %v1319, %v5194
  %v5196 = vrot.slane %v4624, %v5195
  %v5197 = vsel %vm1324, %v5196, %v5192
  %v5198 = vlaneseq
  %v5199 = vshrl.u32 %v5198, 7
  %v5200 = vsub.s32 %v1314, %v5199
  %v5201 = vrot.slane %v4627, %v5200
  %v5202 = vlaneseq
  %v5203 = vshrl.u32 %v5202, 7
  %v5204 = vsub.s32 %v1319, %v5203
  %v5205 = vrot.slane %v4630, %v5204
  %v5206 = vsel %vm1324, %v5205, %v5201
  %v5207 = vsel %vm1893, %v4648, %v4639
  %v5208 = vsel %vm1895, %v4657, %v5207
  %v5209 = vsel %vm1897, %v4666, %v5208
  %v5210 = vsel %vm1899, %v4675, %v5209
  %v5211 = vsel %vm1901, %v4684, %v5210
  %v5212 = vsel %vm1903, %v4693, %v5211
  %v5213 = vsel %vm1905, %v4702, %v5212
  %v5214 = vsel %vm1893, %v4720, %v4711
  %v5215 = vsel %vm1895, %v4729, %v5214
  %v5216 = vsel %vm1897, %v4738, %v5215
  %v5217 = vsel %vm1899, %v4747, %v5216
  %v5218 = vsel %vm1901, %v4756, %v5217
  %v5219 = vsel %vm1903, %v4765, %v5218
  %v5220 = vsel %vm1905, %v4774, %v5219
  %v5221 = vsel %vm1893, %v4792, %v4783
  %v5222 = vsel %vm1895, %v4801, %v5221
  %v5223 = vsel %vm1897, %v4810, %v5222
  %v5224 = vsel %vm1899, %v4819, %v5223
  %v5225 = vsel %vm1901, %v4828, %v5224
  %v5226 = vsel %vm1903, %v4837, %v5225
  %v5227 = vsel %vm1905, %v4846, %v5226
  %v5228 = vsel %vm1893, %v4864, %v4855
  %v5229 = vsel %vm1895, %v4873, %v5228
  %v5230 = vsel %vm1897, %v4882, %v5229
  %v5231 = vsel %vm1899, %v4891, %v5230
  %v5232 = vsel %vm1901, %v4900, %v5231
  %v5233 = vsel %vm1903, %v4909, %v5232
  %v5234 = vsel %vm1905, %v4918, %v5233
  %v5235 = vsel %vm1893, %v4936, %v4927
  %v5236 = vsel %vm1895, %v4945, %v5235
  %v5237 = vsel %vm1897, %v4954, %v5236
  %v5238 = vsel %vm1899, %v4963, %v5237
  %v5239 = vsel %vm1901, %v4972, %v5238
  %v5240 = vsel %vm1903, %v4981, %v5239
  %v5241 = vsel %vm1905, %v4990, %v5240
  %v5242 = vsel %vm1893, %v5008, %v4999
  %v5243 = vsel %vm1895, %v5017, %v5242
  %v5244 = vsel %vm1897, %v5026, %v5243
  %v5245 = vsel %vm1899, %v5035, %v5244
  %v5246 = vsel %vm1901, %v5044, %v5245
  %v5247 = vsel %vm1903, %v5053, %v5246
  %v5248 = vsel %vm1905, %v5062, %v5247
  %v5249 = vsel %vm1893, %v5080, %v5071
  %v5250 = vsel %vm1895, %v5089, %v5249
  %v5251 = vsel %vm1897, %v5098, %v5250
  %v5252 = vsel %vm1899, %v5107, %v5251
  %v5253 = vsel %vm1901, %v5116, %v5252
  %v5254 = vsel %vm1903, %v5125, %v5253
  %v5255 = vsel %vm1905, %v5134, %v5254
  %v5256 = vsel %vm1893, %v5152, %v5143
  %v5257 = vsel %vm1895, %v5161, %v5256
  %v5258 = vsel %vm1897, %v5170, %v5257
  %v5259 = vsel %vm1899, %v5179, %v5258
  %v5260 = vsel %vm1901, %v5188, %v5259
  %v5261 = vsel %vm1903, %v5197, %v5260
  %v5262 = vsel %vm1905, %v5206, %v5261
  %v5335 = vrot.slane %v4056, 7
  %v5336 = vsel %vm1893, %v5335, %v4055
  %v5337 = vrot.slane %v4057, 6
  %v5338 = vsel %vm1895, %v5337, %v5336
  %v5339 = vrot.slane %v4058, 5
  %v5340 = vsel %vm1897, %v5339, %v5338
  %v5341 = vrot.slane %v4059, 4
  %v5342 = vsel %vm1899, %v5341, %v5340
  %v5343 = vrot.slane %v4060, 3
  %v5344 = vsel %vm1901, %v5343, %v5342
  %v5345 = vrot.slane %v4061, 2
  %v5346 = vsel %vm1903, %v5345, %v5344
  %v5347 = vrot.slane %v4062, 1
  %v5348 = vsel %vm1905, %v5347, %v5346
  %v5349 = vrot.slane %v4064, 7
  %v5350 = vsel %vm1893, %v5349, %v4063
  %v5351 = vrot.slane %v4065, 6
  %v5352 = vsel %vm1895, %v5351, %v5350
  %v5353 = vrot.slane %v4066, 5
  %v5354 = vsel %vm1897, %v5353, %v5352
  %v5355 = vrot.slane %v4067, 4
  %v5356 = vsel %vm1899, %v5355, %v5354
  %v5357 = vrot.slane %v4068, 3
  %v5358 = vsel %vm1901, %v5357, %v5356
  %v5359 = vrot.slane %v4069, 2
  %v5360 = vsel %vm1903, %v5359, %v5358
  %v5361 = vrot.slane %v4070, 1
  %v5362 = vsel %vm1905, %v5361, %v5360
  %v5363 = vrot.slane %v4072, 7
  %v5364 = vsel %vm1893, %v5363, %v4071
  %v5365 = vrot.slane %v4073, 6
  %v5366 = vsel %vm1895, %v5365, %v5364
  %v5367 = vrot.slane %v4074, 5
  %v5368 = vsel %vm1897, %v5367, %v5366
  %v5369 = vrot.slane %v4075, 4
  %v5370 = vsel %vm1899, %v5369, %v5368
  %v5371 = vrot.slane %v4076, 3
  %v5372 = vsel %vm1901, %v5371, %v5370
  %v5373 = vrot.slane %v4077, 2
  %v5374 = vsel %vm1903, %v5373, %v5372
  %v5375 = vrot.slane %v4078, 1
  %v5376 = vsel %vm1905, %v5375, %v5374
  %v5377 = vrot.slane %v4080, 7
  %v5378 = vsel %vm1893, %v5377, %v4079
  %v5379 = vrot.slane %v4081, 6
  %v5380 = vsel %vm1895, %v5379, %v5378
  %v5381 = vrot.slane %v4082, 5
  %v5382 = vsel %vm1897, %v5381, %v5380
  %v5383 = vrot.slane %v4083, 4
  %v5384 = vsel %vm1899, %v5383, %v5382
  %v5385 = vrot.slane %v4084, 3
  %v5386 = vsel %vm1901, %v5385, %v5384
  %v5387 = vrot.slane %v4085, 2
  %v5388 = vsel %vm1903, %v5387, %v5386
  %v5389 = vrot.slane %v4086, 1
  %v5390 = vsel %vm1905, %v5389, %v5388
  %v5391 = vrot.slane %v4088, 7
  %v5392 = vsel %vm1893, %v5391, %v4087
  %v5393 = vrot.slane %v4089, 6
  %v5394 = vsel %vm1895, %v5393, %v5392
  %v5395 = vrot.slane %v4090, 5
  %v5396 = vsel %vm1897, %v5395, %v5394
  %v5397 = vrot.slane %v4091, 4
  %v5398 = vsel %vm1899, %v5397, %v5396
  %v5399 = vrot.slane %v4092, 3
  %v5400 = vsel %vm1901, %v5399, %v5398
  %v5401 = vrot.slane %v4093, 2
  %v5402 = vsel %vm1903, %v5401, %v5400
  %v5403 = vrot.slane %v4094, 1
  %v5404 = vsel %vm1905, %v5403, %v5402
  %v5405 = vrot.slane %v4096, 7
  %v5406 = vsel %vm1893, %v5405, %v4095
  %v5407 = vrot.slane %v4097, 6
  %v5408 = vsel %vm1895, %v5407, %v5406
  %v5409 = vrot.slane %v4098, 5
  %v5410 = vsel %vm1897, %v5409, %v5408
  %v5411 = vrot.slane %v4099, 4
  %v5412 = vsel %vm1899, %v5411, %v5410
  %v5413 = vrot.slane %v4100, 3
  %v5414 = vsel %vm1901, %v5413, %v5412
  %v5415 = vrot.slane %v4101, 2
  %v5416 = vsel %vm1903, %v5415, %v5414
  %v5417 = vrot.slane %v4102, 1
  %v5418 = vsel %vm1905, %v5417, %v5416
  %v5419 = vrot.slane %v4104, 7
  %v5420 = vsel %vm1893, %v5419, %v4103
  %v5421 = vrot.slane %v4105, 6
  %v5422 = vsel %vm1895, %v5421, %v5420
  %v5423 = vrot.slane %v4106, 5
  %v5424 = vsel %vm1897, %v5423, %v5422
  %v5425 = vrot.slane %v4107, 4
  %v5426 = vsel %vm1899, %v5425, %v5424
  %v5427 = vrot.slane %v4108, 3
  %v5428 = vsel %vm1901, %v5427, %v5426
  %v5429 = vrot.slane %v4109, 2
  %v5430 = vsel %vm1903, %v5429, %v5428
  %v5431 = vrot.slane %v4110, 1
  %v5432 = vsel %vm1905, %v5431, %v5430
  %v5433 = vrot.slane %v4112, 7
  %v5434 = vsel %vm1893, %v5433, %v4111
  %v5435 = vrot.slane %v4113, 6
  %v5436 = vsel %vm1895, %v5435, %v5434
  %v5437 = vrot.slane %v4114, 5
  %v5438 = vsel %vm1897, %v5437, %v5436
  %v5439 = vrot.slane %v4115, 4
  %v5440 = vsel %vm1899, %v5439, %v5438
  %v5441 = vrot.slane %v4116, 3
  %v5442 = vsel %vm1901, %v5441, %v5440
  %v5443 = vrot.slane %v4117, 2
  %v5444 = vsel %vm1903, %v5443, %v5442
  %v5445 = vrot.slane %v4118, 1
  %v5446 = vsel %vm1905, %v5445, %v5444
  %5447 = vrot.lane.b32.xlu0 %v5348, 16
  %v5448 = vpop.permute.xlu0 %5447
  %5449 = vrot.lane.b32.xlu0 %v5362, 16
  %v5450 = vpop.permute.xlu0 %5449
  %5451 = vrot.lane.b32.xlu0 %v5376, 16
  %v5452 = vpop.permute.xlu0 %5451
  %5453 = vrot.lane.b32.xlu0 %v5390, 16
  %v5454 = vpop.permute.xlu0 %5453
  %5455 = vrot.lane.b32.xlu0 %v5404, 16
  %v5456 = vpop.permute.xlu0 %5455
  %5457 = vrot.lane.b32.xlu0 %v5418, 16
  %v5458 = vpop.permute.xlu0 %5457
  %5459 = vrot.lane.b32.xlu0 %v5432, 16
  %v5460 = vpop.permute.xlu0 %5459
  %5461 = vrot.lane.b32.xlu0 %v5446, 16
  %v5462 = vpop.permute.xlu0 %5461
  %v5471 = vsel %vm160, %v5213, %v5448
  %v5472 = vsel %vm160, %v5220, %v5450
  %v5473 = vsel %vm160, %v5227, %v5452
  %v5474 = vsel %vm160, %v5234, %v5454
  %v5475 = vsel %vm160, %v5241, %v5456
  %v5476 = vsel %vm160, %v5248, %v5458
  %v5477 = vsel %vm160, %v5255, %v5460
  %v5478 = vsel %vm160, %v5262, %v5462
  %v5479 = vld [vmem:[%s3] sm:$0xff]
  %v5480 = vld [vmem:[%s4] sm:$0xff]
  %5482 = vset.pattern.permute.xlu0 0
  %5483 = vperm.xlu0 %5482, %v5480
  %v5484 = vpop.permute.xlu0 %5483
  %v5487 = vsel %vm3278, %v5479, 0
  %5489 = vmatprep.subr.mxu0 0.0
  %5490 = vmatpush1.msra.mxu0 %v5471
  %5491 = vmatprep.subr.mxu0 0.0
  %5492 = vmatpush1.msra.mxu0 %v5472
  %5493 = vmatprep.subr.mxu0 0.0
  %5494 = vmatpush1.msra.mxu0 %v5473
  %5495 = vmatprep.subr.mxu0 0.0
  %5496 = vmatpush1.msra.mxu0 %v5474
  %5497 = vmatprep.subr.mxu0 0.0
  %5498 = vmatpush1.msra.mxu0 0.0
  %5499 = vmatprep.subr.mxu0 0.0
  %5500 = vmatpush1.msra.mxu0 0.0
  %5501 = vmatprep.subr.mxu0 0.0
  %5502 = vmatpush1.msra.mxu0 0.0
  %5503 = vmatprep.subr.mxu0 0.0
  %5504 = vmatpush1.msra.mxu0 0.0
  %5505 = vmatprep.subr.mxu0 0.0
  %5506 = vmatpush1.msra.mxu0 0.0
  %5507 = vmatprep.subr.mxu0 0.0
  %5508 = vmatpush1.msra.mxu0 0.0
  %5509 = vmatprep.subr.mxu0 0.0
  %5510 = vmatpush1.msra.mxu0 0.0
  %5511 = vmatprep.subr.mxu0 0.0
  %5512 = vmatpush1.msra.mxu0 0.0
  %5513 = vmatprep.subr.mxu0 0.0
  %5514 = vmatpush1.msra.mxu0 0.0
  %5515 = vmatprep.subr.mxu0 0.0
  %5516 = vmatpush1.msra.mxu0 0.0
  %5517 = vmatprep.subr.mxu0 0.0
  %5518 = vmatpush1.msra.mxu0 0.0
  %5519 = vmatprep.subr.mxu0 0.0
  %5520 = vmatpush1.msra.mxu0 0.0
  %5521 = vmatprep.subr.mxu0 0.0
  %5522 = vmatpush1.msra.mxu0 0.0
  %5523 = vmatprep.subr.mxu0 0.0
  %5524 = vmatpush1.msra.mxu0 0.0
  %5525 = vmatprep.subr.mxu0 0.0
  %5526 = vmatpush1.msra.mxu0 0.0
  %5527 = vmatprep.subr.mxu0 0.0
  %5528 = vmatpush1.msra.mxu0 0.0
  %5529 = vmatprep.subr.mxu0 0.0
  %5530 = vmatpush1.msra.mxu0 0.0
  %5531 = vmatprep.subr.mxu0 0.0
  %5532 = vmatpush1.msra.mxu0 0.0
  %5533 = vmatprep.subr.mxu0 0.0
  %5534 = vmatpush1.msra.mxu0 0.0
  %5535 = vmatprep.subr.mxu0 0.0
  %5536 = vmatpush1.msra.mxu0 0.0
  %5537 = vmatprep.subr.mxu0 0.0
  %5538 = vmatpush1.msra.mxu0 0.0
  %5539 = vmatprep.subr.mxu0 0.0
  %5540 = vmatpush1.msra.mxu0 0.0
  %5541 = vmatprep.subr.mxu0 0.0
  %5542 = vmatpush1.msra.mxu0 0.0
  %5543 = vmatprep.subr.mxu0 0.0
  %5544 = vmatpush1.msra.mxu0 0.0
  %5545 = vmatprep.subr.mxu0 0.0
  %5546 = vmatpush1.msra.mxu0 0.0
  %5547 = vmatprep.subr.mxu0 0.0
  %5548 = vmatpush1.msra.mxu0 0.0
  %5549 = vmatprep.subr.mxu0 0.0
  %5550 = vmatpush1.msra.mxu0 0.0
  %5551 = vmatprep.subr.mxu0 0.0
  %5552 = vmatpush1.msra.mxu0 0.0
  %5553 = vmatprep.mubr.f32.mxu0 0.0
  %5554 = vmatmul.mubr.f32.gmra.mrb[0].mxu0 %v5487
  %v5555 = vpop.f32.mrb[0].mxu0
  %v5556 = vadd.f32 %v5484, %v5555
  %v5557 = vpop.f32.mrb[0].mxu0
  %5558 = vdwg.mxu0
  %5559 = vmatprep.subr.mxu0 0.0
  %5560 = vmatpush1.msra.mxu0 %v5475
  %5561 = vmatprep.subr.mxu0 0.0
  %5562 = vmatpush1.msra.mxu0 %v5476
  %5563 = vmatprep.subr.mxu0 0.0
  %5564 = vmatpush1.msra.mxu0 %v5477
  %5565 = vmatprep.subr.mxu0 0.0
  %5566 = vmatpush1.msra.mxu0 %v5478
  %5567 = vmatprep.subr.mxu0 0.0
  %5568 = vmatpush1.msra.mxu0 0.0
  %5569 = vmatprep.subr.mxu0 0.0
  %5570 = vmatpush1.msra.mxu0 0.0
  %5571 = vmatprep.subr.mxu0 0.0
  %5572 = vmatpush1.msra.mxu0 0.0
  %5573 = vmatprep.subr.mxu0 0.0
  %5574 = vmatpush1.msra.mxu0 0.0
  %5575 = vmatprep.subr.mxu0 0.0
  %5576 = vmatpush1.msra.mxu0 0.0
  %5577 = vmatprep.subr.mxu0 0.0
  %5578 = vmatpush1.msra.mxu0 0.0
  %5579 = vmatprep.subr.mxu0 0.0
  %5580 = vmatpush1.msra.mxu0 0.0
  %5581 = vmatprep.subr.mxu0 0.0
  %5582 = vmatpush1.msra.mxu0 0.0
  %5583 = vmatprep.subr.mxu0 0.0
  %5584 = vmatpush1.msra.mxu0 0.0
  %5585 = vmatprep.subr.mxu0 0.0
  %5586 = vmatpush1.msra.mxu0 0.0
  %5587 = vmatprep.subr.mxu0 0.0
  %5588 = vmatpush1.msra.mxu0 0.0
  %5589 = vmatprep.subr.mxu0 0.0
  %5590 = vmatpush1.msra.mxu0 0.0
  %5591 = vmatprep.subr.mxu0 0.0
  %5592 = vmatpush1.msra.mxu0 0.0
  %5593 = vmatprep.subr.mxu0 0.0
  %5594 = vmatpush1.msra.mxu0 0.0
  %5595 = vmatprep.subr.mxu0 0.0
  %5596 = vmatpush1.msra.mxu0 0.0
  %5597 = vmatprep.subr.mxu0 0.0
  %5598 = vmatpush1.msra.mxu0 0.0
  %5599 = vmatprep.subr.mxu0 0.0
  %5600 = vmatpush1.msra.mxu0 0.0
  %5601 = vmatprep.subr.mxu0 0.0
  %5602 = vmatpush1.msra.mxu0 0.0
  %5603 = vmatprep.subr.mxu0 0.0
  %5604 = vmatpush1.msra.mxu0 0.0
  %5605 = vmatprep.subr.mxu0 0.0
  %5606 = vmatpush1.msra.mxu0 0.0
  %5607 = vmatprep.subr.mxu0 0.0
  %5608 = vmatpush1.msra.mxu0 0.0
  %5609 = vmatprep.subr.mxu0 0.0
  %5610 = vmatpush1.msra.mxu0 0.0
  %5611 = vmatprep.subr.mxu0 0.0
  %5612 = vmatpush1.msra.mxu0 0.0
  %5613 = vmatprep.subr.mxu0 0.0
  %5614 = vmatpush1.msra.mxu0 0.0
  %5615 = vmatprep.subr.mxu0 0.0
  %5616 = vmatpush1.msra.mxu0 0.0
  %5617 = vmatprep.subr.mxu0 0.0
  %5618 = vmatpush1.msra.mxu0 0.0
  %5619 = vmatprep.subr.mxu0 0.0
  %5620 = vmatpush1.msra.mxu0 0.0
  %5621 = vmatprep.subr.mxu0 0.0
  %5622 = vmatpush1.msra.mxu0 0.0
  %5623 = vmatprep.mubr.f32.mxu0 0.0
  %5624 = vmatmul.mubr.f32.gmra.mrb[0].mxu0 %v5487
  %v5625 = vpop.f32.mrb[0].mxu0
  %v5626 = vadd.f32 %v5484, %v5625
  %v5627 = vpop.f32.mrb[0].mxu0
  %5628 = vdwg.mxu0
  %v5629 = vadd.f32 %v5556, 3.0
  %v5630 = vadd.f32 %v5626, 3.0
  %v5631 = vmax.f32 %v5629, 0.0
  %v5632 = vmax.f32 %v5630, 0.0
  %v5633 = vmin.f32 %v5631, 6.0
  %v5634 = vmin.f32 %v5632, 6.0
  %v5635 = vmul.f32 %v5556, %v5633
  %v5636 = vmul.f32 %v5626, %v5634
  %v5637 = vmul.f32 %v5635, 0.16666667
  %v5638 = vmul.f32 %v5636, 0.16666667
  %v5639 = vld [vmem:[%s5] sm:$0xff]
  %v5640 = vld [vmem:[%s5 + $0x8] sm:$0xff]
  %v5641 = vld [vmem:[%s5 + $0x10] sm:$0xff]
  %v5642 = vld [vmem:[%s5 + $0x18] sm:$0xff]
  %v5643 = vld [vmem:[%s7] sm:$0xff]
  %v5644 = vld [vmem:[%s7 + $0x8] sm:$0xff]
  %v5645 = vld [vmem:[%s7 + $0x10] sm:$0xff]
  %v5646 = vld [vmem:[%s7 + $0x18] sm:$0xff]
  %v5647 = vld [vmem:[%s6] sm:$0xff]
  %v5648 = vld [vmem:[%s6 + $0x8] sm:$0xff]
  %v5649 = vld [vmem:[%s6 + $0x10] sm:$0xff]
  %v5650 = vld [vmem:[%s6 + $0x18] sm:$0xff]
  %5652 = vset.pattern.permute.xlu0 0
  %5653 = vperm.xlu0 %5652, %v5647
  %v5654 = vpop.permute.xlu0 %5653
  %5657 = vset.pattern.permute.xlu0 0
  %5658 = vperm.xlu0 %5657, %v5648
  %v5659 = vpop.permute.xlu0 %5658
  %5662 = vset.pattern.permute.xlu0 0
  %5663 = vperm.xlu0 %5662, %v5649
  %v5664 = vpop.permute.xlu0 %5663
  %5667 = vset.pattern.permute.xlu0 0
  %5668 = vperm.xlu0 %5667, %v5650
  %v5669 = vpop.permute.xlu0 %5668
  %vm5671 = vcmask 64512
  %v5673 = vsel %vm5671, %v5639, 0
  %v5676 = vsel %vm5671, %v5640, 0
  %v5679 = vsel %vm5671, %v5641, 0
  %v5682 = vsel %vm5671, %v5642, 0
  %5684 = vmatprep.subr.mxu0 0.0
  %5685 = vmatpush1.msra.mxu0 %v5637
  %5686 = vmatprep.subr.mxu0 0.0
  %5687 = vmatpush1.msra.mxu0 0.0
  %5688 = vmatprep.subr.mxu0 0.0
  %5689 = vmatpush1.msra.mxu0 0.0
  %5690 = vmatprep.subr.mxu0 0.0
  %5691 = vmatpush1.msra.mxu0 0.0
  %5692 = vmatprep.subr.mxu0 0.0
  %5693 = vmatpush1.msra.mxu0 0.0
  %5694 = vmatprep.subr.mxu0 0.0
  %5695 = vmatpush1.msra.mxu0 0.0
  %5696 = vmatprep.subr.mxu0 0.0
  %5697 = vmatpush1.msra.mxu0 0.0
  %5698 = vmatprep.subr.mxu0 0.0
  %5699 = vmatpush1.msra.mxu0 0.0
  %5700 = vmatprep.subr.mxu0 0.0
  %5701 = vmatpush1.msra.mxu0 0.0
  %5702 = vmatprep.subr.mxu0 0.0
  %5703 = vmatpush1.msra.mxu0 0.0
  %5704 = vmatprep.subr.mxu0 0.0
  %5705 = vmatpush1.msra.mxu0 0.0
  %5706 = vmatprep.subr.mxu0 0.0
  %5707 = vmatpush1.msra.mxu0 0.0
  %5708 = vmatprep.subr.mxu0 0.0
  %5709 = vmatpush1.msra.mxu0 0.0
  %5710 = vmatprep.subr.mxu0 0.0
  %5711 = vmatpush1.msra.mxu0 0.0
  %5712 = vmatprep.subr.mxu0 0.0
  %5713 = vmatpush1.msra.mxu0 0.0
  %5714 = vmatprep.subr.mxu0 0.0
  %5715 = vmatpush1.msra.mxu0 0.0
  %5716 = vmatprep.subr.mxu0 0.0
  %5717 = vmatpush1.msra.mxu0 0.0
  %5718 = vmatprep.subr.mxu0 0.0
  %5719 = vmatpush1.msra.mxu0 0.0
  %5720 = vmatprep.subr.mxu0 0.0
  %5721 = vmatpush1.msra.mxu0 0.0
  %5722 = vmatprep.subr.mxu0 0.0
  %5723 = vmatpush1.msra.mxu0 0.0
  %5724 = vmatprep.subr.mxu0 0.0
  %5725 = vmatpush1.msra.mxu0 0.0
  %5726 = vmatprep.subr.mxu0 0.0
  %5727 = vmatpush1.msra.mxu0 0.0
  %5728 = vmatprep.subr.mxu0 0.0
  %5729 = vmatpush1.msra.mxu0 0.0
  %5730 = vmatprep.subr.mxu0 0.0
  %5731 = vmatpush1.msra.mxu0 0.0
  %5732 = vmatprep.subr.mxu0 0.0
  %5733 = vmatpush1.msra.mxu0 0.0
  %5734 = vmatprep.subr.mxu0 0.0
  %5735 = vmatpush1.msra.mxu0 0.0
  %5736 = vmatprep.subr.mxu0 0.0
  %5737 = vmatpush1.msra.mxu0 0.0
  %5738 = vmatprep.subr.mxu0 0.0
  %5739 = vmatpush1.msra.mxu0 0.0
  %5740 = vmatprep.subr.mxu0 0.0
  %5741 = vmatpush1.msra.mxu0 0.0
  %5742 = vmatprep.subr.mxu0 0.0
  %5743 = vmatpush1.msra.mxu0 0.0
  %5744 = vmatprep.subr.mxu0 0.0
  %5745 = vmatpush1.msra.mxu0 0.0
  %5746 = vmatprep.subr.mxu0 0.0
  %5747 = vmatpush1.msra.mxu0 0.0
  %5748 = vmatprep.mubr.f32.mxu0 0.0
  %5749 = vmatmul.mubr.f32.gmra.mrb[0].mxu0 %v5673
  %v5750 = vpop.f32.mrb[0].mxu0
  %v5751 = vadd.f32 %v5654, %v5750
  %v5752 = vpop.f32.mrb[0].mxu0
  %5753 = vmatprep.mubr.f32.mxu0 0.0
  %5754 = vmatmul.mubr.f32.gmra.mrb[0].mxu0 %v5676
  %v5755 = vpop.f32.mrb[0].mxu0
  %v5756 = vadd.f32 %v5659, %v5755
  %v5757 = vpop.f32.mrb[0].mxu0
  %5758 = vmatprep.mubr.f32.mxu0 0.0
  %5759 = vmatmul.mubr.f32.gmra.mrb[0].mxu0 %v5679
  %v5760 = vpop.f32.mrb[0].mxu0
  %v5761 = vadd.f32 %v5664, %v5760
  %v5762 = vpop.f32.mrb[0].mxu0
  %5763 = vmatprep.mubr.f32.mxu0 0.0
  %5764 = vmatmul.mubr.f32.gmra.mrb[0].mxu0 %v5682
  %v5765 = vpop.f32.mrb[0].mxu0
  %v5766 = vadd.f32 %v5669, %v5765
  %v5767 = vpop.f32.mrb[0].mxu0
  %5768 = vdwg.mxu0
  %5769 = vmatprep.subr.mxu0 0.0
  %5770 = vmatpush1.msra.mxu0 %v5638
  %5771 = vmatprep.subr.mxu0 0.0
  %5772 = vmatpush1.msra.mxu0 0.0
  %5773 = vmatprep.subr.mxu0 0.0
  %5774 = vmatpush1.msra.mxu0 0.0
  %5775 = vmatprep.subr.mxu0 0.0
  %5776 = vmatpush1.msra.mxu0 0.0
  %5777 = vmatprep.subr.mxu0 0.0
  %5778 = vmatpush1.msra.mxu0 0.0
  %5779 = vmatprep.subr.mxu0 0.0
  %5780 = vmatpush1.msra.mxu0 0.0
  %5781 = vmatprep.subr.mxu0 0.0
  %5782 = vmatpush1.msra.mxu0 0.0
  %5783 = vmatprep.subr.mxu0 0.0
  %5784 = vmatpush1.msra.mxu0 0.0
  %5785 = vmatprep.subr.mxu0 0.0
  %5786 = vmatpush1.msra.mxu0 0.0
  %5787 = vmatprep.subr.mxu0 0.0
  %5788 = vmatpush1.msra.mxu0 0.0
  %5789 = vmatprep.subr.mxu0 0.0
  %5790 = vmatpush1.msra.mxu0 0.0
  %5791 = vmatprep.subr.mxu0 0.0
  %5792 = vmatpush1.msra.mxu0 0.0
  %5793 = vmatprep.subr.mxu0 0.0
  %5794 = vmatpush1.msra.mxu0 0.0
  %5795 = vmatprep.subr.mxu0 0.0
  %5796 = vmatpush1.msra.mxu0 0.0
  %5797 = vmatprep.subr.mxu0 0.0
  %5798 = vmatpush1.msra.mxu0 0.0
  %5799 = vmatprep.subr.mxu0 0.0
  %5800 = vmatpush1.msra.mxu0 0.0
  %5801 = vmatprep.subr.mxu0 0.0
  %5802 = vmatpush1.msra.mxu0 0.0
  %5803 = vmatprep.subr.mxu0 0.0
  %5804 = vmatpush1.msra.mxu0 0.0
  %5805 = vmatprep.subr.mxu0 0.0
  %5806 = vmatpush1.msra.mxu0 0.0
  %5807 = vmatprep.subr.mxu0 0.0
  %5808 = vmatpush1.msra.mxu0 0.0
  %5809 = vmatprep.subr.mxu0 0.0
  %5810 = vmatpush1.msra.mxu0 0.0
  %5811 = vmatprep.subr.mxu0 0.0
  %5812 = vmatpush1.msra.mxu0 0.0
  %5813 = vmatprep.subr.mxu0 0.0
  %5814 = vmatpush1.msra.mxu0 0.0
  %5815 = vmatprep.subr.mxu0 0.0
  %5816 = vmatpush1.msra.mxu0 0.0
  %5817 = vmatprep.subr.mxu0 0.0
  %5818 = vmatpush1.msra.mxu0 0.0
  %5819 = vmatprep.subr.mxu0 0.0
  %5820 = vmatpush1.msra.mxu0 0.0
  %5821 = vmatprep.subr.mxu0 0.0
  %5822 = vmatpush1.msra.mxu0 0.0
  %5823 = vmatprep.subr.mxu0 0.0
  %5824 = vmatpush1.msra.mxu0 0.0
  %5825 = vmatprep.subr.mxu0 0.0
  %5826 = vmatpush1.msra.mxu0 0.0
  %5827 = vmatprep.subr.mxu0 0.0
  %5828 = vmatpush1.msra.mxu0 0.0
  %5829 = vmatprep.subr.mxu0 0.0
  %5830 = vmatpush1.msra.mxu0 0.0
  %5831 = vmatprep.subr.mxu0 0.0
  %5832 = vmatpush1.msra.mxu0 0.0
  %5833 = vmatprep.mubr.f32.mxu0 0.0
  %5834 = vmatmul.mubr.f32.gmra.mrb[0].mxu0 %v5673
  %v5835 = vpop.f32.mrb[0].mxu0
  %v5836 = vadd.f32 %v5654, %v5835
  %v5837 = vpop.f32.mrb[0].mxu0
  %5838 = vmatprep.mubr.f32.mxu0 0.0
  %5839 = vmatmul.mubr.f32.gmra.mrb[0].mxu0 %v5676
  %v5840 = vpop.f32.mrb[0].mxu0
  %v5841 = vadd.f32 %v5659, %v5840
  %v5842 = vpop.f32.mrb[0].mxu0
  %5843 = vmatprep.mubr.f32.mxu0 0.0
  %5844 = vmatmul.mubr.f32.gmra.mrb[0].mxu0 %v5679
  %v5845 = vpop.f32.mrb[0].mxu0
  %v5846 = vadd.f32 %v5664, %v5845
  %v5847 = vpop.f32.mrb[0].mxu0
  %5848 = vmatprep.mubr.f32.mxu0 0.0
  %5849 = vmatmul.mubr.f32.gmra.mrb[0].mxu0 %v5682
  %v5850 = vpop.f32.mrb[0].mxu0
  %v5851 = vadd.f32 %v5669, %v5850
  %v5852 = vpop.f32.mrb[0].mxu0
  %5853 = vdwg.mxu0
  %v5854 = vxor.u32 %v5751, 2147483648
  %v5855 = vxor.u32 %v5756, 2147483648
  %v5856 = vxor.u32 %v5761, 2147483648
  %v5857 = vxor.u32 %v5766, 2147483648
  %v5858 = vxor.u32 %v5836, 2147483648
  %v5859 = vxor.u32 %v5841, 2147483648
  %v5860 = vxor.u32 %v5846, 2147483648
  %v5861 = vxor.u32 %v5851, 2147483648
  %v5862 = vmul.f32 %v5854, 1.442695
  %v5863 = vpow.pop %v5862
  %v5864 = vmul.f32 %v5855, 1.442695
  %v5865 = vpow.pop %v5864
  %v5866 = vmul.f32 %v5856, 1.442695
  %v5867 = vpow.pop %v5866
  %v5868 = vmul.f32 %v5857, 1.442695
  %v5869 = vpow.pop %v5868
  %v5870 = vmul.f32 %v5858, 1.442695
  %v5871 = vpow.pop %v5870
  %v5872 = vmul.f32 %v5859, 1.442695
  %v5873 = vpow.pop %v5872
  %v5874 = vmul.f32 %v5860, 1.442695
  %v5875 = vpow.pop %v5874
  %v5876 = vmul.f32 %v5861, 1.442695
  %v5877 = vpow.pop %v5876
  %v5878 = vadd.f32 %v5863, 1.0
  %v5879 = vadd.f32 %v5865, 1.0
  %v5880 = vadd.f32 %v5867, 1.0
  %v5881 = vadd.f32 %v5869, 1.0
  %v5882 = vadd.f32 %v5871, 1.0
  %v5883 = vadd.f32 %v5873, 1.0
  %v5884 = vadd.f32 %v5875, 1.0
  %v5885 = vadd.f32 %v5877, 1.0
  %v5886 = vrcp.pop %v5878
  %v5887 = vmul.f32 1.0, %v5886
  %v5888 = vrcp.pop %v5879
  %v5889 = vmul.f32 1.0, %v5888
  %v5890 = vrcp.pop %v5880
  %v5891 = vmul.f32 1.0, %v5890
  %v5892 = vrcp.pop %v5881
  %v5893 = vmul.f32 1.0, %v5892
  %v5894 = vrcp.pop %v5882
  %v5895 = vmul.f32 1.0, %v5894
  %v5896 = vrcp.pop %v5883
  %v5897 = vmul.f32 1.0, %v5896
  %v5898 = vrcp.pop %v5884
  %v5899 = vmul.f32 1.0, %v5898
  %v5900 = vrcp.pop %v5885
  %v5901 = vmul.f32 1.0, %v5900
  %v5902 = vld [vmem:[%s8] sm:$0xff]
  %v5903 = vld [vmem:[%s8 + $0x8] sm:$0xff]
  %v5904 = vld [vmem:[%s8 + $0x10] sm:$0xff]
  %v5905 = vld [vmem:[%s8 + $0x18] sm:$0xff]
  %5907 = vset.pattern.permute.xlu0 0
  %5908 = vperm.xlu0 %5907, %v5902
  %v5909 = vpop.permute.xlu0 %5908
  %5912 = vset.pattern.permute.xlu0 0
  %5913 = vperm.xlu0 %5912, %v5903
  %v5914 = vpop.permute.xlu0 %5913
  %5917 = vset.pattern.permute.xlu0 0
  %5918 = vperm.xlu0 %5917, %v5904
  %v5919 = vpop.permute.xlu0 %5918
  %5922 = vset.pattern.permute.xlu0 0
  %5923 = vperm.xlu0 %5922, %v5905
  %v5924 = vpop.permute.xlu0 %5923
  %5927 = vrot.lane.b32.xlu0 %v5637, 112
  %v5928 = vpop.permute.xlu0 %5927
  %v5931 = vsel %vm5671, %v5643, 0
  %v5934 = vsel %vm5671, %v5644, 0
  %v5937 = vsel %vm5671, %v5645, 0
  %v5940 = vsel %vm5671, %v5646, 0
  %5942 = vmatprep.subr.mxu0 0.0
  %5943 = vmatpush1.msra.mxu0 %v5928
  %5944 = vmatprep.subr.mxu0 0.0
  %5945 = vmatpush1.msra.mxu0 0.0
  %5946 = vmatprep.subr.mxu0 0.0
  %5947 = vmatpush1.msra.mxu0 0.0
  %5948 = vmatprep.subr.mxu0 0.0
  %5949 = vmatpush1.msra.mxu0 0.0
  %5950 = vmatprep.subr.mxu0 0.0
  %5951 = vmatpush1.msra.mxu0 0.0
  %5952 = vmatprep.subr.mxu0 0.0
  %5953 = vmatpush1.msra.mxu0 0.0
  %5954 = vmatprep.subr.mxu0 0.0
  %5955 = vmatpush1.msra.mxu0 0.0
  %5956 = vmatprep.subr.mxu0 0.0
  %5957 = vmatpush1.msra.mxu0 0.0
  %5958 = vmatprep.subr.mxu0 0.0
  %5959 = vmatpush1.msra.mxu0 0.0
  %5960 = vmatprep.subr.mxu0 0.0
  %5961 = vmatpush1.msra.mxu0 0.0
  %5962 = vmatprep.subr.mxu0 0.0
  %5963 = vmatpush1.msra.mxu0 0.0
  %5964 = vmatprep.subr.mxu0 0.0
  %5965 = vmatpush1.msra.mxu0 0.0
  %5966 = vmatprep.subr.mxu0 0.0
  %5967 = vmatpush1.msra.mxu0 0.0
  %5968 = vmatprep.subr.mxu0 0.0
  %5969 = vmatpush1.msra.mxu0 0.0
  %5970 = vmatprep.subr.mxu0 0.0
  %5971 = vmatpush1.msra.mxu0 0.0
  %5972 = vmatprep.subr.mxu0 0.0
  %5973 = vmatpush1.msra.mxu0 0.0
  %5974 = vmatprep.subr.mxu0 0.0
  %5975 = vmatpush1.msra.mxu0 0.0
  %5976 = vmatprep.subr.mxu0 0.0
  %5977 = vmatpush1.msra.mxu0 0.0
  %5978 = vmatprep.subr.mxu0 0.0
  %5979 = vmatpush1.msra.mxu0 0.0
  %5980 = vmatprep.subr.mxu0 0.0
  %5981 = vmatpush1.msra.mxu0 0.0
  %5982 = vmatprep.subr.mxu0 0.0
  %5983 = vmatpush1.msra.mxu0 0.0
  %5984 = vmatprep.subr.mxu0 0.0
  %5985 = vmatpush1.msra.mxu0 0.0
  %5986 = vmatprep.subr.mxu0 0.0
  %5987 = vmatpush1.msra.mxu0 0.0
  %5988 = vmatprep.subr.mxu0 0.0
  %5989 = vmatpush1.msra.mxu0 0.0
  %5990 = vmatprep.subr.mxu0 0.0
  %5991 = vmatpush1.msra.mxu0 0.0
  %5992 = vmatprep.subr.mxu0 0.0
  %5993 = vmatpush1.msra.mxu0 0.0
  %5994 = vmatprep.subr.mxu0 0.0
  %5995 = vmatpush1.msra.mxu0 0.0
  %5996 = vmatprep.subr.mxu0 0.0
  %5997 = vmatpush1.msra.mxu0 0.0
  %5998 = vmatprep.subr.mxu0 0.0
  %5999 = vmatpush1.msra.mxu0 0.0
  %6000 = vmatprep.subr.mxu0 0.0
  %6001 = vmatpush1.msra.mxu0 0.0
  %6002 = vmatprep.subr.mxu0 0.0
  %6003 = vmatpush1.msra.mxu0 0.0
  %6004 = vmatprep.subr.mxu0 0.0
  %6005 = vmatpush1.msra.mxu0 0.0
  %6006 = vmatprep.mubr.f32.mxu0 0.0
  %6007 = vmatmul.mubr.f32.gmra.mrb[0].mxu0 %v5931
  %v6008 = vpop.f32.mrb[0].mxu0
  %v6009 = vadd.f32 %v5909, %v6008
  %v6010 = vpop.f32.mrb[0].mxu0
  %6011 = vmatprep.mubr.f32.mxu0 0.0
  %6012 = vmatmul.mubr.f32.gmra.mrb[0].mxu0 %v5934
  %v6013 = vpop.f32.mrb[0].mxu0
  %v6014 = vadd.f32 %v5914, %v6013
  %v6015 = vpop.f32.mrb[0].mxu0
  %6016 = vmatprep.mubr.f32.mxu0 0.0
  %6017 = vmatmul.mubr.f32.gmra.mrb[0].mxu0 %v5937
  %v6018 = vpop.f32.mrb[0].mxu0
  %v6019 = vadd.f32 %v5919, %v6018
  %v6020 = vpop.f32.mrb[0].mxu0
  %6021 = vmatprep.mubr.f32.mxu0 0.0
  %6022 = vmatmul.mubr.f32.gmra.mrb[0].mxu0 %v5940
  %v6023 = vpop.f32.mrb[0].mxu0
  %v6024 = vadd.f32 %v5924, %v6023
  %v6025 = vpop.f32.mrb[0].mxu0
  %6026 = vdwg.mxu0
  %6028 = vrot.lane.b32.xlu0 %v5638, 112
  %v6029 = vpop.permute.xlu0 %6028
  %6031 = vmatprep.subr.mxu0 0.0
  %6032 = vmatpush1.msra.mxu0 %v6029
  %6033 = vmatprep.subr.mxu0 0.0
  %6034 = vmatpush1.msra.mxu0 0.0
  %6035 = vmatprep.subr.mxu0 0.0
  %6036 = vmatpush1.msra.mxu0 0.0
  %6037 = vmatprep.subr.mxu0 0.0
  %6038 = vmatpush1.msra.mxu0 0.0
  %6039 = vmatprep.subr.mxu0 0.0
  %6040 = vmatpush1.msra.mxu0 0.0
  %6041 = vmatprep.subr.mxu0 0.0
  %6042 = vmatpush1.msra.mxu0 0.0
  %6043 = vmatprep.subr.mxu0 0.0
  %6044 = vmatpush1.msra.mxu0 0.0
  %6045 = vmatprep.subr.mxu0 0.0
  %6046 = vmatpush1.msra.mxu0 0.0
  %6047 = vmatprep.subr.mxu0 0.0
  %6048 = vmatpush1.msra.mxu0 0.0
  %6049 = vmatprep.subr.mxu0 0.0
  %6050 = vmatpush1.msra.mxu0 0.0
  %6051 = vmatprep.subr.mxu0 0.0
  %6052 = vmatpush1.msra.mxu0 0.0
  %6053 = vmatprep.subr.mxu0 0.0
  %6054 = vmatpush1.msra.mxu0 0.0
  %6055 = vmatprep.subr.mxu0 0.0
  %6056 = vmatpush1.msra.mxu0 0.0
  %6057 = vmatprep.subr.mxu0 0.0
  %6058 = vmatpush1.msra.mxu0 0.0
  %6059 = vmatprep.subr.mxu0 0.0
  %6060 = vmatpush1.msra.mxu0 0.0
  %6061 = vmatprep.subr.mxu0 0.0
  %6062 = vmatpush1.msra.mxu0 0.0
  %6063 = vmatprep.subr.mxu0 0.0
  %6064 = vmatpush1.msra.mxu0 0.0
  %6065 = vmatprep.subr.mxu0 0.0
  %6066 = vmatpush1.msra.mxu0 0.0
  %6067 = vmatprep.subr.mxu0 0.0
  %6068 = vmatpush1.msra.mxu0 0.0
  %6069 = vmatprep.subr.mxu0 0.0
  %6070 = vmatpush1.msra.mxu0 0.0
  %6071 = vmatprep.subr.mxu0 0.0
  %6072 = vmatpush1.msra.mxu0 0.0
  %6073 = vmatprep.subr.mxu0 0.0
  %6074 = vmatpush1.msra.mxu0 0.0
  %6075 = vmatprep.subr.mxu0 0.0
  %6076 = vmatpush1.msra.mxu0 0.0
  %6077 = vmatprep.subr.mxu0 0.0
  %6078 = vmatpush1.msra.mxu0 0.0
  %6079 = vmatprep.subr.mxu0 0.0
  %6080 = vmatpush1.msra.mxu0 0.0
  %6081 = vmatprep.subr.mxu0 0.0
  %6082 = vmatpush1.msra.mxu0 0.0
  %6083 = vmatprep.subr.mxu0 0.0
  %6084 = vmatpush1.msra.mxu0 0.0
  %6085 = vmatprep.subr.mxu0 0.0
  %6086 = vmatpush1.msra.mxu0 0.0
  %6087 = vmatprep.subr.mxu0 0.0
  %6088 = vmatpush1.msra.mxu0 0.0
  %6089 = vmatprep.subr.mxu0 0.0
  %6090 = vmatpush1.msra.mxu0 0.0
  %6091 = vmatprep.subr.mxu0 0.0
  %6092 = vmatpush1.msra.mxu0 0.0
  %6093 = vmatprep.subr.mxu0 0.0
  %6094 = vmatpush1.msra.mxu0 0.0
  %6095 = vmatprep.mubr.f32.mxu0 0.0
  %6096 = vmatmul.mubr.f32.gmra.mrb[0].mxu0 %v5931
  %v6097 = vpop.f32.mrb[0].mxu0
  %v6098 = vadd.f32 %v5909, %v6097
  %v6099 = vpop.f32.mrb[0].mxu0
  %6100 = vmatprep.mubr.f32.mxu0 0.0
  %6101 = vmatmul.mubr.f32.gmra.mrb[0].mxu0 %v5934
  %v6102 = vpop.f32.mrb[0].mxu0
  %v6103 = vadd.f32 %v5914, %v6102
  %v6104 = vpop.f32.mrb[0].mxu0
  %6105 = vmatprep.mubr.f32.mxu0 0.0
  %6106 = vmatmul.mubr.f32.gmra.mrb[0].mxu0 %v5937
  %v6107 = vpop.f32.mrb[0].mxu0
  %v6108 = vadd.f32 %v5919, %v6107
  %v6109 = vpop.f32.mrb[0].mxu0
  %6110 = vmatprep.mubr.f32.mxu0 0.0
  %6111 = vmatmul.mubr.f32.gmra.mrb[0].mxu0 %v5940
  %v6112 = vpop.f32.mrb[0].mxu0
  %v6113 = vadd.f32 %v5924, %v6112
  %v6114 = vpop.f32.mrb[0].mxu0
  %6115 = vdwg.mxu0
  %v6116 = vxor.u32 %v6009, 2147483648
  %v6117 = vxor.u32 %v6014, 2147483648
  %v6118 = vxor.u32 %v6019, 2147483648
  %v6119 = vxor.u32 %v6024, 2147483648
  %v6120 = vxor.u32 %v6098, 2147483648
  %v6121 = vxor.u32 %v6103, 2147483648
  %v6122 = vxor.u32 %v6108, 2147483648
  %v6123 = vxor.u32 %v6113, 2147483648
  %v6124 = vmul.f32 %v6116, 1.442695
  %v6125 = vpow.pop %v6124
  %v6126 = vmul.f32 %v6117, 1.442695
  %v6127 = vpow.pop %v6126
  %v6128 = vmul.f32 %v6118, 1.442695
  %v6129 = vpow.pop %v6128
  %v6130 = vmul.f32 %v6119, 1.442695
  %v6131 = vpow.pop %v6130
  %v6132 = vmul.f32 %v6120, 1.442695
  %v6133 = vpow.pop %v6132
  %v6134 = vmul.f32 %v6121, 1.442695
  %v6135 = vpow.pop %v6134
  %v6136 = vmul.f32 %v6122, 1.442695
  %v6137 = vpow.pop %v6136
  %v6138 = vmul.f32 %v6123, 1.442695
  %v6139 = vpow.pop %v6138
  %v6140 = vadd.f32 %v6125, 1.0
  %v6141 = vadd.f32 %v6127, 1.0
  %v6142 = vadd.f32 %v6129, 1.0
  %v6143 = vadd.f32 %v6131, 1.0
  %v6144 = vadd.f32 %v6133, 1.0
  %v6145 = vadd.f32 %v6135, 1.0
  %v6146 = vadd.f32 %v6137, 1.0
  %v6147 = vadd.f32 %v6139, 1.0
  %v6148 = vrcp.pop %v6140
  %v6149 = vmul.f32 1.0, %v6148
  %v6150 = vrcp.pop %v6141
  %v6151 = vmul.f32 1.0, %v6150
  %v6152 = vrcp.pop %v6142
  %v6153 = vmul.f32 1.0, %v6152
  %v6154 = vrcp.pop %v6143
  %v6155 = vmul.f32 1.0, %v6154
  %v6156 = vrcp.pop %v6144
  %v6157 = vmul.f32 1.0, %v6156
  %v6158 = vrcp.pop %v6145
  %v6159 = vmul.f32 1.0, %v6158
  %v6160 = vrcp.pop %v6146
  %v6161 = vmul.f32 1.0, %v6160
  %v6162 = vrcp.pop %v6147
  %v6163 = vmul.f32 1.0, %v6162
  %v6164 = vmul.f32 %v3440, %v3440
  %v6165 = vlaneseq
  %v6166 = vshrl.u32 %v6165, 7
  %v6167 = vsub.s32 0, %v6166
  %v6168 = vrot.slane %v6164, %v6167
  %6170 = vbcast.lane.b32.xlu0 %v6168, 256
  %v6171 = vpop.permute.xlu0 %6170
  %s6173 = sor.u32 256, 8
  %6174 = vbcast.lane.b32.xlu0 %v6168, %s6173
  %v6175 = vpop.permute.xlu0 %6174
  %s6177 = sor.u32 256, 16
  %6178 = vbcast.lane.b32.xlu0 %v6168, %s6177
  %v6179 = vpop.permute.xlu0 %6178
  %s6181 = sor.u32 256, 24
  %6182 = vbcast.lane.b32.xlu0 %v6168, %s6181
  %v6183 = vpop.permute.xlu0 %6182
  %v6184 = vlaneseq
  %v6185 = vshrl.u32 %v6184, 7
  %v6186 = vsub.s32 1, %v6185
  %v6187 = vrot.slane %v6164, %v6186
  %6189 = vbcast.lane.b32.xlu0 %v6187, 256
  %v6190 = vpop.permute.xlu0 %6189
  %s6192 = sor.u32 256, 8
  %6193 = vbcast.lane.b32.xlu0 %v6187, %s6192
  %v6194 = vpop.permute.xlu0 %6193
  %s6196 = sor.u32 256, 16
  %6197 = vbcast.lane.b32.xlu0 %v6187, %s6196
  %v6198 = vpop.permute.xlu0 %6197
  %s6200 = sor.u32 256, 24
  %6201 = vbcast.lane.b32.xlu0 %v6187, %s6200
  %v6202 = vpop.permute.xlu0 %6201
  %v6203 = vmul.f32 %v5887, %v6171
  %v6204 = vmul.f32 %v5889, %v6175
  %v6205 = vmul.f32 %v5891, %v6179
  %v6206 = vmul.f32 %v5893, %v6183
  %v6207 = vmul.f32 %v5895, %v6190
  %v6208 = vmul.f32 %v5897, %v6194
  %v6209 = vmul.f32 %v5899, %v6198
  %v6210 = vmul.f32 %v5901, %v6202
  %v6211 = vmul.f32 %v32, %v32
  %v6212 = vmul.f32 %v33, %v33
  %v6213 = vmul.f32 %v34, %v34
  %v6214 = vmul.f32 %v35, %v35
  %v6215 = vmul.f32 %v36, %v36
  %v6216 = vmul.f32 %v37, %v37
  %v6217 = vmul.f32 %v38, %v38
  %v6218 = vmul.f32 %v39, %v39
  %v6219 = vmul.f32 %v40, %v40
  %v6220 = vmul.f32 %v41, %v41
  %v6221 = vmul.f32 %v42, %v42
  %v6222 = vmul.f32 %v43, %v43
  %v6223 = vmul.f32 %v44, %v44
  %v6224 = vmul.f32 %v45, %v45
  %v6225 = vmul.f32 %v46, %v46
  %v6226 = vmul.f32 %v47, %v47
  %v6227 = vmul.f32 %v48, %v48
  %v6228 = vmul.f32 %v49, %v49
  %v6229 = vmul.f32 %v50, %v50
  %v6230 = vmul.f32 %v51, %v51
  %v6231 = vmul.f32 %v52, %v52
  %v6232 = vmul.f32 %v53, %v53
  %v6233 = vmul.f32 %v54, %v54
  %v6234 = vmul.f32 %v55, %v55
  %v6235 = vmul.f32 %v56, %v56
  %v6236 = vmul.f32 %v57, %v57
  %v6237 = vmul.f32 %v58, %v58
  %v6238 = vmul.f32 %v59, %v59
  %v6239 = vmul.f32 %v60, %v60
  %v6240 = vmul.f32 %v61, %v61
  %v6241 = vmul.f32 %v62, %v62
  %v6242 = vmul.f32 %v63, %v63
  %v6243 = vmul.f32 %v64, %v64
  %v6244 = vmul.f32 %v65, %v65
  %v6245 = vmul.f32 %v66, %v66
  %v6246 = vmul.f32 %v67, %v67
  %v6247 = vmul.f32 %v68, %v68
  %v6248 = vmul.f32 %v69, %v69
  %v6249 = vmul.f32 %v70, %v70
  %v6250 = vmul.f32 %v71, %v71
  %v6251 = vmul.f32 %v72, %v72
  %v6252 = vmul.f32 %v73, %v73
  %v6253 = vmul.f32 %v74, %v74
  %v6254 = vmul.f32 %v75, %v75
  %v6255 = vmul.f32 %v76, %v76
  %v6256 = vmul.f32 %v77, %v77
  %v6257 = vmul.f32 %v78, %v78
  %v6258 = vmul.f32 %v79, %v79
  %v6259 = vmul.f32 %v80, %v80
  %v6260 = vmul.f32 %v81, %v81
  %v6261 = vmul.f32 %v82, %v82
  %v6262 = vmul.f32 %v83, %v83
  %v6263 = vmul.f32 %v84, %v84
  %v6264 = vmul.f32 %v85, %v85
  %v6265 = vmul.f32 %v86, %v86
  %v6266 = vmul.f32 %v87, %v87
  %v6267 = vmul.f32 %v88, %v88
  %v6268 = vmul.f32 %v89, %v89
  %v6269 = vmul.f32 %v90, %v90
  %v6270 = vmul.f32 %v91, %v91
  %v6271 = vmul.f32 %v92, %v92
  %v6272 = vmul.f32 %v93, %v93
  %v6273 = vmul.f32 %v94, %v94
  %v6274 = vmul.f32 %v95, %v95
  %v6275 = vmul.f32 %v96, %v96
  %v6276 = vmul.f32 %v97, %v97
  %v6277 = vmul.f32 %v98, %v98
  %v6278 = vmul.f32 %v99, %v99
  %v6279 = vmul.f32 %v100, %v100
  %v6280 = vmul.f32 %v101, %v101
  %v6281 = vmul.f32 %v102, %v102
  %v6282 = vmul.f32 %v103, %v103
  %v6283 = vmul.f32 %v104, %v104
  %v6284 = vmul.f32 %v105, %v105
  %v6285 = vmul.f32 %v106, %v106
  %v6286 = vmul.f32 %v107, %v107
  %v6287 = vmul.f32 %v108, %v108
  %v6288 = vmul.f32 %v109, %v109
  %v6289 = vmul.f32 %v110, %v110
  %v6290 = vmul.f32 %v111, %v111
  %v6291 = vmul.f32 %v112, %v112
  %v6292 = vmul.f32 %v113, %v113
  %v6293 = vmul.f32 %v114, %v114
  %v6294 = vmul.f32 %v115, %v115
  %v6295 = vmul.f32 %v116, %v116
  %v6296 = vmul.f32 %v117, %v117
  %v6297 = vmul.f32 %v118, %v118
  %v6298 = vmul.f32 %v119, %v119
  %v6299 = vmul.f32 %v120, %v120
  %v6300 = vmul.f32 %v121, %v121
  %v6301 = vmul.f32 %v122, %v122
  %v6302 = vmul.f32 %v123, %v123
  %v6303 = vmul.f32 %v124, %v124
  %v6304 = vmul.f32 %v125, %v125
  %v6305 = vmul.f32 %v126, %v126
  %v6306 = vmul.f32 %v127, %v127
  %v6307 = vmul.f32 %v128, %v128
  %v6308 = vmul.f32 %v129, %v129
  %v6309 = vmul.f32 %v130, %v130
  %v6310 = vmul.f32 %v131, %v131
  %v6311 = vmul.f32 %v132, %v132
  %v6312 = vmul.f32 %v133, %v133
  %v6313 = vmul.f32 %v134, %v134
  %v6314 = vmul.f32 %v135, %v135
  %v6315 = vmul.f32 %v136, %v136
  %v6316 = vmul.f32 %v137, %v137
  %v6317 = vmul.f32 %v138, %v138
  %v6318 = vmul.f32 %v139, %v139
  %v6319 = vmul.f32 %v140, %v140
  %v6320 = vmul.f32 %v141, %v141
  %v6321 = vmul.f32 %v142, %v142
  %v6322 = vmul.f32 %v143, %v143
  %v6323 = vmul.f32 %v144, %v144
  %v6324 = vmul.f32 %v145, %v145
  %v6325 = vmul.f32 %v146, %v146
  %v6326 = vmul.f32 %v147, %v147
  %v6327 = vmul.f32 %v148, %v148
  %v6328 = vmul.f32 %v149, %v149
  %v6329 = vmul.f32 %v150, %v150
  %v6330 = vmul.f32 %v151, %v151
  %v6331 = vmul.f32 %v152, %v152
  %v6332 = vmul.f32 %v153, %v153
  %v6333 = vmul.f32 %v154, %v154
  %v6334 = vmul.f32 %v155, %v155
  %v6335 = vmul.f32 %v156, %v156
  %v6336 = vmul.f32 %v157, %v157
  %v6337 = vmul.f32 %v158, %v158
  %v6338 = vmul.f32 %v159, %v159
  %v6339 = vlaneseq
  %v6340 = vshrl.u32 %v6339, 7
  %v6341 = vsub.s32 0, %v6340
  %v6342 = vrot.slane %v6203, %v6341
  %6344 = vbcast.lane.b32.xlu0 %v6342, 256
  %v6345 = vpop.permute.xlu0 %6344
  %s6347 = sor.u32 256, 8
  %6348 = vbcast.lane.b32.xlu0 %v6342, %s6347
  %v6349 = vpop.permute.xlu0 %6348
  %v6350 = vlaneseq
  %v6351 = vshrl.u32 %v6350, 7
  %v6352 = vsub.s32 1, %v6351
  %v6353 = vrot.slane %v6203, %v6352
  %6355 = vbcast.lane.b32.xlu0 %v6353, 256
  %v6356 = vpop.permute.xlu0 %6355
  %s6358 = sor.u32 256, 8
  %6359 = vbcast.lane.b32.xlu0 %v6353, %s6358
  %v6360 = vpop.permute.xlu0 %6359
  %v6361 = vlaneseq
  %v6362 = vshrl.u32 %v6361, 7
  %v6363 = vsub.s32 2, %v6362
  %v6364 = vrot.slane %v6203, %v6363
  %6366 = vbcast.lane.b32.xlu0 %v6364, 256
  %v6367 = vpop.permute.xlu0 %6366
  %s6369 = sor.u32 256, 8
  %6370 = vbcast.lane.b32.xlu0 %v6364, %s6369
  %v6371 = vpop.permute.xlu0 %6370
  %v6372 = vlaneseq
  %v6373 = vshrl.u32 %v6372, 7
  %v6374 = vsub.s32 3, %v6373
  %v6375 = vrot.slane %v6203, %v6374
  %6377 = vbcast.lane.b32.xlu0 %v6375, 256
  %v6378 = vpop.permute.xlu0 %6377
  %s6380 = sor.u32 256, 8
  %6381 = vbcast.lane.b32.xlu0 %v6375, %s6380
  %v6382 = vpop.permute.xlu0 %6381
  %v6383 = vlaneseq
  %v6384 = vshrl.u32 %v6383, 7
  %v6385 = vsub.s32 4, %v6384
  %v6386 = vrot.slane %v6203, %v6385
  %6388 = vbcast.lane.b32.xlu0 %v6386, 256
  %v6389 = vpop.permute.xlu0 %6388
  %s6391 = sor.u32 256, 8
  %6392 = vbcast.lane.b32.xlu0 %v6386, %s6391
  %v6393 = vpop.permute.xlu0 %6392
  %v6394 = vlaneseq
  %v6395 = vshrl.u32 %v6394, 7
  %v6396 = vsub.s32 5, %v6395
  %v6397 = vrot.slane %v6203, %v6396
  %6399 = vbcast.lane.b32.xlu0 %v6397, 256
  %v6400 = vpop.permute.xlu0 %6399
  %s6402 = sor.u32 256, 8
  %6403 = vbcast.lane.b32.xlu0 %v6397, %s6402
  %v6404 = vpop.permute.xlu0 %6403
  %v6405 = vlaneseq
  %v6406 = vshrl.u32 %v6405, 7
  %v6407 = vsub.s32 6, %v6406
  %v6408 = vrot.slane %v6203, %v6407
  %6410 = vbcast.lane.b32.xlu0 %v6408, 256
  %v6411 = vpop.permute.xlu0 %6410
  %s6413 = sor.u32 256, 8
  %6414 = vbcast.lane.b32.xlu0 %v6408, %s6413
  %v6415 = vpop.permute.xlu0 %6414
  %v6416 = vlaneseq
  %v6417 = vshrl.u32 %v6416, 7
  %v6418 = vsub.s32 7, %v6417
  %v6419 = vrot.slane %v6203, %v6418
  %6421 = vbcast.lane.b32.xlu0 %v6419, 256
  %v6422 = vpop.permute.xlu0 %6421
  %s6424 = sor.u32 256, 8
  %6425 = vbcast.lane.b32.xlu0 %v6419, %s6424
  %v6426 = vpop.permute.xlu0 %6425
  %v6427 = vlaneseq
  %v6428 = vshrl.u32 %v6427, 7
  %v6429 = vsub.s32 0, %v6428
  %v6430 = vrot.slane %v6204, %v6429
  %6432 = vbcast.lane.b32.xlu0 %v6430, 256
  %v6433 = vpop.permute.xlu0 %6432
  %s6435 = sor.u32 256, 8
  %6436 = vbcast.lane.b32.xlu0 %v6430, %s6435
  %v6437 = vpop.permute.xlu0 %6436
  %v6438 = vlaneseq
  %v6439 = vshrl.u32 %v6438, 7
  %v6440 = vsub.s32 1, %v6439
  %v6441 = vrot.slane %v6204, %v6440
  %6443 = vbcast.lane.b32.xlu0 %v6441, 256
  %v6444 = vpop.permute.xlu0 %6443
  %s6446 = sor.u32 256, 8
  %6447 = vbcast.lane.b32.xlu0 %v6441, %s6446
  %v6448 = vpop.permute.xlu0 %6447
  %v6449 = vlaneseq
  %v6450 = vshrl.u32 %v6449, 7
  %v6451 = vsub.s32 2, %v6450
  %v6452 = vrot.slane %v6204, %v6451
  %6454 = vbcast.lane.b32.xlu0 %v6452, 256
  %v6455 = vpop.permute.xlu0 %6454
  %s6457 = sor.u32 256, 8
  %6458 = vbcast.lane.b32.xlu0 %v6452, %s6457
  %v6459 = vpop.permute.xlu0 %6458
  %v6460 = vlaneseq
  %v6461 = vshrl.u32 %v6460, 7
  %v6462 = vsub.s32 3, %v6461
  %v6463 = vrot.slane %v6204, %v6462
  %6465 = vbcast.lane.b32.xlu0 %v6463, 256
  %v6466 = vpop.permute.xlu0 %6465
  %s6468 = sor.u32 256, 8
  %6469 = vbcast.lane.b32.xlu0 %v6463, %s6468
  %v6470 = vpop.permute.xlu0 %6469
  %v6471 = vlaneseq
  %v6472 = vshrl.u32 %v6471, 7
  %v6473 = vsub.s32 4, %v6472
  %v6474 = vrot.slane %v6204, %v6473
  %6476 = vbcast.lane.b32.xlu0 %v6474, 256
  %v6477 = vpop.permute.xlu0 %6476
  %s6479 = sor.u32 256, 8
  %6480 = vbcast.lane.b32.xlu0 %v6474, %s6479
  %v6481 = vpop.permute.xlu0 %6480
  %v6482 = vlaneseq
  %v6483 = vshrl.u32 %v6482, 7
  %v6484 = vsub.s32 5, %v6483
  %v6485 = vrot.slane %v6204, %v6484
  %6487 = vbcast.lane.b32.xlu0 %v6485, 256
  %v6488 = vpop.permute.xlu0 %6487
  %s6490 = sor.u32 256, 8
  %6491 = vbcast.lane.b32.xlu0 %v6485, %s6490
  %v6492 = vpop.permute.xlu0 %6491
  %v6493 = vlaneseq
  %v6494 = vshrl.u32 %v6493, 7
  %v6495 = vsub.s32 6, %v6494
  %v6496 = vrot.slane %v6204, %v6495
  %6498 = vbcast.lane.b32.xlu0 %v6496, 256
  %v6499 = vpop.permute.xlu0 %6498
  %s6501 = sor.u32 256, 8
  %6502 = vbcast.lane.b32.xlu0 %v6496, %s6501
  %v6503 = vpop.permute.xlu0 %6502
  %v6504 = vlaneseq
  %v6505 = vshrl.u32 %v6504, 7
  %v6506 = vsub.s32 7, %v6505
  %v6507 = vrot.slane %v6204, %v6506
  %6509 = vbcast.lane.b32.xlu0 %v6507, 256
  %v6510 = vpop.permute.xlu0 %6509
  %s6512 = sor.u32 256, 8
  %6513 = vbcast.lane.b32.xlu0 %v6507, %s6512
  %v6514 = vpop.permute.xlu0 %6513
  %v6515 = vlaneseq
  %v6516 = vshrl.u32 %v6515, 7
  %v6517 = vsub.s32 0, %v6516
  %v6518 = vrot.slane %v6205, %v6517
  %6520 = vbcast.lane.b32.xlu0 %v6518, 256
  %v6521 = vpop.permute.xlu0 %6520
  %s6523 = sor.u32 256, 8
  %6524 = vbcast.lane.b32.xlu0 %v6518, %s6523
  %v6525 = vpop.permute.xlu0 %6524
  %v6526 = vlaneseq
  %v6527 = vshrl.u32 %v6526, 7
  %v6528 = vsub.s32 1, %v6527
  %v6529 = vrot.slane %v6205, %v6528
  %6531 = vbcast.lane.b32.xlu0 %v6529, 256
  %v6532 = vpop.permute.xlu0 %6531
  %s6534 = sor.u32 256, 8
  %6535 = vbcast.lane.b32.xlu0 %v6529, %s6534
  %v6536 = vpop.permute.xlu0 %6535
  %v6537 = vlaneseq
  %v6538 = vshrl.u32 %v6537, 7
  %v6539 = vsub.s32 2, %v6538
  %v6540 = vrot.slane %v6205, %v6539
  %6542 = vbcast.lane.b32.xlu0 %v6540, 256
  %v6543 = vpop.permute.xlu0 %6542
  %s6545 = sor.u32 256, 8
  %6546 = vbcast.lane.b32.xlu0 %v6540, %s6545
  %v6547 = vpop.permute.xlu0 %6546
  %v6548 = vlaneseq
  %v6549 = vshrl.u32 %v6548, 7
  %v6550 = vsub.s32 3, %v6549
  %v6551 = vrot.slane %v6205, %v6550
  %6553 = vbcast.lane.b32.xlu0 %v6551, 256
  %v6554 = vpop.permute.xlu0 %6553
  %s6556 = sor.u32 256, 8
  %6557 = vbcast.lane.b32.xlu0 %v6551, %s6556
  %v6558 = vpop.permute.xlu0 %6557
  %v6559 = vlaneseq
  %v6560 = vshrl.u32 %v6559, 7
  %v6561 = vsub.s32 4, %v6560
  %v6562 = vrot.slane %v6205, %v6561
  %6564 = vbcast.lane.b32.xlu0 %v6562, 256
  %v6565 = vpop.permute.xlu0 %6564
  %s6567 = sor.u32 256, 8
  %6568 = vbcast.lane.b32.xlu0 %v6562, %s6567
  %v6569 = vpop.permute.xlu0 %6568
  %v6570 = vlaneseq
  %v6571 = vshrl.u32 %v6570, 7
  %v6572 = vsub.s32 5, %v6571
  %v6573 = vrot.slane %v6205, %v6572
  %6575 = vbcast.lane.b32.xlu0 %v6573, 256
  %v6576 = vpop.permute.xlu0 %6575
  %s6578 = sor.u32 256, 8
  %6579 = vbcast.lane.b32.xlu0 %v6573, %s6578
  %v6580 = vpop.permute.xlu0 %6579
  %v6581 = vlaneseq
  %v6582 = vshrl.u32 %v6581, 7
  %v6583 = vsub.s32 6, %v6582
  %v6584 = vrot.slane %v6205, %v6583
  %6586 = vbcast.lane.b32.xlu0 %v6584, 256
  %v6587 = vpop.permute.xlu0 %6586
  %s6589 = sor.u32 256, 8
  %6590 = vbcast.lane.b32.xlu0 %v6584, %s6589
  %v6591 = vpop.permute.xlu0 %6590
  %v6592 = vlaneseq
  %v6593 = vshrl.u32 %v6592, 7
  %v6594 = vsub.s32 7, %v6593
  %v6595 = vrot.slane %v6205, %v6594
  %6597 = vbcast.lane.b32.xlu0 %v6595, 256
  %v6598 = vpop.permute.xlu0 %6597
  %s6600 = sor.u32 256, 8
  %6601 = vbcast.lane.b32.xlu0 %v6595, %s6600
  %v6602 = vpop.permute.xlu0 %6601
  %v6603 = vlaneseq
  %v6604 = vshrl.u32 %v6603, 7
  %v6605 = vsub.s32 0, %v6604
  %v6606 = vrot.slane %v6206, %v6605
  %6608 = vbcast.lane.b32.xlu0 %v6606, 256
  %v6609 = vpop.permute.xlu0 %6608
  %s6611 = sor.u32 256, 8
  %6612 = vbcast.lane.b32.xlu0 %v6606, %s6611
  %v6613 = vpop.permute.xlu0 %6612
  %v6614 = vlaneseq
  %v6615 = vshrl.u32 %v6614, 7
  %v6616 = vsub.s32 1, %v6615
  %v6617 = vrot.slane %v6206, %v6616
  %6619 = vbcast.lane.b32.xlu0 %v6617, 256
  %v6620 = vpop.permute.xlu0 %6619
  %s6622 = sor.u32 256, 8
  %6623 = vbcast.lane.b32.xlu0 %v6617, %s6622
  %v6624 = vpop.permute.xlu0 %6623
  %v6625 = vlaneseq
  %v6626 = vshrl.u32 %v6625, 7
  %v6627 = vsub.s32 2, %v6626
  %v6628 = vrot.slane %v6206, %v6627
  %6630 = vbcast.lane.b32.xlu0 %v6628, 256
  %v6631 = vpop.permute.xlu0 %6630
  %s6633 = sor.u32 256, 8
  %6634 = vbcast.lane.b32.xlu0 %v6628, %s6633
  %v6635 = vpop.permute.xlu0 %6634
  %v6636 = vlaneseq
  %v6637 = vshrl.u32 %v6636, 7
  %v6638 = vsub.s32 3, %v6637
  %v6639 = vrot.slane %v6206, %v6638
  %6641 = vbcast.lane.b32.xlu0 %v6639, 256
  %v6642 = vpop.permute.xlu0 %6641
  %s6644 = sor.u32 256, 8
  %6645 = vbcast.lane.b32.xlu0 %v6639, %s6644
  %v6646 = vpop.permute.xlu0 %6645
  %v6647 = vlaneseq
  %v6648 = vshrl.u32 %v6647, 7
  %v6649 = vsub.s32 4, %v6648
  %v6650 = vrot.slane %v6206, %v6649
  %6652 = vbcast.lane.b32.xlu0 %v6650, 256
  %v6653 = vpop.permute.xlu0 %6652
  %s6655 = sor.u32 256, 8
  %6656 = vbcast.lane.b32.xlu0 %v6650, %s6655
  %v6657 = vpop.permute.xlu0 %6656
  %v6658 = vlaneseq
  %v6659 = vshrl.u32 %v6658, 7
  %v6660 = vsub.s32 5, %v6659
  %v6661 = vrot.slane %v6206, %v6660
  %6663 = vbcast.lane.b32.xlu0 %v6661, 256
  %v6664 = vpop.permute.xlu0 %6663
  %s6666 = sor.u32 256, 8
  %6667 = vbcast.lane.b32.xlu0 %v6661, %s6666
  %v6668 = vpop.permute.xlu0 %6667
  %v6669 = vlaneseq
  %v6670 = vshrl.u32 %v6669, 7
  %v6671 = vsub.s32 6, %v6670
  %v6672 = vrot.slane %v6206, %v6671
  %6674 = vbcast.lane.b32.xlu0 %v6672, 256
  %v6675 = vpop.permute.xlu0 %6674
  %s6677 = sor.u32 256, 8
  %6678 = vbcast.lane.b32.xlu0 %v6672, %s6677
  %v6679 = vpop.permute.xlu0 %6678
  %v6680 = vlaneseq
  %v6681 = vshrl.u32 %v6680, 7
  %v6682 = vsub.s32 7, %v6681
  %v6683 = vrot.slane %v6206, %v6682
  %6685 = vbcast.lane.b32.xlu0 %v6683, 256
  %v6686 = vpop.permute.xlu0 %6685
  %s6688 = sor.u32 256, 8
  %6689 = vbcast.lane.b32.xlu0 %v6683, %s6688
  %v6690 = vpop.permute.xlu0 %6689
  %v6691 = vlaneseq
  %v6692 = vshrl.u32 %v6691, 7
  %v6693 = vsub.s32 0, %v6692
  %v6694 = vrot.slane %v6207, %v6693
  %6696 = vbcast.lane.b32.xlu0 %v6694, 256
  %v6697 = vpop.permute.xlu0 %6696
  %s6699 = sor.u32 256, 8
  %6700 = vbcast.lane.b32.xlu0 %v6694, %s6699
  %v6701 = vpop.permute.xlu0 %6700
  %v6702 = vlaneseq
  %v6703 = vshrl.u32 %v6702, 7
  %v6704 = vsub.s32 1, %v6703
  %v6705 = vrot.slane %v6207, %v6704
  %6707 = vbcast.lane.b32.xlu0 %v6705, 256
  %v6708 = vpop.permute.xlu0 %6707
  %s6710 = sor.u32 256, 8
  %6711 = vbcast.lane.b32.xlu0 %v6705, %s6710
  %v6712 = vpop.permute.xlu0 %6711
  %v6713 = vlaneseq
  %v6714 = vshrl.u32 %v6713, 7
  %v6715 = vsub.s32 2, %v6714
  %v6716 = vrot.slane %v6207, %v6715
  %6718 = vbcast.lane.b32.xlu0 %v6716, 256
  %v6719 = vpop.permute.xlu0 %6718
  %s6721 = sor.u32 256, 8
  %6722 = vbcast.lane.b32.xlu0 %v6716, %s6721
  %v6723 = vpop.permute.xlu0 %6722
  %v6724 = vlaneseq
  %v6725 = vshrl.u32 %v6724, 7
  %v6726 = vsub.s32 3, %v6725
  %v6727 = vrot.slane %v6207, %v6726
  %6729 = vbcast.lane.b32.xlu0 %v6727, 256
  %v6730 = vpop.permute.xlu0 %6729
  %s6732 = sor.u32 256, 8
  %6733 = vbcast.lane.b32.xlu0 %v6727, %s6732
  %v6734 = vpop.permute.xlu0 %6733
  %v6735 = vlaneseq
  %v6736 = vshrl.u32 %v6735, 7
  %v6737 = vsub.s32 4, %v6736
  %v6738 = vrot.slane %v6207, %v6737
  %6740 = vbcast.lane.b32.xlu0 %v6738, 256
  %v6741 = vpop.permute.xlu0 %6740
  %s6743 = sor.u32 256, 8
  %6744 = vbcast.lane.b32.xlu0 %v6738, %s6743
  %v6745 = vpop.permute.xlu0 %6744
  %v6746 = vlaneseq
  %v6747 = vshrl.u32 %v6746, 7
  %v6748 = vsub.s32 5, %v6747
  %v6749 = vrot.slane %v6207, %v6748
  %6751 = vbcast.lane.b32.xlu0 %v6749, 256
  %v6752 = vpop.permute.xlu0 %6751
  %s6754 = sor.u32 256, 8
  %6755 = vbcast.lane.b32.xlu0 %v6749, %s6754
  %v6756 = vpop.permute.xlu0 %6755
  %v6757 = vlaneseq
  %v6758 = vshrl.u32 %v6757, 7
  %v6759 = vsub.s32 6, %v6758
  %v6760 = vrot.slane %v6207, %v6759
  %6762 = vbcast.lane.b32.xlu0 %v6760, 256
  %v6763 = vpop.permute.xlu0 %6762
  %s6765 = sor.u32 256, 8
  %6766 = vbcast.lane.b32.xlu0 %v6760, %s6765
  %v6767 = vpop.permute.xlu0 %6766
  %v6768 = vlaneseq
  %v6769 = vshrl.u32 %v6768, 7
  %v6770 = vsub.s32 7, %v6769
  %v6771 = vrot.slane %v6207, %v6770
  %6773 = vbcast.lane.b32.xlu0 %v6771, 256
  %v6774 = vpop.permute.xlu0 %6773
  %s6776 = sor.u32 256, 8
  %6777 = vbcast.lane.b32.xlu0 %v6771, %s6776
  %v6778 = vpop.permute.xlu0 %6777
  %v6779 = vlaneseq
  %v6780 = vshrl.u32 %v6779, 7
  %v6781 = vsub.s32 0, %v6780
  %v6782 = vrot.slane %v6208, %v6781
  %6784 = vbcast.lane.b32.xlu0 %v6782, 256
  %v6785 = vpop.permute.xlu0 %6784
  %s6787 = sor.u32 256, 8
  %6788 = vbcast.lane.b32.xlu0 %v6782, %s6787
  %v6789 = vpop.permute.xlu0 %6788
  %v6790 = vlaneseq
  %v6791 = vshrl.u32 %v6790, 7
  %v6792 = vsub.s32 1, %v6791
  %v6793 = vrot.slane %v6208, %v6792
  %6795 = vbcast.lane.b32.xlu0 %v6793, 256
  %v6796 = vpop.permute.xlu0 %6795
  %s6798 = sor.u32 256, 8
  %6799 = vbcast.lane.b32.xlu0 %v6793, %s6798
  %v6800 = vpop.permute.xlu0 %6799
  %v6801 = vlaneseq
  %v6802 = vshrl.u32 %v6801, 7
  %v6803 = vsub.s32 2, %v6802
  %v6804 = vrot.slane %v6208, %v6803
  %6806 = vbcast.lane.b32.xlu0 %v6804, 256
  %v6807 = vpop.permute.xlu0 %6806
  %s6809 = sor.u32 256, 8
  %6810 = vbcast.lane.b32.xlu0 %v6804, %s6809
  %v6811 = vpop.permute.xlu0 %6810
  %v6812 = vlaneseq
  %v6813 = vshrl.u32 %v6812, 7
  %v6814 = vsub.s32 3, %v6813
  %v6815 = vrot.slane %v6208, %v6814
  %6817 = vbcast.lane.b32.xlu0 %v6815, 256
  %v6818 = vpop.permute.xlu0 %6817
  %s6820 = sor.u32 256, 8
  %6821 = vbcast.lane.b32.xlu0 %v6815, %s6820
  %v6822 = vpop.permute.xlu0 %6821
  %v6823 = vlaneseq
  %v6824 = vshrl.u32 %v6823, 7
  %v6825 = vsub.s32 4, %v6824
  %v6826 = vrot.slane %v6208, %v6825
  %6828 = vbcast.lane.b32.xlu0 %v6826, 256
  %v6829 = vpop.permute.xlu0 %6828
  %s6831 = sor.u32 256, 8
  %6832 = vbcast.lane.b32.xlu0 %v6826, %s6831
  %v6833 = vpop.permute.xlu0 %6832
  %v6834 = vlaneseq
  %v6835 = vshrl.u32 %v6834, 7
  %v6836 = vsub.s32 5, %v6835
  %v6837 = vrot.slane %v6208, %v6836
  %6839 = vbcast.lane.b32.xlu0 %v6837, 256
  %v6840 = vpop.permute.xlu0 %6839
  %s6842 = sor.u32 256, 8
  %6843 = vbcast.lane.b32.xlu0 %v6837, %s6842
  %v6844 = vpop.permute.xlu0 %6843
  %v6845 = vlaneseq
  %v6846 = vshrl.u32 %v6845, 7
  %v6847 = vsub.s32 6, %v6846
  %v6848 = vrot.slane %v6208, %v6847
  %6850 = vbcast.lane.b32.xlu0 %v6848, 256
  %v6851 = vpop.permute.xlu0 %6850
  %s6853 = sor.u32 256, 8
  %6854 = vbcast.lane.b32.xlu0 %v6848, %s6853
  %v6855 = vpop.permute.xlu0 %6854
  %v6856 = vlaneseq
  %v6857 = vshrl.u32 %v6856, 7
  %v6858 = vsub.s32 7, %v6857
  %v6859 = vrot.slane %v6208, %v6858
  %6861 = vbcast.lane.b32.xlu0 %v6859, 256
  %v6862 = vpop.permute.xlu0 %6861
  %s6864 = sor.u32 256, 8
  %6865 = vbcast.lane.b32.xlu0 %v6859, %s6864
  %v6866 = vpop.permute.xlu0 %6865
  %v6867 = vlaneseq
  %v6868 = vshrl.u32 %v6867, 7
  %v6869 = vsub.s32 0, %v6868
  %v6870 = vrot.slane %v6209, %v6869
  %6872 = vbcast.lane.b32.xlu0 %v6870, 256
  %v6873 = vpop.permute.xlu0 %6872
  %s6875 = sor.u32 256, 8
  %6876 = vbcast.lane.b32.xlu0 %v6870, %s6875
  %v6877 = vpop.permute.xlu0 %6876
  %v6878 = vlaneseq
  %v6879 = vshrl.u32 %v6878, 7
  %v6880 = vsub.s32 1, %v6879
  %v6881 = vrot.slane %v6209, %v6880
  %6883 = vbcast.lane.b32.xlu0 %v6881, 256
  %v6884 = vpop.permute.xlu0 %6883
  %s6886 = sor.u32 256, 8
  %6887 = vbcast.lane.b32.xlu0 %v6881, %s6886
  %v6888 = vpop.permute.xlu0 %6887
  %v6889 = vlaneseq
  %v6890 = vshrl.u32 %v6889, 7
  %v6891 = vsub.s32 2, %v6890
  %v6892 = vrot.slane %v6209, %v6891
  %6894 = vbcast.lane.b32.xlu0 %v6892, 256
  %v6895 = vpop.permute.xlu0 %6894
  %s6897 = sor.u32 256, 8
  %6898 = vbcast.lane.b32.xlu0 %v6892, %s6897
  %v6899 = vpop.permute.xlu0 %6898
  %v6900 = vlaneseq
  %v6901 = vshrl.u32 %v6900, 7
  %v6902 = vsub.s32 3, %v6901
  %v6903 = vrot.slane %v6209, %v6902
  %6905 = vbcast.lane.b32.xlu0 %v6903, 256
  %v6906 = vpop.permute.xlu0 %6905
  %s6908 = sor.u32 256, 8
  %6909 = vbcast.lane.b32.xlu0 %v6903, %s6908
  %v6910 = vpop.permute.xlu0 %6909
  %v6911 = vlaneseq
  %v6912 = vshrl.u32 %v6911, 7
  %v6913 = vsub.s32 4, %v6912
  %v6914 = vrot.slane %v6209, %v6913
  %6916 = vbcast.lane.b32.xlu0 %v6914, 256
  %v6917 = vpop.permute.xlu0 %6916
  %s6919 = sor.u32 256, 8
  %6920 = vbcast.lane.b32.xlu0 %v6914, %s6919
  %v6921 = vpop.permute.xlu0 %6920
  %v6922 = vlaneseq
  %v6923 = vshrl.u32 %v6922, 7
  %v6924 = vsub.s32 5, %v6923
  %v6925 = vrot.slane %v6209, %v6924
  %6927 = vbcast.lane.b32.xlu0 %v6925, 256
  %v6928 = vpop.permute.xlu0 %6927
  %s6930 = sor.u32 256, 8
  %6931 = vbcast.lane.b32.xlu0 %v6925, %s6930
  %v6932 = vpop.permute.xlu0 %6931
  %v6933 = vlaneseq
  %v6934 = vshrl.u32 %v6933, 7
  %v6935 = vsub.s32 6, %v6934
  %v6936 = vrot.slane %v6209, %v6935
  %6938 = vbcast.lane.b32.xlu0 %v6936, 256
  %v6939 = vpop.permute.xlu0 %6938
  %s6941 = sor.u32 256, 8
  %6942 = vbcast.lane.b32.xlu0 %v6936, %s6941
  %v6943 = vpop.permute.xlu0 %6942
  %v6944 = vlaneseq
  %v6945 = vshrl.u32 %v6944, 7
  %v6946 = vsub.s32 7, %v6945
  %v6947 = vrot.slane %v6209, %v6946
  %6949 = vbcast.lane.b32.xlu0 %v6947, 256
  %v6950 = vpop.permute.xlu0 %6949
  %s6952 = sor.u32 256, 8
  %6953 = vbcast.lane.b32.xlu0 %v6947, %s6952
  %v6954 = vpop.permute.xlu0 %6953
  %v6955 = vlaneseq
  %v6956 = vshrl.u32 %v6955, 7
  %v6957 = vsub.s32 0, %v6956
  %v6958 = vrot.slane %v6210, %v6957
  %6960 = vbcast.lane.b32.xlu0 %v6958, 256
  %v6961 = vpop.permute.xlu0 %6960
  %s6963 = sor.u32 256, 8
  %6964 = vbcast.lane.b32.xlu0 %v6958, %s6963
  %v6965 = vpop.permute.xlu0 %6964
  %v6966 = vlaneseq
  %v6967 = vshrl.u32 %v6966, 7
  %v6968 = vsub.s32 1, %v6967
  %v6969 = vrot.slane %v6210, %v6968
  %6971 = vbcast.lane.b32.xlu0 %v6969, 256
  %v6972 = vpop.permute.xlu0 %6971
  %s6974 = sor.u32 256, 8
  %6975 = vbcast.lane.b32.xlu0 %v6969, %s6974
  %v6976 = vpop.permute.xlu0 %6975
  %v6977 = vlaneseq
  %v6978 = vshrl.u32 %v6977, 7
  %v6979 = vsub.s32 2, %v6978
  %v6980 = vrot.slane %v6210, %v6979
  %6982 = vbcast.lane.b32.xlu0 %v6980, 256
  %v6983 = vpop.permute.xlu0 %6982
  %s6985 = sor.u32 256, 8
  %6986 = vbcast.lane.b32.xlu0 %v6980, %s6985
  %v6987 = vpop.permute.xlu0 %6986
  %v6988 = vlaneseq
  %v6989 = vshrl.u32 %v6988, 7
  %v6990 = vsub.s32 3, %v6989
  %v6991 = vrot.slane %v6210, %v6990
  %6993 = vbcast.lane.b32.xlu0 %v6991, 256
  %v6994 = vpop.permute.xlu0 %6993
  %s6996 = sor.u32 256, 8
  %6997 = vbcast.lane.b32.xlu0 %v6991, %s6996
  %v6998 = vpop.permute.xlu0 %6997
  %v6999 = vlaneseq
  %v7000 = vshrl.u32 %v6999, 7
  %v7001 = vsub.s32 4, %v7000
  %v7002 = vrot.slane %v6210, %v7001
  %7004 = vbcast.lane.b32.xlu0 %v7002, 256
  %v7005 = vpop.permute.xlu0 %7004
  %s7007 = sor.u32 256, 8
  %7008 = vbcast.lane.b32.xlu0 %v7002, %s7007
  %v7009 = vpop.permute.xlu0 %7008
  %v7010 = vlaneseq
  %v7011 = vshrl.u32 %v7010, 7
  %v7012 = vsub.s32 5, %v7011
  %v7013 = vrot.slane %v6210, %v7012
  %7015 = vbcast.lane.b32.xlu0 %v7013, 256
  %v7016 = vpop.permute.xlu0 %7015
  %s7018 = sor.u32 256, 8
  %7019 = vbcast.lane.b32.xlu0 %v7013, %s7018
  %v7020 = vpop.permute.xlu0 %7019
  %v7021 = vlaneseq
  %v7022 = vshrl.u32 %v7021, 7
  %v7023 = vsub.s32 6, %v7022
  %v7024 = vrot.slane %v6210, %v7023
  %7026 = vbcast.lane.b32.xlu0 %v7024, 256
  %v7027 = vpop.permute.xlu0 %7026
  %s7029 = sor.u32 256, 8
  %7030 = vbcast.lane.b32.xlu0 %v7024, %s7029
  %v7031 = vpop.permute.xlu0 %7030
  %v7032 = vlaneseq
  %v7033 = vshrl.u32 %v7032, 7
  %v7034 = vsub.s32 7, %v7033
  %v7035 = vrot.slane %v6210, %v7034
  %7037 = vbcast.lane.b32.xlu0 %v7035, 256
  %v7038 = vpop.permute.xlu0 %7037
  %s7040 = sor.u32 256, 8
  %7041 = vbcast.lane.b32.xlu0 %v7035, %s7040
  %v7042 = vpop.permute.xlu0 %7041
  %v7043 = vmul.f32 %v6211, %v6345
  %v7044 = vmul.f32 %v6212, %v6349
  %v7045 = vmul.f32 %v6213, %v6356
  %v7046 = vmul.f32 %v6214, %v6360
  %v7047 = vmul.f32 %v6215, %v6367
  %v7048 = vmul.f32 %v6216, %v6371
  %v7049 = vmul.f32 %v6217, %v6378
  %v7050 = vmul.f32 %v6218, %v6382
  %v7051 = vmul.f32 %v6219, %v6389
  %v7052 = vmul.f32 %v6220, %v6393
  %v7053 = vmul.f32 %v6221, %v6400
  %v7054 = vmul.f32 %v6222, %v6404
  %v7055 = vmul.f32 %v6223, %v6411
  %v7056 = vmul.f32 %v6224, %v6415
  %v7057 = vmul.f32 %v6225, %v6422
  %v7058 = vmul.f32 %v6226, %v6426
  %v7059 = vmul.f32 %v6227, %v6433
  %v7060 = vmul.f32 %v6228, %v6437
  %v7061 = vmul.f32 %v6229, %v6444
  %v7062 = vmul.f32 %v6230, %v6448
  %v7063 = vmul.f32 %v6231, %v6455
  %v7064 = vmul.f32 %v6232, %v6459
  %v7065 = vmul.f32 %v6233, %v6466
  %v7066 = vmul.f32 %v6234, %v6470
  %v7067 = vmul.f32 %v6235, %v6477
  %v7068 = vmul.f32 %v6236, %v6481
  %v7069 = vmul.f32 %v6237, %v6488
  %v7070 = vmul.f32 %v6238, %v6492
  %v7071 = vmul.f32 %v6239, %v6499
  %v7072 = vmul.f32 %v6240, %v6503
  %v7073 = vmul.f32 %v6241, %v6510
  %v7074 = vmul.f32 %v6242, %v6514
  %v7075 = vmul.f32 %v6243, %v6521
  %v7076 = vmul.f32 %v6244, %v6525
  %v7077 = vmul.f32 %v6245, %v6532
  %v7078 = vmul.f32 %v6246, %v6536
  %v7079 = vmul.f32 %v6247, %v6543
  %v7080 = vmul.f32 %v6248, %v6547
  %v7081 = vmul.f32 %v6249, %v6554
  %v7082 = vmul.f32 %v6250, %v6558
  %v7083 = vmul.f32 %v6251, %v6565
  %v7084 = vmul.f32 %v6252, %v6569
  %v7085 = vmul.f32 %v6253, %v6576
  %v7086 = vmul.f32 %v6254, %v6580
  %v7087 = vmul.f32 %v6255, %v6587
  %v7088 = vmul.f32 %v6256, %v6591
  %v7089 = vmul.f32 %v6257, %v6598
  %v7090 = vmul.f32 %v6258, %v6602
  %v7091 = vmul.f32 %v6259, %v6609
  %v7092 = vmul.f32 %v6260, %v6613
  %v7093 = vmul.f32 %v6261, %v6620
  %v7094 = vmul.f32 %v6262, %v6624
  %v7095 = vmul.f32 %v6263, %v6631
  %v7096 = vmul.f32 %v6264, %v6635
  %v7097 = vmul.f32 %v6265, %v6642
  %v7098 = vmul.f32 %v6266, %v6646
  %v7099 = vmul.f32 %v6267, %v6653
  %v7100 = vmul.f32 %v6268, %v6657
  %v7101 = vmul.f32 %v6269, %v6664
  %v7102 = vmul.f32 %v6270, %v6668
  %v7103 = vmul.f32 %v6271, %v6675
  %v7104 = vmul.f32 %v6272, %v6679
  %v7105 = vmul.f32 %v6273, %v6686
  %v7106 = vmul.f32 %v6274, %v6690
  %v7107 = vmul.f32 %v6275, %v6697
  %v7108 = vmul.f32 %v6276, %v6701
  %v7109 = vmul.f32 %v6277, %v6708
  %v7110 = vmul.f32 %v6278, %v6712
  %v7111 = vmul.f32 %v6279, %v6719
  %v7112 = vmul.f32 %v6280, %v6723
  %v7113 = vmul.f32 %v6281, %v6730
  %v7114 = vmul.f32 %v6282, %v6734
  %v7115 = vmul.f32 %v6283, %v6741
  %v7116 = vmul.f32 %v6284, %v6745
  %v7117 = vmul.f32 %v6285, %v6752
  %v7118 = vmul.f32 %v6286, %v6756
  %v7119 = vmul.f32 %v6287, %v6763
  %v7120 = vmul.f32 %v6288, %v6767
  %v7121 = vmul.f32 %v6289, %v6774
  %v7122 = vmul.f32 %v6290, %v6778
  %v7123 = vmul.f32 %v6291, %v6785
  %v7124 = vmul.f32 %v6292, %v6789
  %v7125 = vmul.f32 %v6293, %v6796
  %v7126 = vmul.f32 %v6294, %v6800
  %v7127 = vmul.f32 %v6295, %v6807
  %v7128 = vmul.f32 %v6296, %v6811
  %v7129 = vmul.f32 %v6297, %v6818
  %v7130 = vmul.f32 %v6298, %v6822
  %v7131 = vmul.f32 %v6299, %v6829
  %v7132 = vmul.f32 %v6300, %v6833
  %v7133 = vmul.f32 %v6301, %v6840
  %v7134 = vmul.f32 %v6302, %v6844
  %v7135 = vmul.f32 %v6303, %v6851
  %v7136 = vmul.f32 %v6304, %v6855
  %v7137 = vmul.f32 %v6305, %v6862
  %v7138 = vmul.f32 %v6306, %v6866
  %v7139 = vmul.f32 %v6307, %v6873
  %v7140 = vmul.f32 %v6308, %v6877
  %v7141 = vmul.f32 %v6309, %v6884
  %v7142 = vmul.f32 %v6310, %v6888
  %v7143 = vmul.f32 %v6311, %v6895
  %v7144 = vmul.f32 %v6312, %v6899
  %v7145 = vmul.f32 %v6313, %v6906
  %v7146 = vmul.f32 %v6314, %v6910
  %v7147 = vmul.f32 %v6315, %v6917
  %v7148 = vmul.f32 %v6316, %v6921
  %v7149 = vmul.f32 %v6317, %v6928
  %v7150 = vmul.f32 %v6318, %v6932
  %v7151 = vmul.f32 %v6319, %v6939
  %v7152 = vmul.f32 %v6320, %v6943
  %v7153 = vmul.f32 %v6321, %v6950
  %v7154 = vmul.f32 %v6322, %v6954
  %v7155 = vmul.f32 %v6323, %v6961
  %v7156 = vmul.f32 %v6324, %v6965
  %v7157 = vmul.f32 %v6325, %v6972
  %v7158 = vmul.f32 %v6326, %v6976
  %v7159 = vmul.f32 %v6327, %v6983
  %v7160 = vmul.f32 %v6328, %v6987
  %v7161 = vmul.f32 %v6329, %v6994
  %v7162 = vmul.f32 %v6330, %v6998
  %v7163 = vmul.f32 %v6331, %v7005
  %v7164 = vmul.f32 %v6332, %v7009
  %v7165 = vmul.f32 %v6333, %v7016
  %v7166 = vmul.f32 %v6334, %v7020
  %v7167 = vmul.f32 %v6335, %v7027
  %v7168 = vmul.f32 %v6336, %v7031
  %v7169 = vmul.f32 %v6337, %v7038
  %v7170 = vmul.f32 %v6338, %v7042
  %v7179 = vcombine.high %v6149, %v6149
  %v7181 = vunpack.c.l.s4 1966171168
  %v7182 = vunpack.c.0.s8 %v7181
  %v7183 = vlaneseq
  %v7184 = vshrl.u32 %v7183, 7
  %v7185 = vsub.s32 %v7182, %v7184
  %v7186 = vrot.slane %v6149, %v7185
  %v7188 = vunpack.c.l.s4 1966171168
  %v7189 = vunpack.c.0.s8 %v7188
  %v7190 = vlaneseq
  %v7191 = vshrl.u32 %v7190, 7
  %v7192 = vsub.s32 %v7189, %v7191
  %v7193 = vrot.slane %v7179, %v7192
  %v7194 = vcombine.high %v7186, %v7186
  %v7195 = vcombine.high %v7193, %v7193
  %v7197 = vunpack.c.l.s4 1966171168
  %v7198 = vunpack.c.0.s8 %v7197
  %v7199 = vlaneseq
  %v7200 = vshrl.u32 %v7199, 7
  %v7201 = vsub.s32 %v7198, %v7200
  %v7202 = vrot.slane %v7186, %v7201
  %v7204 = vunpack.c.l.s4 1966171168
  %v7205 = vunpack.c.0.s8 %v7204
  %v7206 = vlaneseq
  %v7207 = vshrl.u32 %v7206, 7
  %v7208 = vsub.s32 %v7205, %v7207
  %v7209 = vrot.slane %v7193, %v7208
  %v7211 = vunpack.c.l.s4 1966171168
  %v7212 = vunpack.c.0.s8 %v7211
  %v7213 = vlaneseq
  %v7214 = vshrl.u32 %v7213, 7
  %v7215 = vsub.s32 %v7212, %v7214
  %v7216 = vrot.slane %v7194, %v7215
  %v7218 = vunpack.c.l.s4 1966171168
  %v7219 = vunpack.c.0.s8 %v7218
  %v7220 = vlaneseq
  %v7221 = vshrl.u32 %v7220, 7
  %v7222 = vsub.s32 %v7219, %v7221
  %v7223 = vrot.slane %v7195, %v7222
  %v7224 = vcombine.high %v7202, %v7202
  %v7225 = vcombine.high %v7209, %v7209
  %v7226 = vcombine.high %v7216, %v7216
  %v7227 = vcombine.high %v7223, %v7223
  %v7228 = vcombine.high %v6151, %v6151
  %v7230 = vunpack.c.l.s4 1966171168
  %v7231 = vunpack.c.0.s8 %v7230
  %v7232 = vlaneseq
  %v7233 = vshrl.u32 %v7232, 7
  %v7234 = vsub.s32 %v7231, %v7233
  %v7235 = vrot.slane %v6151, %v7234
  %v7237 = vunpack.c.l.s4 1966171168
  %v7238 = vunpack.c.0.s8 %v7237
  %v7239 = vlaneseq
  %v7240 = vshrl.u32 %v7239, 7
  %v7241 = vsub.s32 %v7238, %v7240
  %v7242 = vrot.slane %v7228, %v7241
  %v7243 = vcombine.high %v7235, %v7235
  %v7244 = vcombine.high %v7242, %v7242
  %v7246 = vunpack.c.l.s4 1966171168
  %v7247 = vunpack.c.0.s8 %v7246
  %v7248 = vlaneseq
  %v7249 = vshrl.u32 %v7248, 7
  %v7250 = vsub.s32 %v7247, %v7249
  %v7251 = vrot.slane %v7235, %v7250
  %v7253 = vunpack.c.l.s4 1966171168
  %v7254 = vunpack.c.0.s8 %v7253
  %v7255 = vlaneseq
  %v7256 = vshrl.u32 %v7255, 7
  %v7257 = vsub.s32 %v7254, %v7256
  %v7258 = vrot.slane %v7242, %v7257
  %v7260 = vunpack.c.l.s4 1966171168
  %v7261 = vunpack.c.0.s8 %v7260
  %v7262 = vlaneseq
  %v7263 = vshrl.u32 %v7262, 7
  %v7264 = vsub.s32 %v7261, %v7263
  %v7265 = vrot.slane %v7243, %v7264
  %v7267 = vunpack.c.l.s4 1966171168
  %v7268 = vunpack.c.0.s8 %v7267
  %v7269 = vlaneseq
  %v7270 = vshrl.u32 %v7269, 7
  %v7271 = vsub.s32 %v7268, %v7270
  %v7272 = vrot.slane %v7244, %v7271
  %v7273 = vcombine.high %v7251, %v7251
  %v7274 = vcombine.high %v7258, %v7258
  %v7275 = vcombine.high %v7265, %v7265
  %v7276 = vcombine.high %v7272, %v7272
  %v7277 = vcombine.high %v6153, %v6153
  %v7279 = vunpack.c.l.s4 1966171168
  %v7280 = vunpack.c.0.s8 %v7279
  %v7281 = vlaneseq
  %v7282 = vshrl.u32 %v7281, 7
  %v7283 = vsub.s32 %v7280, %v7282
  %v7284 = vrot.slane %v6153, %v7283
  %v7286 = vunpack.c.l.s4 1966171168
  %v7287 = vunpack.c.0.s8 %v7286
  %v7288 = vlaneseq
  %v7289 = vshrl.u32 %v7288, 7
  %v7290 = vsub.s32 %v7287, %v7289
  %v7291 = vrot.slane %v7277, %v7290
  %v7292 = vcombine.high %v7284, %v7284
  %v7293 = vcombine.high %v7291, %v7291
  %v7295 = vunpack.c.l.s4 1966171168
  %v7296 = vunpack.c.0.s8 %v7295
  %v7297 = vlaneseq
  %v7298 = vshrl.u32 %v7297, 7
  %v7299 = vsub.s32 %v7296, %v7298
  %v7300 = vrot.slane %v7284, %v7299
  %v7302 = vunpack.c.l.s4 1966171168
  %v7303 = vunpack.c.0.s8 %v7302
  %v7304 = vlaneseq
  %v7305 = vshrl.u32 %v7304, 7
  %v7306 = vsub.s32 %v7303, %v7305
  %v7307 = vrot.slane %v7291, %v7306
  %v7309 = vunpack.c.l.s4 1966171168
  %v7310 = vunpack.c.0.s8 %v7309
  %v7311 = vlaneseq
  %v7312 = vshrl.u32 %v7311, 7
  %v7313 = vsub.s32 %v7310, %v7312
  %v7314 = vrot.slane %v7292, %v7313
  %v7316 = vunpack.c.l.s4 1966171168
  %v7317 = vunpack.c.0.s8 %v7316
  %v7318 = vlaneseq
  %v7319 = vshrl.u32 %v7318, 7
  %v7320 = vsub.s32 %v7317, %v7319
  %v7321 = vrot.slane %v7293, %v7320
  %v7322 = vcombine.high %v7300, %v7300
  %v7323 = vcombine.high %v7307, %v7307
  %v7324 = vcombine.high %v7314, %v7314
  %v7325 = vcombine.high %v7321, %v7321
  %v7326 = vcombine.high %v6155, %v6155
  %v7328 = vunpack.c.l.s4 1966171168
  %v7329 = vunpack.c.0.s8 %v7328
  %v7330 = vlaneseq
  %v7331 = vshrl.u32 %v7330, 7
  %v7332 = vsub.s32 %v7329, %v7331
  %v7333 = vrot.slane %v6155, %v7332
  %v7335 = vunpack.c.l.s4 1966171168
  %v7336 = vunpack.c.0.s8 %v7335
  %v7337 = vlaneseq
  %v7338 = vshrl.u32 %v7337, 7
  %v7339 = vsub.s32 %v7336, %v7338
  %v7340 = vrot.slane %v7326, %v7339
  %v7341 = vcombine.high %v7333, %v7333
  %v7342 = vcombine.high %v7340, %v7340
  %v7344 = vunpack.c.l.s4 1966171168
  %v7345 = vunpack.c.0.s8 %v7344
  %v7346 = vlaneseq
  %v7347 = vshrl.u32 %v7346, 7
  %v7348 = vsub.s32 %v7345, %v7347
  %v7349 = vrot.slane %v7333, %v7348
  %v7351 = vunpack.c.l.s4 1966171168
  %v7352 = vunpack.c.0.s8 %v7351
  %v7353 = vlaneseq
  %v7354 = vshrl.u32 %v7353, 7
  %v7355 = vsub.s32 %v7352, %v7354
  %v7356 = vrot.slane %v7340, %v7355
  %v7358 = vunpack.c.l.s4 1966171168
  %v7359 = vunpack.c.0.s8 %v7358
  %v7360 = vlaneseq
  %v7361 = vshrl.u32 %v7360, 7
  %v7362 = vsub.s32 %v7359, %v7361
  %v7363 = vrot.slane %v7341, %v7362
  %v7365 = vunpack.c.l.s4 1966171168
  %v7366 = vunpack.c.0.s8 %v7365
  %v7367 = vlaneseq
  %v7368 = vshrl.u32 %v7367, 7
  %v7369 = vsub.s32 %v7366, %v7368
  %v7370 = vrot.slane %v7342, %v7369
  %v7371 = vcombine.high %v7349, %v7349
  %v7372 = vcombine.high %v7356, %v7356
  %v7373 = vcombine.high %v7363, %v7363
  %v7374 = vcombine.high %v7370, %v7370
  %v7375 = vcombine.high %v6157, %v6157
  %v7377 = vunpack.c.l.s4 1966171168
  %v7378 = vunpack.c.0.s8 %v7377
  %v7379 = vlaneseq
  %v7380 = vshrl.u32 %v7379, 7
  %v7381 = vsub.s32 %v7378, %v7380
  %v7382 = vrot.slane %v6157, %v7381
  %v7384 = vunpack.c.l.s4 1966171168
  %v7385 = vunpack.c.0.s8 %v7384
  %v7386 = vlaneseq
  %v7387 = vshrl.u32 %v7386, 7
  %v7388 = vsub.s32 %v7385, %v7387
  %v7389 = vrot.slane %v7375, %v7388
  %v7390 = vcombine.high %v7382, %v7382
  %v7391 = vcombine.high %v7389, %v7389
  %v7393 = vunpack.c.l.s4 1966171168
  %v7394 = vunpack.c.0.s8 %v7393
  %v7395 = vlaneseq
  %v7396 = vshrl.u32 %v7395, 7
  %v7397 = vsub.s32 %v7394, %v7396
  %v7398 = vrot.slane %v7382, %v7397
  %v7400 = vunpack.c.l.s4 1966171168
  %v7401 = vunpack.c.0.s8 %v7400
  %v7402 = vlaneseq
  %v7403 = vshrl.u32 %v7402, 7
  %v7404 = vsub.s32 %v7401, %v7403
  %v7405 = vrot.slane %v7389, %v7404
  %v7407 = vunpack.c.l.s4 1966171168
  %v7408 = vunpack.c.0.s8 %v7407
  %v7409 = vlaneseq
  %v7410 = vshrl.u32 %v7409, 7
  %v7411 = vsub.s32 %v7408, %v7410
  %v7412 = vrot.slane %v7390, %v7411
  %v7414 = vunpack.c.l.s4 1966171168
  %v7415 = vunpack.c.0.s8 %v7414
  %v7416 = vlaneseq
  %v7417 = vshrl.u32 %v7416, 7
  %v7418 = vsub.s32 %v7415, %v7417
  %v7419 = vrot.slane %v7391, %v7418
  %v7420 = vcombine.high %v7398, %v7398
  %v7421 = vcombine.high %v7405, %v7405
  %v7422 = vcombine.high %v7412, %v7412
  %v7423 = vcombine.high %v7419, %v7419
  %v7424 = vcombine.high %v6159, %v6159
  %v7426 = vunpack.c.l.s4 1966171168
  %v7427 = vunpack.c.0.s8 %v7426
  %v7428 = vlaneseq
  %v7429 = vshrl.u32 %v7428, 7
  %v7430 = vsub.s32 %v7427, %v7429
  %v7431 = vrot.slane %v6159, %v7430
  %v7433 = vunpack.c.l.s4 1966171168
  %v7434 = vunpack.c.0.s8 %v7433
  %v7435 = vlaneseq
  %v7436 = vshrl.u32 %v7435, 7
  %v7437 = vsub.s32 %v7434, %v7436
  %v7438 = vrot.slane %v7424, %v7437
  %v7439 = vcombine.high %v7431, %v7431
  %v7440 = vcombine.high %v7438, %v7438
  %v7442 = vunpack.c.l.s4 1966171168
  %v7443 = vunpack.c.0.s8 %v7442
  %v7444 = vlaneseq
  %v7445 = vshrl.u32 %v7444, 7
  %v7446 = vsub.s32 %v7443, %v7445
  %v7447 = vrot.slane %v7431, %v7446
  %v7449 = vunpack.c.l.s4 1966171168
  %v7450 = vunpack.c.0.s8 %v7449
  %v7451 = vlaneseq
  %v7452 = vshrl.u32 %v7451, 7
  %v7453 = vsub.s32 %v7450, %v7452
  %v7454 = vrot.slane %v7438, %v7453
  %v7456 = vunpack.c.l.s4 1966171168
  %v7457 = vunpack.c.0.s8 %v7456
  %v7458 = vlaneseq
  %v7459 = vshrl.u32 %v7458, 7
  %v7460 = vsub.s32 %v7457, %v7459
  %v7461 = vrot.slane %v7439, %v7460
  %v7463 = vunpack.c.l.s4 1966171168
  %v7464 = vunpack.c.0.s8 %v7463
  %v7465 = vlaneseq
  %v7466 = vshrl.u32 %v7465, 7
  %v7467 = vsub.s32 %v7464, %v7466
  %v7468 = vrot.slane %v7440, %v7467
  %v7469 = vcombine.high %v7447, %v7447
  %v7470 = vcombine.high %v7454, %v7454
  %v7471 = vcombine.high %v7461, %v7461
  %v7472 = vcombine.high %v7468, %v7468
  %v7473 = vcombine.high %v6161, %v6161
  %v7475 = vunpack.c.l.s4 1966171168
  %v7476 = vunpack.c.0.s8 %v7475
  %v7477 = vlaneseq
  %v7478 = vshrl.u32 %v7477, 7
  %v7479 = vsub.s32 %v7476, %v7478
  %v7480 = vrot.slane %v6161, %v7479
  %v7482 = vunpack.c.l.s4 1966171168
  %v7483 = vunpack.c.0.s8 %v7482
  %v7484 = vlaneseq
  %v7485 = vshrl.u32 %v7484, 7
  %v7486 = vsub.s32 %v7483, %v7485
  %v7487 = vrot.slane %v7473, %v7486
  %v7488 = vcombine.high %v7480, %v7480
  %v7489 = vcombine.high %v7487, %v7487
  %v7491 = vunpack.c.l.s4 1966171168
  %v7492 = vunpack.c.0.s8 %v7491
  %v7493 = vlaneseq
  %v7494 = vshrl.u32 %v7493, 7
  %v7495 = vsub.s32 %v7492, %v7494
  %v7496 = vrot.slane %v7480, %v7495
  %v7498 = vunpack.c.l.s4 1966171168
  %v7499 = vunpack.c.0.s8 %v7498
  %v7500 = vlaneseq
  %v7501 = vshrl.u32 %v7500, 7
  %v7502 = vsub.s32 %v7499, %v7501
  %v7503 = vrot.slane %v7487, %v7502
  %v7505 = vunpack.c.l.s4 1966171168
  %v7506 = vunpack.c.0.s8 %v7505
  %v7507 = vlaneseq
  %v7508 = vshrl.u32 %v7507, 7
  %v7509 = vsub.s32 %v7506, %v7508
  %v7510 = vrot.slane %v7488, %v7509
  %v7512 = vunpack.c.l.s4 1966171168
  %v7513 = vunpack.c.0.s8 %v7512
  %v7514 = vlaneseq
  %v7515 = vshrl.u32 %v7514, 7
  %v7516 = vsub.s32 %v7513, %v7515
  %v7517 = vrot.slane %v7489, %v7516
  %v7518 = vcombine.high %v7496, %v7496
  %v7519 = vcombine.high %v7503, %v7503
  %v7520 = vcombine.high %v7510, %v7510
  %v7521 = vcombine.high %v7517, %v7517
  %v7522 = vcombine.high %v6163, %v6163
  %v7524 = vunpack.c.l.s4 1966171168
  %v7525 = vunpack.c.0.s8 %v7524
  %v7526 = vlaneseq
  %v7527 = vshrl.u32 %v7526, 7
  %v7528 = vsub.s32 %v7525, %v7527
  %v7529 = vrot.slane %v6163, %v7528
  %v7531 = vunpack.c.l.s4 1966171168
  %v7532 = vunpack.c.0.s8 %v7531
  %v7533 = vlaneseq
  %v7534 = vshrl.u32 %v7533, 7
  %v7535 = vsub.s32 %v7532, %v7534
  %v7536 = vrot.slane %v7522, %v7535
  %v7537 = vcombine.high %v7529, %v7529
  %v7538 = vcombine.high %v7536, %v7536
  %v7540 = vunpack.c.l.s4 1966171168
  %v7541 = vunpack.c.0.s8 %v7540
  %v7542 = vlaneseq
  %v7543 = vshrl.u32 %v7542, 7
  %v7544 = vsub.s32 %v7541, %v7543
  %v7545 = vrot.slane %v7529, %v7544
  %v7547 = vunpack.c.l.s4 1966171168
  %v7548 = vunpack.c.0.s8 %v7547
  %v7549 = vlaneseq
  %v7550 = vshrl.u32 %v7549, 7
  %v7551 = vsub.s32 %v7548, %v7550
  %v7552 = vrot.slane %v7536, %v7551
  %v7554 = vunpack.c.l.s4 1966171168
  %v7555 = vunpack.c.0.s8 %v7554
  %v7556 = vlaneseq
  %v7557 = vshrl.u32 %v7556, 7
  %v7558 = vsub.s32 %v7555, %v7557
  %v7559 = vrot.slane %v7537, %v7558
  %v7561 = vunpack.c.l.s4 1966171168
  %v7562 = vunpack.c.0.s8 %v7561
  %v7563 = vlaneseq
  %v7564 = vshrl.u32 %v7563, 7
  %v7565 = vsub.s32 %v7562, %v7564
  %v7566 = vrot.slane %v7538, %v7565
  %v7567 = vcombine.high %v7545, %v7545
  %v7568 = vcombine.high %v7552, %v7552
  %v7569 = vcombine.high %v7559, %v7559
  %v7570 = vcombine.high %v7566, %v7566
  %v7571 = vlaneseq
  %v7572 = vshrl.u32 %v7571, 7
  %v7573 = vsub.s32 0, %v7572
  %v7574 = vrot.slane %v7202, %v7573
  %v7575 = vlaneseq
  %v7576 = vshrl.u32 %v7575, 7
  %v7577 = vsub.s32 0, %v7576
  %v7578 = vrot.slane %v7216, %v7577
  %v7579 = vlaneseq
  %v7580 = vshrl.u32 %v7579, 7
  %v7581 = vsub.s32 0, %v7580
  %v7582 = vrot.slane %v7224, %v7581
  %v7583 = vlaneseq
  %v7584 = vshrl.u32 %v7583, 7
  %v7585 = vsub.s32 0, %v7584
  %v7586 = vrot.slane %v7226, %v7585
  %v7587 = vlaneseq
  %v7588 = vshrl.u32 %v7587, 7
  %v7589 = vsub.s32 0, %v7588
  %v7590 = vrot.slane %v7209, %v7589
  %v7591 = vlaneseq
  %v7592 = vshrl.u32 %v7591, 7
  %v7593 = vsub.s32 0, %v7592
  %v7594 = vrot.slane %v7223, %v7593
  %v7595 = vlaneseq
  %v7596 = vshrl.u32 %v7595, 7
  %v7597 = vsub.s32 0, %v7596
  %v7598 = vrot.slane %v7225, %v7597
  %v7599 = vlaneseq
  %v7600 = vshrl.u32 %v7599, 7
  %v7601 = vsub.s32 0, %v7600
  %v7602 = vrot.slane %v7227, %v7601
  %v7603 = vlaneseq
  %v7604 = vshrl.u32 %v7603, 7
  %v7605 = vsub.s32 0, %v7604
  %v7606 = vrot.slane %v7251, %v7605
  %v7607 = vlaneseq
  %v7608 = vshrl.u32 %v7607, 7
  %v7609 = vsub.s32 0, %v7608
  %v7610 = vrot.slane %v7265, %v7609
  %v7611 = vlaneseq
  %v7612 = vshrl.u32 %v7611, 7
  %v7613 = vsub.s32 0, %v7612
  %v7614 = vrot.slane %v7273, %v7613
  %v7615 = vlaneseq
  %v7616 = vshrl.u32 %v7615, 7
  %v7617 = vsub.s32 0, %v7616
  %v7618 = vrot.slane %v7275, %v7617
  %v7619 = vlaneseq
  %v7620 = vshrl.u32 %v7619, 7
  %v7621 = vsub.s32 0, %v7620
  %v7622 = vrot.slane %v7258, %v7621
  %v7623 = vlaneseq
  %v7624 = vshrl.u32 %v7623, 7
  %v7625 = vsub.s32 0, %v7624
  %v7626 = vrot.slane %v7272, %v7625
  %v7627 = vlaneseq
  %v7628 = vshrl.u32 %v7627, 7
  %v7629 = vsub.s32 0, %v7628
  %v7630 = vrot.slane %v7274, %v7629
  %v7631 = vlaneseq
  %v7632 = vshrl.u32 %v7631, 7
  %v7633 = vsub.s32 0, %v7632
  %v7634 = vrot.slane %v7276, %v7633
  %v7635 = vlaneseq
  %v7636 = vshrl.u32 %v7635, 7
  %v7637 = vsub.s32 0, %v7636
  %v7638 = vrot.slane %v7300, %v7637
  %v7639 = vlaneseq
  %v7640 = vshrl.u32 %v7639, 7
  %v7641 = vsub.s32 0, %v7640
  %v7642 = vrot.slane %v7314, %v7641
  %v7643 = vlaneseq
  %v7644 = vshrl.u32 %v7643, 7
  %v7645 = vsub.s32 0, %v7644
  %v7646 = vrot.slane %v7322, %v7645
  %v7647 = vlaneseq
  %v7648 = vshrl.u32 %v7647, 7
  %v7649 = vsub.s32 0, %v7648
  %v7650 = vrot.slane %v7324, %v7649
  %v7651 = vlaneseq
  %v7652 = vshrl.u32 %v7651, 7
  %v7653 = vsub.s32 0, %v7652
  %v7654 = vrot.slane %v7307, %v7653
  %v7655 = vlaneseq
  %v7656 = vshrl.u32 %v7655, 7
  %v7657 = vsub.s32 0, %v7656
  %v7658 = vrot.slane %v7321, %v7657
  %v7659 = vlaneseq
  %v7660 = vshrl.u32 %v7659, 7
  %v7661 = vsub.s32 0, %v7660
  %v7662 = vrot.slane %v7323, %v7661
  %v7663 = vlaneseq
  %v7664 = vshrl.u32 %v7663, 7
  %v7665 = vsub.s32 0, %v7664
  %v7666 = vrot.slane %v7325, %v7665
  %v7667 = vlaneseq
  %v7668 = vshrl.u32 %v7667, 7
  %v7669 = vsub.s32 0, %v7668
  %v7670 = vrot.slane %v7349, %v7669
  %v7671 = vlaneseq
  %v7672 = vshrl.u32 %v7671, 7
  %v7673 = vsub.s32 0, %v7672
  %v7674 = vrot.slane %v7363, %v7673
  %v7675 = vlaneseq
  %v7676 = vshrl.u32 %v7675, 7
  %v7677 = vsub.s32 0, %v7676
  %v7678 = vrot.slane %v7371, %v7677
  %v7679 = vlaneseq
  %v7680 = vshrl.u32 %v7679, 7
  %v7681 = vsub.s32 0, %v7680
  %v7682 = vrot.slane %v7373, %v7681
  %v7683 = vlaneseq
  %v7684 = vshrl.u32 %v7683, 7
  %v7685 = vsub.s32 0, %v7684
  %v7686 = vrot.slane %v7356, %v7685
  %v7687 = vlaneseq
  %v7688 = vshrl.u32 %v7687, 7
  %v7689 = vsub.s32 0, %v7688
  %v7690 = vrot.slane %v7370, %v7689
  %v7691 = vlaneseq
  %v7692 = vshrl.u32 %v7691, 7
  %v7693 = vsub.s32 0, %v7692
  %v7694 = vrot.slane %v7372, %v7693
  %v7695 = vlaneseq
  %v7696 = vshrl.u32 %v7695, 7
  %v7697 = vsub.s32 0, %v7696
  %v7698 = vrot.slane %v7374, %v7697
  %v7699 = vlaneseq
  %v7700 = vshrl.u32 %v7699, 7
  %v7701 = vsub.s32 0, %v7700
  %v7702 = vrot.slane %v7398, %v7701
  %v7703 = vlaneseq
  %v7704 = vshrl.u32 %v7703, 7
  %v7705 = vsub.s32 0, %v7704
  %v7706 = vrot.slane %v7412, %v7705
  %v7707 = vlaneseq
  %v7708 = vshrl.u32 %v7707, 7
  %v7709 = vsub.s32 0, %v7708
  %v7710 = vrot.slane %v7420, %v7709
  %v7711 = vlaneseq
  %v7712 = vshrl.u32 %v7711, 7
  %v7713 = vsub.s32 0, %v7712
  %v7714 = vrot.slane %v7422, %v7713
  %v7715 = vlaneseq
  %v7716 = vshrl.u32 %v7715, 7
  %v7717 = vsub.s32 0, %v7716
  %v7718 = vrot.slane %v7405, %v7717
  %v7719 = vlaneseq
  %v7720 = vshrl.u32 %v7719, 7
  %v7721 = vsub.s32 0, %v7720
  %v7722 = vrot.slane %v7419, %v7721
  %v7723 = vlaneseq
  %v7724 = vshrl.u32 %v7723, 7
  %v7725 = vsub.s32 0, %v7724
  %v7726 = vrot.slane %v7421, %v7725
  %v7727 = vlaneseq
  %v7728 = vshrl.u32 %v7727, 7
  %v7729 = vsub.s32 0, %v7728
  %v7730 = vrot.slane %v7423, %v7729
  %v7731 = vlaneseq
  %v7732 = vshrl.u32 %v7731, 7
  %v7733 = vsub.s32 0, %v7732
  %v7734 = vrot.slane %v7447, %v7733
  %v7735 = vlaneseq
  %v7736 = vshrl.u32 %v7735, 7
  %v7737 = vsub.s32 0, %v7736
  %v7738 = vrot.slane %v7461, %v7737
  %v7739 = vlaneseq
  %v7740 = vshrl.u32 %v7739, 7
  %v7741 = vsub.s32 0, %v7740
  %v7742 = vrot.slane %v7469, %v7741
  %v7743 = vlaneseq
  %v7744 = vshrl.u32 %v7743, 7
  %v7745 = vsub.s32 0, %v7744
  %v7746 = vrot.slane %v7471, %v7745
  %v7747 = vlaneseq
  %v7748 = vshrl.u32 %v7747, 7
  %v7749 = vsub.s32 0, %v7748
  %v7750 = vrot.slane %v7454, %v7749
  %v7751 = vlaneseq
  %v7752 = vshrl.u32 %v7751, 7
  %v7753 = vsub.s32 0, %v7752
  %v7754 = vrot.slane %v7468, %v7753
  %v7755 = vlaneseq
  %v7756 = vshrl.u32 %v7755, 7
  %v7757 = vsub.s32 0, %v7756
  %v7758 = vrot.slane %v7470, %v7757
  %v7759 = vlaneseq
  %v7760 = vshrl.u32 %v7759, 7
  %v7761 = vsub.s32 0, %v7760
  %v7762 = vrot.slane %v7472, %v7761
  %v7763 = vlaneseq
  %v7764 = vshrl.u32 %v7763, 7
  %v7765 = vsub.s32 0, %v7764
  %v7766 = vrot.slane %v7496, %v7765
  %v7767 = vlaneseq
  %v7768 = vshrl.u32 %v7767, 7
  %v7769 = vsub.s32 0, %v7768
  %v7770 = vrot.slane %v7510, %v7769
  %v7771 = vlaneseq
  %v7772 = vshrl.u32 %v7771, 7
  %v7773 = vsub.s32 0, %v7772
  %v7774 = vrot.slane %v7518, %v7773
  %v7775 = vlaneseq
  %v7776 = vshrl.u32 %v7775, 7
  %v7777 = vsub.s32 0, %v7776
  %v7778 = vrot.slane %v7520, %v7777
  %v7779 = vlaneseq
  %v7780 = vshrl.u32 %v7779, 7
  %v7781 = vsub.s32 0, %v7780
  %v7782 = vrot.slane %v7503, %v7781
  %v7783 = vlaneseq
  %v7784 = vshrl.u32 %v7783, 7
  %v7785 = vsub.s32 0, %v7784
  %v7786 = vrot.slane %v7517, %v7785
  %v7787 = vlaneseq
  %v7788 = vshrl.u32 %v7787, 7
  %v7789 = vsub.s32 0, %v7788
  %v7790 = vrot.slane %v7519, %v7789
  %v7791 = vlaneseq
  %v7792 = vshrl.u32 %v7791, 7
  %v7793 = vsub.s32 0, %v7792
  %v7794 = vrot.slane %v7521, %v7793
  %v7795 = vlaneseq
  %v7796 = vshrl.u32 %v7795, 7
  %v7797 = vsub.s32 0, %v7796
  %v7798 = vrot.slane %v7545, %v7797
  %v7799 = vlaneseq
  %v7800 = vshrl.u32 %v7799, 7
  %v7801 = vsub.s32 0, %v7800
  %v7802 = vrot.slane %v7559, %v7801
  %v7803 = vlaneseq
  %v7804 = vshrl.u32 %v7803, 7
  %v7805 = vsub.s32 0, %v7804
  %v7806 = vrot.slane %v7567, %v7805
  %v7807 = vlaneseq
  %v7808 = vshrl.u32 %v7807, 7
  %v7809 = vsub.s32 0, %v7808
  %v7810 = vrot.slane %v7569, %v7809
  %v7811 = vlaneseq
  %v7812 = vshrl.u32 %v7811, 7
  %v7813 = vsub.s32 0, %v7812
  %v7814 = vrot.slane %v7552, %v7813
  %v7815 = vlaneseq
  %v7816 = vshrl.u32 %v7815, 7
  %v7817 = vsub.s32 0, %v7816
  %v7818 = vrot.slane %v7566, %v7817
  %v7819 = vlaneseq
  %v7820 = vshrl.u32 %v7819, 7
  %v7821 = vsub.s32 0, %v7820
  %v7822 = vrot.slane %v7568, %v7821
  %v7823 = vlaneseq
  %v7824 = vshrl.u32 %v7823, 7
  %v7825 = vsub.s32 0, %v7824
  %v7826 = vrot.slane %v7570, %v7825
  %v7891 = vmul.f32 %v7043, %v7574
  %v7892 = vmul.f32 %v7044, %v7574
  %v7893 = vmul.f32 %v7045, %v7578
  %v7894 = vmul.f32 %v7046, %v7578
  %v7895 = vmul.f32 %v7047, %v7582
  %v7896 = vmul.f32 %v7048, %v7582
  %v7897 = vmul.f32 %v7049, %v7586
  %v7898 = vmul.f32 %v7050, %v7586
  %v7899 = vmul.f32 %v7051, %v7590
  %v7900 = vmul.f32 %v7052, %v7590
  %v7901 = vmul.f32 %v7053, %v7594
  %v7902 = vmul.f32 %v7054, %v7594
  %v7903 = vmul.f32 %v7055, %v7598
  %v7904 = vmul.f32 %v7056, %v7598
  %v7905 = vmul.f32 %v7057, %v7602
  %v7906 = vmul.f32 %v7058, %v7602
  %v7907 = vmul.f32 %v7059, %v7606
  %v7908 = vmul.f32 %v7060, %v7606
  %v7909 = vmul.f32 %v7061, %v7610
  %v7910 = vmul.f32 %v7062, %v7610
  %v7911 = vmul.f32 %v7063, %v7614
  %v7912 = vmul.f32 %v7064, %v7614
  %v7913 = vmul.f32 %v7065, %v7618
  %v7914 = vmul.f32 %v7066, %v7618
  %v7915 = vmul.f32 %v7067, %v7622
  %v7916 = vmul.f32 %v7068, %v7622
  %v7917 = vmul.f32 %v7069, %v7626
  %v7918 = vmul.f32 %v7070, %v7626
  %v7919 = vmul.f32 %v7071, %v7630
  %v7920 = vmul.f32 %v7072, %v7630
  %v7921 = vmul.f32 %v7073, %v7634
  %v7922 = vmul.f32 %v7074, %v7634
  %v7923 = vmul.f32 %v7075, %v7638
  %v7924 = vmul.f32 %v7076, %v7638
  %v7925 = vmul.f32 %v7077, %v7642
  %v7926 = vmul.f32 %v7078, %v7642
  %v7927 = vmul.f32 %v7079, %v7646
  %v7928 = vmul.f32 %v7080, %v7646
  %v7929 = vmul.f32 %v7081, %v7650
  %v7930 = vmul.f32 %v7082, %v7650
  %v7931 = vmul.f32 %v7083, %v7654
  %v7932 = vmul.f32 %v7084, %v7654
  %v7933 = vmul.f32 %v7085, %v7658
  %v7934 = vmul.f32 %v7086, %v7658
  %v7935 = vmul.f32 %v7087, %v7662
  %v7936 = vmul.f32 %v7088, %v7662
  %v7937 = vmul.f32 %v7089, %v7666
  %v7938 = vmul.f32 %v7090, %v7666
  %v7939 = vmul.f32 %v7091, %v7670
  %v7940 = vmul.f32 %v7092, %v7670
  %v7941 = vmul.f32 %v7093, %v7674
  %v7942 = vmul.f32 %v7094, %v7674
  %v7943 = vmul.f32 %v7095, %v7678
  %v7944 = vmul.f32 %v7096, %v7678
  %v7945 = vmul.f32 %v7097, %v7682
  %v7946 = vmul.f32 %v7098, %v7682
  %v7947 = vmul.f32 %v7099, %v7686
  %v7948 = vmul.f32 %v7100, %v7686
  %v7949 = vmul.f32 %v7101, %v7690
  %v7950 = vmul.f32 %v7102, %v7690
  %v7951 = vmul.f32 %v7103, %v7694
  %v7952 = vmul.f32 %v7104, %v7694
  %v7953 = vmul.f32 %v7105, %v7698
  %v7954 = vmul.f32 %v7106, %v7698
  %v7955 = vmul.f32 %v7107, %v7702
  %v7956 = vmul.f32 %v7108, %v7702
  %v7957 = vmul.f32 %v7109, %v7706
  %v7958 = vmul.f32 %v7110, %v7706
  %v7959 = vmul.f32 %v7111, %v7710
  %v7960 = vmul.f32 %v7112, %v7710
  %v7961 = vmul.f32 %v7113, %v7714
  %v7962 = vmul.f32 %v7114, %v7714
  %v7963 = vmul.f32 %v7115, %v7718
  %v7964 = vmul.f32 %v7116, %v7718
  %v7965 = vmul.f32 %v7117, %v7722
  %v7966 = vmul.f32 %v7118, %v7722
  %v7967 = vmul.f32 %v7119, %v7726
  %v7968 = vmul.f32 %v7120, %v7726
  %v7969 = vmul.f32 %v7121, %v7730
  %v7970 = vmul.f32 %v7122, %v7730
  %v7971 = vmul.f32 %v7123, %v7734
  %v7972 = vmul.f32 %v7124, %v7734
  %v7973 = vmul.f32 %v7125, %v7738
  %v7974 = vmul.f32 %v7126, %v7738
  %v7975 = vmul.f32 %v7127, %v7742
  %v7976 = vmul.f32 %v7128, %v7742
  %v7977 = vmul.f32 %v7129, %v7746
  %v7978 = vmul.f32 %v7130, %v7746
  %v7979 = vmul.f32 %v7131, %v7750
  %v7980 = vmul.f32 %v7132, %v7750
  %v7981 = vmul.f32 %v7133, %v7754
  %v7982 = vmul.f32 %v7134, %v7754
  %v7983 = vmul.f32 %v7135, %v7758
  %v7984 = vmul.f32 %v7136, %v7758
  %v7985 = vmul.f32 %v7137, %v7762
  %v7986 = vmul.f32 %v7138, %v7762
  %v7987 = vmul.f32 %v7139, %v7766
  %v7988 = vmul.f32 %v7140, %v7766
  %v7989 = vmul.f32 %v7141, %v7770
  %v7990 = vmul.f32 %v7142, %v7770
  %v7991 = vmul.f32 %v7143, %v7774
  %v7992 = vmul.f32 %v7144, %v7774
  %v7993 = vmul.f32 %v7145, %v7778
  %v7994 = vmul.f32 %v7146, %v7778
  %v7995 = vmul.f32 %v7147, %v7782
  %v7996 = vmul.f32 %v7148, %v7782
  %v7997 = vmul.f32 %v7149, %v7786
  %v7998 = vmul.f32 %v7150, %v7786
  %v7999 = vmul.f32 %v7151, %v7790
  %v8000 = vmul.f32 %v7152, %v7790
  %v8001 = vmul.f32 %v7153, %v7794
  %v8002 = vmul.f32 %v7154, %v7794
  %v8003 = vmul.f32 %v7155, %v7798
  %v8004 = vmul.f32 %v7156, %v7798
  %v8005 = vmul.f32 %v7157, %v7802
  %v8006 = vmul.f32 %v7158, %v7802
  %v8007 = vmul.f32 %v7159, %v7806
  %v8008 = vmul.f32 %v7160, %v7806
  %v8009 = vmul.f32 %v7161, %v7810
  %v8010 = vmul.f32 %v7162, %v7810
  %v8011 = vmul.f32 %v7163, %v7814
  %v8012 = vmul.f32 %v7164, %v7814
  %v8013 = vmul.f32 %v7165, %v7818
  %v8014 = vmul.f32 %v7166, %v7818
  %v8015 = vmul.f32 %v7167, %v7822
  %v8016 = vmul.f32 %v7168, %v7822
  %v8017 = vmul.f32 %v7169, %v7826
  %v8018 = vmul.f32 %v7170, %v7826
  %8019 = vst.msk [vmem:[%s9] sm:$0xff] %vm160, %v7891
  %8020 = vst.msk [vmem:[%s9 + $0x8] sm:$0xff] %vm160, %v7892
  %8021 = vst.msk [vmem:[%s9 + $0x10] sm:$0xff] %vm160, %v7893
  %8022 = vst.msk [vmem:[%s9 + $0x18] sm:$0xff] %vm160, %v7894
  %8023 = vst.msk [vmem:[%s9 + $0x20] sm:$0xff] %vm160, %v7895
  %8024 = vst.msk [vmem:[%s9 + $0x28] sm:$0xff] %vm160, %v7896
  %8025 = vst.msk [vmem:[%s9 + $0x30] sm:$0xff] %vm160, %v7897
  %8026 = vst.msk [vmem:[%s9 + $0x38] sm:$0xff] %vm160, %v7898
  %8027 = vst.msk [vmem:[%s9 + $0x40] sm:$0xff] %vm160, %v7899
  %8028 = vst.msk [vmem:[%s9 + $0x48] sm:$0xff] %vm160, %v7900
  %8029 = vst.msk [vmem:[%s9 + $0x50] sm:$0xff] %vm160, %v7901
  %8030 = vst.msk [vmem:[%s9 + $0x58] sm:$0xff] %vm160, %v7902
  %8031 = vst.msk [vmem:[%s9 + $0x60] sm:$0xff] %vm160, %v7903
  %8032 = vst.msk [vmem:[%s9 + $0x68] sm:$0xff] %vm160, %v7904
  %8033 = vst.msk [vmem:[%s9 + $0x70] sm:$0xff] %vm160, %v7905
  %8034 = vst.msk [vmem:[%s9 + $0x78] sm:$0xff] %vm160, %v7906
  %8035 = vst.msk [vmem:[%s9 + $0x80] sm:$0xff] %vm160, %v7907
  %8036 = vst.msk [vmem:[%s9 + $0x88] sm:$0xff] %vm160, %v7908
  %8037 = vst.msk [vmem:[%s9 + $0x90] sm:$0xff] %vm160, %v7909
  %8038 = vst.msk [vmem:[%s9 + $0x98] sm:$0xff] %vm160, %v7910
  %8039 = vst.msk [vmem:[%s9 + $0xa0] sm:$0xff] %vm160, %v7911
  %8040 = vst.msk [vmem:[%s9 + $0xa8] sm:$0xff] %vm160, %v7912
  %8041 = vst.msk [vmem:[%s9 + $0xb0] sm:$0xff] %vm160, %v7913
  %8042 = vst.msk [vmem:[%s9 + $0xb8] sm:$0xff] %vm160, %v7914
  %8043 = vst.msk [vmem:[%s9 + $0xc0] sm:$0xff] %vm160, %v7915
  %8044 = vst.msk [vmem:[%s9 + $0xc8] sm:$0xff] %vm160, %v7916
  %8045 = vst.msk [vmem:[%s9 + $0xd0] sm:$0xff] %vm160, %v7917
  %8046 = vst.msk [vmem:[%s9 + $0xd8] sm:$0xff] %vm160, %v7918
  %8047 = vst.msk [vmem:[%s9 + $0xe0] sm:$0xff] %vm160, %v7919
  %8048 = vst.msk [vmem:[%s9 + $0xe8] sm:$0xff] %vm160, %v7920
  %8049 = vst.msk [vmem:[%s9 + $0xf0] sm:$0xff] %vm160, %v7921
  %8050 = vst.msk [vmem:[%s9 + $0xf8] sm:$0xff] %vm160, %v7922
  %8051 = vst.msk [vmem:[%s9 + $0x100] sm:$0xff] %vm160, %v7923
  %8052 = vst.msk [vmem:[%s9 + $0x108] sm:$0xff] %vm160, %v7924
  %8053 = vst.msk [vmem:[%s9 + $0x110] sm:$0xff] %vm160, %v7925
  %8054 = vst.msk [vmem:[%s9 + $0x118] sm:$0xff] %vm160, %v7926
  %8055 = vst.msk [vmem:[%s9 + $0x120] sm:$0xff] %vm160, %v7927
  %8056 = vst.msk [vmem:[%s9 + $0x128] sm:$0xff] %vm160, %v7928
  %8057 = vst.msk [vmem:[%s9 + $0x130] sm:$0xff] %vm160, %v7929
  %8058 = vst.msk [vmem:[%s9 + $0x138] sm:$0xff] %vm160, %v7930
  %8059 = vst.msk [vmem:[%s9 + $0x140] sm:$0xff] %vm160, %v7931
  %8060 = vst.msk [vmem:[%s9 + $0x148] sm:$0xff] %vm160, %v7932
  %8061 = vst.msk [vmem:[%s9 + $0x150] sm:$0xff] %vm160, %v7933
  %8062 = vst.msk [vmem:[%s9 + $0x158] sm:$0xff] %vm160, %v7934
  %8063 = vst.msk [vmem:[%s9 + $0x160] sm:$0xff] %vm160, %v7935
  %8064 = vst.msk [vmem:[%s9 + $0x168] sm:$0xff] %vm160, %v7936
  %8065 = vst.msk [vmem:[%s9 + $0x170] sm:$0xff] %vm160, %v7937
  %8066 = vst.msk [vmem:[%s9 + $0x178] sm:$0xff] %vm160, %v7938
  %8067 = vst.msk [vmem:[%s9 + $0x180] sm:$0xff] %vm160, %v7939
  %8068 = vst.msk [vmem:[%s9 + $0x188] sm:$0xff] %vm160, %v7940
  %8069 = vst.msk [vmem:[%s9 + $0x190] sm:$0xff] %vm160, %v7941
  %8070 = vst.msk [vmem:[%s9 + $0x198] sm:$0xff] %vm160, %v7942
  %8071 = vst.msk [vmem:[%s9 + $0x1a0] sm:$0xff] %vm160, %v7943
  %8072 = vst.msk [vmem:[%s9 + $0x1a8] sm:$0xff] %vm160, %v7944
  %8073 = vst.msk [vmem:[%s9 + $0x1b0] sm:$0xff] %vm160, %v7945
  %8074 = vst.msk [vmem:[%s9 + $0x1b8] sm:$0xff] %vm160, %v7946
  %8075 = vst.msk [vmem:[%s9 + $0x1c0] sm:$0xff] %vm160, %v7947
  %8076 = vst.msk [vmem:[%s9 + $0x1c8] sm:$0xff] %vm160, %v7948
  %8077 = vst.msk [vmem:[%s9 + $0x1d0] sm:$0xff] %vm160, %v7949
  %8078 = vst.msk [vmem:[%s9 + $0x1d8] sm:$0xff] %vm160, %v7950
  %8079 = vst.msk [vmem:[%s9 + $0x1e0] sm:$0xff] %vm160, %v7951
  %8080 = vst.msk [vmem:[%s9 + $0x1e8] sm:$0xff] %vm160, %v7952
  %8081 = vst.msk [vmem:[%s9 + $0x1f0] sm:$0xff] %vm160, %v7953
  %8082 = vst.msk [vmem:[%s9 + $0x1f8] sm:$0xff] %vm160, %v7954
  %8083 = vst.msk [vmem:[%s9 + $0x200] sm:$0xff] %vm160, %v7955
  %8084 = vst.msk [vmem:[%s9 + $0x208] sm:$0xff] %vm160, %v7956
  %8085 = vst.msk [vmem:[%s9 + $0x210] sm:$0xff] %vm160, %v7957
  %8086 = vst.msk [vmem:[%s9 + $0x218] sm:$0xff] %vm160, %v7958
  %8087 = vst.msk [vmem:[%s9 + $0x220] sm:$0xff] %vm160, %v7959
  %8088 = vst.msk [vmem:[%s9 + $0x228] sm:$0xff] %vm160, %v7960
  %8089 = vst.msk [vmem:[%s9 + $0x230] sm:$0xff] %vm160, %v7961
  %8090 = vst.msk [vmem:[%s9 + $0x238] sm:$0xff] %vm160, %v7962
  %8091 = vst.msk [vmem:[%s9 + $0x240] sm:$0xff] %vm160, %v7963
  %8092 = vst.msk [vmem:[%s9 + $0x248] sm:$0xff] %vm160, %v7964
  %8093 = vst.msk [vmem:[%s9 + $0x250] sm:$0xff] %vm160, %v7965
  %8094 = vst.msk [vmem:[%s9 + $0x258] sm:$0xff] %vm160, %v7966
  %8095 = vst.msk [vmem:[%s9 + $0x260] sm:$0xff] %vm160, %v7967
  %8096 = vst.msk [vmem:[%s9 + $0x268] sm:$0xff] %vm160, %v7968
  %8097 = vst.msk [vmem:[%s9 + $0x270] sm:$0xff] %vm160, %v7969
  %8098 = vst.msk [vmem:[%s9 + $0x278] sm:$0xff] %vm160, %v7970
  %8099 = vst.msk [vmem:[%s9 + $0x280] sm:$0xff] %vm160, %v7971
  %8100 = vst.msk [vmem:[%s9 + $0x288] sm:$0xff] %vm160, %v7972
  %8101 = vst.msk [vmem:[%s9 + $0x290] sm:$0xff] %vm160, %v7973
  %8102 = vst.msk [vmem:[%s9 + $0x298] sm:$0xff] %vm160, %v7974
  %8103 = vst.msk [vmem:[%s9 + $0x2a0] sm:$0xff] %vm160, %v7975
  %8104 = vst.msk [vmem:[%s9 + $0x2a8] sm:$0xff] %vm160, %v7976
  %8105 = vst.msk [vmem:[%s9 + $0x2b0] sm:$0xff] %vm160, %v7977
  %8106 = vst.msk [vmem:[%s9 + $0x2b8] sm:$0xff] %vm160, %v7978
  %8107 = vst.msk [vmem:[%s9 + $0x2c0] sm:$0xff] %vm160, %v7979
  %8108 = vst.msk [vmem:[%s9 + $0x2c8] sm:$0xff] %vm160, %v7980
  %8109 = vst.msk [vmem:[%s9 + $0x2d0] sm:$0xff] %vm160, %v7981
  %8110 = vst.msk [vmem:[%s9 + $0x2d8] sm:$0xff] %vm160, %v7982
  %8111 = vst.msk [vmem:[%s9 + $0x2e0] sm:$0xff] %vm160, %v7983
  %8112 = vst.msk [vmem:[%s9 + $0x2e8] sm:$0xff] %vm160, %v7984
  %8113 = vst.msk [vmem:[%s9 + $0x2f0] sm:$0xff] %vm160, %v7985
  %8114 = vst.msk [vmem:[%s9 + $0x2f8] sm:$0xff] %vm160, %v7986
  %8115 = vst.msk [vmem:[%s9 + $0x300] sm:$0xff] %vm160, %v7987
  %8116 = vst.msk [vmem:[%s9 + $0x308] sm:$0xff] %vm160, %v7988
  %8117 = vst.msk [vmem:[%s9 + $0x310] sm:$0xff] %vm160, %v7989
  %8118 = vst.msk [vmem:[%s9 + $0x318] sm:$0xff] %vm160, %v7990
  %8119 = vst.msk [vmem:[%s9 + $0x320] sm:$0xff] %vm160, %v7991
  %8120 = vst.msk [vmem:[%s9 + $0x328] sm:$0xff] %vm160, %v7992
  %8121 = vst.msk [vmem:[%s9 + $0x330] sm:$0xff] %vm160, %v7993
  %8122 = vst.msk [vmem:[%s9 + $0x338] sm:$0xff] %vm160, %v7994
  %8123 = vst.msk [vmem:[%s9 + $0x340] sm:$0xff] %vm160, %v7995
  %8124 = vst.msk [vmem:[%s9 + $0x348] sm:$0xff] %vm160, %v7996
  %8125 = vst.msk [vmem:[%s9 + $0x350] sm:$0xff] %vm160, %v7997
  %8126 = vst.msk [vmem:[%s9 + $0x358] sm:$0xff] %vm160, %v7998
  %8127 = vst.msk [vmem:[%s9 + $0x360] sm:$0xff] %vm160, %v7999
  %8128 = vst.msk [vmem:[%s9 + $0x368] sm:$0xff] %vm160, %v8000
  %8129 = vst.msk [vmem:[%s9 + $0x370] sm:$0xff] %vm160, %v8001
  %8130 = vst.msk [vmem:[%s9 + $0x378] sm:$0xff] %vm160, %v8002
  %8131 = vst.msk [vmem:[%s9 + $0x380] sm:$0xff] %vm160, %v8003
  %8132 = vst.msk [vmem:[%s9 + $0x388] sm:$0xff] %vm160, %v8004
  %8133 = vst.msk [vmem:[%s9 + $0x390] sm:$0xff] %vm160, %v8005
  %8134 = vst.msk [vmem:[%s9 + $0x398] sm:$0xff] %vm160, %v8006
  %8135 = vst.msk [vmem:[%s9 + $0x3a0] sm:$0xff] %vm160, %v8007
  %8136 = vst.msk [vmem:[%s9 + $0x3a8] sm:$0xff] %vm160, %v8008
  %8137 = vst.msk [vmem:[%s9 + $0x3b0] sm:$0xff] %vm160, %v8009
  %8138 = vst.msk [vmem:[%s9 + $0x3b8] sm:$0xff] %vm160, %v8010
  %8139 = vst.msk [vmem:[%s9 + $0x3c0] sm:$0xff] %vm160, %v8011
  %8140 = vst.msk [vmem:[%s9 + $0x3c8] sm:$0xff] %vm160, %v8012
  %8141 = vst.msk [vmem:[%s9 + $0x3d0] sm:$0xff] %vm160, %v8013
  %8142 = vst.msk [vmem:[%s9 + $0x3d8] sm:$0xff] %vm160, %v8014
  %8143 = vst.msk [vmem:[%s9 + $0x3e0] sm:$0xff] %vm160, %v8015
  %8144 = vst.msk [vmem:[%s9 + $0x3e8] sm:$0xff] %vm160, %v8016
  %8145 = vst.msk [vmem:[%s9 + $0x3f0] sm:$0xff] %vm160, %v8017
  %8146 = vst.msk [vmem:[%s9 + $0x3f8] sm:$0xff] %vm160, %v8018
  // Predicated region
  $region38: #{tpu_custom_call.1} parent=0 // pred_check
    _
  $region39: #{tpu_custom_call.1} parent=0 // pred_check_branch
    %8148 = sbr.rel (0) target = $region41
  $region40: #{tpu_custom_call.1} parent=0 // pred_region
    _
  $region41: #{tpu_custom_call.1} parent=0 // pred_fallthru
    _
  // Predicated region
  $region42: #{tpu_custom_call.1} parent=0 // pred_check
    _
  $region43: #{tpu_custom_call.1} parent=0 // pred_check_branch
    %8150 = sbr.rel (0) target = $region45
  $region44: #{tpu_custom_call.1} parent=0 // pred_region
    _
  $region45: #{tpu_custom_call.1} parent=0 // pred_fallthru
    _

</llo_original>
